<compile_context>
chip_gen: v6e
topology: v6e:2x2x1
jax: 0.10.0
libtpu: 0.0.40
codegen_flags: <defaults>
</compile_context>

<pallas_src>
import jax
import jax.numpy as jnp
from jax.experimental import pallas as pl
from jax.experimental.pallas import tpu as pltpu

HIDDEN = 96      # output channels of each conv (as in the PyTorch module)
HID_PAD = 128    # hidden channels padded up to one full 128-lane vreg
BN_EPS = 1e-5


def dense_block_kernel(p1_ref, w1_ref, w2_ref, w3_ref,
                       s1_ref, s2_ref, s3_ref,
                       o_ref, xp_ref):
    """Fused conv1->conv2->conv3 (3x3, stride 1, 'same') + folded BN + ReLU +
    channel concat for one batch element.

    p1_ref:        (1, H*W, 9*Cin)   bf16 im2col patch of the input (built in XLA)
    w1_ref:        (9*Cin, 128)      bf16 im2col weights (BN scale folded in)
    w{2,3}_ref:    (9*128, 128)      bf16 im2col weights (Cin padded 96->128)
    s{1,2,3}_ref:  (1, 128)          f32 per-channel shift (conv bias/BN folded)
    o_ref:         (1, 288, H*W)     f32, NCHW-flat concat(out1, out2, out3)
    xp_ref:        (H+2, W+2, 128)   bf16 zero-bordered activation scratch,
                                     reused for conv2 and conv3 inputs
    """
    Hp2, Wp2, C = xp_ref.shape
    H, W = Hp2 - 2, Wp2 - 2
    HW = H * W
    hid = o_ref.shape[1] // 3          # 96 real channels per conv
    zdt = xp_ref.dtype

    # Zero ONLY the 1-pixel border (the interior is fully overwritten below).
    # Done every grid step so it stays correct when the parallel axis is split
    # across TensorCores (each core has its own uninitialized scratch).
    xp_ref[0:1, :, :] = jnp.zeros((1, Wp2, C), zdt)
    xp_ref[H + 1:H + 2, :, :] = jnp.zeros((1, Wp2, C), zdt)
    xp_ref[:, 0:1, :] = jnp.zeros((Hp2, 1, C), zdt)
    xp_ref[:, W + 1:W + 2, :] = jnp.zeros((Hp2, 1, C), zdt)

    def conv3x3_from_scratch(w_ref, s_ref):
        # im2col from the bf16 padded scratch: one deep-K MXU matmul.
        patch = jnp.concatenate(
            [xp_ref[dy:dy + H, dx:dx + W, :].reshape(HW, C)
             for dy in range(3) for dx in range(3)],
            axis=-1)                                             # (HW, 9*C) bf16
        acc = jnp.dot(patch, w_ref[...],
                      preferred_element_type=jnp.float32)        # (HW, 128) f32
        return jnp.maximum(acc + s_ref[...], 0.0)                # BN shift + ReLU

    # conv1: patch was built in the wrapper; just matmul + shift + ReLU.
    y1 = jnp.maximum(
        jnp.dot(p1_ref[0], w1_ref[...], preferred_element_type=jnp.float32)
        + s1_ref[...], 0.0)                                      # (HW, 128) f32
    o_ref[0, 0:hid, :] = y1[:, 0:hid].T                          # slice, then transpose

    # conv2 (consumes out1, which stays in VMEM as bf16)
    xp_ref[1:H + 1, 1:W + 1, :] = y1.astype(zdt).reshape(H, W, C)
    y2 = conv3x3_from_scratch(w2_ref, s2_ref)
    o_ref[0, hid:2 * hid, :] = y2[:, 0:hid].T

    # conv3 (reuses the same scratch; border is still zero)
    xp_ref[1:H + 1, 1:W + 1, :] = y2.astype(zdt).reshape(H, W, C)
    y3 = conv3x3_from_scratch(w3_ref, s3_ref)
    o_ref[0, 2 * hid:3 * hid, :] = y3[:, 0:hid].T


def _fold_conv_bn(p, cin_pad=None, eps=BN_EPS):
    """Fold conv bias + eval-mode BN into the conv weights and a per-channel
    shift, flatten HWIO -> (9*Cin, Cout) for the im2col matmul, pad Cout (and
    optionally Cin) up to 128 lanes with zeros, cast weights to bf16."""
    scale = p["gamma"] / jnp.sqrt(p["var"] + eps)                # (Cout,)
    shift = scale * (p["bias"] - p["mean"]) + p["beta"]          # (Cout,)
    w = p["w"] * scale[None, None, None, :]                      # HWIO * scale(Cout)
    kh, kw, cin, cout = w.shape
    if cin_pad is not None and cin_pad > cin:
        w = jnp.pad(w, ((0, 0), (0, 0), (0, cin_pad - cin), (0, 0)))
        cin = cin_pad
    w = jnp.pad(w, ((0, 0), (0, 0), (0, 0), (0, HID_PAD - cout)))
    shift = jnp.pad(shift, (0, HID_PAD - cout))
    w_flat = w.reshape(kh * kw * cin, HID_PAD).astype(jnp.bfloat16)
    return w_flat, shift.reshape(1, HID_PAD).astype(jnp.float32)


def dense_block_0_forward(x_nchw, params):
    """Forward pass matching the PyTorch module: conv1 -> conv2 -> conv3 (3x3,
    pad 1) with eval-mode BN + ReLU, outputs concatenated along channels.
    Input NCHW f32, output NCHW f32 (N, 288, H, W)."""
    N, cin, H, W = x_nchw.shape

    # conv1's im2col patch is tiny (cin=4): build it in XLA so the kernel
    # never touches 4/128-lane-utilized data.  ~N*H*W*9*cin bf16 of extra HBM.
    x_nhwc = jnp.transpose(x_nchw, (0, 2, 3, 1))                 # (N, H, W, cin)
    xpad = jnp.pad(x_nhwc, ((0, 0), (1, 1), (1, 1), (0, 0)))     # (N, H+2, W+2, cin)
    patch1 = jnp.concatenate(
        [xpad[:, dy:dy + H, dx:dx + W, :].reshape(N, H * W, cin)
         for dy in range(3) for dx in range(3)],
        axis=-1).astype(jnp.bfloat16)                            # (N, H*W, 9*cin)
    k_in = patch1.shape[-1]

    w1, s1 = _fold_conv_bn(params[0])                   # (9*cin, 128)
    w2, s2 = _fold_conv_bn(params[1], cin_pad=HID_PAD)  # (9*128, 128)
    w3, s3 = _fold_conv_bn(params[2], cin_pad=HID_PAD)

    out = pl.pallas_call(
        dense_block_kernel,
        out_shape=jax.ShapeDtypeStruct((N, 3 * HIDDEN, H * W), jnp.float32),
        grid=(N,),
        in_specs=[
            pl.BlockSpec((1, H * W, k_in), lambda n: (n, 0, 0)),
            pl.BlockSpec(w1.shape, lambda n: (0, 0)),
            pl.BlockSpec(w2.shape, lambda n: (0, 0)),
            pl.BlockSpec(w3.shape, lambda n: (0, 0)),
            pl.BlockSpec(s1.shape, lambda n: (0, 0)),
            pl.BlockSpec(s2.shape, lambda n: (0, 0)),
            pl.BlockSpec(s3.shape, lambda n: (0, 0)),
        ],
        out_specs=pl.BlockSpec((1, 3 * HIDDEN, H * W), lambda n: (n, 0, 0)),
        scratch_shapes=[
            pltpu.VMEM((H + 2, W + 2, HID_PAD), jnp.bfloat16),
        ],
        compiler_params=pltpu.CompilerParams(
            dimension_semantics=("parallel",)),
    )(patch1, w1, w2, w3, s1, s2, s3)

    # (N, 288, H*W) is already NCHW in row-major order -> free reshape.
    return out.reshape(N, 3 * HIDDEN, H, W)


def init_dense_block_params(key, in_dim, hidden=HIDDEN, nontrivial_bn=False):
    """Parameters matching the PyTorch module's initialize_weight():
    conv weight ~ N(0, 0.01), conv bias = 0; BatchNorm defaults (gamma=1,
    beta=0, running_mean=0, running_var=1).  nontrivial_bn=True replaces the
    BN parameters/stats with non-trivial values so the BN fold is exercised."""
    cins = [in_dim, hidden, hidden]
    params = []
    for k, cin in zip(jax.random.split(key, len(cins)), cins):
        k_w, k_g, k_b, k_m, k_v = jax.random.split(k, 5)
        w_oihw = 0.01 * jax.random.normal(k_w, (hidden, cin, 3, 3), jnp.float32)
        p = {
            "w": jnp.transpose(w_oihw, (2, 3, 1, 0)),   # OIHW -> HWIO
            "bias": jnp.zeros((hidden,), jnp.float32),
            "gamma": jnp.ones((hidden,), jnp.float32),
            "beta": jnp.zeros((hidden,), jnp.float32),
            "mean": jnp.zeros((hidden,), jnp.float32),
            "var": jnp.ones((hidden,), jnp.float32),
        }
        if nontrivial_bn:
            p["gamma"] = 1.0 + 0.1 * jax.random.normal(k_g, (hidden,), jnp.float32)
            p["beta"] = 0.05 * jax.random.normal(k_b, (hidden,), jnp.float32)
            p["mean"] = 0.02 * jax.random.normal(k_m, (hidden,), jnp.float32)
            p["var"] = 1.0 + 0.2 * jax.random.uniform(k_v, (hidden,), jnp.float32)
        params.append(p)
    return params


def _reference_forward(x_nchw, params, eps=BN_EPS):
    """Pure-JAX f32 reference (lax conv + explicit, un-folded BN)."""
    def conv_bn_relu(x, p):
        y = jax.lax.conv_general_dilated(
            x, p["w"], window_strides=(1, 1), padding="SAME",
            dimension_numbers=("NCHW", "HWIO", "NCHW"))
        y = y + p["bias"][None, :, None, None]
        y = (y - p["mean"][None, :, None, None]) * (
            p["gamma"] / jnp.sqrt(p["var"] + eps))[None, :, None, None]
        y = y + p["beta"][None, :, None, None]
        return jnp.maximum(y, 0.0)

    o1 = conv_bn_relu(x_nchw, params[0])
    o2 = conv_bn_relu(o1, params[1])
    o3 = conv_bn_relu(o2, params[2])
    return jnp.concatenate([o1, o2, o3], axis=1)


if __name__ == "__main__":
    import numpy as np

    key = jax.random.PRNGKey(0)
    k_x, k_p = jax.random.split(key)

    N, C_in, H, W = 2, 4, 16, 16
    x = jax.random.normal(k_x, (N, C_in, H, W), jnp.float32)

    # Non-trivial BN stats so the BN fold is actually tested (module defaults
    # make eval-mode BN an identity and would hide fold bugs).
    params = init_dense_block_params(k_p, in_dim=C_in, nontrivial_bn=True)

    fwd = jax.jit(dense_block_0_forward)
    out = jax.block_until_ready(fwd(x, params))

    assert out.shape == (N, 3 * HIDDEN, H, W), out.shape
    assert out.dtype == jnp.float32

    ref = _reference_forward(x, params)
    np.testing.assert_allclose(np.asarray(out), np.asarray(ref),
                               rtol=0.05, atol=5e-3)
    print("KERNEL_OK")
</pallas_src>

<mosaic_0001>
module attributes {stable_mosaic.version = 11 : i64} {
  func.func @dense_block_kernel(%arg0: i32, %arg1: memref<1x256x36xbf16, #tpu.memory_space<vmem>>, %arg2: memref<36x128xbf16, #tpu.memory_space<vmem>>, %arg3: memref<1152x128xbf16, #tpu.memory_space<vmem>>, %arg4: memref<1152x128xbf16, #tpu.memory_space<vmem>>, %arg5: memref<1x128xf32, #tpu.memory_space<vmem>>, %arg6: memref<1x128xf32, #tpu.memory_space<vmem>>, %arg7: memref<1x128xf32, #tpu.memory_space<vmem>>, %arg8: memref<1x288x256xf32, #tpu.memory_space<vmem>>, %arg9: memref<18x18x128xbf16, #tpu.memory_space<vmem>>) attributes {dimension_semantics = [#tpu.dimension_semantics<parallel>], iteration_bounds = array<i64: 2>, scalar_prefetch = 0 : i64, scratch_operands = 1 : i64, tpu.core_type = #tpu.core_type<tc>, window_params = [{transform_indices = @transform_0, window_bounds = array<i64: 1, 256, 36>}, {pipeline_mode = #tpu.pipeline_mode<synchronous>, transform_indices = @transform_1, window_bounds = array<i64: 36, 128>}, {pipeline_mode = #tpu.pipeline_mode<synchronous>, transform_indices = @transform_2, window_bounds = array<i64: 1152, 128>}, {pipeline_mode = #tpu.pipeline_mode<synchronous>, transform_indices = @transform_3, window_bounds = array<i64: 1152, 128>}, {pipeline_mode = #tpu.pipeline_mode<synchronous>, transform_indices = @transform_4, window_bounds = array<i64: 1, 128>}, {pipeline_mode = #tpu.pipeline_mode<synchronous>, transform_indices = @transform_5, window_bounds = array<i64: 1, 128>}, {pipeline_mode = #tpu.pipeline_mode<synchronous>, transform_indices = @transform_6, window_bounds = array<i64: 1, 128>}, {transform_indices = @transform_7, window_bounds = array<i64: 1, 288, 256>}]} {
    %cst = arith.constant 0.000000e+00 : bf16
    %0 = vector.broadcast %cst : bf16 to vector<1x18x128xbf16>
    %c0 = arith.constant 0 : index
    %c0_0 = arith.constant 0 : index
    %c0_1 = arith.constant 0 : index
    %1 = vector.load %arg9[%c0, %c0_0, %c0_1] : memref<18x18x128xbf16, #tpu.memory_space<vmem>>, vector<1x18x128xbf16>
    tpu.vector_store %arg9[%c0, %c0_0, %c0_1], %0 {strides = array<i32>} : memref<18x18x128xbf16, #tpu.memory_space<vmem>>, vector<1x18x128xbf16>,
    %cst_2 = arith.constant 0.000000e+00 : bf16
    %2 = vector.broadcast %cst_2 : bf16 to vector<1x18x128xbf16>
    %c17 = arith.constant 17 : index
    %c0_3 = arith.constant 0 : index
    %c0_4 = arith.constant 0 : index
    %3 = vector.load %arg9[%c17, %c0_3, %c0_4] : memref<18x18x128xbf16, #tpu.memory_space<vmem>>, vector<1x18x128xbf16>
    tpu.vector_store %arg9[%c17, %c0_3, %c0_4], %2 {strides = array<i32>} : memref<18x18x128xbf16, #tpu.memory_space<vmem>>, vector<1x18x128xbf16>,
    %cst_5 = arith.constant 0.000000e+00 : bf16
    %4 = vector.broadcast %cst_5 : bf16 to vector<18x1x128xbf16>
    %c0_6 = arith.constant 0 : index
    %c0_7 = arith.constant 0 : index
    %c0_8 = arith.constant 0 : index
    %5 = vector.load %arg9[%c0_6, %c0_7, %c0_8] : memref<18x18x128xbf16, #tpu.memory_space<vmem>>, vector<18x1x128xbf16>
    tpu.vector_store %arg9[%c0_6, %c0_7, %c0_8], %4 {strides = array<i32>} : memref<18x18x128xbf16, #tpu.memory_space<vmem>>, vector<18x1x128xbf16>,
    %cst_9 = arith.constant 0.000000e+00 : bf16
    %6 = vector.broadcast %cst_9 : bf16 to vector<18x1x128xbf16>
    %c0_10 = arith.constant 0 : index
    %c17_11 = arith.constant 17 : index
    %c0_12 = arith.constant 0 : index
    %7 = vector.load %arg9[%c0_10, %c17_11, %c0_12] : memref<18x18x128xbf16, #tpu.memory_space<vmem>>, vector<18x1x128xbf16>
    tpu.vector_store %arg9[%c0_10, %c17_11, %c0_12], %6 {strides = array<i32>} : memref<18x18x128xbf16, #tpu.memory_space<vmem>>, vector<18x1x128xbf16>,
    %c0_13 = arith.constant 0 : index
    %c0_14 = arith.constant 0 : index
    %c0_15 = arith.constant 0 : index
    %8 = vector.load %arg1[%c0_13, %c0_14, %c0_15] : memref<1x256x36xbf16, #tpu.memory_space<vmem>>, vector<1x256x36xbf16>
    %9 = vector.shape_cast %8 : vector<1x256x36xbf16> to vector<256x36xbf16>
    %c0_16 = arith.constant 0 : index
    %c0_17 = arith.constant 0 : index
    %10 = vector.load %arg2[%c0_16, %c0_17] : memref<36x128xbf16, #tpu.memory_space<vmem>>, vector<36x128xbf16>
    %cst_18 = arith.constant dense<0.000000e+00> : vector<256x128xf32>
    %11 = tpu.matmul %9, %10, %cst_18 {dimension_numbers = #tpu.dot_dimension_numbers<[1], [0], [0], [1], [0, 0, 1, 1], [], []>} : vector<256x36xbf16>, vector<36x128xbf16>, vector<256x128xf32> -> vector<256x128xf32>
    %c0_19 = arith.constant 0 : index
    %c0_20 = arith.constant 0 : index
    %12 = vector.load %arg5[%c0_19, %c0_20] : memref<1x128xf32, #tpu.memory_space<vmem>>, vector<1x128xf32>
    %13 = vector.broadcast %12 : vector<1x128xf32> to vector<256x128xf32>
    %14 = arith.addf %11, %13 : vector<256x128xf32>
    %cst_21 = arith.constant 0.000000e+00 : f32
    %15 = vector.broadcast %cst_21 : f32 to vector<256x128xf32>
    %16 = arith.maximumf %14, %15 : vector<256x128xf32>
    %17 = vector.extract_strided_slice %16 {offsets = [0, 0], sizes = [256, 96], strides = [1, 1]} : vector<256x128xf32> to vector<256x96xf32>
    %18 = tpu.transpose %17, [1, 0] : vector<256x96xf32> -> vector<96x256xf32>
    %c0_22 = arith.constant 0 : index
    %c0_23 = arith.constant 0 : index
    %c0_24 = arith.constant 0 : index
    %19 = vector.load %arg8[%c0_22, %c0_23, %c0_24] : memref<1x288x256xf32, #tpu.memory_space<vmem>>, vector<1x96x256xf32>
    %20 = vector.shape_cast %19 : vector<1x96x256xf32> to vector<96x256xf32>
    %21 = vector.shape_cast %18 : vector<96x256xf32> to vector<1x96x256xf32>
    tpu.vector_store %arg8[%c0_22, %c0_23, %c0_24], %21 {strides = array<i32>} : memref<1x288x256xf32, #tpu.memory_space<vmem>>, vector<1x96x256xf32>,
    %22 = arith.truncf %16 : vector<256x128xf32> to vector<256x128xbf16>
    %23 = vector.shape_cast %22 : vector<256x128xbf16> to vector<16x16x128xbf16>
    %c1 = arith.constant 1 : index
    %c1_25 = arith.constant 1 : index
    %c0_26 = arith.constant 0 : index
    %24 = vector.load %arg9[%c1, %c1_25, %c0_26] : memref<18x18x128xbf16, #tpu.memory_space<vmem>>, vector<16x16x128xbf16>
    tpu.vector_store %arg9[%c1, %c1_25, %c0_26], %23 {strides = array<i32>} : memref<18x18x128xbf16, #tpu.memory_space<vmem>>, vector<16x16x128xbf16>,
    %c0_27 = arith.constant 0 : index
    %c0_28 = arith.constant 0 : index
    %c0_29 = arith.constant 0 : index
    %25 = vector.load %arg9[%c0_27, %c0_28, %c0_29] : memref<18x18x128xbf16, #tpu.memory_space<vmem>>, vector<16x16x128xbf16>
    %26 = vector.shape_cast %25 : vector<16x16x128xbf16> to vector<256x128xbf16>
    %c0_30 = arith.constant 0 : index
    %c1_31 = arith.constant 1 : index
    %c0_32 = arith.constant 0 : index
    %27 = vector.load %arg9[%c0_30, %c1_31, %c0_32] : memref<18x18x128xbf16, #tpu.memory_space<vmem>>, vector<16x16x128xbf16>
    %28 = vector.shape_cast %27 : vector<16x16x128xbf16> to vector<256x128xbf16>
    %c0_33 = arith.constant 0 : index
    %c2 = arith.constant 2 : index
    %c0_34 = arith.constant 0 : index
    %29 = vector.load %arg9[%c0_33, %c2, %c0_34] : memref<18x18x128xbf16, #tpu.memory_space<vmem>>, vector<16x16x128xbf16>
    %30 = vector.shape_cast %29 : vector<16x16x128xbf16> to vector<256x128xbf16>
    %c1_35 = arith.constant 1 : index
    %c0_36 = arith.constant 0 : index
    %c0_37 = arith.constant 0 : index
    %31 = vector.load %arg9[%c1_35, %c0_36, %c0_37] : memref<18x18x128xbf16, #tpu.memory_space<vmem>>, vector<16x16x128xbf16>
    %32 = vector.shape_cast %31 : vector<16x16x128xbf16> to vector<256x128xbf16>
    %c1_38 = arith.constant 1 : index
    %c1_39 = arith.constant 1 : index
    %c0_40 = arith.constant 0 : index
    %33 = vector.load %arg9[%c1_38, %c1_39, %c0_40] : memref<18x18x128xbf16, #tpu.memory_space<vmem>>, vector<16x16x128xbf16>
    %34 = vector.shape_cast %33 : vector<16x16x128xbf16> to vector<256x128xbf16>
    %c1_41 = arith.constant 1 : index
    %c2_42 = arith.constant 2 : index
    %c0_43 = arith.constant 0 : index
    %35 = vector.load %arg9[%c1_41, %c2_42, %c0_43] : memref<18x18x128xbf16, #tpu.memory_space<vmem>>, vector<16x16x128xbf16>
    %36 = vector.shape_cast %35 : vector<16x16x128xbf16> to vector<256x128xbf16>
    %c2_44 = arith.constant 2 : index
    %c0_45 = arith.constant 0 : index
    %c0_46 = arith.constant 0 : index
    %37 = vector.load %arg9[%c2_44, %c0_45, %c0_46] : memref<18x18x128xbf16, #tpu.memory_space<vmem>>, vector<16x16x128xbf16>
    %38 = vector.shape_cast %37 : vector<16x16x128xbf16> to vector<256x128xbf16>
    %c2_47 = arith.constant 2 : index
    %c1_48 = arith.constant 1 : index
    %c0_49 = arith.constant 0 : index
    %39 = vector.load %arg9[%c2_47, %c1_48, %c0_49] : memref<18x18x128xbf16, #tpu.memory_space<vmem>>, vector<16x16x128xbf16>
    %40 = vector.shape_cast %39 : vector<16x16x128xbf16> to vector<256x128xbf16>
    %c2_50 = arith.constant 2 : index
    %c2_51 = arith.constant 2 : index
    %c0_52 = arith.constant 0 : index
    %41 = vector.load %arg9[%c2_50, %c2_51, %c0_52] : memref<18x18x128xbf16, #tpu.memory_space<vmem>>, vector<16x16x128xbf16>
    %42 = vector.shape_cast %41 : vector<16x16x128xbf16> to vector<256x128xbf16>
    %43 = tpu.concatenate %26, %28, %30, %32, %34, %36, %38, %40, %42 in 1 : vector<256x128xbf16>, vector<256x128xbf16>, vector<256x128xbf16>, vector<256x128xbf16>, vector<256x128xbf16>, vector<256x128xbf16>, vector<256x128xbf16>, vector<256x128xbf16>, vector<256x128xbf16> -> vector<256x1152xbf16>
    %c0_53 = arith.constant 0 : index
    %c0_54 = arith.constant 0 : index
    %44 = vector.load %arg3[%c0_53, %c0_54] : memref<1152x128xbf16, #tpu.memory_space<vmem>>, vector<1152x128xbf16>
    %cst_55 = arith.constant dense<0.000000e+00> : vector<256x128xf32>
    %45 = tpu.matmul %43, %44, %cst_55 {dimension_numbers = #tpu.dot_dimension_numbers<[1], [0], [0], [1], [0, 0, 1, 1], [], []>} : vector<256x1152xbf16>, vector<1152x128xbf16>, vector<256x128xf32> -> vector<256x128xf32>
    %c0_56 = arith.constant 0 : index
    %c0_57 = arith.constant 0 : index
    %46 = vector.load %arg6[%c0_56, %c0_57] : memref<1x128xf32, #tpu.memory_space<vmem>>, vector<1x128xf32>
    %47 = vector.broadcast %46 : vector<1x128xf32> to vector<256x128xf32>
    %48 = arith.addf %45, %47 : vector<256x128xf32>
    %cst_58 = arith.constant 0.000000e+00 : f32
    %49 = vector.broadcast %cst_58 : f32 to vector<256x128xf32>
    %50 = arith.maximumf %48, %49 : vector<256x128xf32>
    %51 = vector.extract_strided_slice %50 {offsets = [0, 0], sizes = [256, 96], strides = [1, 1]} : vector<256x128xf32> to vector<256x96xf32>
    %52 = tpu.transpose %51, [1, 0] : vector<256x96xf32> -> vector<96x256xf32>
    %c0_59 = arith.constant 0 : index
    %c96 = arith.constant 96 : index
    %c0_60 = arith.constant 0 : index
    %53 = vector.load %arg8[%c0_59, %c96, %c0_60] : memref<1x288x256xf32, #tpu.memory_space<vmem>>, vector<1x96x256xf32>
    %54 = vector.shape_cast %53 : vector<1x96x256xf32> to vector<96x256xf32>
    %55 = vector.shape_cast %52 : vector<96x256xf32> to vector<1x96x256xf32>
    tpu.vector_store %arg8[%c0_59, %c96, %c0_60], %55 {strides = array<i32>} : memref<1x288x256xf32, #tpu.memory_space<vmem>>, vector<1x96x256xf32>,
    %56 = arith.truncf %50 : vector<256x128xf32> to vector<256x128xbf16>
    %57 = vector.shape_cast %56 : vector<256x128xbf16> to vector<16x16x128xbf16>
    %c1_61 = arith.constant 1 : index
    %c1_62 = arith.constant 1 : index
    %c0_63 = arith.constant 0 : index
    %58 = vector.load %arg9[%c1_61, %c1_62, %c0_63] : memref<18x18x128xbf16, #tpu.memory_space<vmem>>, vector<16x16x128xbf16>
    tpu.vector_store %arg9[%c1_61, %c1_62, %c0_63], %57 {strides = array<i32>} : memref<18x18x128xbf16, #tpu.memory_space<vmem>>, vector<16x16x128xbf16>,
    %c0_64 = arith.constant 0 : index
    %c0_65 = arith.constant 0 : index
    %c0_66 = arith.constant 0 : index
    %59 = vector.load %arg9[%c0_64, %c0_65, %c0_66] : memref<18x18x128xbf16, #tpu.memory_space<vmem>>, vector<16x16x128xbf16>
    %60 = vector.shape_cast %59 : vector<16x16x128xbf16> to vector<256x128xbf16>
    %c0_67 = arith.constant 0 : index
    %c1_68 = arith.constant 1 : index
    %c0_69 = arith.constant 0 : index
    %61 = vector.load %arg9[%c0_67, %c1_68, %c0_69] : memref<18x18x128xbf16, #tpu.memory_space<vmem>>, vector<16x16x128xbf16>
    %62 = vector.shape_cast %61 : vector<16x16x128xbf16> to vector<256x128xbf16>
    %c0_70 = arith.constant 0 : index
    %c2_71 = arith.constant 2 : index
    %c0_72 = arith.constant 0 : index
    %63 = vector.load %arg9[%c0_70, %c2_71, %c0_72] : memref<18x18x128xbf16, #tpu.memory_space<vmem>>, vector<16x16x128xbf16>
    %64 = vector.shape_cast %63 : vector<16x16x128xbf16> to vector<256x128xbf16>
    %c1_73 = arith.constant 1 : index
    %c0_74 = arith.constant 0 : index
    %c0_75 = arith.constant 0 : index
    %65 = vector.load %arg9[%c1_73, %c0_74, %c0_75] : memref<18x18x128xbf16, #tpu.memory_space<vmem>>, vector<16x16x128xbf16>
    %66 = vector.shape_cast %65 : vector<16x16x128xbf16> to vector<256x128xbf16>
    %c1_76 = arith.constant 1 : index
    %c1_77 = arith.constant 1 : index
    %c0_78 = arith.constant 0 : index
    %67 = vector.load %arg9[%c1_76, %c1_77, %c0_78] : memref<18x18x128xbf16, #tpu.memory_space<vmem>>, vector<16x16x128xbf16>
    %68 = vector.shape_cast %67 : vector<16x16x128xbf16> to vector<256x128xbf16>
    %c1_79 = arith.constant 1 : index
    %c2_80 = arith.constant 2 : index
    %c0_81 = arith.constant 0 : index
    %69 = vector.load %arg9[%c1_79, %c2_80, %c0_81] : memref<18x18x128xbf16, #tpu.memory_space<vmem>>, vector<16x16x128xbf16>
    %70 = vector.shape_cast %69 : vector<16x16x128xbf16> to vector<256x128xbf16>
    %c2_82 = arith.constant 2 : index
    %c0_83 = arith.constant 0 : index
    %c0_84 = arith.constant 0 : index
    %71 = vector.load %arg9[%c2_82, %c0_83, %c0_84] : memref<18x18x128xbf16, #tpu.memory_space<vmem>>, vector<16x16x128xbf16>
    %72 = vector.shape_cast %71 : vector<16x16x128xbf16> to vector<256x128xbf16>
    %c2_85 = arith.constant 2 : index
    %c1_86 = arith.constant 1 : index
    %c0_87 = arith.constant 0 : index
    %73 = vector.load %arg9[%c2_85, %c1_86, %c0_87] : memref<18x18x128xbf16, #tpu.memory_space<vmem>>, vector<16x16x128xbf16>
    %74 = vector.shape_cast %73 : vector<16x16x128xbf16> to vector<256x128xbf16>
    %c2_88 = arith.constant 2 : index
    %c2_89 = arith.constant 2 : index
    %c0_90 = arith.constant 0 : index
    %75 = vector.load %arg9[%c2_88, %c2_89, %c0_90] : memref<18x18x128xbf16, #tpu.memory_space<vmem>>, vector<16x16x128xbf16>
    %76 = vector.shape_cast %75 : vector<16x16x128xbf16> to vector<256x128xbf16>
    %77 = tpu.concatenate %60, %62, %64, %66, %68, %70, %72, %74, %76 in 1 : vector<256x128xbf16>, vector<256x128xbf16>, vector<256x128xbf16>, vector<256x128xbf16>, vector<256x128xbf16>, vector<256x128xbf16>, vector<256x128xbf16>, vector<256x128xbf16>, vector<256x128xbf16> -> vector<256x1152xbf16>
    %c0_91 = arith.constant 0 : index
    %c0_92 = arith.constant 0 : index
    %78 = vector.load %arg4[%c0_91, %c0_92] : memref<1152x128xbf16, #tpu.memory_space<vmem>>, vector<1152x128xbf16>
    %cst_93 = arith.constant dense<0.000000e+00> : vector<256x128xf32>
    %79 = tpu.matmul %77, %78, %cst_93 {dimension_numbers = #tpu.dot_dimension_numbers<[1], [0], [0], [1], [0, 0, 1, 1], [], []>} : vector<256x1152xbf16>, vector<1152x128xbf16>, vector<256x128xf32> -> vector<256x128xf32>
    %c0_94 = arith.constant 0 : index
    %c0_95 = arith.constant 0 : index
    %80 = vector.load %arg7[%c0_94, %c0_95] : memref<1x128xf32, #tpu.memory_space<vmem>>, vector<1x128xf32>
    %81 = vector.broadcast %80 : vector<1x128xf32> to vector<256x128xf32>
    %82 = arith.addf %79, %81 : vector<256x128xf32>
    %cst_96 = arith.constant 0.000000e+00 : f32
    %83 = vector.broadcast %cst_96 : f32 to vector<256x128xf32>
    %84 = arith.maximumf %82, %83 : vector<256x128xf32>
    %85 = vector.extract_strided_slice %84 {offsets = [0, 0], sizes = [256, 96], strides = [1, 1]} : vector<256x128xf32> to vector<256x96xf32>
    %86 = tpu.transpose %85, [1, 0] : vector<256x96xf32> -> vector<96x256xf32>
    %c0_97 = arith.constant 0 : index
    %c192 = arith.constant 192 : index
    %c0_98 = arith.constant 0 : index
    %87 = vector.load %arg8[%c0_97, %c192, %c0_98] : memref<1x288x256xf32, #tpu.memory_space<vmem>>, vector<1x96x256xf32>
    %88 = vector.shape_cast %87 : vector<1x96x256xf32> to vector<96x256xf32>
    %89 = vector.shape_cast %86 : vector<96x256xf32> to vector<1x96x256xf32>
    tpu.vector_store %arg8[%c0_97, %c192, %c0_98], %89 {strides = array<i32>} : memref<1x288x256xf32, #tpu.memory_space<vmem>>, vector<1x96x256xf32>,
    return
  }
  func.func @transform_0(%arg0: i32) -> (i32, i32, i32) {
    %c0_i32 = arith.constant 0 : i32
    %c0_i32_0 = arith.constant 0 : i32
    %c0_i32_1 = arith.constant 0 : i32
    return %arg0, %c0_i32, %c0_i32_0 : i32, i32, i32
  }
  func.func @transform_1(%arg0: i32) -> (i32, i32) {
    %c0_i32 = arith.constant 0 : i32
    %c0_i32_0 = arith.constant 0 : i32
    %c0_i32_1 = arith.constant 0 : i32
    return %c0_i32, %c0_i32_0 : i32, i32
  }
  func.func @transform_2(%arg0: i32) -> (i32, i32) {
    %c0_i32 = arith.constant 0 : i32
    %c0_i32_0 = arith.constant 0 : i32
    %c0_i32_1 = arith.constant 0 : i32
    return %c0_i32, %c0_i32_0 : i32, i32
  }
  func.func @transform_3(%arg0: i32) -> (i32, i32) {
    %c0_i32 = arith.constant 0 : i32
    %c0_i32_0 = arith.constant 0 : i32
    %c0_i32_1 = arith.constant 0 : i32
    return %c0_i32, %c0_i32_0 : i32, i32
  }
  func.func @transform_4(%arg0: i32) -> (i32, i32) {
    %c0_i32 = arith.constant 0 : i32
    %c0_i32_0 = arith.constant 0 : i32
    %c0_i32_1 = arith.constant 0 : i32
    return %c0_i32, %c0_i32_0 : i32, i32
  }
  func.func @transform_5(%arg0: i32) -> (i32, i32) {
    %c0_i32 = arith.constant 0 : i32
    %c0_i32_0 = arith.constant 0 : i32
    %c0_i32_1 = arith.constant 0 : i32
    return %c0_i32, %c0_i32_0 : i32, i32
  }
  func.func @transform_6(%arg0: i32) -> (i32, i32) {
    %c0_i32 = arith.constant 0 : i32
    %c0_i32_0 = arith.constant 0 : i32
    %c0_i32_1 = arith.constant 0 : i32
    return %c0_i32, %c0_i32_0 : i32, i32
  }
  func.func @transform_7(%arg0: i32) -> (i32, i32, i32) {
    %c0_i32 = arith.constant 0 : i32
    %c0_i32_0 = arith.constant 0 : i32
    %c0_i32_1 = arith.constant 0 : i32
    return %arg0, %c0_i32, %c0_i32_0 : i32, i32, i32
  }
}

</mosaic_0001>

<llo_original>
// kernel: dense_block_0_forward.1
$region0: #{dense_block_0_forward.1}
  #allocation0 [shape = 'u32[]', space=smem, size = 0x4, offset = 0x4, fixed_abs, tag = 'smem constant byte address 0x4 - core index']
  #allocation1 [shape = 'u32[144,128]{1,0:T(1,128)}', space=vmem, size = 0x12000, scoped, tag = 'internal scratch']
  #allocation2 [shape = 'bf16[18,18,128]{2,1,0:T(8,128)(2,1)}', space=vmem, size = 0x1b000, scoped, tag = 'scratch operand']
  %s0 = inlined_call_operand.vmem [shape: bf16[2,256,36], index: 0, kind: input, shape index: {}]
  %s1 = inlined_call_operand.vmem [shape: bf16[36,128], index: 1, kind: input, shape index: {}]
  %s2 = inlined_call_operand.vmem [shape: bf16[1152,128], index: 2, kind: input, shape index: {}]
  %s3 = inlined_call_operand.vmem [shape: bf16[1152,128], index: 3, kind: input, shape index: {}]
  %s4 = inlined_call_operand.vmem [shape: f32[1,128], index: 4, kind: input, shape index: {}]
  %s5 = inlined_call_operand.vmem [shape: f32[1,128], index: 5, kind: input, shape index: {}]
  %s6 = inlined_call_operand.vmem [shape: f32[1,128], index: 6, kind: input, shape index: {}]
  %s7 = inlined_call_operand.vmem [shape: f32[2,288,256], index: 7, kind: output, shape index: {}]
  %s8 = sld [smem:[#allocation0]]
  $region61: #{dense_block_0_forward.1} parent=0
    _
  %s10 = ssub.s32 1, %s8
  %s11 = scalar_select 0, %s10, %s8
  loop: start=0, step=1, limit=4
  $region2: #{dense_block_0_forward.1} parent=0 // loop_pre_header
    _
  $region3: #{dense_block_0_forward.1} parent=0 // loop_header
    %s13 = sphi 0, %s17
    %p14 = scmp.ge.s32.totalorder %s13, 4
    %s23 = sphi 0, %s25
    %s26 = sphi 0, %s23
    %s27 = sphi 0, %s26
    %s43 = sphi 0, %s27
    %s47 = sphi 0, %s47
    %s49 = sphi 0, %s47
    %s50 = sphi 0, %s49
    %s64 = sphi 0, %s50
    %s68 = sphi 0, %s68
    %s70 = sphi 0, %s68
    %s71 = sphi 0, %s70
    %s85 = sphi 0, %s71
    %s89 = sphi 0, %s89
    %s91 = sphi 0, %s89
    %s92 = sphi 0, %s91
    %s106 = sphi 0, %s92
    %s110 = sphi 0, %s110
    %s112 = sphi 0, %s110
    %s113 = sphi 0, %s112
    %s127 = sphi 0, %s113
    %s131 = sphi 0, %s131
    %s133 = sphi 0, %s131
    %s134 = sphi 0, %s133
    %s148 = sphi 0, %s134
    %s152 = sphi 0, %s152
    %s154 = sphi 0, %s152
    %s155 = sphi 0, %s154
    %s169 = sphi 0, %s155
    %s175 = sphi 0, %s177
    %s178 = sphi 0, %s175
    %s179 = sphi 0, %s178
    %s195 = sphi 0, %s179
  $region4: #{dense_block_0_forward.1} parent=0 // loop_header_branch
    %16 = sbr.rel (%p14) target = $region8
  $region5: #{dense_block_0_forward.1} parent=0 // loop_body
    %s18 = ssub.s32 %s13, 1
    %s19 = ssub.s32 %s13, 2
    %s20 = sadd.s32 %s13, 1
    %s21 = ssub.s32 %s13, %s20
    %p22 = scmp.eq.s32.totalorder %s21, 0
    %s24 = sadd.s32 %s23, 1
    %s25 = scalar_select %p22, %s23, %s24
    %p28 = pneg %p22
    %p29 = scmp.eq.s32.totalorder %s13, 1
    %p30 = por %p28, %p29
    %p31 = scmp.ne.s32.totalorder %s23, %s26
    %p32 = scmp.eq.s32.totalorder %s13, 0
    %p33 = por %p31, %p32
    %p34 = scmp.ne.s32.totalorder %s23, %s26
    %p35 = scmp.eq.s32.totalorder %s18, 1
    %p36 = por %p34, %p35
    %p37 = scmp.ne.s32.totalorder %s26, %s27
    %p38 = scmp.eq.s32.totalorder %s18, 0
    %p39 = por %p37, %p38
    %p40 = scmp.ne.s32.totalorder %s26, %s27
    %p41 = scmp.eq.s32.totalorder %s19, 1
    %p42 = por %p40, %p41
    %p44 = scmp.ne.s32.totalorder %s27, %s43
    %p45 = scmp.eq.s32.totalorder %s19, 0
    %p46 = por %p44, %p45
    %s48 = sadd.s32 %s47, 1
    %p51 = scmp.eq.s32.totalorder %s13, 1
    %p52 = scmp.ne.s32.totalorder %s47, %s49
    %p53 = scmp.eq.s32.totalorder %s13, 0
    %p54 = por %p52, %p53
    %p55 = scmp.ne.s32.totalorder %s47, %s49
    %p56 = scmp.eq.s32.totalorder %s18, 1
    %p57 = por %p55, %p56
    %p58 = scmp.ne.s32.totalorder %s49, %s50
    %p59 = scmp.eq.s32.totalorder %s18, 0
    %p60 = por %p58, %p59
    %p61 = scmp.ne.s32.totalorder %s49, %s50
    %p62 = scmp.eq.s32.totalorder %s19, 1
    %p63 = por %p61, %p62
    %p65 = scmp.ne.s32.totalorder %s50, %s64
    %p66 = scmp.eq.s32.totalorder %s19, 0
    %p67 = por %p65, %p66
    %s69 = sadd.s32 %s68, 1
    %p72 = scmp.eq.s32.totalorder %s13, 1
    %p73 = scmp.ne.s32.totalorder %s68, %s70
    %p74 = scmp.eq.s32.totalorder %s13, 0
    %p75 = por %p73, %p74
    %p76 = scmp.ne.s32.totalorder %s68, %s70
    %p77 = scmp.eq.s32.totalorder %s18, 1
    %p78 = por %p76, %p77
    %p79 = scmp.ne.s32.totalorder %s70, %s71
    %p80 = scmp.eq.s32.totalorder %s18, 0
    %p81 = por %p79, %p80
    %p82 = scmp.ne.s32.totalorder %s70, %s71
    %p83 = scmp.eq.s32.totalorder %s19, 1
    %p84 = por %p82, %p83
    %p86 = scmp.ne.s32.totalorder %s71, %s85
    %p87 = scmp.eq.s32.totalorder %s19, 0
    %p88 = por %p86, %p87
    %s90 = sadd.s32 %s89, 1
    %p93 = scmp.eq.s32.totalorder %s13, 1
    %p94 = scmp.ne.s32.totalorder %s89, %s91
    %p95 = scmp.eq.s32.totalorder %s13, 0
    %p96 = por %p94, %p95
    %p97 = scmp.ne.s32.totalorder %s89, %s91
    %p98 = scmp.eq.s32.totalorder %s18, 1
    %p99 = por %p97, %p98
    %p100 = scmp.ne.s32.totalorder %s91, %s92
    %p101 = scmp.eq.s32.totalorder %s18, 0
    %p102 = por %p100, %p101
    %p103 = scmp.ne.s32.totalorder %s91, %s92
    %p104 = scmp.eq.s32.totalorder %s19, 1
    %p105 = por %p103, %p104
    %p107 = scmp.ne.s32.totalorder %s92, %s106
    %p108 = scmp.eq.s32.totalorder %s19, 0
    %p109 = por %p107, %p108
    %s111 = sadd.s32 %s110, 1
    %p114 = scmp.eq.s32.totalorder %s13, 1
    %p115 = scmp.ne.s32.totalorder %s110, %s112
    %p116 = scmp.eq.s32.totalorder %s13, 0
    %p117 = por %p115, %p116
    %p118 = scmp.ne.s32.totalorder %s110, %s112
    %p119 = scmp.eq.s32.totalorder %s18, 1
    %p120 = por %p118, %p119
    %p121 = scmp.ne.s32.totalorder %s112, %s113
    %p122 = scmp.eq.s32.totalorder %s18, 0
    %p123 = por %p121, %p122
    %p124 = scmp.ne.s32.totalorder %s112, %s113
    %p125 = scmp.eq.s32.totalorder %s19, 1
    %p126 = por %p124, %p125
    %p128 = scmp.ne.s32.totalorder %s113, %s127
    %p129 = scmp.eq.s32.totalorder %s19, 0
    %p130 = por %p128, %p129
    %s132 = sadd.s32 %s131, 1
    %p135 = scmp.eq.s32.totalorder %s13, 1
    %p136 = scmp.ne.s32.totalorder %s131, %s133
    %p137 = scmp.eq.s32.totalorder %s13, 0
    %p138 = por %p136, %p137
    %p139 = scmp.ne.s32.totalorder %s131, %s133
    %p140 = scmp.eq.s32.totalorder %s18, 1
    %p141 = por %p139, %p140
    %p142 = scmp.ne.s32.totalorder %s133, %s134
    %p143 = scmp.eq.s32.totalorder %s18, 0
    %p144 = por %p142, %p143
    %p145 = scmp.ne.s32.totalorder %s133, %s134
    %p146 = scmp.eq.s32.totalorder %s19, 1
    %p147 = por %p145, %p146
    %p149 = scmp.ne.s32.totalorder %s134, %s148
    %p150 = scmp.eq.s32.totalorder %s19, 0
    %p151 = por %p149, %p150
    %s153 = sadd.s32 %s152, 1
    %p156 = scmp.eq.s32.totalorder %s13, 1
    %p157 = scmp.ne.s32.totalorder %s152, %s154
    %p158 = scmp.eq.s32.totalorder %s13, 0
    %p159 = por %p157, %p158
    %p160 = scmp.ne.s32.totalorder %s152, %s154
    %p161 = scmp.eq.s32.totalorder %s18, 1
    %p162 = por %p160, %p161
    %p163 = scmp.ne.s32.totalorder %s154, %s155
    %p164 = scmp.eq.s32.totalorder %s18, 0
    %p165 = por %p163, %p164
    %p166 = scmp.ne.s32.totalorder %s154, %s155
    %p167 = scmp.eq.s32.totalorder %s19, 1
    %p168 = por %p166, %p167
    %p170 = scmp.ne.s32.totalorder %s155, %s169
    %p171 = scmp.eq.s32.totalorder %s19, 0
    %p172 = por %p170, %p171
    %s173 = ssub.s32 %s13, %s20
    %p174 = scmp.eq.s32.totalorder %s173, 0
    %s176 = sadd.s32 %s175, 1
    %s177 = scalar_select %p174, %s175, %s176
    %p180 = pneg %p174
    %p181 = scmp.eq.s32.totalorder %s13, 1
    %p182 = por %p180, %p181
    %p183 = scmp.ne.s32.totalorder %s175, %s178
    %p184 = scmp.eq.s32.totalorder %s13, 0
    %p185 = por %p183, %p184
    %p186 = scmp.ne.s32.totalorder %s175, %s178
    %p187 = scmp.eq.s32.totalorder %s18, 1
    %p188 = por %p186, %p187
    %p189 = scmp.ne.s32.totalorder %s178, %s179
    %p190 = scmp.eq.s32.totalorder %s18, 0
    %p191 = por %p189, %p190
    %p192 = scmp.ne.s32.totalorder %s178, %s179
    %p193 = scmp.eq.s32.totalorder %s19, 1
    %p194 = por %p192, %p193
    %p196 = scmp.ne.s32.totalorder %s179, %s195
    %p197 = scmp.eq.s32.totalorder %s19, 0
    %p198 = por %p196, %p197
    %p199 = scmp.le.s32.totalorder 1, %s13
    %p200 = scmp.lt.s32.totalorder %s13, 3
    %p201 = pnand %p199, %p200
    %p202 = pneg %p201
    // Predicated region
    $region9: #{dense_block_0_forward.1} parent=5 // pred_check
      _
    $region10: #{dense_block_0_forward.1} parent=5 // pred_check_branch
      %204 = sbr.rel (%p201) target = $region12
    $region11: #{dense_block_0_forward.1} parent=5 // pred_region
      %s205 = ssub.s32 %s13, 1
      // Predicated region
      $region13: #{dense_block_0_forward.1} parent=11 // pred_check
        %p206 = pneg %p60
      $region14: #{dense_block_0_forward.1} parent=11 // pred_check_branch
        %208 = sbr.rel (%p206) target = $region16
      $region15: #{dense_block_0_forward.1} parent=11 // pred_region
        _
      $region16: #{dense_block_0_forward.1} parent=11 // pred_fallthru
        _
      // Predicated region
      $region17: #{dense_block_0_forward.1} parent=11 // pred_check
        %p209 = pneg %p81
      $region18: #{dense_block_0_forward.1} parent=11 // pred_check_branch
        %211 = sbr.rel (%p209) target = $region20
      $region19: #{dense_block_0_forward.1} parent=11 // pred_region
        _
      $region20: #{dense_block_0_forward.1} parent=11 // pred_fallthru
        _
      // Predicated region
      $region21: #{dense_block_0_forward.1} parent=11 // pred_check
        %p212 = pneg %p102
      $region22: #{dense_block_0_forward.1} parent=11 // pred_check_branch
        %214 = sbr.rel (%p212) target = $region24
      $region23: #{dense_block_0_forward.1} parent=11 // pred_region
        _
      $region24: #{dense_block_0_forward.1} parent=11 // pred_fallthru
        _
      // Predicated region
      $region25: #{dense_block_0_forward.1} parent=11 // pred_check
        %p215 = pneg %p123
      $region26: #{dense_block_0_forward.1} parent=11 // pred_check_branch
        %217 = sbr.rel (%p215) target = $region28
      $region27: #{dense_block_0_forward.1} parent=11 // pred_region
        _
      $region28: #{dense_block_0_forward.1} parent=11 // pred_fallthru
        _
      // Predicated region
      $region29: #{dense_block_0_forward.1} parent=11 // pred_check
        %p218 = pneg %p144
      $region30: #{dense_block_0_forward.1} parent=11 // pred_check_branch
        %220 = sbr.rel (%p218) target = $region32
      $region31: #{dense_block_0_forward.1} parent=11 // pred_region
        _
      $region32: #{dense_block_0_forward.1} parent=11 // pred_fallthru
        _
      // Predicated region
      $region33: #{dense_block_0_forward.1} parent=11 // pred_check
        %p221 = pneg %p165
      $region34: #{dense_block_0_forward.1} parent=11 // pred_check_branch
        %223 = sbr.rel (%p221) target = $region36
      $region35: #{dense_block_0_forward.1} parent=11 // pred_region
        _
      $region36: #{dense_block_0_forward.1} parent=11 // pred_fallthru
        _
    $region12: #{dense_block_0_forward.1} parent=5 // pred_fallthru
      _
    %p224 = scmp.lt.s32.totalorder %s13, 2
    // Predicated region
    $region37: #{dense_block_0_forward.1} parent=5 // pred_check
      %p225 = pneg %p224
    $region38: #{dense_block_0_forward.1} parent=5 // pred_check_branch
      %227 = sbr.rel (%p225) target = $region40
    $region39: #{dense_block_0_forward.1} parent=5 // pred_region
      // Predicated region
      $region41: #{dense_block_0_forward.1} parent=39 // pred_check
        %p228 = pneg %p33
      $region42: #{dense_block_0_forward.1} parent=39 // pred_check_branch
        %230 = sbr.rel (%p228) target = $region44
      $region43: #{dense_block_0_forward.1} parent=39 // pred_region
        %p231 = scmp.lt.s32.totalorder %s13, 1
        %s232 = scalar_select %p231, %s13, 1
        %s233 = smul.addr %s232, 32
        %s234 = smul.addr %s233, 4
        %s235 = scalar_lea.vmem %s0, %s234
      $region44: #{dense_block_0_forward.1} parent=39 // pred_fallthru
        _
    $region40: #{dense_block_0_forward.1} parent=5 // pred_fallthru
      _
    %p236 = scmp.le.s32.totalorder 1, %s13
    %p237 = scmp.lt.s32.totalorder %s13, 3
    %p238 = pnand %p236, %p237
    %p239 = pneg %p238
    // Predicated region
    $region45: #{dense_block_0_forward.1} parent=5 // pred_check
      _
    $region46: #{dense_block_0_forward.1} parent=5 // pred_check_branch
      %241 = sbr.rel (%p238) target = $region48
    $region47: #{dense_block_0_forward.1} parent=5 // pred_region
      %s242 = ssub.s32 %s13, 1
      %p243 = scmp.lt.s32.totalorder %s18, 1
      %s244 = scalar_select %p243, %s18, 1
      %s245 = smul.addr %s244, 32
      %s246 = smul.addr %s245, 4
      %s247 = scalar_lea.vmem %s0, %s246
      %p248 = pneg %p39
      %p249 = pneg %p36
      %p250 = pneg %p60
      %p251 = pneg %p57
      %p252 = pneg %p81
      %p253 = pneg %p78
      %p254 = pneg %p102
      %p255 = pneg %p99
      %p256 = pneg %p123
      %p257 = pneg %p120
      %p258 = pneg %p144
      %p259 = pneg %p141
      %p260 = pneg %p165
      %p261 = pneg %p162
      %p262 = pneg %p191
      %p263 = pneg %p188
      %p264 = scmp.lt.s32.totalorder %s18, 1
      %s265 = scalar_select %p264, %s18, 1
      %s266 = smul.addr %s265, 72
      %s267 = smul.addr %s266, 8
      %s268 = scalar_lea.vmem %s7, %s267
      %p269 = scmp.lt.s32.totalorder %s18, 1
      %s270 = scalar_select %p269, %s18, 1
      %s271 = smul.addr %s270, 32
      %s272 = smul.addr %s271, 4
      %s273 = scalar_lea.vmem %s0, %s272
      %p274 = scmp.lt.s32.totalorder %s18, 1
      %s275 = scalar_select %p274, %s18, 1
      %s276 = smul.addr %s275, 72
      %s277 = smul.addr %s276, 8
      %s278 = scalar_lea.vmem %s7, %s277
      %280 = vst [vmem:[#allocation2] sm:$0xf] 0
      %281 = vst [vmem:[#allocation2 + $0x4] sm:$0xf] 0
      %282 = vst [vmem:[#allocation2 + $0x8] sm:$0x1] 0
      %s283 = scalar_lea.vmem [#allocation2], 204
      %284 = vst [vmem:[%s283] sm:$0xf] 0
      %285 = vst [vmem:[%s283 + $0x4] sm:$0xf] 0
      %286 = vst [vmem:[%s283 + $0x8] sm:$0x1] 0
      %vm287 = vcmask 1040384
      %vm288 = vsmask.f32 256
      %vm289 = vmand %vm287, %vm288
      %v290 = vld [vmem:[#allocation2] sm:$0x1]
      %v291 = vsel %vm289, 0, %v290
      %292 = vst [vmem:[#allocation2] sm:$0x1] %v291
      %v293 = vld [vmem:[#allocation2 + $0xc] sm:$0x1]
      %v294 = vsel %vm289, 0, %v293
      %295 = vst [vmem:[#allocation2 + $0xc] sm:$0x1] %v294
      %v296 = vld [vmem:[#allocation2 + $0x18] sm:$0x1]
      %v297 = vsel %vm289, 0, %v296
      %298 = vst [vmem:[#allocation2 + $0x18] sm:$0x1] %v297
      %v299 = vld [vmem:[#allocation2 + $0x24] sm:$0x1]
      %v300 = vsel %vm289, 0, %v299
      %301 = vst [vmem:[#allocation2 + $0x24] sm:$0x1] %v300
      %v302 = vld [vmem:[#allocation2 + $0x30] sm:$0x1]
      %v303 = vsel %vm289, 0, %v302
      %304 = vst [vmem:[#allocation2 + $0x30] sm:$0x1] %v303
      %v305 = vld [vmem:[#allocation2 + $0x3c] sm:$0x1]
      %v306 = vsel %vm289, 0, %v305
      %307 = vst [vmem:[#allocation2 + $0x3c] sm:$0x1] %v306
      %v308 = vld [vmem:[#allocation2 + $0x48] sm:$0x1]
      %v309 = vsel %vm289, 0, %v308
      %310 = vst [vmem:[#allocation2 + $0x48] sm:$0x1] %v309
      %v311 = vld [vmem:[#allocation2 + $0x54] sm:$0x1]
      %v312 = vsel %vm289, 0, %v311
      %313 = vst [vmem:[#allocation2 + $0x54] sm:$0x1] %v312
      %v314 = vld [vmem:[#allocation2 + $0x60] sm:$0x1]
      %v315 = vsel %vm289, 0, %v314
      %316 = vst [vmem:[#allocation2 + $0x60] sm:$0x1] %v315
      %v317 = vld [vmem:[#allocation2 + $0x6c] sm:$0x1]
      %v318 = vsel %vm289, 0, %v317
      %319 = vst [vmem:[#allocation2 + $0x6c] sm:$0x1] %v318
      %v320 = vld [vmem:[#allocation2 + $0x78] sm:$0x1]
      %v321 = vsel %vm289, 0, %v320
      %322 = vst [vmem:[#allocation2 + $0x78] sm:$0x1] %v321
      %v323 = vld [vmem:[#allocation2 + $0x84] sm:$0x1]
      %v324 = vsel %vm289, 0, %v323
      %325 = vst [vmem:[#allocation2 + $0x84] sm:$0x1] %v324
      %v326 = vld [vmem:[#allocation2 + $0x90] sm:$0x1]
      %v327 = vsel %vm289, 0, %v326
      %328 = vst [vmem:[#allocation2 + $0x90] sm:$0x1] %v327
      %v329 = vld [vmem:[#allocation2 + $0x9c] sm:$0x1]
      %v330 = vsel %vm289, 0, %v329
      %331 = vst [vmem:[#allocation2 + $0x9c] sm:$0x1] %v330
      %v332 = vld [vmem:[#allocation2 + $0xa8] sm:$0x1]
      %v333 = vsel %vm289, 0, %v332
      %334 = vst [vmem:[#allocation2 + $0xa8] sm:$0x1] %v333
      %v335 = vld [vmem:[#allocation2 + $0xb4] sm:$0x1]
      %v336 = vsel %vm289, 0, %v335
      %337 = vst [vmem:[#allocation2 + $0xb4] sm:$0x1] %v336
      %v338 = vld [vmem:[#allocation2 + $0xc0] sm:$0x1]
      %v339 = vsel %vm289, 0, %v338
      %340 = vst [vmem:[#allocation2 + $0xc0] sm:$0x1] %v339
      %v341 = vld [vmem:[#allocation2 + $0xcc] sm:$0x1]
      %v342 = vsel %vm289, 0, %v341
      %343 = vst [vmem:[#allocation2 + $0xcc] sm:$0x1] %v342
      %vm344 = vsmask.f32 7938
      %vm345 = vmand %vm287, %vm344
      %v346 = vld [vmem:[#allocation2 + $0x8] sm:$0x1]
      %v347 = vsel %vm345, 0, %v346
      %348 = vst [vmem:[#allocation2 + $0x8] sm:$0x1] %v347
      %v349 = vld [vmem:[#allocation2 + $0x14] sm:$0x1]
      %v350 = vsel %vm345, 0, %v349
      %351 = vst [vmem:[#allocation2 + $0x14] sm:$0x1] %v350
      %v352 = vld [vmem:[#allocation2 + $0x20] sm:$0x1]
      %v353 = vsel %vm345, 0, %v352
      %354 = vst [vmem:[#allocation2 + $0x20] sm:$0x1] %v353
      %v355 = vld [vmem:[#allocation2 + $0x2c] sm:$0x1]
      %v356 = vsel %vm345, 0, %v355
      %357 = vst [vmem:[#allocation2 + $0x2c] sm:$0x1] %v356
      %v358 = vld [vmem:[#allocation2 + $0x38] sm:$0x1]
      %v359 = vsel %vm345, 0, %v358
      %360 = vst [vmem:[#allocation2 + $0x38] sm:$0x1] %v359
      %v361 = vld [vmem:[#allocation2 + $0x44] sm:$0x1]
      %v362 = vsel %vm345, 0, %v361
      %363 = vst [vmem:[#allocation2 + $0x44] sm:$0x1] %v362
      %v364 = vld [vmem:[#allocation2 + $0x50] sm:$0x1]
      %v365 = vsel %vm345, 0, %v364
      %366 = vst [vmem:[#allocation2 + $0x50] sm:$0x1] %v365
      %v367 = vld [vmem:[#allocation2 + $0x5c] sm:$0x1]
      %v368 = vsel %vm345, 0, %v367
      %369 = vst [vmem:[#allocation2 + $0x5c] sm:$0x1] %v368
      %v370 = vld [vmem:[#allocation2 + $0x68] sm:$0x1]
      %v371 = vsel %vm345, 0, %v370
      %372 = vst [vmem:[#allocation2 + $0x68] sm:$0x1] %v371
      %v373 = vld [vmem:[#allocation2 + $0x74] sm:$0x1]
      %v374 = vsel %vm345, 0, %v373
      %375 = vst [vmem:[#allocation2 + $0x74] sm:$0x1] %v374
      %v376 = vld [vmem:[#allocation2 + $0x80] sm:$0x1]
      %v377 = vsel %vm345, 0, %v376
      %378 = vst [vmem:[#allocation2 + $0x80] sm:$0x1] %v377
      %v379 = vld [vmem:[#allocation2 + $0x8c] sm:$0x1]
      %v380 = vsel %vm345, 0, %v379
      %381 = vst [vmem:[#allocation2 + $0x8c] sm:$0x1] %v380
      %v382 = vld [vmem:[#allocation2 + $0x98] sm:$0x1]
      %v383 = vsel %vm345, 0, %v382
      %384 = vst [vmem:[#allocation2 + $0x98] sm:$0x1] %v383
      %v385 = vld [vmem:[#allocation2 + $0xa4] sm:$0x1]
      %v386 = vsel %vm345, 0, %v385
      %387 = vst [vmem:[#allocation2 + $0xa4] sm:$0x1] %v386
      %v388 = vld [vmem:[#allocation2 + $0xb0] sm:$0x1]
      %v389 = vsel %vm345, 0, %v388
      %390 = vst [vmem:[#allocation2 + $0xb0] sm:$0x1] %v389
      %v391 = vld [vmem:[#allocation2 + $0xbc] sm:$0x1]
      %v392 = vsel %vm345, 0, %v391
      %393 = vst [vmem:[#allocation2 + $0xbc] sm:$0x1] %v392
      %v394 = vld [vmem:[#allocation2 + $0xc8] sm:$0x1]
      %v395 = vsel %vm345, 0, %v394
      %396 = vst [vmem:[#allocation2 + $0xc8] sm:$0x1] %v395
      %v397 = vld [vmem:[#allocation2 + $0xd4] sm:$0x1]
      %v398 = vsel %vm345, 0, %v397
      %399 = vst [vmem:[#allocation2 + $0xd4] sm:$0x1] %v398
      %v400 = vld [vmem:[%s273] sm:$0xf]
      %v401 = vld [vmem:[%s273 + $0x4] sm:$0xf]
      %v402 = vld [vmem:[%s273 + $0x8] sm:$0xf]
      %v403 = vld [vmem:[%s273 + $0xc] sm:$0xf]
      %v404 = vld [vmem:[%s273 + $0x10] sm:$0xf]
      %v405 = vld [vmem:[%s273 + $0x14] sm:$0xf]
      %v406 = vld [vmem:[%s273 + $0x18] sm:$0xf]
      %v407 = vld [vmem:[%s273 + $0x1c] sm:$0xf]
      %v408 = vld [vmem:[%s273 + $0x20] sm:$0xf]
      %v409 = vld [vmem:[%s273 + $0x24] sm:$0xf]
      %v410 = vld [vmem:[%s273 + $0x28] sm:$0xf]
      %v411 = vld [vmem:[%s273 + $0x2c] sm:$0xf]
      %v412 = vld [vmem:[%s273 + $0x30] sm:$0xf]
      %v413 = vld [vmem:[%s273 + $0x34] sm:$0xf]
      %v414 = vld [vmem:[%s273 + $0x38] sm:$0xf]
      %v415 = vld [vmem:[%s273 + $0x3c] sm:$0xf]
      %v416 = vld [vmem:[%s273 + $0x40] sm:$0xf]
      %v417 = vld [vmem:[%s273 + $0x44] sm:$0xf]
      %v418 = vld [vmem:[%s273 + $0x48] sm:$0xf]
      %v419 = vld [vmem:[%s273 + $0x4c] sm:$0xf]
      %v420 = vld [vmem:[%s273 + $0x50] sm:$0xf]
      %v421 = vld [vmem:[%s273 + $0x54] sm:$0xf]
      %v422 = vld [vmem:[%s273 + $0x58] sm:$0xf]
      %v423 = vld [vmem:[%s273 + $0x5c] sm:$0xf]
      %v424 = vld [vmem:[%s273 + $0x60] sm:$0xf]
      %v425 = vld [vmem:[%s273 + $0x64] sm:$0xf]
      %v426 = vld [vmem:[%s273 + $0x68] sm:$0xf]
      %v427 = vld [vmem:[%s273 + $0x6c] sm:$0xf]
      %v428 = vld [vmem:[%s273 + $0x70] sm:$0xf]
      %v429 = vld [vmem:[%s273 + $0x74] sm:$0xf]
      %v430 = vld [vmem:[%s273 + $0x78] sm:$0xf]
      %v431 = vld [vmem:[%s273 + $0x7c] sm:$0xf]
      %v432 = vld [vmem:[%s1] sm:$0xf]
      %v433 = vld [vmem:[%s1 + $0x4] sm:$0xf]
      %v434 = vld [vmem:[%s1 + $0x8] sm:$0xf]
      %v435 = vld [vmem:[%s1 + $0xc] sm:$0xf]
      %v436 = vld [vmem:[%s1 + $0x10] sm:$0x3]
      %v437 = vld [vmem:[%s4] sm:$0x1]
      %v439 = vlaneseq
      %v440 = vshrl.u32 %v439, 7
      %v441 = vsub.s32 0, %v440
      %v442 = vrot.slane %v437, %v441
      %v476 = vunpack.c.l.b16 %v400
      %v477 = vunpack.c.l.b16 %v401
      %v478 = vunpack.c.l.b16 %v402
      %v479 = vunpack.c.l.b16 %v403
      %v480 = vunpack.c.l.b16 %v404
      %v481 = vunpack.c.l.b16 %v405
      %v482 = vunpack.c.l.b16 %v406
      %v483 = vunpack.c.l.b16 %v407
      %v484 = vunpack.c.l.b16 %v408
      %v485 = vunpack.c.l.b16 %v409
      %v486 = vunpack.c.l.b16 %v410
      %v487 = vunpack.c.l.b16 %v411
      %v488 = vunpack.c.l.b16 %v412
      %v489 = vunpack.c.l.b16 %v413
      %v490 = vunpack.c.l.b16 %v414
      %v491 = vunpack.c.l.b16 %v415
      %v492 = vunpack.c.l.b16 %v416
      %v493 = vunpack.c.l.b16 %v417
      %v494 = vunpack.c.l.b16 %v418
      %v495 = vunpack.c.l.b16 %v419
      %v496 = vunpack.c.l.b16 %v420
      %v497 = vunpack.c.l.b16 %v421
      %v498 = vunpack.c.l.b16 %v422
      %v499 = vunpack.c.l.b16 %v423
      %v500 = vunpack.c.l.b16 %v424
      %v501 = vunpack.c.l.b16 %v425
      %v502 = vunpack.c.l.b16 %v426
      %v503 = vunpack.c.l.b16 %v427
      %v504 = vunpack.c.l.b16 %v428
      %v505 = vunpack.c.l.b16 %v429
      %v506 = vunpack.c.l.b16 %v430
      %v507 = vunpack.c.l.b16 %v431
      %v508 = vpack.c.b16 %v477, %v476
      %v509 = vpack.c.b16 %v479, %v478
      %v510 = vpack.c.b16 %v481, %v480
      %v511 = vpack.c.b16 %v483, %v482
      %v512 = vpack.c.b16 %v485, %v484
      %v513 = vpack.c.b16 %v487, %v486
      %v514 = vpack.c.b16 %v489, %v488
      %v515 = vpack.c.b16 %v491, %v490
      %v516 = vpack.c.b16 %v493, %v492
      %v517 = vpack.c.b16 %v495, %v494
      %v518 = vpack.c.b16 %v497, %v496
      %v519 = vpack.c.b16 %v499, %v498
      %v520 = vpack.c.b16 %v501, %v500
      %v521 = vpack.c.b16 %v503, %v502
      %v522 = vpack.c.b16 %v505, %v504
      %v523 = vpack.c.b16 %v507, %v506
      %v529 = vunpack.c.l.b16 %v432
      %v530 = vunpack.c.l.b16 %v433
      %v531 = vunpack.c.l.b16 %v434
      %v532 = vunpack.c.l.b16 %v435
      %v533 = vunpack.c.l.b16 %v436
      %v534 = vpack.c.b16 %v530, %v529
      %v535 = vpack.c.b16 %v532, %v531
      %v536 = vpack.c.b16 %v533, %v533
      %vm539 = vcmask 293888
      %v541 = vsel %vm539, %v508, 0
      %v544 = vsel %vm539, %v509, 0
      %v547 = vsel %vm539, %v510, 0
      %v550 = vsel %vm539, %v511, 0
      %v553 = vsel %vm539, %v512, 0
      %v556 = vsel %vm539, %v513, 0
      %v559 = vsel %vm539, %v514, 0
      %v562 = vsel %vm539, %v515, 0
      %v565 = vsel %vm539, %v516, 0
      %v568 = vsel %vm539, %v517, 0
      %v571 = vsel %vm539, %v518, 0
      %v574 = vsel %vm539, %v519, 0
      %v577 = vsel %vm539, %v520, 0
      %v580 = vsel %vm539, %v521, 0
      %v583 = vsel %vm539, %v522, 0
      %v586 = vsel %vm539, %v523, 0
      %vm588 = vcmask 1041408
      %v590 = vsel %vm588, %v536, 0
      %592 = vmatprep.subr.bf16.mxu0 0
      %593 = vmatpush1.bf16.msra.mxu0 0
      %594 = vmatprep.subr.bf16.mxu0 0
      %595 = vmatpush1.bf16.msra.mxu0 0
      %596 = vmatprep.subr.bf16.mxu0 0
      %597 = vmatpush1.bf16.msra.mxu0 0
      %598 = vmatprep.subr.bf16.mxu0 0
      %599 = vmatpush1.bf16.msra.mxu0 0
      %600 = vmatprep.subr.bf16.mxu0 0
      %601 = vmatpush1.bf16.msra.mxu0 0
      %602 = vmatprep.subr.bf16.mxu0 0
      %603 = vmatpush1.bf16.msra.mxu0 %v590
      %604 = vmatprep.subr.bf16.mxu0 0
      %605 = vmatpush1.bf16.msra.mxu0 %v535
      %606 = vmatprep.subr.bf16.mxu0 0
      %607 = vmatpush1.bf16.msra.mxu0 %v534
      %608 = vmatprep.subr.bf16.mxu0 0
      %609 = vmatpush2.bf16.msra.mxu0 0
      %610 = vmatprep.subr.bf16.mxu0 0
      %611 = vmatpush2.bf16.msra.mxu0 0
      %612 = vmatprep.subr.bf16.mxu0 0
      %613 = vmatpush2.bf16.msra.mxu0 0
      %614 = vmatprep.subr.bf16.mxu0 0
      %615 = vmatpush2.bf16.msra.mxu0 0
      %616 = vmatprep.subr.bf16.mxu0 0
      %617 = vmatpush2.bf16.msra.mxu0 0
      %618 = vmatprep.subr.bf16.mxu0 0
      %619 = vmatpush2.bf16.msra.mxu0 0
      %620 = vmatprep.subr.bf16.mxu0 0
      %621 = vmatpush2.bf16.msra.mxu0 0
      %622 = vmatprep.subr.bf16.mxu0 0
      %623 = vmatpush2.bf16.msra.mxu0 0
      %624 = vmatprep.mubr.bf16.mxu0 0
      %625 = vmatmul.mubr.bf16.gmra.mxu0 %v541
      %v626 = vpop.f32.mrf.mxu0
      %v627 = vadd.f32 %v442, %v626
      %v628 = vpop.f32.mrf.mxu0
      %v629 = vpop.f32.mrf.mxu0
      %v630 = vadd.f32 %v442, %v629
      %v631 = vpop.f32.mrf.mxu0
      %632 = vmatprep.mubr.bf16.mxu0 0
      %633 = vmatmul.mubr.bf16.gmra.mxu0 %v544
      %v634 = vpop.f32.mrf.mxu0
      %v635 = vadd.f32 %v442, %v634
      %v636 = vpop.f32.mrf.mxu0
      %v637 = vpop.f32.mrf.mxu0
      %v638 = vadd.f32 %v442, %v637
      %v639 = vpop.f32.mrf.mxu0
      %640 = vmatprep.mubr.bf16.mxu0 0
      %641 = vmatmul.mubr.bf16.gmra.mxu0 %v547
      %v642 = vpop.f32.mrf.mxu0
      %v643 = vadd.f32 %v442, %v642
      %v644 = vpop.f32.mrf.mxu0
      %v645 = vpop.f32.mrf.mxu0
      %v646 = vadd.f32 %v442, %v645
      %v647 = vpop.f32.mrf.mxu0
      %648 = vmatprep.mubr.bf16.mxu0 0
      %649 = vmatmul.mubr.bf16.gmra.mxu0 %v550
      %v650 = vpop.f32.mrf.mxu0
      %v651 = vadd.f32 %v442, %v650
      %v652 = vpop.f32.mrf.mxu0
      %v653 = vpop.f32.mrf.mxu0
      %v654 = vadd.f32 %v442, %v653
      %v655 = vpop.f32.mrf.mxu0
      %656 = vmatprep.mubr.bf16.mxu0 0
      %657 = vmatmul.mubr.bf16.gmra.mxu0 %v553
      %v658 = vpop.f32.mrf.mxu0
      %v659 = vadd.f32 %v442, %v658
      %v660 = vpop.f32.mrf.mxu0
      %v661 = vpop.f32.mrf.mxu0
      %v662 = vadd.f32 %v442, %v661
      %v663 = vpop.f32.mrf.mxu0
      %664 = vmatprep.mubr.bf16.mxu0 0
      %665 = vmatmul.mubr.bf16.gmra.mxu0 %v556
      %v666 = vpop.f32.mrf.mxu0
      %v667 = vadd.f32 %v442, %v666
      %v668 = vpop.f32.mrf.mxu0
      %v669 = vpop.f32.mrf.mxu0
      %v670 = vadd.f32 %v442, %v669
      %v671 = vpop.f32.mrf.mxu0
      %672 = vmatprep.mubr.bf16.mxu0 0
      %673 = vmatmul.mubr.bf16.gmra.mxu0 %v559
      %v674 = vpop.f32.mrf.mxu0
      %v675 = vadd.f32 %v442, %v674
      %v676 = vpop.f32.mrf.mxu0
      %v677 = vpop.f32.mrf.mxu0
      %v678 = vadd.f32 %v442, %v677
      %v679 = vpop.f32.mrf.mxu0
      %680 = vmatprep.mubr.bf16.mxu0 0
      %681 = vmatmul.mubr.bf16.gmra.mxu0 %v562
      %v682 = vpop.f32.mrf.mxu0
      %v683 = vadd.f32 %v442, %v682
      %v684 = vpop.f32.mrf.mxu0
      %v685 = vpop.f32.mrf.mxu0
      %v686 = vadd.f32 %v442, %v685
      %v687 = vpop.f32.mrf.mxu0
      %688 = vmatprep.mubr.bf16.mxu0 0
      %689 = vmatmul.mubr.bf16.gmra.mxu0 %v565
      %v690 = vpop.f32.mrf.mxu0
      %v691 = vadd.f32 %v442, %v690
      %v692 = vpop.f32.mrf.mxu0
      %v693 = vpop.f32.mrf.mxu0
      %v694 = vadd.f32 %v442, %v693
      %v695 = vpop.f32.mrf.mxu0
      %696 = vmatprep.mubr.bf16.mxu0 0
      %697 = vmatmul.mubr.bf16.gmra.mxu0 %v568
      %v698 = vpop.f32.mrf.mxu0
      %v699 = vadd.f32 %v442, %v698
      %v700 = vpop.f32.mrf.mxu0
      %v701 = vpop.f32.mrf.mxu0
      %v702 = vadd.f32 %v442, %v701
      %v703 = vpop.f32.mrf.mxu0
      %704 = vmatprep.mubr.bf16.mxu0 0
      %705 = vmatmul.mubr.bf16.gmra.mxu0 %v571
      %v706 = vpop.f32.mrf.mxu0
      %v707 = vadd.f32 %v442, %v706
      %v708 = vpop.f32.mrf.mxu0
      %v709 = vpop.f32.mrf.mxu0
      %v710 = vadd.f32 %v442, %v709
      %v711 = vpop.f32.mrf.mxu0
      %712 = vmatprep.mubr.bf16.mxu0 0
      %713 = vmatmul.mubr.bf16.gmra.mxu0 %v574
      %v714 = vpop.f32.mrf.mxu0
      %v715 = vadd.f32 %v442, %v714
      %v716 = vpop.f32.mrf.mxu0
      %v717 = vpop.f32.mrf.mxu0
      %v718 = vadd.f32 %v442, %v717
      %v719 = vpop.f32.mrf.mxu0
      %720 = vmatprep.mubr.bf16.mxu0 0
      %721 = vmatmul.mubr.bf16.gmra.mxu0 %v577
      %v722 = vpop.f32.mrf.mxu0
      %v723 = vadd.f32 %v442, %v722
      %v724 = vpop.f32.mrf.mxu0
      %v725 = vpop.f32.mrf.mxu0
      %v726 = vadd.f32 %v442, %v725
      %v727 = vpop.f32.mrf.mxu0
      %728 = vmatprep.mubr.bf16.mxu0 0
      %729 = vmatmul.mubr.bf16.gmra.mxu0 %v580
      %v730 = vpop.f32.mrf.mxu0
      %v731 = vadd.f32 %v442, %v730
      %v732 = vpop.f32.mrf.mxu0
      %v733 = vpop.f32.mrf.mxu0
      %v734 = vadd.f32 %v442, %v733
      %v735 = vpop.f32.mrf.mxu0
      %736 = vmatprep.mubr.bf16.mxu0 0
      %737 = vmatmul.mubr.bf16.gmra.mxu0 %v583
      %v738 = vpop.f32.mrf.mxu0
      %v739 = vadd.f32 %v442, %v738
      %v740 = vpop.f32.mrf.mxu0
      %v741 = vpop.f32.mrf.mxu0
      %v742 = vadd.f32 %v442, %v741
      %v743 = vpop.f32.mrf.mxu0
      %744 = vmatprep.mubr.bf16.mxu0 0
      %745 = vmatmul.mubr.bf16.gmra.mxu0 %v586
      %v746 = vpop.f32.mrf.mxu0
      %v747 = vadd.f32 %v442, %v746
      %v748 = vpop.f32.mrf.mxu0
      %v749 = vpop.f32.mrf.mxu0
      %v750 = vadd.f32 %v442, %v749
      %v751 = vpop.f32.mrf.mxu0
      %752 = vdwg.mxu0
      %v753 = vmax.f32 %v627, 0.0
      %v754 = vmax.f32 %v630, 0.0
      %v755 = vmax.f32 %v635, 0.0
      %v756 = vmax.f32 %v638, 0.0
      %v757 = vmax.f32 %v643, 0.0
      %v758 = vmax.f32 %v646, 0.0
      %v759 = vmax.f32 %v651, 0.0
      %v760 = vmax.f32 %v654, 0.0
      %v761 = vmax.f32 %v659, 0.0
      %v762 = vmax.f32 %v662, 0.0
      %v763 = vmax.f32 %v667, 0.0
      %v764 = vmax.f32 %v670, 0.0
      %v765 = vmax.f32 %v675, 0.0
      %v766 = vmax.f32 %v678, 0.0
      %v767 = vmax.f32 %v683, 0.0
      %v768 = vmax.f32 %v686, 0.0
      %v769 = vmax.f32 %v691, 0.0
      %v770 = vmax.f32 %v694, 0.0
      %v771 = vmax.f32 %v699, 0.0
      %v772 = vmax.f32 %v702, 0.0
      %v773 = vmax.f32 %v707, 0.0
      %v774 = vmax.f32 %v710, 0.0
      %v775 = vmax.f32 %v715, 0.0
      %v776 = vmax.f32 %v718, 0.0
      %v777 = vmax.f32 %v723, 0.0
      %v778 = vmax.f32 %v726, 0.0
      %v779 = vmax.f32 %v731, 0.0
      %v780 = vmax.f32 %v734, 0.0
      %v781 = vmax.f32 %v739, 0.0
      %v782 = vmax.f32 %v742, 0.0
      %v783 = vmax.f32 %v747, 0.0
      %v784 = vmax.f32 %v750, 0.0
      %785 = vxpose.xlu0.b32.start [1/16] %v753, 128
      %786 = vxpose.xlu0.b32.cont [2/16] %v754, 128
      %787 = vxpose.xlu0.b32.cont [3/16] %v755, 128
      %788 = vxpose.xlu0.b32.cont [4/16] %v756, 128
      %789 = vxpose.xlu0.b32.cont [5/16] %v757, 128
      %790 = vxpose.xlu0.b32.cont [6/16] %v758, 128
      %791 = vxpose.xlu0.b32.cont [7/16] %v759, 128
      %792 = vxpose.xlu0.b32.cont [8/16] %v760, 128
      %793 = vxpose.xlu0.b32.cont [9/16] %v761, 128
      %794 = vxpose.xlu0.b32.cont [10/16] %v762, 128
      %795 = vxpose.xlu0.b32.cont [11/16] %v763, 128
      %796 = vxpose.xlu0.b32.cont [12/16] %v764, 128
      %797 = vxpose.xlu0.b32.cont [13/16] %v765, 128
      %798 = vxpose.xlu0.b32.cont [14/16] %v766, 128
      %799 = vxpose.xlu0.b32.cont [15/16] %v767, 128
      %800 = vxpose.xlu0.b32.end [16/16] %v768, 128
      %v801 = vpop.trf.xlu0
      %v802 = vpop.trf.xlu0
      %v803 = vpop.trf.xlu0
      %v804 = vpop.trf.xlu0
      %v805 = vpop.trf.xlu0
      %v806 = vpop.trf.xlu0
      %v807 = vpop.trf.xlu0
      %v808 = vpop.trf.xlu0
      %v809 = vpop.trf.xlu0
      %v810 = vpop.trf.xlu0
      %v811 = vpop.trf.xlu0
      %v812 = vpop.trf.xlu0
      %v813 = vpop.trf.xlu0
      %v814 = vpop.trf.xlu0
      %v815 = vpop.trf.xlu0
      %v816 = vpop.trf.xlu0
      %817 = vxpose.xlu0.b32.start [1/16] %v769, 128
      %818 = vxpose.xlu0.b32.cont [2/16] %v770, 128
      %819 = vxpose.xlu0.b32.cont [3/16] %v771, 128
      %820 = vxpose.xlu0.b32.cont [4/16] %v772, 128
      %821 = vxpose.xlu0.b32.cont [5/16] %v773, 128
      %822 = vxpose.xlu0.b32.cont [6/16] %v774, 128
      %823 = vxpose.xlu0.b32.cont [7/16] %v775, 128
      %824 = vxpose.xlu0.b32.cont [8/16] %v776, 128
      %825 = vxpose.xlu0.b32.cont [9/16] %v777, 128
      %826 = vxpose.xlu0.b32.cont [10/16] %v778, 128
      %827 = vxpose.xlu0.b32.cont [11/16] %v779, 128
      %828 = vxpose.xlu0.b32.cont [12/16] %v780, 128
      %829 = vxpose.xlu0.b32.cont [13/16] %v781, 128
      %830 = vxpose.xlu0.b32.cont [14/16] %v782, 128
      %831 = vxpose.xlu0.b32.cont [15/16] %v783, 128
      %832 = vxpose.xlu0.b32.end [16/16] %v784, 128
      %v833 = vpop.trf.xlu0
      %v834 = vpop.trf.xlu0
      %v835 = vpop.trf.xlu0
      %v836 = vpop.trf.xlu0
      %v837 = vpop.trf.xlu0
      %v838 = vpop.trf.xlu0
      %v839 = vpop.trf.xlu0
      %v840 = vpop.trf.xlu0
      %v841 = vpop.trf.xlu0
      %v842 = vpop.trf.xlu0
      %v843 = vpop.trf.xlu0
      %v844 = vpop.trf.xlu0
      %v845 = vpop.trf.xlu0
      %v846 = vpop.trf.xlu0
      %v847 = vpop.trf.xlu0
      %v848 = vpop.trf.xlu0
      %849 = vst [vmem:[%s278] sm:$0xff] %v801
      %850 = vst [vmem:[%s278 + $0x8] sm:$0xff] %v833
      %851 = vst [vmem:[%s278 + $0x10] sm:$0xff] %v802
      %852 = vst [vmem:[%s278 + $0x18] sm:$0xff] %v834
      %853 = vst [vmem:[%s278 + $0x20] sm:$0xff] %v803
      %854 = vst [vmem:[%s278 + $0x28] sm:$0xff] %v835
      %855 = vst [vmem:[%s278 + $0x30] sm:$0xff] %v804
      %856 = vst [vmem:[%s278 + $0x38] sm:$0xff] %v836
      %857 = vst [vmem:[%s278 + $0x40] sm:$0xff] %v805
      %858 = vst [vmem:[%s278 + $0x48] sm:$0xff] %v837
      %859 = vst [vmem:[%s278 + $0x50] sm:$0xff] %v806
      %860 = vst [vmem:[%s278 + $0x58] sm:$0xff] %v838
      %861 = vst [vmem:[%s278 + $0x60] sm:$0xff] %v807
      %862 = vst [vmem:[%s278 + $0x68] sm:$0xff] %v839
      %863 = vst [vmem:[%s278 + $0x70] sm:$0xff] %v808
      %864 = vst [vmem:[%s278 + $0x78] sm:$0xff] %v840
      %865 = vst [vmem:[%s278 + $0x80] sm:$0xff] %v809
      %866 = vst [vmem:[%s278 + $0x88] sm:$0xff] %v841
      %867 = vst [vmem:[%s278 + $0x90] sm:$0xff] %v810
      %868 = vst [vmem:[%s278 + $0x98] sm:$0xff] %v842
      %869 = vst [vmem:[%s278 + $0xa0] sm:$0xff] %v811
      %870 = vst [vmem:[%s278 + $0xa8] sm:$0xff] %v843
      %871 = vst [vmem:[%s278 + $0xb0] sm:$0xff] %v812
      %872 = vst [vmem:[%s278 + $0xb8] sm:$0xff] %v844
      %v873 = vpack.c.bf16 %v754, %v753
      %v874 = vpack.c.bf16 %v756, %v755
      %v875 = vpack.c.bf16 %v758, %v757
      %v876 = vpack.c.bf16 %v760, %v759
      %v877 = vpack.c.bf16 %v762, %v761
      %v878 = vpack.c.bf16 %v764, %v763
      %v879 = vpack.c.bf16 %v766, %v765
      %v880 = vpack.c.bf16 %v768, %v767
      %v881 = vpack.c.bf16 %v770, %v769
      %v882 = vpack.c.bf16 %v772, %v771
      %v883 = vpack.c.bf16 %v774, %v773
      %v884 = vpack.c.bf16 %v776, %v775
      %v885 = vpack.c.bf16 %v778, %v777
      %v886 = vpack.c.bf16 %v780, %v779
      %v887 = vpack.c.bf16 %v782, %v781
      %v888 = vpack.c.bf16 %v784, %v783
      %v905 = vunpack.c.l.b16 %v873
      %v906 = vunpack.c.h.b16 %v873
      %v907 = vunpack.c.l.b16 %v874
      %v908 = vunpack.c.h.b16 %v874
      %v909 = vunpack.c.l.b16 %v875
      %v910 = vunpack.c.h.b16 %v875
      %v911 = vunpack.c.l.b16 %v876
      %v912 = vunpack.c.h.b16 %v876
      %v913 = vunpack.c.l.b16 %v877
      %v914 = vunpack.c.h.b16 %v877
      %v915 = vunpack.c.l.b16 %v878
      %v916 = vunpack.c.h.b16 %v878
      %v917 = vunpack.c.l.b16 %v879
      %v918 = vunpack.c.h.b16 %v879
      %v919 = vunpack.c.l.b16 %v880
      %v920 = vunpack.c.h.b16 %v880
      %v921 = vunpack.c.l.b16 %v881
      %v922 = vunpack.c.h.b16 %v881
      %v923 = vunpack.c.l.b16 %v882
      %v924 = vunpack.c.h.b16 %v882
      %v925 = vunpack.c.l.b16 %v883
      %v926 = vunpack.c.h.b16 %v883
      %v927 = vunpack.c.l.b16 %v884
      %v928 = vunpack.c.h.b16 %v884
      %v929 = vunpack.c.l.b16 %v885
      %v930 = vunpack.c.h.b16 %v885
      %v931 = vunpack.c.l.b16 %v886
      %v932 = vunpack.c.h.b16 %v886
      %v933 = vunpack.c.l.b16 %v887
      %v934 = vunpack.c.h.b16 %v887
      %v935 = vunpack.c.l.b16 %v888
      %v936 = vunpack.c.h.b16 %v888
      %v937 = vpack.c.b16 %v905, %v905
      %v938 = vpack.c.b16 %v906, %v906
      %v939 = vpack.c.b16 %v907, %v907
      %v940 = vpack.c.b16 %v908, %v908
      %v941 = vpack.c.b16 %v909, %v909
      %v942 = vpack.c.b16 %v910, %v910
      %v943 = vpack.c.b16 %v911, %v911
      %v944 = vpack.c.b16 %v912, %v912
      %v945 = vpack.c.b16 %v913, %v913
      %v946 = vpack.c.b16 %v914, %v914
      %v947 = vpack.c.b16 %v915, %v915
      %v948 = vpack.c.b16 %v916, %v916
      %v949 = vpack.c.b16 %v917, %v917
      %v950 = vpack.c.b16 %v918, %v918
      %v951 = vpack.c.b16 %v919, %v919
      %v952 = vpack.c.b16 %v920, %v920
      %v953 = vpack.c.b16 %v921, %v921
      %v954 = vpack.c.b16 %v922, %v922
      %v955 = vpack.c.b16 %v923, %v923
      %v956 = vpack.c.b16 %v924, %v924
      %v957 = vpack.c.b16 %v925, %v925
      %v958 = vpack.c.b16 %v926, %v926
      %v959 = vpack.c.b16 %v927, %v927
      %v960 = vpack.c.b16 %v928, %v928
      %v961 = vpack.c.b16 %v929, %v929
      %v962 = vpack.c.b16 %v930, %v930
      %v963 = vpack.c.b16 %v931, %v931
      %v964 = vpack.c.b16 %v932, %v932
      %v965 = vpack.c.b16 %v933, %v933
      %v966 = vpack.c.b16 %v934, %v934
      %v967 = vpack.c.b16 %v935, %v935
      %v968 = vpack.c.b16 %v936, %v936
      %vm969 = vsmask.f32 4368
      %vm970 = vmor %vm288, %vm969
      %v972 = vshrl.u32 %v937, 16
      %v974 = vrot.slane %v972, 7
      %v975 = vshll.u32 %v937, 16
      %v977 = vor.u32 %v974, %v975
      %v978 = vrot.slane %v974, 4
      %v980 = vshrl.u32 %v938, 16
      %v982 = vrot.slane %v980, 7
      %v983 = vshll.u32 %v938, 16
      %v985 = vor.u32 %v982, %v983
      %v986 = vsel %vm970, %v978, %v985
      %v987 = vrot.slane %v982, 4
      %v989 = vshrl.u32 %v939, 16
      %v991 = vrot.slane %v989, 7
      %v992 = vshll.u32 %v939, 16
      %v994 = vor.u32 %v991, %v992
      %v995 = vrot.slane %v991, 4
      %v997 = vshrl.u32 %v940, 16
      %v999 = vrot.slane %v997, 7
      %v1000 = vshll.u32 %v940, 16
      %v1002 = vor.u32 %v999, %v1000
      %v1003 = vsel %vm970, %v995, %v1002
      %v1004 = vrot.slane %v999, 4
      %v1006 = vshrl.u32 %v941, 16
      %v1008 = vrot.slane %v1006, 7
      %v1009 = vshll.u32 %v941, 16
      %v1011 = vor.u32 %v1008, %v1009
      %v1012 = vrot.slane %v1008, 4
      %v1014 = vshrl.u32 %v942, 16
      %v1016 = vrot.slane %v1014, 7
      %v1017 = vshll.u32 %v942, 16
      %v1019 = vor.u32 %v1016, %v1017
      %v1020 = vsel %vm970, %v1012, %v1019
      %v1021 = vrot.slane %v1016, 4
      %v1023 = vshrl.u32 %v943, 16
      %v1025 = vrot.slane %v1023, 7
      %v1026 = vshll.u32 %v943, 16
      %v1028 = vor.u32 %v1025, %v1026
      %v1029 = vrot.slane %v1025, 4
      %v1031 = vshrl.u32 %v944, 16
      %v1033 = vrot.slane %v1031, 7
      %v1034 = vshll.u32 %v944, 16
      %v1036 = vor.u32 %v1033, %v1034
      %v1037 = vsel %vm970, %v1029, %v1036
      %v1038 = vrot.slane %v1033, 4
      %v1040 = vshrl.u32 %v945, 16
      %v1042 = vrot.slane %v1040, 7
      %v1043 = vshll.u32 %v945, 16
      %v1045 = vor.u32 %v1042, %v1043
      %v1046 = vrot.slane %v1042, 4
      %v1048 = vshrl.u32 %v946, 16
      %v1050 = vrot.slane %v1048, 7
      %v1051 = vshll.u32 %v946, 16
      %v1053 = vor.u32 %v1050, %v1051
      %v1054 = vsel %vm970, %v1046, %v1053
      %v1055 = vrot.slane %v1050, 4
      %v1057 = vshrl.u32 %v947, 16
      %v1059 = vrot.slane %v1057, 7
      %v1060 = vshll.u32 %v947, 16
      %v1062 = vor.u32 %v1059, %v1060
      %v1063 = vrot.slane %v1059, 4
      %v1065 = vshrl.u32 %v948, 16
      %v1067 = vrot.slane %v1065, 7
      %v1068 = vshll.u32 %v948, 16
      %v1070 = vor.u32 %v1067, %v1068
      %v1071 = vsel %vm970, %v1063, %v1070
      %v1072 = vrot.slane %v1067, 4
      %v1074 = vshrl.u32 %v949, 16
      %v1076 = vrot.slane %v1074, 7
      %v1077 = vshll.u32 %v949, 16
      %v1079 = vor.u32 %v1076, %v1077
      %v1080 = vrot.slane %v1076, 4
      %v1082 = vshrl.u32 %v950, 16
      %v1084 = vrot.slane %v1082, 7
      %v1085 = vshll.u32 %v950, 16
      %v1087 = vor.u32 %v1084, %v1085
      %v1088 = vsel %vm970, %v1080, %v1087
      %v1089 = vrot.slane %v1084, 4
      %v1091 = vshrl.u32 %v951, 16
      %v1093 = vrot.slane %v1091, 7
      %v1094 = vshll.u32 %v951, 16
      %v1096 = vor.u32 %v1093, %v1094
      %v1097 = vrot.slane %v1093, 4
      %v1099 = vshrl.u32 %v952, 16
      %v1101 = vrot.slane %v1099, 7
      %v1102 = vshll.u32 %v952, 16
      %v1104 = vor.u32 %v1101, %v1102
      %v1105 = vsel %vm970, %v1097, %v1104
      %v1106 = vrot.slane %v1101, 4
      %v1108 = vshrl.u32 %v953, 16
      %v1110 = vrot.slane %v1108, 7
      %v1111 = vshll.u32 %v953, 16
      %v1113 = vor.u32 %v1110, %v1111
      %v1114 = vrot.slane %v1110, 4
      %v1116 = vshrl.u32 %v954, 16
      %v1118 = vrot.slane %v1116, 7
      %v1119 = vshll.u32 %v954, 16
      %v1121 = vor.u32 %v1118, %v1119
      %v1122 = vsel %vm970, %v1114, %v1121
      %v1123 = vrot.slane %v1118, 4
      %v1125 = vshrl.u32 %v955, 16
      %v1127 = vrot.slane %v1125, 7
      %v1128 = vshll.u32 %v955, 16
      %v1130 = vor.u32 %v1127, %v1128
      %v1131 = vrot.slane %v1127, 4
      %v1133 = vshrl.u32 %v956, 16
      %v1135 = vrot.slane %v1133, 7
      %v1136 = vshll.u32 %v956, 16
      %v1138 = vor.u32 %v1135, %v1136
      %v1139 = vsel %vm970, %v1131, %v1138
      %v1140 = vrot.slane %v1135, 4
      %v1142 = vshrl.u32 %v957, 16
      %v1144 = vrot.slane %v1142, 7
      %v1145 = vshll.u32 %v957, 16
      %v1147 = vor.u32 %v1144, %v1145
      %v1148 = vrot.slane %v1144, 4
      %v1150 = vshrl.u32 %v958, 16
      %v1152 = vrot.slane %v1150, 7
      %v1153 = vshll.u32 %v958, 16
      %v1155 = vor.u32 %v1152, %v1153
      %v1156 = vsel %vm970, %v1148, %v1155
      %v1157 = vrot.slane %v1152, 4
      %v1159 = vshrl.u32 %v959, 16
      %v1161 = vrot.slane %v1159, 7
      %v1162 = vshll.u32 %v959, 16
      %v1164 = vor.u32 %v1161, %v1162
      %v1165 = vrot.slane %v1161, 4
      %v1167 = vshrl.u32 %v960, 16
      %v1169 = vrot.slane %v1167, 7
      %v1170 = vshll.u32 %v960, 16
      %v1172 = vor.u32 %v1169, %v1170
      %v1173 = vsel %vm970, %v1165, %v1172
      %v1174 = vrot.slane %v1169, 4
      %v1176 = vshrl.u32 %v961, 16
      %v1178 = vrot.slane %v1176, 7
      %v1179 = vshll.u32 %v961, 16
      %v1181 = vor.u32 %v1178, %v1179
      %v1182 = vrot.slane %v1178, 4
      %v1184 = vshrl.u32 %v962, 16
      %v1186 = vrot.slane %v1184, 7
      %v1187 = vshll.u32 %v962, 16
      %v1189 = vor.u32 %v1186, %v1187
      %v1190 = vsel %vm970, %v1182, %v1189
      %v1191 = vrot.slane %v1186, 4
      %v1193 = vshrl.u32 %v963, 16
      %v1195 = vrot.slane %v1193, 7
      %v1196 = vshll.u32 %v963, 16
      %v1198 = vor.u32 %v1195, %v1196
      %v1199 = vrot.slane %v1195, 4
      %v1201 = vshrl.u32 %v964, 16
      %v1203 = vrot.slane %v1201, 7
      %v1204 = vshll.u32 %v964, 16
      %v1206 = vor.u32 %v1203, %v1204
      %v1207 = vsel %vm970, %v1199, %v1206
      %v1208 = vrot.slane %v1203, 4
      %v1210 = vshrl.u32 %v965, 16
      %v1212 = vrot.slane %v1210, 7
      %v1213 = vshll.u32 %v965, 16
      %v1215 = vor.u32 %v1212, %v1213
      %v1216 = vrot.slane %v1212, 4
      %v1218 = vshrl.u32 %v966, 16
      %v1220 = vrot.slane %v1218, 7
      %v1221 = vshll.u32 %v966, 16
      %v1223 = vor.u32 %v1220, %v1221
      %v1224 = vsel %vm970, %v1216, %v1223
      %v1225 = vrot.slane %v1220, 4
      %v1227 = vshrl.u32 %v967, 16
      %v1229 = vrot.slane %v1227, 7
      %v1230 = vshll.u32 %v967, 16
      %v1232 = vor.u32 %v1229, %v1230
      %v1233 = vrot.slane %v1229, 4
      %v1235 = vshrl.u32 %v968, 16
      %v1237 = vrot.slane %v1235, 7
      %v1238 = vshll.u32 %v968, 16
      %v1240 = vor.u32 %v1237, %v1238
      %v1241 = vsel %vm970, %v1233, %v1240
      %v1242 = vrot.slane %v1237, 4
      %s1291 = scalar_lea.vmem [#allocation2], 12
      %vm1292 = vcmask 1043456
      %vm1293 = vmand %vm1292, %vm344
      %v1294 = vld [vmem:[%s1291] sm:$0xf]
      %v1295 = vsel %vm1293, %v977, %v1294
      %1296 = vst [vmem:[%s1291] sm:$0xf] %v1295
      %1297 = vst [vmem:[%s1291 + $0x4] sm:$0xf] %v986
      %v1298 = vld [vmem:[%s1291 + $0x8] sm:$0x1]
      %v1299 = vsel %vm289, %v987, %v1298
      %1300 = vst [vmem:[%s1291 + $0x8] sm:$0x1] %v1299
      %v1301 = vld [vmem:[%s1291 + $0xc] sm:$0xf]
      %v1302 = vsel %vm1293, %v994, %v1301
      %1303 = vst [vmem:[%s1291 + $0xc] sm:$0xf] %v1302
      %1304 = vst [vmem:[%s1291 + $0x10] sm:$0xf] %v1003
      %v1305 = vld [vmem:[%s1291 + $0x14] sm:$0x1]
      %v1306 = vsel %vm289, %v1004, %v1305
      %1307 = vst [vmem:[%s1291 + $0x14] sm:$0x1] %v1306
      %v1308 = vld [vmem:[%s1291 + $0x18] sm:$0xf]
      %v1309 = vsel %vm1293, %v1011, %v1308
      %1310 = vst [vmem:[%s1291 + $0x18] sm:$0xf] %v1309
      %1311 = vst [vmem:[%s1291 + $0x1c] sm:$0xf] %v1020
      %v1312 = vld [vmem:[%s1291 + $0x20] sm:$0x1]
      %v1313 = vsel %vm289, %v1021, %v1312
      %1314 = vst [vmem:[%s1291 + $0x20] sm:$0x1] %v1313
      %v1315 = vld [vmem:[%s1291 + $0x24] sm:$0xf]
      %v1316 = vsel %vm1293, %v1028, %v1315
      %1317 = vst [vmem:[%s1291 + $0x24] sm:$0xf] %v1316
      %1318 = vst [vmem:[%s1291 + $0x28] sm:$0xf] %v1037
      %v1319 = vld [vmem:[%s1291 + $0x2c] sm:$0x1]
      %v1320 = vsel %vm289, %v1038, %v1319
      %1321 = vst [vmem:[%s1291 + $0x2c] sm:$0x1] %v1320
      %v1322 = vld [vmem:[%s1291 + $0x30] sm:$0xf]
      %v1323 = vsel %vm1293, %v1045, %v1322
      %1324 = vst [vmem:[%s1291 + $0x30] sm:$0xf] %v1323
      %1325 = vst [vmem:[%s1291 + $0x34] sm:$0xf] %v1054
      %v1326 = vld [vmem:[%s1291 + $0x38] sm:$0x1]
      %v1327 = vsel %vm289, %v1055, %v1326
      %1328 = vst [vmem:[%s1291 + $0x38] sm:$0x1] %v1327
      %v1329 = vld [vmem:[%s1291 + $0x3c] sm:$0xf]
      %v1330 = vsel %vm1293, %v1062, %v1329
      %1331 = vst [vmem:[%s1291 + $0x3c] sm:$0xf] %v1330
      %1332 = vst [vmem:[%s1291 + $0x40] sm:$0xf] %v1071
      %v1333 = vld [vmem:[%s1291 + $0x44] sm:$0x1]
      %v1334 = vsel %vm289, %v1072, %v1333
      %1335 = vst [vmem:[%s1291 + $0x44] sm:$0x1] %v1334
      %v1336 = vld [vmem:[%s1291 + $0x48] sm:$0xf]
      %v1337 = vsel %vm1293, %v1079, %v1336
      %1338 = vst [vmem:[%s1291 + $0x48] sm:$0xf] %v1337
      %1339 = vst [vmem:[%s1291 + $0x4c] sm:$0xf] %v1088
      %v1340 = vld [vmem:[%s1291 + $0x50] sm:$0x1]
      %v1341 = vsel %vm289, %v1089, %v1340
      %1342 = vst [vmem:[%s1291 + $0x50] sm:$0x1] %v1341
      %v1343 = vld [vmem:[%s1291 + $0x54] sm:$0xf]
      %v1344 = vsel %vm1293, %v1096, %v1343
      %1345 = vst [vmem:[%s1291 + $0x54] sm:$0xf] %v1344
      %1346 = vst [vmem:[%s1291 + $0x58] sm:$0xf] %v1105
      %v1347 = vld [vmem:[%s1291 + $0x5c] sm:$0x1]
      %v1348 = vsel %vm289, %v1106, %v1347
      %1349 = vst [vmem:[%s1291 + $0x5c] sm:$0x1] %v1348
      %v1350 = vld [vmem:[%s1291 + $0x60] sm:$0xf]
      %v1351 = vsel %vm1293, %v1113, %v1350
      %1352 = vst [vmem:[%s1291 + $0x60] sm:$0xf] %v1351
      %1353 = vst [vmem:[%s1291 + $0x64] sm:$0xf] %v1122
      %v1354 = vld [vmem:[%s1291 + $0x68] sm:$0x1]
      %v1355 = vsel %vm289, %v1123, %v1354
      %1356 = vst [vmem:[%s1291 + $0x68] sm:$0x1] %v1355
      %v1357 = vld [vmem:[%s1291 + $0x6c] sm:$0xf]
      %v1358 = vsel %vm1293, %v1130, %v1357
      %1359 = vst [vmem:[%s1291 + $0x6c] sm:$0xf] %v1358
      %1360 = vst [vmem:[%s1291 + $0x70] sm:$0xf] %v1139
      %v1361 = vld [vmem:[%s1291 + $0x74] sm:$0x1]
      %v1362 = vsel %vm289, %v1140, %v1361
      %1363 = vst [vmem:[%s1291 + $0x74] sm:$0x1] %v1362
      %v1364 = vld [vmem:[%s1291 + $0x78] sm:$0xf]
      %v1365 = vsel %vm1293, %v1147, %v1364
      %1366 = vst [vmem:[%s1291 + $0x78] sm:$0xf] %v1365
      %1367 = vst [vmem:[%s1291 + $0x7c] sm:$0xf] %v1156
      %v1368 = vld [vmem:[%s1291 + $0x80] sm:$0x1]
      %v1369 = vsel %vm289, %v1157, %v1368
      %1370 = vst [vmem:[%s1291 + $0x80] sm:$0x1] %v1369
      %v1371 = vld [vmem:[%s1291 + $0x84] sm:$0xf]
      %v1372 = vsel %vm1293, %v1164, %v1371
      %1373 = vst [vmem:[%s1291 + $0x84] sm:$0xf] %v1372
      %1374 = vst [vmem:[%s1291 + $0x88] sm:$0xf] %v1173
      %v1375 = vld [vmem:[%s1291 + $0x8c] sm:$0x1]
      %v1376 = vsel %vm289, %v1174, %v1375
      %1377 = vst [vmem:[%s1291 + $0x8c] sm:$0x1] %v1376
      %v1378 = vld [vmem:[%s1291 + $0x90] sm:$0xf]
      %v1379 = vsel %vm1293, %v1181, %v1378
      %1380 = vst [vmem:[%s1291 + $0x90] sm:$0xf] %v1379
      %1381 = vst [vmem:[%s1291 + $0x94] sm:$0xf] %v1190
      %v1382 = vld [vmem:[%s1291 + $0x98] sm:$0x1]
      %v1383 = vsel %vm289, %v1191, %v1382
      %1384 = vst [vmem:[%s1291 + $0x98] sm:$0x1] %v1383
      %v1385 = vld [vmem:[%s1291 + $0x9c] sm:$0xf]
      %v1386 = vsel %vm1293, %v1198, %v1385
      %1387 = vst [vmem:[%s1291 + $0x9c] sm:$0xf] %v1386
      %1388 = vst [vmem:[%s1291 + $0xa0] sm:$0xf] %v1207
      %v1389 = vld [vmem:[%s1291 + $0xa4] sm:$0x1]
      %v1390 = vsel %vm289, %v1208, %v1389
      %1391 = vst [vmem:[%s1291 + $0xa4] sm:$0x1] %v1390
      %v1392 = vld [vmem:[%s1291 + $0xa8] sm:$0xf]
      %v1393 = vsel %vm1293, %v1215, %v1392
      %1394 = vst [vmem:[%s1291 + $0xa8] sm:$0xf] %v1393
      %1395 = vst [vmem:[%s1291 + $0xac] sm:$0xf] %v1224
      %v1396 = vld [vmem:[%s1291 + $0xb0] sm:$0x1]
      %v1397 = vsel %vm289, %v1225, %v1396
      %1398 = vst [vmem:[%s1291 + $0xb0] sm:$0x1] %v1397
      %v1399 = vld [vmem:[%s1291 + $0xb4] sm:$0xf]
      %v1400 = vsel %vm1293, %v1232, %v1399
      %1401 = vst [vmem:[%s1291 + $0xb4] sm:$0xf] %v1400
      %1402 = vst [vmem:[%s1291 + $0xb8] sm:$0xf] %v1241
      %v1403 = vld [vmem:[%s1291 + $0xbc] sm:$0x1]
      %v1404 = vsel %vm289, %v1242, %v1403
      %1405 = vst [vmem:[%s1291 + $0xbc] sm:$0x1] %v1404
      %v1406 = vld [vmem:[#allocation2] sm:$0xf]
      %v1407 = vld [vmem:[#allocation2 + $0x4] sm:$0xf]
      %v1408 = vld [vmem:[#allocation2 + $0xc] sm:$0xf]
      %v1409 = vld [vmem:[#allocation2 + $0x10] sm:$0xf]
      %v1410 = vld [vmem:[#allocation2 + $0x18] sm:$0xf]
      %v1411 = vld [vmem:[#allocation2 + $0x1c] sm:$0xf]
      %v1412 = vld [vmem:[#allocation2 + $0x24] sm:$0xf]
      %v1413 = vld [vmem:[#allocation2 + $0x28] sm:$0xf]
      %v1414 = vld [vmem:[#allocation2 + $0x30] sm:$0xf]
      %v1415 = vld [vmem:[#allocation2 + $0x34] sm:$0xf]
      %v1416 = vld [vmem:[#allocation2 + $0x3c] sm:$0xf]
      %v1417 = vld [vmem:[#allocation2 + $0x40] sm:$0xf]
      %v1418 = vld [vmem:[#allocation2 + $0x48] sm:$0xf]
      %v1419 = vld [vmem:[#allocation2 + $0x4c] sm:$0xf]
      %v1420 = vld [vmem:[#allocation2 + $0x54] sm:$0xf]
      %v1421 = vld [vmem:[#allocation2 + $0x58] sm:$0xf]
      %v1422 = vld [vmem:[#allocation2 + $0x60] sm:$0xf]
      %v1423 = vld [vmem:[#allocation2 + $0x64] sm:$0xf]
      %v1424 = vld [vmem:[#allocation2 + $0x6c] sm:$0xf]
      %v1425 = vld [vmem:[#allocation2 + $0x70] sm:$0xf]
      %v1426 = vld [vmem:[#allocation2 + $0x78] sm:$0xf]
      %v1427 = vld [vmem:[#allocation2 + $0x7c] sm:$0xf]
      %v1428 = vld [vmem:[#allocation2 + $0x84] sm:$0xf]
      %v1429 = vld [vmem:[#allocation2 + $0x88] sm:$0xf]
      %v1430 = vld [vmem:[#allocation2 + $0x90] sm:$0xf]
      %v1431 = vld [vmem:[#allocation2 + $0x94] sm:$0xf]
      %v1432 = vld [vmem:[#allocation2 + $0x9c] sm:$0xf]
      %v1433 = vld [vmem:[#allocation2 + $0xa0] sm:$0xf]
      %v1434 = vld [vmem:[#allocation2 + $0xa8] sm:$0xf]
      %v1435 = vld [vmem:[#allocation2 + $0xac] sm:$0xf]
      %v1436 = vld [vmem:[#allocation2 + $0xb4] sm:$0xf]
      %v1437 = vld [vmem:[#allocation2 + $0xb8] sm:$0xf]
      %v1438 = vld [vmem:[#allocation2 + $0x8] sm:$0x1]
      %v1439 = vld [vmem:[#allocation2 + $0x14] sm:$0x1]
      %v1440 = vld [vmem:[#allocation2 + $0x20] sm:$0x1]
      %v1441 = vld [vmem:[#allocation2 + $0x2c] sm:$0x1]
      %v1442 = vld [vmem:[#allocation2 + $0x38] sm:$0x1]
      %v1443 = vld [vmem:[#allocation2 + $0x44] sm:$0x1]
      %v1444 = vld [vmem:[#allocation2 + $0x50] sm:$0x1]
      %v1445 = vld [vmem:[#allocation2 + $0x5c] sm:$0x1]
      %v1446 = vld [vmem:[#allocation2 + $0x68] sm:$0x1]
      %v1447 = vld [vmem:[#allocation2 + $0x74] sm:$0x1]
      %v1448 = vld [vmem:[#allocation2 + $0x80] sm:$0x1]
      %v1449 = vld [vmem:[#allocation2 + $0x8c] sm:$0x1]
      %v1450 = vld [vmem:[#allocation2 + $0x98] sm:$0x1]
      %v1451 = vld [vmem:[#allocation2 + $0xa4] sm:$0x1]
      %v1452 = vld [vmem:[#allocation2 + $0xb0] sm:$0x1]
      %v1453 = vld [vmem:[#allocation2 + $0xbc] sm:$0x1]
      %vm1454 = vsmask.f32 3328
      %vm1455 = vsmask.f32 7440
      %vm1456 = vmor %vm1454, %vm1455
      %v1458 = vshrl.u32 %v1406, 16
      %v1460 = vrot.slane %v1458, 4
      %v1461 = vshll.u32 %v1406, 16
      %v1463 = vrot.slane %v1461, 5
      %v1464 = vor.u32 %v1460, %v1463
      %v1465 = vrot.slane %v1464, 4
      %v1467 = vshll.u32 %v1407, 16
      %v1469 = vrot.slane %v1467, 5
      %v1470 = vsel %vm1456, %v1465, %v1469
      %v1471 = vshrl.u32 %v1407, 16
      %v1473 = vrot.slane %v1471, 4
      %v1474 = vor.u32 %v1473, %v1469
      %v1475 = vrot.slane %v1474, 4
      %v1477 = vshll.u32 %v1438, 16
      %v1479 = vrot.slane %v1477, 5
      %v1480 = vsel %vm1456, %v1475, %v1479
      %v1482 = vshrl.u32 %v1408, 16
      %v1484 = vrot.slane %v1482, 4
      %v1485 = vshll.u32 %v1408, 16
      %v1487 = vrot.slane %v1485, 5
      %v1488 = vor.u32 %v1484, %v1487
      %v1489 = vrot.slane %v1488, 4
      %v1491 = vshll.u32 %v1409, 16
      %v1493 = vrot.slane %v1491, 5
      %v1494 = vsel %vm1456, %v1489, %v1493
      %v1495 = vshrl.u32 %v1409, 16
      %v1497 = vrot.slane %v1495, 4
      %v1498 = vor.u32 %v1497, %v1493
      %v1499 = vrot.slane %v1498, 4
      %v1501 = vshll.u32 %v1439, 16
      %v1503 = vrot.slane %v1501, 5
      %v1504 = vsel %vm1456, %v1499, %v1503
      %v1506 = vshrl.u32 %v1410, 16
      %v1508 = vrot.slane %v1506, 4
      %v1509 = vshll.u32 %v1410, 16
      %v1511 = vrot.slane %v1509, 5
      %v1512 = vor.u32 %v1508, %v1511
      %v1513 = vrot.slane %v1512, 4
      %v1515 = vshll.u32 %v1411, 16
      %v1517 = vrot.slane %v1515, 5
      %v1518 = vsel %vm1456, %v1513, %v1517
      %v1519 = vshrl.u32 %v1411, 16
      %v1521 = vrot.slane %v1519, 4
      %v1522 = vor.u32 %v1521, %v1517
      %v1523 = vrot.slane %v1522, 4
      %v1525 = vshll.u32 %v1440, 16
      %v1527 = vrot.slane %v1525, 5
      %v1528 = vsel %vm1456, %v1523, %v1527
      %v1530 = vshrl.u32 %v1412, 16
      %v1532 = vrot.slane %v1530, 4
      %v1533 = vshll.u32 %v1412, 16
      %v1535 = vrot.slane %v1533, 5
      %v1536 = vor.u32 %v1532, %v1535
      %v1537 = vrot.slane %v1536, 4
      %v1539 = vshll.u32 %v1413, 16
      %v1541 = vrot.slane %v1539, 5
      %v1542 = vsel %vm1456, %v1537, %v1541
      %v1543 = vshrl.u32 %v1413, 16
      %v1545 = vrot.slane %v1543, 4
      %v1546 = vor.u32 %v1545, %v1541
      %v1547 = vrot.slane %v1546, 4
      %v1549 = vshll.u32 %v1441, 16
      %v1551 = vrot.slane %v1549, 5
      %v1552 = vsel %vm1456, %v1547, %v1551
      %v1554 = vshrl.u32 %v1414, 16
      %v1556 = vrot.slane %v1554, 4
      %v1557 = vshll.u32 %v1414, 16
      %v1559 = vrot.slane %v1557, 5
      %v1560 = vor.u32 %v1556, %v1559
      %v1561 = vrot.slane %v1560, 4
      %v1563 = vshll.u32 %v1415, 16
      %v1565 = vrot.slane %v1563, 5
      %v1566 = vsel %vm1456, %v1561, %v1565
      %v1567 = vshrl.u32 %v1415, 16
      %v1569 = vrot.slane %v1567, 4
      %v1570 = vor.u32 %v1569, %v1565
      %v1571 = vrot.slane %v1570, 4
      %v1573 = vshll.u32 %v1442, 16
      %v1575 = vrot.slane %v1573, 5
      %v1576 = vsel %vm1456, %v1571, %v1575
      %v1578 = vshrl.u32 %v1416, 16
      %v1580 = vrot.slane %v1578, 4
      %v1581 = vshll.u32 %v1416, 16
      %v1583 = vrot.slane %v1581, 5
      %v1584 = vor.u32 %v1580, %v1583
      %v1585 = vrot.slane %v1584, 4
      %v1587 = vshll.u32 %v1417, 16
      %v1589 = vrot.slane %v1587, 5
      %v1590 = vsel %vm1456, %v1585, %v1589
      %v1591 = vshrl.u32 %v1417, 16
      %v1593 = vrot.slane %v1591, 4
      %v1594 = vor.u32 %v1593, %v1589
      %v1595 = vrot.slane %v1594, 4
      %v1597 = vshll.u32 %v1443, 16
      %v1599 = vrot.slane %v1597, 5
      %v1600 = vsel %vm1456, %v1595, %v1599
      %v1602 = vshrl.u32 %v1418, 16
      %v1604 = vrot.slane %v1602, 4
      %v1605 = vshll.u32 %v1418, 16
      %v1607 = vrot.slane %v1605, 5
      %v1608 = vor.u32 %v1604, %v1607
      %v1609 = vrot.slane %v1608, 4
      %v1611 = vshll.u32 %v1419, 16
      %v1613 = vrot.slane %v1611, 5
      %v1614 = vsel %vm1456, %v1609, %v1613
      %v1615 = vshrl.u32 %v1419, 16
      %v1617 = vrot.slane %v1615, 4
      %v1618 = vor.u32 %v1617, %v1613
      %v1619 = vrot.slane %v1618, 4
      %v1621 = vshll.u32 %v1444, 16
      %v1623 = vrot.slane %v1621, 5
      %v1624 = vsel %vm1456, %v1619, %v1623
      %v1626 = vshrl.u32 %v1420, 16
      %v1628 = vrot.slane %v1626, 4
      %v1629 = vshll.u32 %v1420, 16
      %v1631 = vrot.slane %v1629, 5
      %v1632 = vor.u32 %v1628, %v1631
      %v1633 = vrot.slane %v1632, 4
      %v1635 = vshll.u32 %v1421, 16
      %v1637 = vrot.slane %v1635, 5
      %v1638 = vsel %vm1456, %v1633, %v1637
      %v1639 = vshrl.u32 %v1421, 16
      %v1641 = vrot.slane %v1639, 4
      %v1642 = vor.u32 %v1641, %v1637
      %v1643 = vrot.slane %v1642, 4
      %v1645 = vshll.u32 %v1445, 16
      %v1647 = vrot.slane %v1645, 5
      %v1648 = vsel %vm1456, %v1643, %v1647
      %v1650 = vshrl.u32 %v1422, 16
      %v1652 = vrot.slane %v1650, 4
      %v1653 = vshll.u32 %v1422, 16
      %v1655 = vrot.slane %v1653, 5
      %v1656 = vor.u32 %v1652, %v1655
      %v1657 = vrot.slane %v1656, 4
      %v1659 = vshll.u32 %v1423, 16
      %v1661 = vrot.slane %v1659, 5
      %v1662 = vsel %vm1456, %v1657, %v1661
      %v1663 = vshrl.u32 %v1423, 16
      %v1665 = vrot.slane %v1663, 4
      %v1666 = vor.u32 %v1665, %v1661
      %v1667 = vrot.slane %v1666, 4
      %v1669 = vshll.u32 %v1446, 16
      %v1671 = vrot.slane %v1669, 5
      %v1672 = vsel %vm1456, %v1667, %v1671
      %v1674 = vshrl.u32 %v1424, 16
      %v1676 = vrot.slane %v1674, 4
      %v1677 = vshll.u32 %v1424, 16
      %v1679 = vrot.slane %v1677, 5
      %v1680 = vor.u32 %v1676, %v1679
      %v1681 = vrot.slane %v1680, 4
      %v1683 = vshll.u32 %v1425, 16
      %v1685 = vrot.slane %v1683, 5
      %v1686 = vsel %vm1456, %v1681, %v1685
      %v1687 = vshrl.u32 %v1425, 16
      %v1689 = vrot.slane %v1687, 4
      %v1690 = vor.u32 %v1689, %v1685
      %v1691 = vrot.slane %v1690, 4
      %v1693 = vshll.u32 %v1447, 16
      %v1695 = vrot.slane %v1693, 5
      %v1696 = vsel %vm1456, %v1691, %v1695
      %v1698 = vshrl.u32 %v1426, 16
      %v1700 = vrot.slane %v1698, 4
      %v1701 = vshll.u32 %v1426, 16
      %v1703 = vrot.slane %v1701, 5
      %v1704 = vor.u32 %v1700, %v1703
      %v1705 = vrot.slane %v1704, 4
      %v1707 = vshll.u32 %v1427, 16
      %v1709 = vrot.slane %v1707, 5
      %v1710 = vsel %vm1456, %v1705, %v1709
      %v1711 = vshrl.u32 %v1427, 16
      %v1713 = vrot.slane %v1711, 4
      %v1714 = vor.u32 %v1713, %v1709
      %v1715 = vrot.slane %v1714, 4
      %v1717 = vshll.u32 %v1448, 16
      %v1719 = vrot.slane %v1717, 5
      %v1720 = vsel %vm1456, %v1715, %v1719
      %v1722 = vshrl.u32 %v1428, 16
      %v1724 = vrot.slane %v1722, 4
      %v1725 = vshll.u32 %v1428, 16
      %v1727 = vrot.slane %v1725, 5
      %v1728 = vor.u32 %v1724, %v1727
      %v1729 = vrot.slane %v1728, 4
      %v1731 = vshll.u32 %v1429, 16
      %v1733 = vrot.slane %v1731, 5
      %v1734 = vsel %vm1456, %v1729, %v1733
      %v1735 = vshrl.u32 %v1429, 16
      %v1737 = vrot.slane %v1735, 4
      %v1738 = vor.u32 %v1737, %v1733
      %v1739 = vrot.slane %v1738, 4
      %v1741 = vshll.u32 %v1449, 16
      %v1743 = vrot.slane %v1741, 5
      %v1744 = vsel %vm1456, %v1739, %v1743
      %v1746 = vshrl.u32 %v1430, 16
      %v1748 = vrot.slane %v1746, 4
      %v1749 = vshll.u32 %v1430, 16
      %v1751 = vrot.slane %v1749, 5
      %v1752 = vor.u32 %v1748, %v1751
      %v1753 = vrot.slane %v1752, 4
      %v1755 = vshll.u32 %v1431, 16
      %v1757 = vrot.slane %v1755, 5
      %v1758 = vsel %vm1456, %v1753, %v1757
      %v1759 = vshrl.u32 %v1431, 16
      %v1761 = vrot.slane %v1759, 4
      %v1762 = vor.u32 %v1761, %v1757
      %v1763 = vrot.slane %v1762, 4
      %v1765 = vshll.u32 %v1450, 16
      %v1767 = vrot.slane %v1765, 5
      %v1768 = vsel %vm1456, %v1763, %v1767
      %v1770 = vshrl.u32 %v1432, 16
      %v1772 = vrot.slane %v1770, 4
      %v1773 = vshll.u32 %v1432, 16
      %v1775 = vrot.slane %v1773, 5
      %v1776 = vor.u32 %v1772, %v1775
      %v1777 = vrot.slane %v1776, 4
      %v1779 = vshll.u32 %v1433, 16
      %v1781 = vrot.slane %v1779, 5
      %v1782 = vsel %vm1456, %v1777, %v1781
      %v1783 = vshrl.u32 %v1433, 16
      %v1785 = vrot.slane %v1783, 4
      %v1786 = vor.u32 %v1785, %v1781
      %v1787 = vrot.slane %v1786, 4
      %v1789 = vshll.u32 %v1451, 16
      %v1791 = vrot.slane %v1789, 5
      %v1792 = vsel %vm1456, %v1787, %v1791
      %v1794 = vshrl.u32 %v1434, 16
      %v1796 = vrot.slane %v1794, 4
      %v1797 = vshll.u32 %v1434, 16
      %v1799 = vrot.slane %v1797, 5
      %v1800 = vor.u32 %v1796, %v1799
      %v1801 = vrot.slane %v1800, 4
      %v1803 = vshll.u32 %v1435, 16
      %v1805 = vrot.slane %v1803, 5
      %v1806 = vsel %vm1456, %v1801, %v1805
      %v1807 = vshrl.u32 %v1435, 16
      %v1809 = vrot.slane %v1807, 4
      %v1810 = vor.u32 %v1809, %v1805
      %v1811 = vrot.slane %v1810, 4
      %v1813 = vshll.u32 %v1452, 16
      %v1815 = vrot.slane %v1813, 5
      %v1816 = vsel %vm1456, %v1811, %v1815
      %v1818 = vshrl.u32 %v1436, 16
      %v1820 = vrot.slane %v1818, 4
      %v1821 = vshll.u32 %v1436, 16
      %v1823 = vrot.slane %v1821, 5
      %v1824 = vor.u32 %v1820, %v1823
      %v1825 = vrot.slane %v1824, 4
      %v1827 = vshll.u32 %v1437, 16
      %v1829 = vrot.slane %v1827, 5
      %v1830 = vsel %vm1456, %v1825, %v1829
      %v1831 = vshrl.u32 %v1437, 16
      %v1833 = vrot.slane %v1831, 4
      %v1834 = vor.u32 %v1833, %v1829
      %v1835 = vrot.slane %v1834, 4
      %v1837 = vshll.u32 %v1453, 16
      %v1839 = vrot.slane %v1837, 5
      %v1840 = vsel %vm1456, %v1835, %v1839
      %v1841 = vld [vmem:[#allocation2] sm:$0xe]
      %v1842 = vld [vmem:[#allocation2 + $0xc] sm:$0xe]
      %v1843 = vld [vmem:[#allocation2 + $0x18] sm:$0xe]
      %v1844 = vld [vmem:[#allocation2 + $0x24] sm:$0xe]
      %v1845 = vld [vmem:[#allocation2 + $0x30] sm:$0xe]
      %v1846 = vld [vmem:[#allocation2 + $0x3c] sm:$0xe]
      %v1847 = vld [vmem:[#allocation2 + $0x48] sm:$0xe]
      %v1848 = vld [vmem:[#allocation2 + $0x54] sm:$0xe]
      %v1849 = vld [vmem:[#allocation2 + $0x60] sm:$0xe]
      %v1850 = vld [vmem:[#allocation2 + $0x6c] sm:$0xe]
      %v1851 = vld [vmem:[#allocation2 + $0x78] sm:$0xe]
      %v1852 = vld [vmem:[#allocation2 + $0x84] sm:$0xe]
      %v1853 = vld [vmem:[#allocation2 + $0x90] sm:$0xe]
      %v1854 = vld [vmem:[#allocation2 + $0x9c] sm:$0xe]
      %v1855 = vld [vmem:[#allocation2 + $0xa8] sm:$0xe]
      %v1856 = vld [vmem:[#allocation2 + $0xb4] sm:$0xe]
      %vm1905 = vcmask 1042432
      %vm1906 = vcmask 1046532
      %vm1907 = vmor %vm1905, %vm1906
      %v1908 = vrot.slane %v1841, 5
      %v1909 = vrot.slane %v1908, 4
      %v1910 = vrot.slane %v1407, 5
      %v1911 = vsel %vm1907, %v1909, %v1910
      %v1912 = vrot.slane %v1910, 4
      %v1913 = vrot.slane %v1438, 5
      %v1914 = vsel %vm1907, %v1912, %v1913
      %v1915 = vrot.slane %v1842, 5
      %v1916 = vrot.slane %v1915, 4
      %v1917 = vrot.slane %v1409, 5
      %v1918 = vsel %vm1907, %v1916, %v1917
      %v1919 = vrot.slane %v1917, 4
      %v1920 = vrot.slane %v1439, 5
      %v1921 = vsel %vm1907, %v1919, %v1920
      %v1922 = vrot.slane %v1843, 5
      %v1923 = vrot.slane %v1922, 4
      %v1924 = vrot.slane %v1411, 5
      %v1925 = vsel %vm1907, %v1923, %v1924
      %v1926 = vrot.slane %v1924, 4
      %v1927 = vrot.slane %v1440, 5
      %v1928 = vsel %vm1907, %v1926, %v1927
      %v1929 = vrot.slane %v1844, 5
      %v1930 = vrot.slane %v1929, 4
      %v1931 = vrot.slane %v1413, 5
      %v1932 = vsel %vm1907, %v1930, %v1931
      %v1933 = vrot.slane %v1931, 4
      %v1934 = vrot.slane %v1441, 5
      %v1935 = vsel %vm1907, %v1933, %v1934
      %v1936 = vrot.slane %v1845, 5
      %v1937 = vrot.slane %v1936, 4
      %v1938 = vrot.slane %v1415, 5
      %v1939 = vsel %vm1907, %v1937, %v1938
      %v1940 = vrot.slane %v1938, 4
      %v1941 = vrot.slane %v1442, 5
      %v1942 = vsel %vm1907, %v1940, %v1941
      %v1943 = vrot.slane %v1846, 5
      %v1944 = vrot.slane %v1943, 4
      %v1945 = vrot.slane %v1417, 5
      %v1946 = vsel %vm1907, %v1944, %v1945
      %v1947 = vrot.slane %v1945, 4
      %v1948 = vrot.slane %v1443, 5
      %v1949 = vsel %vm1907, %v1947, %v1948
      %v1950 = vrot.slane %v1847, 5
      %v1951 = vrot.slane %v1950, 4
      %v1952 = vrot.slane %v1419, 5
      %v1953 = vsel %vm1907, %v1951, %v1952
      %v1954 = vrot.slane %v1952, 4
      %v1955 = vrot.slane %v1444, 5
      %v1956 = vsel %vm1907, %v1954, %v1955
      %v1957 = vrot.slane %v1848, 5
      %v1958 = vrot.slane %v1957, 4
      %v1959 = vrot.slane %v1421, 5
      %v1960 = vsel %vm1907, %v1958, %v1959
      %v1961 = vrot.slane %v1959, 4
      %v1962 = vrot.slane %v1445, 5
      %v1963 = vsel %vm1907, %v1961, %v1962
      %v1964 = vrot.slane %v1849, 5
      %v1965 = vrot.slane %v1964, 4
      %v1966 = vrot.slane %v1423, 5
      %v1967 = vsel %vm1907, %v1965, %v1966
      %v1968 = vrot.slane %v1966, 4
      %v1969 = vrot.slane %v1446, 5
      %v1970 = vsel %vm1907, %v1968, %v1969
      %v1971 = vrot.slane %v1850, 5
      %v1972 = vrot.slane %v1971, 4
      %v1973 = vrot.slane %v1425, 5
      %v1974 = vsel %vm1907, %v1972, %v1973
      %v1975 = vrot.slane %v1973, 4
      %v1976 = vrot.slane %v1447, 5
      %v1977 = vsel %vm1907, %v1975, %v1976
      %v1978 = vrot.slane %v1851, 5
      %v1979 = vrot.slane %v1978, 4
      %v1980 = vrot.slane %v1427, 5
      %v1981 = vsel %vm1907, %v1979, %v1980
      %v1982 = vrot.slane %v1980, 4
      %v1983 = vrot.slane %v1448, 5
      %v1984 = vsel %vm1907, %v1982, %v1983
      %v1985 = vrot.slane %v1852, 5
      %v1986 = vrot.slane %v1985, 4
      %v1987 = vrot.slane %v1429, 5
      %v1988 = vsel %vm1907, %v1986, %v1987
      %v1989 = vrot.slane %v1987, 4
      %v1990 = vrot.slane %v1449, 5
      %v1991 = vsel %vm1907, %v1989, %v1990
      %v1992 = vrot.slane %v1853, 5
      %v1993 = vrot.slane %v1992, 4
      %v1994 = vrot.slane %v1431, 5
      %v1995 = vsel %vm1907, %v1993, %v1994
      %v1996 = vrot.slane %v1994, 4
      %v1997 = vrot.slane %v1450, 5
      %v1998 = vsel %vm1907, %v1996, %v1997
      %v1999 = vrot.slane %v1854, 5
      %v2000 = vrot.slane %v1999, 4
      %v2001 = vrot.slane %v1433, 5
      %v2002 = vsel %vm1907, %v2000, %v2001
      %v2003 = vrot.slane %v2001, 4
      %v2004 = vrot.slane %v1451, 5
      %v2005 = vsel %vm1907, %v2003, %v2004
      %v2006 = vrot.slane %v1855, 5
      %v2007 = vrot.slane %v2006, 4
      %v2008 = vrot.slane %v1435, 5
      %v2009 = vsel %vm1907, %v2007, %v2008
      %v2010 = vrot.slane %v2008, 4
      %v2011 = vrot.slane %v1452, 5
      %v2012 = vsel %vm1907, %v2010, %v2011
      %v2013 = vrot.slane %v1856, 5
      %v2014 = vrot.slane %v2013, 4
      %v2015 = vrot.slane %v1437, 5
      %v2016 = vsel %vm1907, %v2014, %v2015
      %v2017 = vrot.slane %v2015, 4
      %v2018 = vrot.slane %v1453, 5
      %v2019 = vsel %vm1907, %v2017, %v2018
      %v2020 = vld [vmem:[%s1291] sm:$0xf]
      %v2021 = vld [vmem:[%s1291 + $0x4] sm:$0xf]
      %v2022 = vld [vmem:[%s1291 + $0xc] sm:$0xf]
      %v2023 = vld [vmem:[%s1291 + $0x10] sm:$0xf]
      %v2024 = vld [vmem:[%s1291 + $0x18] sm:$0xf]
      %v2025 = vld [vmem:[%s1291 + $0x1c] sm:$0xf]
      %v2026 = vld [vmem:[%s1291 + $0x24] sm:$0xf]
      %v2027 = vld [vmem:[%s1291 + $0x28] sm:$0xf]
      %v2028 = vld [vmem:[%s1291 + $0x30] sm:$0xf]
      %v2029 = vld [vmem:[%s1291 + $0x34] sm:$0xf]
      %v2030 = vld [vmem:[%s1291 + $0x3c] sm:$0xf]
      %v2031 = vld [vmem:[%s1291 + $0x40] sm:$0xf]
      %v2032 = vld [vmem:[%s1291 + $0x48] sm:$0xf]
      %v2033 = vld [vmem:[%s1291 + $0x4c] sm:$0xf]
      %v2034 = vld [vmem:[%s1291 + $0x54] sm:$0xf]
      %v2035 = vld [vmem:[%s1291 + $0x58] sm:$0xf]
      %v2036 = vld [vmem:[%s1291 + $0x60] sm:$0xf]
      %v2037 = vld [vmem:[%s1291 + $0x64] sm:$0xf]
      %v2038 = vld [vmem:[%s1291 + $0x6c] sm:$0xf]
      %v2039 = vld [vmem:[%s1291 + $0x70] sm:$0xf]
      %v2040 = vld [vmem:[%s1291 + $0x78] sm:$0xf]
      %v2041 = vld [vmem:[%s1291 + $0x7c] sm:$0xf]
      %v2042 = vld [vmem:[%s1291 + $0x84] sm:$0xf]
      %v2043 = vld [vmem:[%s1291 + $0x88] sm:$0xf]
      %v2044 = vld [vmem:[%s1291 + $0x90] sm:$0xf]
      %v2045 = vld [vmem:[%s1291 + $0x94] sm:$0xf]
      %v2046 = vld [vmem:[%s1291 + $0x9c] sm:$0xf]
      %v2047 = vld [vmem:[%s1291 + $0xa0] sm:$0xf]
      %v2048 = vld [vmem:[%s1291 + $0xa8] sm:$0xf]
      %v2049 = vld [vmem:[%s1291 + $0xac] sm:$0xf]
      %v2050 = vld [vmem:[%s1291 + $0xb4] sm:$0xf]
      %v2051 = vld [vmem:[%s1291 + $0xb8] sm:$0xf]
      %v2052 = vld [vmem:[%s1291 + $0x8] sm:$0x1]
      %v2053 = vld [vmem:[%s1291 + $0x14] sm:$0x1]
      %v2054 = vld [vmem:[%s1291 + $0x20] sm:$0x1]
      %v2055 = vld [vmem:[%s1291 + $0x2c] sm:$0x1]
      %v2056 = vld [vmem:[%s1291 + $0x38] sm:$0x1]
      %v2057 = vld [vmem:[%s1291 + $0x44] sm:$0x1]
      %v2058 = vld [vmem:[%s1291 + $0x50] sm:$0x1]
      %v2059 = vld [vmem:[%s1291 + $0x5c] sm:$0x1]
      %v2060 = vld [vmem:[%s1291 + $0x68] sm:$0x1]
      %v2061 = vld [vmem:[%s1291 + $0x74] sm:$0x1]
      %v2062 = vld [vmem:[%s1291 + $0x80] sm:$0x1]
      %v2063 = vld [vmem:[%s1291 + $0x8c] sm:$0x1]
      %v2064 = vld [vmem:[%s1291 + $0x98] sm:$0x1]
      %v2065 = vld [vmem:[%s1291 + $0xa4] sm:$0x1]
      %v2066 = vld [vmem:[%s1291 + $0xb0] sm:$0x1]
      %v2067 = vld [vmem:[%s1291 + $0xbc] sm:$0x1]
      %v2069 = vshrl.u32 %v2020, 16
      %v2071 = vrot.slane %v2069, 4
      %v2072 = vshll.u32 %v2020, 16
      %v2074 = vrot.slane %v2072, 5
      %v2075 = vor.u32 %v2071, %v2074
      %v2076 = vrot.slane %v2075, 4
      %v2078 = vshll.u32 %v2021, 16
      %v2080 = vrot.slane %v2078, 5
      %v2081 = vsel %vm1456, %v2076, %v2080
      %v2082 = vshrl.u32 %v2021, 16
      %v2084 = vrot.slane %v2082, 4
      %v2085 = vor.u32 %v2084, %v2080
      %v2086 = vrot.slane %v2085, 4
      %v2088 = vshll.u32 %v2052, 16
      %v2090 = vrot.slane %v2088, 5
      %v2091 = vsel %vm1456, %v2086, %v2090
      %v2093 = vshrl.u32 %v2022, 16
      %v2095 = vrot.slane %v2093, 4
      %v2096 = vshll.u32 %v2022, 16
      %v2098 = vrot.slane %v2096, 5
      %v2099 = vor.u32 %v2095, %v2098
      %v2100 = vrot.slane %v2099, 4
      %v2102 = vshll.u32 %v2023, 16
      %v2104 = vrot.slane %v2102, 5
      %v2105 = vsel %vm1456, %v2100, %v2104
      %v2106 = vshrl.u32 %v2023, 16
      %v2108 = vrot.slane %v2106, 4
      %v2109 = vor.u32 %v2108, %v2104
      %v2110 = vrot.slane %v2109, 4
      %v2112 = vshll.u32 %v2053, 16
      %v2114 = vrot.slane %v2112, 5
      %v2115 = vsel %vm1456, %v2110, %v2114
      %v2117 = vshrl.u32 %v2024, 16
      %v2119 = vrot.slane %v2117, 4
      %v2120 = vshll.u32 %v2024, 16
      %v2122 = vrot.slane %v2120, 5
      %v2123 = vor.u32 %v2119, %v2122
      %v2124 = vrot.slane %v2123, 4
      %v2126 = vshll.u32 %v2025, 16
      %v2128 = vrot.slane %v2126, 5
      %v2129 = vsel %vm1456, %v2124, %v2128
      %v2130 = vshrl.u32 %v2025, 16
      %v2132 = vrot.slane %v2130, 4
      %v2133 = vor.u32 %v2132, %v2128
      %v2134 = vrot.slane %v2133, 4
      %v2136 = vshll.u32 %v2054, 16
      %v2138 = vrot.slane %v2136, 5
      %v2139 = vsel %vm1456, %v2134, %v2138
      %v2141 = vshrl.u32 %v2026, 16
      %v2143 = vrot.slane %v2141, 4
      %v2144 = vshll.u32 %v2026, 16
      %v2146 = vrot.slane %v2144, 5
      %v2147 = vor.u32 %v2143, %v2146
      %v2148 = vrot.slane %v2147, 4
      %v2150 = vshll.u32 %v2027, 16
      %v2152 = vrot.slane %v2150, 5
      %v2153 = vsel %vm1456, %v2148, %v2152
      %v2154 = vshrl.u32 %v2027, 16
      %v2156 = vrot.slane %v2154, 4
      %v2157 = vor.u32 %v2156, %v2152
      %v2158 = vrot.slane %v2157, 4
      %v2160 = vshll.u32 %v2055, 16
      %v2162 = vrot.slane %v2160, 5
      %v2163 = vsel %vm1456, %v2158, %v2162
      %v2165 = vshrl.u32 %v2028, 16
      %v2167 = vrot.slane %v2165, 4
      %v2168 = vshll.u32 %v2028, 16
      %v2170 = vrot.slane %v2168, 5
      %v2171 = vor.u32 %v2167, %v2170
      %v2172 = vrot.slane %v2171, 4
      %v2174 = vshll.u32 %v2029, 16
      %v2176 = vrot.slane %v2174, 5
      %v2177 = vsel %vm1456, %v2172, %v2176
      %v2178 = vshrl.u32 %v2029, 16
      %v2180 = vrot.slane %v2178, 4
      %v2181 = vor.u32 %v2180, %v2176
      %v2182 = vrot.slane %v2181, 4
      %v2184 = vshll.u32 %v2056, 16
      %v2186 = vrot.slane %v2184, 5
      %v2187 = vsel %vm1456, %v2182, %v2186
      %v2189 = vshrl.u32 %v2030, 16
      %v2191 = vrot.slane %v2189, 4
      %v2192 = vshll.u32 %v2030, 16
      %v2194 = vrot.slane %v2192, 5
      %v2195 = vor.u32 %v2191, %v2194
      %v2196 = vrot.slane %v2195, 4
      %v2198 = vshll.u32 %v2031, 16
      %v2200 = vrot.slane %v2198, 5
      %v2201 = vsel %vm1456, %v2196, %v2200
      %v2202 = vshrl.u32 %v2031, 16
      %v2204 = vrot.slane %v2202, 4
      %v2205 = vor.u32 %v2204, %v2200
      %v2206 = vrot.slane %v2205, 4
      %v2208 = vshll.u32 %v2057, 16
      %v2210 = vrot.slane %v2208, 5
      %v2211 = vsel %vm1456, %v2206, %v2210
      %v2213 = vshrl.u32 %v2032, 16
      %v2215 = vrot.slane %v2213, 4
      %v2216 = vshll.u32 %v2032, 16
      %v2218 = vrot.slane %v2216, 5
      %v2219 = vor.u32 %v2215, %v2218
      %v2220 = vrot.slane %v2219, 4
      %v2222 = vshll.u32 %v2033, 16
      %v2224 = vrot.slane %v2222, 5
      %v2225 = vsel %vm1456, %v2220, %v2224
      %v2226 = vshrl.u32 %v2033, 16
      %v2228 = vrot.slane %v2226, 4
      %v2229 = vor.u32 %v2228, %v2224
      %v2230 = vrot.slane %v2229, 4
      %v2232 = vshll.u32 %v2058, 16
      %v2234 = vrot.slane %v2232, 5
      %v2235 = vsel %vm1456, %v2230, %v2234
      %v2237 = vshrl.u32 %v2034, 16
      %v2239 = vrot.slane %v2237, 4
      %v2240 = vshll.u32 %v2034, 16
      %v2242 = vrot.slane %v2240, 5
      %v2243 = vor.u32 %v2239, %v2242
      %v2244 = vrot.slane %v2243, 4
      %v2246 = vshll.u32 %v2035, 16
      %v2248 = vrot.slane %v2246, 5
      %v2249 = vsel %vm1456, %v2244, %v2248
      %v2250 = vshrl.u32 %v2035, 16
      %v2252 = vrot.slane %v2250, 4
      %v2253 = vor.u32 %v2252, %v2248
      %v2254 = vrot.slane %v2253, 4
      %v2256 = vshll.u32 %v2059, 16
      %v2258 = vrot.slane %v2256, 5
      %v2259 = vsel %vm1456, %v2254, %v2258
      %v2261 = vshrl.u32 %v2036, 16
      %v2263 = vrot.slane %v2261, 4
      %v2264 = vshll.u32 %v2036, 16
      %v2266 = vrot.slane %v2264, 5
      %v2267 = vor.u32 %v2263, %v2266
      %v2268 = vrot.slane %v2267, 4
      %v2270 = vshll.u32 %v2037, 16
      %v2272 = vrot.slane %v2270, 5
      %v2273 = vsel %vm1456, %v2268, %v2272
      %v2274 = vshrl.u32 %v2037, 16
      %v2276 = vrot.slane %v2274, 4
      %v2277 = vor.u32 %v2276, %v2272
      %v2278 = vrot.slane %v2277, 4
      %v2280 = vshll.u32 %v2060, 16
      %v2282 = vrot.slane %v2280, 5
      %v2283 = vsel %vm1456, %v2278, %v2282
      %v2285 = vshrl.u32 %v2038, 16
      %v2287 = vrot.slane %v2285, 4
      %v2288 = vshll.u32 %v2038, 16
      %v2290 = vrot.slane %v2288, 5
      %v2291 = vor.u32 %v2287, %v2290
      %v2292 = vrot.slane %v2291, 4
      %v2294 = vshll.u32 %v2039, 16
      %v2296 = vrot.slane %v2294, 5
      %v2297 = vsel %vm1456, %v2292, %v2296
      %v2298 = vshrl.u32 %v2039, 16
      %v2300 = vrot.slane %v2298, 4
      %v2301 = vor.u32 %v2300, %v2296
      %v2302 = vrot.slane %v2301, 4
      %v2304 = vshll.u32 %v2061, 16
      %v2306 = vrot.slane %v2304, 5
      %v2307 = vsel %vm1456, %v2302, %v2306
      %v2309 = vshrl.u32 %v2040, 16
      %v2311 = vrot.slane %v2309, 4
      %v2312 = vshll.u32 %v2040, 16
      %v2314 = vrot.slane %v2312, 5
      %v2315 = vor.u32 %v2311, %v2314
      %v2316 = vrot.slane %v2315, 4
      %v2318 = vshll.u32 %v2041, 16
      %v2320 = vrot.slane %v2318, 5
      %v2321 = vsel %vm1456, %v2316, %v2320
      %v2322 = vshrl.u32 %v2041, 16
      %v2324 = vrot.slane %v2322, 4
      %v2325 = vor.u32 %v2324, %v2320
      %v2326 = vrot.slane %v2325, 4
      %v2328 = vshll.u32 %v2062, 16
      %v2330 = vrot.slane %v2328, 5
      %v2331 = vsel %vm1456, %v2326, %v2330
      %v2333 = vshrl.u32 %v2042, 16
      %v2335 = vrot.slane %v2333, 4
      %v2336 = vshll.u32 %v2042, 16
      %v2338 = vrot.slane %v2336, 5
      %v2339 = vor.u32 %v2335, %v2338
      %v2340 = vrot.slane %v2339, 4
      %v2342 = vshll.u32 %v2043, 16
      %v2344 = vrot.slane %v2342, 5
      %v2345 = vsel %vm1456, %v2340, %v2344
      %v2346 = vshrl.u32 %v2043, 16
      %v2348 = vrot.slane %v2346, 4
      %v2349 = vor.u32 %v2348, %v2344
      %v2350 = vrot.slane %v2349, 4
      %v2352 = vshll.u32 %v2063, 16
      %v2354 = vrot.slane %v2352, 5
      %v2355 = vsel %vm1456, %v2350, %v2354
      %v2357 = vshrl.u32 %v2044, 16
      %v2359 = vrot.slane %v2357, 4
      %v2360 = vshll.u32 %v2044, 16
      %v2362 = vrot.slane %v2360, 5
      %v2363 = vor.u32 %v2359, %v2362
      %v2364 = vrot.slane %v2363, 4
      %v2366 = vshll.u32 %v2045, 16
      %v2368 = vrot.slane %v2366, 5
      %v2369 = vsel %vm1456, %v2364, %v2368
      %v2370 = vshrl.u32 %v2045, 16
      %v2372 = vrot.slane %v2370, 4
      %v2373 = vor.u32 %v2372, %v2368
      %v2374 = vrot.slane %v2373, 4
      %v2376 = vshll.u32 %v2064, 16
      %v2378 = vrot.slane %v2376, 5
      %v2379 = vsel %vm1456, %v2374, %v2378
      %v2381 = vshrl.u32 %v2046, 16
      %v2383 = vrot.slane %v2381, 4
      %v2384 = vshll.u32 %v2046, 16
      %v2386 = vrot.slane %v2384, 5
      %v2387 = vor.u32 %v2383, %v2386
      %v2388 = vrot.slane %v2387, 4
      %v2390 = vshll.u32 %v2047, 16
      %v2392 = vrot.slane %v2390, 5
      %v2393 = vsel %vm1456, %v2388, %v2392
      %v2394 = vshrl.u32 %v2047, 16
      %v2396 = vrot.slane %v2394, 4
      %v2397 = vor.u32 %v2396, %v2392
      %v2398 = vrot.slane %v2397, 4
      %v2400 = vshll.u32 %v2065, 16
      %v2402 = vrot.slane %v2400, 5
      %v2403 = vsel %vm1456, %v2398, %v2402
      %v2405 = vshrl.u32 %v2048, 16
      %v2407 = vrot.slane %v2405, 4
      %v2408 = vshll.u32 %v2048, 16
      %v2410 = vrot.slane %v2408, 5
      %v2411 = vor.u32 %v2407, %v2410
      %v2412 = vrot.slane %v2411, 4
      %v2414 = vshll.u32 %v2049, 16
      %v2416 = vrot.slane %v2414, 5
      %v2417 = vsel %vm1456, %v2412, %v2416
      %v2418 = vshrl.u32 %v2049, 16
      %v2420 = vrot.slane %v2418, 4
      %v2421 = vor.u32 %v2420, %v2416
      %v2422 = vrot.slane %v2421, 4
      %v2424 = vshll.u32 %v2066, 16
      %v2426 = vrot.slane %v2424, 5
      %v2427 = vsel %vm1456, %v2422, %v2426
      %v2429 = vshrl.u32 %v2050, 16
      %v2431 = vrot.slane %v2429, 4
      %v2432 = vshll.u32 %v2050, 16
      %v2434 = vrot.slane %v2432, 5
      %v2435 = vor.u32 %v2431, %v2434
      %v2436 = vrot.slane %v2435, 4
      %v2438 = vshll.u32 %v2051, 16
      %v2440 = vrot.slane %v2438, 5
      %v2441 = vsel %vm1456, %v2436, %v2440
      %v2442 = vshrl.u32 %v2051, 16
      %v2444 = vrot.slane %v2442, 4
      %v2445 = vor.u32 %v2444, %v2440
      %v2446 = vrot.slane %v2445, 4
      %v2448 = vshll.u32 %v2067, 16
      %v2450 = vrot.slane %v2448, 5
      %v2451 = vsel %vm1456, %v2446, %v2450
      %v2452 = vld [vmem:[%s1291] sm:$0xe]
      %v2453 = vld [vmem:[%s1291 + $0xc] sm:$0xe]
      %v2454 = vld [vmem:[%s1291 + $0x18] sm:$0xe]
      %v2455 = vld [vmem:[%s1291 + $0x24] sm:$0xe]
      %v2456 = vld [vmem:[%s1291 + $0x30] sm:$0xe]
      %v2457 = vld [vmem:[%s1291 + $0x3c] sm:$0xe]
      %v2458 = vld [vmem:[%s1291 + $0x48] sm:$0xe]
      %v2459 = vld [vmem:[%s1291 + $0x54] sm:$0xe]
      %v2460 = vld [vmem:[%s1291 + $0x60] sm:$0xe]
      %v2461 = vld [vmem:[%s1291 + $0x6c] sm:$0xe]
      %v2462 = vld [vmem:[%s1291 + $0x78] sm:$0xe]
      %v2463 = vld [vmem:[%s1291 + $0x84] sm:$0xe]
      %v2464 = vld [vmem:[%s1291 + $0x90] sm:$0xe]
      %v2465 = vld [vmem:[%s1291 + $0x9c] sm:$0xe]
      %v2466 = vld [vmem:[%s1291 + $0xa8] sm:$0xe]
      %v2467 = vld [vmem:[%s1291 + $0xb4] sm:$0xe]
      %v2516 = vrot.slane %v2452, 5
      %v2517 = vrot.slane %v2516, 4
      %v2518 = vrot.slane %v2021, 5
      %v2519 = vsel %vm1907, %v2517, %v2518
      %v2520 = vrot.slane %v2518, 4
      %v2521 = vrot.slane %v2052, 5
      %v2522 = vsel %vm1907, %v2520, %v2521
      %v2523 = vrot.slane %v2453, 5
      %v2524 = vrot.slane %v2523, 4
      %v2525 = vrot.slane %v2023, 5
      %v2526 = vsel %vm1907, %v2524, %v2525
      %v2527 = vrot.slane %v2525, 4
      %v2528 = vrot.slane %v2053, 5
      %v2529 = vsel %vm1907, %v2527, %v2528
      %v2530 = vrot.slane %v2454, 5
      %v2531 = vrot.slane %v2530, 4
      %v2532 = vrot.slane %v2025, 5
      %v2533 = vsel %vm1907, %v2531, %v2532
      %v2534 = vrot.slane %v2532, 4
      %v2535 = vrot.slane %v2054, 5
      %v2536 = vsel %vm1907, %v2534, %v2535
      %v2537 = vrot.slane %v2455, 5
      %v2538 = vrot.slane %v2537, 4
      %v2539 = vrot.slane %v2027, 5
      %v2540 = vsel %vm1907, %v2538, %v2539
      %v2541 = vrot.slane %v2539, 4
      %v2542 = vrot.slane %v2055, 5
      %v2543 = vsel %vm1907, %v2541, %v2542
      %v2544 = vrot.slane %v2456, 5
      %v2545 = vrot.slane %v2544, 4
      %v2546 = vrot.slane %v2029, 5
      %v2547 = vsel %vm1907, %v2545, %v2546
      %v2548 = vrot.slane %v2546, 4
      %v2549 = vrot.slane %v2056, 5
      %v2550 = vsel %vm1907, %v2548, %v2549
      %v2551 = vrot.slane %v2457, 5
      %v2552 = vrot.slane %v2551, 4
      %v2553 = vrot.slane %v2031, 5
      %v2554 = vsel %vm1907, %v2552, %v2553
      %v2555 = vrot.slane %v2553, 4
      %v2556 = vrot.slane %v2057, 5
      %v2557 = vsel %vm1907, %v2555, %v2556
      %v2558 = vrot.slane %v2458, 5
      %v2559 = vrot.slane %v2558, 4
      %v2560 = vrot.slane %v2033, 5
      %v2561 = vsel %vm1907, %v2559, %v2560
      %v2562 = vrot.slane %v2560, 4
      %v2563 = vrot.slane %v2058, 5
      %v2564 = vsel %vm1907, %v2562, %v2563
      %v2565 = vrot.slane %v2459, 5
      %v2566 = vrot.slane %v2565, 4
      %v2567 = vrot.slane %v2035, 5
      %v2568 = vsel %vm1907, %v2566, %v2567
      %v2569 = vrot.slane %v2567, 4
      %v2570 = vrot.slane %v2059, 5
      %v2571 = vsel %vm1907, %v2569, %v2570
      %v2572 = vrot.slane %v2460, 5
      %v2573 = vrot.slane %v2572, 4
      %v2574 = vrot.slane %v2037, 5
      %v2575 = vsel %vm1907, %v2573, %v2574
      %v2576 = vrot.slane %v2574, 4
      %v2577 = vrot.slane %v2060, 5
      %v2578 = vsel %vm1907, %v2576, %v2577
      %v2579 = vrot.slane %v2461, 5
      %v2580 = vrot.slane %v2579, 4
      %v2581 = vrot.slane %v2039, 5
      %v2582 = vsel %vm1907, %v2580, %v2581
      %v2583 = vrot.slane %v2581, 4
      %v2584 = vrot.slane %v2061, 5
      %v2585 = vsel %vm1907, %v2583, %v2584
      %v2586 = vrot.slane %v2462, 5
      %v2587 = vrot.slane %v2586, 4
      %v2588 = vrot.slane %v2041, 5
      %v2589 = vsel %vm1907, %v2587, %v2588
      %v2590 = vrot.slane %v2588, 4
      %v2591 = vrot.slane %v2062, 5
      %v2592 = vsel %vm1907, %v2590, %v2591
      %v2593 = vrot.slane %v2463, 5
      %v2594 = vrot.slane %v2593, 4
      %v2595 = vrot.slane %v2043, 5
      %v2596 = vsel %vm1907, %v2594, %v2595
      %v2597 = vrot.slane %v2595, 4
      %v2598 = vrot.slane %v2063, 5
      %v2599 = vsel %vm1907, %v2597, %v2598
      %v2600 = vrot.slane %v2464, 5
      %v2601 = vrot.slane %v2600, 4
      %v2602 = vrot.slane %v2045, 5
      %v2603 = vsel %vm1907, %v2601, %v2602
      %v2604 = vrot.slane %v2602, 4
      %v2605 = vrot.slane %v2064, 5
      %v2606 = vsel %vm1907, %v2604, %v2605
      %v2607 = vrot.slane %v2465, 5
      %v2608 = vrot.slane %v2607, 4
      %v2609 = vrot.slane %v2047, 5
      %v2610 = vsel %vm1907, %v2608, %v2609
      %v2611 = vrot.slane %v2609, 4
      %v2612 = vrot.slane %v2065, 5
      %v2613 = vsel %vm1907, %v2611, %v2612
      %v2614 = vrot.slane %v2466, 5
      %v2615 = vrot.slane %v2614, 4
      %v2616 = vrot.slane %v2049, 5
      %v2617 = vsel %vm1907, %v2615, %v2616
      %v2618 = vrot.slane %v2616, 4
      %v2619 = vrot.slane %v2066, 5
      %v2620 = vsel %vm1907, %v2618, %v2619
      %v2621 = vrot.slane %v2467, 5
      %v2622 = vrot.slane %v2621, 4
      %v2623 = vrot.slane %v2051, 5
      %v2624 = vsel %vm1907, %v2622, %v2623
      %v2625 = vrot.slane %v2623, 4
      %v2626 = vrot.slane %v2067, 5
      %v2627 = vsel %vm1907, %v2625, %v2626
      %s2628 = scalar_lea.vmem [#allocation2], 24
      %v2629 = vld [vmem:[%s2628] sm:$0xf]
      %v2630 = vld [vmem:[%s2628 + $0x4] sm:$0xf]
      %v2631 = vld [vmem:[%s2628 + $0xc] sm:$0xf]
      %v2632 = vld [vmem:[%s2628 + $0x10] sm:$0xf]
      %v2633 = vld [vmem:[%s2628 + $0x18] sm:$0xf]
      %v2634 = vld [vmem:[%s2628 + $0x1c] sm:$0xf]
      %v2635 = vld [vmem:[%s2628 + $0x24] sm:$0xf]
      %v2636 = vld [vmem:[%s2628 + $0x28] sm:$0xf]
      %v2637 = vld [vmem:[%s2628 + $0x30] sm:$0xf]
      %v2638 = vld [vmem:[%s2628 + $0x34] sm:$0xf]
      %v2639 = vld [vmem:[%s2628 + $0x3c] sm:$0xf]
      %v2640 = vld [vmem:[%s2628 + $0x40] sm:$0xf]
      %v2641 = vld [vmem:[%s2628 + $0x48] sm:$0xf]
      %v2642 = vld [vmem:[%s2628 + $0x4c] sm:$0xf]
      %v2643 = vld [vmem:[%s2628 + $0x54] sm:$0xf]
      %v2644 = vld [vmem:[%s2628 + $0x58] sm:$0xf]
      %v2645 = vld [vmem:[%s2628 + $0x60] sm:$0xf]
      %v2646 = vld [vmem:[%s2628 + $0x64] sm:$0xf]
      %v2647 = vld [vmem:[%s2628 + $0x6c] sm:$0xf]
      %v2648 = vld [vmem:[%s2628 + $0x70] sm:$0xf]
      %v2649 = vld [vmem:[%s2628 + $0x78] sm:$0xf]
      %v2650 = vld [vmem:[%s2628 + $0x7c] sm:$0xf]
      %v2651 = vld [vmem:[%s2628 + $0x84] sm:$0xf]
      %v2652 = vld [vmem:[%s2628 + $0x88] sm:$0xf]
      %v2653 = vld [vmem:[%s2628 + $0x90] sm:$0xf]
      %v2654 = vld [vmem:[%s2628 + $0x94] sm:$0xf]
      %v2655 = vld [vmem:[%s2628 + $0x9c] sm:$0xf]
      %v2656 = vld [vmem:[%s2628 + $0xa0] sm:$0xf]
      %v2657 = vld [vmem:[%s2628 + $0xa8] sm:$0xf]
      %v2658 = vld [vmem:[%s2628 + $0xac] sm:$0xf]
      %v2659 = vld [vmem:[%s2628 + $0xb4] sm:$0xf]
      %v2660 = vld [vmem:[%s2628 + $0xb8] sm:$0xf]
      %v2661 = vld [vmem:[%s2628 + $0x8] sm:$0x1]
      %v2662 = vld [vmem:[%s2628 + $0x14] sm:$0x1]
      %v2663 = vld [vmem:[%s2628 + $0x20] sm:$0x1]
      %v2664 = vld [vmem:[%s2628 + $0x2c] sm:$0x1]
      %v2665 = vld [vmem:[%s2628 + $0x38] sm:$0x1]
      %v2666 = vld [vmem:[%s2628 + $0x44] sm:$0x1]
      %v2667 = vld [vmem:[%s2628 + $0x50] sm:$0x1]
      %v2668 = vld [vmem:[%s2628 + $0x5c] sm:$0x1]
      %v2669 = vld [vmem:[%s2628 + $0x68] sm:$0x1]
      %v2670 = vld [vmem:[%s2628 + $0x74] sm:$0x1]
      %v2671 = vld [vmem:[%s2628 + $0x80] sm:$0x1]
      %v2672 = vld [vmem:[%s2628 + $0x8c] sm:$0x1]
      %v2673 = vld [vmem:[%s2628 + $0x98] sm:$0x1]
      %v2674 = vld [vmem:[%s2628 + $0xa4] sm:$0x1]
      %v2675 = vld [vmem:[%s2628 + $0xb0] sm:$0x1]
      %v2676 = vld [vmem:[%s2628 + $0xbc] sm:$0x1]
      %v2678 = vshrl.u32 %v2629, 16
      %v2680 = vrot.slane %v2678, 4
      %v2681 = vshll.u32 %v2629, 16
      %v2683 = vrot.slane %v2681, 5
      %v2684 = vor.u32 %v2680, %v2683
      %v2685 = vrot.slane %v2684, 4
      %v2687 = vshll.u32 %v2630, 16
      %v2689 = vrot.slane %v2687, 5
      %v2690 = vsel %vm1456, %v2685, %v2689
      %v2691 = vshrl.u32 %v2630, 16
      %v2693 = vrot.slane %v2691, 4
      %v2694 = vor.u32 %v2693, %v2689
      %v2695 = vrot.slane %v2694, 4
      %v2697 = vshll.u32 %v2661, 16
      %v2699 = vrot.slane %v2697, 5
      %v2700 = vsel %vm1456, %v2695, %v2699
      %v2702 = vshrl.u32 %v2631, 16
      %v2704 = vrot.slane %v2702, 4
      %v2705 = vshll.u32 %v2631, 16
      %v2707 = vrot.slane %v2705, 5
      %v2708 = vor.u32 %v2704, %v2707
      %v2709 = vrot.slane %v2708, 4
      %v2711 = vshll.u32 %v2632, 16
      %v2713 = vrot.slane %v2711, 5
      %v2714 = vsel %vm1456, %v2709, %v2713
      %v2715 = vshrl.u32 %v2632, 16
      %v2717 = vrot.slane %v2715, 4
      %v2718 = vor.u32 %v2717, %v2713
      %v2719 = vrot.slane %v2718, 4
      %v2721 = vshll.u32 %v2662, 16
      %v2723 = vrot.slane %v2721, 5
      %v2724 = vsel %vm1456, %v2719, %v2723
      %v2726 = vshrl.u32 %v2633, 16
      %v2728 = vrot.slane %v2726, 4
      %v2729 = vshll.u32 %v2633, 16
      %v2731 = vrot.slane %v2729, 5
      %v2732 = vor.u32 %v2728, %v2731
      %v2733 = vrot.slane %v2732, 4
      %v2735 = vshll.u32 %v2634, 16
      %v2737 = vrot.slane %v2735, 5
      %v2738 = vsel %vm1456, %v2733, %v2737
      %v2739 = vshrl.u32 %v2634, 16
      %v2741 = vrot.slane %v2739, 4
      %v2742 = vor.u32 %v2741, %v2737
      %v2743 = vrot.slane %v2742, 4
      %v2745 = vshll.u32 %v2663, 16
      %v2747 = vrot.slane %v2745, 5
      %v2748 = vsel %vm1456, %v2743, %v2747
      %v2750 = vshrl.u32 %v2635, 16
      %v2752 = vrot.slane %v2750, 4
      %v2753 = vshll.u32 %v2635, 16
      %v2755 = vrot.slane %v2753, 5
      %v2756 = vor.u32 %v2752, %v2755
      %v2757 = vrot.slane %v2756, 4
      %v2759 = vshll.u32 %v2636, 16
      %v2761 = vrot.slane %v2759, 5
      %v2762 = vsel %vm1456, %v2757, %v2761
      %v2763 = vshrl.u32 %v2636, 16
      %v2765 = vrot.slane %v2763, 4
      %v2766 = vor.u32 %v2765, %v2761
      %v2767 = vrot.slane %v2766, 4
      %v2769 = vshll.u32 %v2664, 16
      %v2771 = vrot.slane %v2769, 5
      %v2772 = vsel %vm1456, %v2767, %v2771
      %v2774 = vshrl.u32 %v2637, 16
      %v2776 = vrot.slane %v2774, 4
      %v2777 = vshll.u32 %v2637, 16
      %v2779 = vrot.slane %v2777, 5
      %v2780 = vor.u32 %v2776, %v2779
      %v2781 = vrot.slane %v2780, 4
      %v2783 = vshll.u32 %v2638, 16
      %v2785 = vrot.slane %v2783, 5
      %v2786 = vsel %vm1456, %v2781, %v2785
      %v2787 = vshrl.u32 %v2638, 16
      %v2789 = vrot.slane %v2787, 4
      %v2790 = vor.u32 %v2789, %v2785
      %v2791 = vrot.slane %v2790, 4
      %v2793 = vshll.u32 %v2665, 16
      %v2795 = vrot.slane %v2793, 5
      %v2796 = vsel %vm1456, %v2791, %v2795
      %v2798 = vshrl.u32 %v2639, 16
      %v2800 = vrot.slane %v2798, 4
      %v2801 = vshll.u32 %v2639, 16
      %v2803 = vrot.slane %v2801, 5
      %v2804 = vor.u32 %v2800, %v2803
      %v2805 = vrot.slane %v2804, 4
      %v2807 = vshll.u32 %v2640, 16
      %v2809 = vrot.slane %v2807, 5
      %v2810 = vsel %vm1456, %v2805, %v2809
      %v2811 = vshrl.u32 %v2640, 16
      %v2813 = vrot.slane %v2811, 4
      %v2814 = vor.u32 %v2813, %v2809
      %v2815 = vrot.slane %v2814, 4
      %v2817 = vshll.u32 %v2666, 16
      %v2819 = vrot.slane %v2817, 5
      %v2820 = vsel %vm1456, %v2815, %v2819
      %v2822 = vshrl.u32 %v2641, 16
      %v2824 = vrot.slane %v2822, 4
      %v2825 = vshll.u32 %v2641, 16
      %v2827 = vrot.slane %v2825, 5
      %v2828 = vor.u32 %v2824, %v2827
      %v2829 = vrot.slane %v2828, 4
      %v2831 = vshll.u32 %v2642, 16
      %v2833 = vrot.slane %v2831, 5
      %v2834 = vsel %vm1456, %v2829, %v2833
      %v2835 = vshrl.u32 %v2642, 16
      %v2837 = vrot.slane %v2835, 4
      %v2838 = vor.u32 %v2837, %v2833
      %v2839 = vrot.slane %v2838, 4
      %v2841 = vshll.u32 %v2667, 16
      %v2843 = vrot.slane %v2841, 5
      %v2844 = vsel %vm1456, %v2839, %v2843
      %v2846 = vshrl.u32 %v2643, 16
      %v2848 = vrot.slane %v2846, 4
      %v2849 = vshll.u32 %v2643, 16
      %v2851 = vrot.slane %v2849, 5
      %v2852 = vor.u32 %v2848, %v2851
      %v2853 = vrot.slane %v2852, 4
      %v2855 = vshll.u32 %v2644, 16
      %v2857 = vrot.slane %v2855, 5
      %v2858 = vsel %vm1456, %v2853, %v2857
      %v2859 = vshrl.u32 %v2644, 16
      %v2861 = vrot.slane %v2859, 4
      %v2862 = vor.u32 %v2861, %v2857
      %v2863 = vrot.slane %v2862, 4
      %v2865 = vshll.u32 %v2668, 16
      %v2867 = vrot.slane %v2865, 5
      %v2868 = vsel %vm1456, %v2863, %v2867
      %v2870 = vshrl.u32 %v2645, 16
      %v2872 = vrot.slane %v2870, 4
      %v2873 = vshll.u32 %v2645, 16
      %v2875 = vrot.slane %v2873, 5
      %v2876 = vor.u32 %v2872, %v2875
      %v2877 = vrot.slane %v2876, 4
      %v2879 = vshll.u32 %v2646, 16
      %v2881 = vrot.slane %v2879, 5
      %v2882 = vsel %vm1456, %v2877, %v2881
      %v2883 = vshrl.u32 %v2646, 16
      %v2885 = vrot.slane %v2883, 4
      %v2886 = vor.u32 %v2885, %v2881
      %v2887 = vrot.slane %v2886, 4
      %v2889 = vshll.u32 %v2669, 16
      %v2891 = vrot.slane %v2889, 5
      %v2892 = vsel %vm1456, %v2887, %v2891
      %v2894 = vshrl.u32 %v2647, 16
      %v2896 = vrot.slane %v2894, 4
      %v2897 = vshll.u32 %v2647, 16
      %v2899 = vrot.slane %v2897, 5
      %v2900 = vor.u32 %v2896, %v2899
      %v2901 = vrot.slane %v2900, 4
      %v2903 = vshll.u32 %v2648, 16
      %v2905 = vrot.slane %v2903, 5
      %v2906 = vsel %vm1456, %v2901, %v2905
      %v2907 = vshrl.u32 %v2648, 16
      %v2909 = vrot.slane %v2907, 4
      %v2910 = vor.u32 %v2909, %v2905
      %v2911 = vrot.slane %v2910, 4
      %v2913 = vshll.u32 %v2670, 16
      %v2915 = vrot.slane %v2913, 5
      %v2916 = vsel %vm1456, %v2911, %v2915
      %v2918 = vshrl.u32 %v2649, 16
      %v2920 = vrot.slane %v2918, 4
      %v2921 = vshll.u32 %v2649, 16
      %v2923 = vrot.slane %v2921, 5
      %v2924 = vor.u32 %v2920, %v2923
      %v2925 = vrot.slane %v2924, 4
      %v2927 = vshll.u32 %v2650, 16
      %v2929 = vrot.slane %v2927, 5
      %v2930 = vsel %vm1456, %v2925, %v2929
      %v2931 = vshrl.u32 %v2650, 16
      %v2933 = vrot.slane %v2931, 4
      %v2934 = vor.u32 %v2933, %v2929
      %v2935 = vrot.slane %v2934, 4
      %v2937 = vshll.u32 %v2671, 16
      %v2939 = vrot.slane %v2937, 5
      %v2940 = vsel %vm1456, %v2935, %v2939
      %v2942 = vshrl.u32 %v2651, 16
      %v2944 = vrot.slane %v2942, 4
      %v2945 = vshll.u32 %v2651, 16
      %v2947 = vrot.slane %v2945, 5
      %v2948 = vor.u32 %v2944, %v2947
      %v2949 = vrot.slane %v2948, 4
      %v2951 = vshll.u32 %v2652, 16
      %v2953 = vrot.slane %v2951, 5
      %v2954 = vsel %vm1456, %v2949, %v2953
      %v2955 = vshrl.u32 %v2652, 16
      %v2957 = vrot.slane %v2955, 4
      %v2958 = vor.u32 %v2957, %v2953
      %v2959 = vrot.slane %v2958, 4
      %v2961 = vshll.u32 %v2672, 16
      %v2963 = vrot.slane %v2961, 5
      %v2964 = vsel %vm1456, %v2959, %v2963
      %v2966 = vshrl.u32 %v2653, 16
      %v2968 = vrot.slane %v2966, 4
      %v2969 = vshll.u32 %v2653, 16
      %v2971 = vrot.slane %v2969, 5
      %v2972 = vor.u32 %v2968, %v2971
      %v2973 = vrot.slane %v2972, 4
      %v2975 = vshll.u32 %v2654, 16
      %v2977 = vrot.slane %v2975, 5
      %v2978 = vsel %vm1456, %v2973, %v2977
      %v2979 = vshrl.u32 %v2654, 16
      %v2981 = vrot.slane %v2979, 4
      %v2982 = vor.u32 %v2981, %v2977
      %v2983 = vrot.slane %v2982, 4
      %v2985 = vshll.u32 %v2673, 16
      %v2987 = vrot.slane %v2985, 5
      %v2988 = vsel %vm1456, %v2983, %v2987
      %v2990 = vshrl.u32 %v2655, 16
      %v2992 = vrot.slane %v2990, 4
      %v2993 = vshll.u32 %v2655, 16
      %v2995 = vrot.slane %v2993, 5
      %v2996 = vor.u32 %v2992, %v2995
      %v2997 = vrot.slane %v2996, 4
      %v2999 = vshll.u32 %v2656, 16
      %v3001 = vrot.slane %v2999, 5
      %v3002 = vsel %vm1456, %v2997, %v3001
      %v3003 = vshrl.u32 %v2656, 16
      %v3005 = vrot.slane %v3003, 4
      %v3006 = vor.u32 %v3005, %v3001
      %v3007 = vrot.slane %v3006, 4
      %v3009 = vshll.u32 %v2674, 16
      %v3011 = vrot.slane %v3009, 5
      %v3012 = vsel %vm1456, %v3007, %v3011
      %v3014 = vshrl.u32 %v2657, 16
      %v3016 = vrot.slane %v3014, 4
      %v3017 = vshll.u32 %v2657, 16
      %v3019 = vrot.slane %v3017, 5
      %v3020 = vor.u32 %v3016, %v3019
      %v3021 = vrot.slane %v3020, 4
      %v3023 = vshll.u32 %v2658, 16
      %v3025 = vrot.slane %v3023, 5
      %v3026 = vsel %vm1456, %v3021, %v3025
      %v3027 = vshrl.u32 %v2658, 16
      %v3029 = vrot.slane %v3027, 4
      %v3030 = vor.u32 %v3029, %v3025
      %v3031 = vrot.slane %v3030, 4
      %v3033 = vshll.u32 %v2675, 16
      %v3035 = vrot.slane %v3033, 5
      %v3036 = vsel %vm1456, %v3031, %v3035
      %v3038 = vshrl.u32 %v2659, 16
      %v3040 = vrot.slane %v3038, 4
      %v3041 = vshll.u32 %v2659, 16
      %v3043 = vrot.slane %v3041, 5
      %v3044 = vor.u32 %v3040, %v3043
      %v3045 = vrot.slane %v3044, 4
      %v3047 = vshll.u32 %v2660, 16
      %v3049 = vrot.slane %v3047, 5
      %v3050 = vsel %vm1456, %v3045, %v3049
      %v3051 = vshrl.u32 %v2660, 16
      %v3053 = vrot.slane %v3051, 4
      %v3054 = vor.u32 %v3053, %v3049
      %v3055 = vrot.slane %v3054, 4
      %v3057 = vshll.u32 %v2676, 16
      %v3059 = vrot.slane %v3057, 5
      %v3060 = vsel %vm1456, %v3055, %v3059
      %v3061 = vld [vmem:[%s2628] sm:$0xe]
      %v3062 = vld [vmem:[%s2628 + $0xc] sm:$0xe]
      %v3063 = vld [vmem:[%s2628 + $0x18] sm:$0xe]
      %v3064 = vld [vmem:[%s2628 + $0x24] sm:$0xe]
      %v3065 = vld [vmem:[%s2628 + $0x30] sm:$0xe]
      %v3066 = vld [vmem:[%s2628 + $0x3c] sm:$0xe]
      %v3067 = vld [vmem:[%s2628 + $0x48] sm:$0xe]
      %v3068 = vld [vmem:[%s2628 + $0x54] sm:$0xe]
      %v3069 = vld [vmem:[%s2628 + $0x60] sm:$0xe]
      %v3070 = vld [vmem:[%s2628 + $0x6c] sm:$0xe]
      %v3071 = vld [vmem:[%s2628 + $0x78] sm:$0xe]
      %v3072 = vld [vmem:[%s2628 + $0x84] sm:$0xe]
      %v3073 = vld [vmem:[%s2628 + $0x90] sm:$0xe]
      %v3074 = vld [vmem:[%s2628 + $0x9c] sm:$0xe]
      %v3075 = vld [vmem:[%s2628 + $0xa8] sm:$0xe]
      %v3076 = vld [vmem:[%s2628 + $0xb4] sm:$0xe]
      %v3125 = vrot.slane %v3061, 5
      %v3126 = vrot.slane %v3125, 4
      %v3127 = vrot.slane %v2630, 5
      %v3128 = vsel %vm1907, %v3126, %v3127
      %v3129 = vrot.slane %v3127, 4
      %v3130 = vrot.slane %v2661, 5
      %v3131 = vsel %vm1907, %v3129, %v3130
      %v3132 = vrot.slane %v3062, 5
      %v3133 = vrot.slane %v3132, 4
      %v3134 = vrot.slane %v2632, 5
      %v3135 = vsel %vm1907, %v3133, %v3134
      %v3136 = vrot.slane %v3134, 4
      %v3137 = vrot.slane %v2662, 5
      %v3138 = vsel %vm1907, %v3136, %v3137
      %v3139 = vrot.slane %v3063, 5
      %v3140 = vrot.slane %v3139, 4
      %v3141 = vrot.slane %v2634, 5
      %v3142 = vsel %vm1907, %v3140, %v3141
      %v3143 = vrot.slane %v3141, 4
      %v3144 = vrot.slane %v2663, 5
      %v3145 = vsel %vm1907, %v3143, %v3144
      %v3146 = vrot.slane %v3064, 5
      %v3147 = vrot.slane %v3146, 4
      %v3148 = vrot.slane %v2636, 5
      %v3149 = vsel %vm1907, %v3147, %v3148
      %v3150 = vrot.slane %v3148, 4
      %v3151 = vrot.slane %v2664, 5
      %v3152 = vsel %vm1907, %v3150, %v3151
      %v3153 = vrot.slane %v3065, 5
      %v3154 = vrot.slane %v3153, 4
      %v3155 = vrot.slane %v2638, 5
      %v3156 = vsel %vm1907, %v3154, %v3155
      %v3157 = vrot.slane %v3155, 4
      %v3158 = vrot.slane %v2665, 5
      %v3159 = vsel %vm1907, %v3157, %v3158
      %v3160 = vrot.slane %v3066, 5
      %v3161 = vrot.slane %v3160, 4
      %v3162 = vrot.slane %v2640, 5
      %v3163 = vsel %vm1907, %v3161, %v3162
      %v3164 = vrot.slane %v3162, 4
      %v3165 = vrot.slane %v2666, 5
      %v3166 = vsel %vm1907, %v3164, %v3165
      %v3167 = vrot.slane %v3067, 5
      %v3168 = vrot.slane %v3167, 4
      %v3169 = vrot.slane %v2642, 5
      %v3170 = vsel %vm1907, %v3168, %v3169
      %v3171 = vrot.slane %v3169, 4
      %v3172 = vrot.slane %v2667, 5
      %v3173 = vsel %vm1907, %v3171, %v3172
      %v3174 = vrot.slane %v3068, 5
      %v3175 = vrot.slane %v3174, 4
      %v3176 = vrot.slane %v2644, 5
      %v3177 = vsel %vm1907, %v3175, %v3176
      %v3178 = vrot.slane %v3176, 4
      %v3179 = vrot.slane %v2668, 5
      %v3180 = vsel %vm1907, %v3178, %v3179
      %v3181 = vrot.slane %v3069, 5
      %v3182 = vrot.slane %v3181, 4
      %v3183 = vrot.slane %v2646, 5
      %v3184 = vsel %vm1907, %v3182, %v3183
      %v3185 = vrot.slane %v3183, 4
      %v3186 = vrot.slane %v2669, 5
      %v3187 = vsel %vm1907, %v3185, %v3186
      %v3188 = vrot.slane %v3070, 5
      %v3189 = vrot.slane %v3188, 4
      %v3190 = vrot.slane %v2648, 5
      %v3191 = vsel %vm1907, %v3189, %v3190
      %v3192 = vrot.slane %v3190, 4
      %v3193 = vrot.slane %v2670, 5
      %v3194 = vsel %vm1907, %v3192, %v3193
      %v3195 = vrot.slane %v3071, 5
      %v3196 = vrot.slane %v3195, 4
      %v3197 = vrot.slane %v2650, 5
      %v3198 = vsel %vm1907, %v3196, %v3197
      %v3199 = vrot.slane %v3197, 4
      %v3200 = vrot.slane %v2671, 5
      %v3201 = vsel %vm1907, %v3199, %v3200
      %v3202 = vrot.slane %v3072, 5
      %v3203 = vrot.slane %v3202, 4
      %v3204 = vrot.slane %v2652, 5
      %v3205 = vsel %vm1907, %v3203, %v3204
      %v3206 = vrot.slane %v3204, 4
      %v3207 = vrot.slane %v2672, 5
      %v3208 = vsel %vm1907, %v3206, %v3207
      %v3209 = vrot.slane %v3073, 5
      %v3210 = vrot.slane %v3209, 4
      %v3211 = vrot.slane %v2654, 5
      %v3212 = vsel %vm1907, %v3210, %v3211
      %v3213 = vrot.slane %v3211, 4
      %v3214 = vrot.slane %v2673, 5
      %v3215 = vsel %vm1907, %v3213, %v3214
      %v3216 = vrot.slane %v3074, 5
      %v3217 = vrot.slane %v3216, 4
      %v3218 = vrot.slane %v2656, 5
      %v3219 = vsel %vm1907, %v3217, %v3218
      %v3220 = vrot.slane %v3218, 4
      %v3221 = vrot.slane %v2674, 5
      %v3222 = vsel %vm1907, %v3220, %v3221
      %v3223 = vrot.slane %v3075, 5
      %v3224 = vrot.slane %v3223, 4
      %v3225 = vrot.slane %v2658, 5
      %v3226 = vsel %vm1907, %v3224, %v3225
      %v3227 = vrot.slane %v3225, 4
      %v3228 = vrot.slane %v2675, 5
      %v3229 = vsel %vm1907, %v3227, %v3228
      %v3230 = vrot.slane %v3076, 5
      %v3231 = vrot.slane %v3230, 4
      %v3232 = vrot.slane %v2660, 5
      %v3233 = vsel %vm1907, %v3231, %v3232
      %v3234 = vrot.slane %v3232, 4
      %v3235 = vrot.slane %v2676, 5
      %v3236 = vsel %vm1907, %v3234, %v3235
      %v3253 = vunpack.c.l.b16 %v1406
      %v3254 = vunpack.c.l.b16 %v1407
      %v3255 = vunpack.c.l.b16 %v1408
      %v3256 = vunpack.c.l.b16 %v1409
      %v3257 = vunpack.c.l.b16 %v1410
      %v3258 = vunpack.c.l.b16 %v1411
      %v3259 = vunpack.c.l.b16 %v1412
      %v3260 = vunpack.c.l.b16 %v1413
      %v3261 = vunpack.c.l.b16 %v1414
      %v3262 = vunpack.c.l.b16 %v1415
      %v3263 = vunpack.c.l.b16 %v1416
      %v3264 = vunpack.c.l.b16 %v1417
      %v3265 = vunpack.c.l.b16 %v1418
      %v3266 = vunpack.c.l.b16 %v1419
      %v3267 = vunpack.c.l.b16 %v1420
      %v3268 = vunpack.c.l.b16 %v1421
      %v3269 = vunpack.c.l.b16 %v1422
      %v3270 = vunpack.c.l.b16 %v1423
      %v3271 = vunpack.c.l.b16 %v1424
      %v3272 = vunpack.c.l.b16 %v1425
      %v3273 = vunpack.c.l.b16 %v1426
      %v3274 = vunpack.c.l.b16 %v1427
      %v3275 = vunpack.c.l.b16 %v1428
      %v3276 = vunpack.c.l.b16 %v1429
      %v3277 = vunpack.c.l.b16 %v1430
      %v3278 = vunpack.c.l.b16 %v1431
      %v3279 = vunpack.c.l.b16 %v1432
      %v3280 = vunpack.c.l.b16 %v1433
      %v3281 = vunpack.c.l.b16 %v1434
      %v3282 = vunpack.c.l.b16 %v1435
      %v3283 = vunpack.c.l.b16 %v1436
      %v3284 = vunpack.c.l.b16 %v1437
      %v3285 = vpack.c.b16 %v3254, %v3253
      %v3286 = vpack.c.b16 %v3256, %v3255
      %v3287 = vpack.c.b16 %v3258, %v3257
      %v3288 = vpack.c.b16 %v3260, %v3259
      %v3289 = vpack.c.b16 %v3262, %v3261
      %v3290 = vpack.c.b16 %v3264, %v3263
      %v3291 = vpack.c.b16 %v3266, %v3265
      %v3292 = vpack.c.b16 %v3268, %v3267
      %v3293 = vpack.c.b16 %v3270, %v3269
      %v3294 = vpack.c.b16 %v3272, %v3271
      %v3295 = vpack.c.b16 %v3274, %v3273
      %v3296 = vpack.c.b16 %v3276, %v3275
      %v3297 = vpack.c.b16 %v3278, %v3277
      %v3298 = vpack.c.b16 %v3280, %v3279
      %v3299 = vpack.c.b16 %v3282, %v3281
      %v3300 = vpack.c.b16 %v3284, %v3283
      %v3317 = vunpack.c.l.b16 %v1470
      %v3318 = vunpack.c.l.b16 %v1480
      %v3319 = vunpack.c.l.b16 %v1494
      %v3320 = vunpack.c.l.b16 %v1504
      %v3321 = vunpack.c.l.b16 %v1518
      %v3322 = vunpack.c.l.b16 %v1528
      %v3323 = vunpack.c.l.b16 %v1542
      %v3324 = vunpack.c.l.b16 %v1552
      %v3325 = vunpack.c.l.b16 %v1566
      %v3326 = vunpack.c.l.b16 %v1576
      %v3327 = vunpack.c.l.b16 %v1590
      %v3328 = vunpack.c.l.b16 %v1600
      %v3329 = vunpack.c.l.b16 %v1614
      %v3330 = vunpack.c.l.b16 %v1624
      %v3331 = vunpack.c.l.b16 %v1638
      %v3332 = vunpack.c.l.b16 %v1648
      %v3333 = vunpack.c.l.b16 %v1662
      %v3334 = vunpack.c.l.b16 %v1672
      %v3335 = vunpack.c.l.b16 %v1686
      %v3336 = vunpack.c.l.b16 %v1696
      %v3337 = vunpack.c.l.b16 %v1710
      %v3338 = vunpack.c.l.b16 %v1720
      %v3339 = vunpack.c.l.b16 %v1734
      %v3340 = vunpack.c.l.b16 %v1744
      %v3341 = vunpack.c.l.b16 %v1758
      %v3342 = vunpack.c.l.b16 %v1768
      %v3343 = vunpack.c.l.b16 %v1782
      %v3344 = vunpack.c.l.b16 %v1792
      %v3345 = vunpack.c.l.b16 %v1806
      %v3346 = vunpack.c.l.b16 %v1816
      %v3347 = vunpack.c.l.b16 %v1830
      %v3348 = vunpack.c.l.b16 %v1840
      %v3349 = vpack.c.b16 %v3318, %v3317
      %v3350 = vpack.c.b16 %v3320, %v3319
      %v3351 = vpack.c.b16 %v3322, %v3321
      %v3352 = vpack.c.b16 %v3324, %v3323
      %v3353 = vpack.c.b16 %v3326, %v3325
      %v3354 = vpack.c.b16 %v3328, %v3327
      %v3355 = vpack.c.b16 %v3330, %v3329
      %v3356 = vpack.c.b16 %v3332, %v3331
      %v3357 = vpack.c.b16 %v3334, %v3333
      %v3358 = vpack.c.b16 %v3336, %v3335
      %v3359 = vpack.c.b16 %v3338, %v3337
      %v3360 = vpack.c.b16 %v3340, %v3339
      %v3361 = vpack.c.b16 %v3342, %v3341
      %v3362 = vpack.c.b16 %v3344, %v3343
      %v3363 = vpack.c.b16 %v3346, %v3345
      %v3364 = vpack.c.b16 %v3348, %v3347
      %v3381 = vunpack.c.l.b16 %v1911
      %v3382 = vunpack.c.l.b16 %v1914
      %v3383 = vunpack.c.l.b16 %v1918
      %v3384 = vunpack.c.l.b16 %v1921
      %v3385 = vunpack.c.l.b16 %v1925
      %v3386 = vunpack.c.l.b16 %v1928
      %v3387 = vunpack.c.l.b16 %v1932
      %v3388 = vunpack.c.l.b16 %v1935
      %v3389 = vunpack.c.l.b16 %v1939
      %v3390 = vunpack.c.l.b16 %v1942
      %v3391 = vunpack.c.l.b16 %v1946
      %v3392 = vunpack.c.l.b16 %v1949
      %v3393 = vunpack.c.l.b16 %v1953
      %v3394 = vunpack.c.l.b16 %v1956
      %v3395 = vunpack.c.l.b16 %v1960
      %v3396 = vunpack.c.l.b16 %v1963
      %v3397 = vunpack.c.l.b16 %v1967
      %v3398 = vunpack.c.l.b16 %v1970
      %v3399 = vunpack.c.l.b16 %v1974
      %v3400 = vunpack.c.l.b16 %v1977
      %v3401 = vunpack.c.l.b16 %v1981
      %v3402 = vunpack.c.l.b16 %v1984
      %v3403 = vunpack.c.l.b16 %v1988
      %v3404 = vunpack.c.l.b16 %v1991
      %v3405 = vunpack.c.l.b16 %v1995
      %v3406 = vunpack.c.l.b16 %v1998
      %v3407 = vunpack.c.l.b16 %v2002
      %v3408 = vunpack.c.l.b16 %v2005
      %v3409 = vunpack.c.l.b16 %v2009
      %v3410 = vunpack.c.l.b16 %v2012
      %v3411 = vunpack.c.l.b16 %v2016
      %v3412 = vunpack.c.l.b16 %v2019
      %v3413 = vpack.c.b16 %v3382, %v3381
      %v3414 = vpack.c.b16 %v3384, %v3383
      %v3415 = vpack.c.b16 %v3386, %v3385
      %v3416 = vpack.c.b16 %v3388, %v3387
      %v3417 = vpack.c.b16 %v3390, %v3389
      %v3418 = vpack.c.b16 %v3392, %v3391
      %v3419 = vpack.c.b16 %v3394, %v3393
      %v3420 = vpack.c.b16 %v3396, %v3395
      %v3421 = vpack.c.b16 %v3398, %v3397
      %v3422 = vpack.c.b16 %v3400, %v3399
      %v3423 = vpack.c.b16 %v3402, %v3401
      %v3424 = vpack.c.b16 %v3404, %v3403
      %v3425 = vpack.c.b16 %v3406, %v3405
      %v3426 = vpack.c.b16 %v3408, %v3407
      %v3427 = vpack.c.b16 %v3410, %v3409
      %v3428 = vpack.c.b16 %v3412, %v3411
      %v3461 = vunpack.c.l.b16 %v2020
      %v3462 = vunpack.c.l.b16 %v2021
      %v3463 = vunpack.c.l.b16 %v2022
      %v3464 = vunpack.c.l.b16 %v2023
      %v3465 = vunpack.c.l.b16 %v2024
      %v3466 = vunpack.c.l.b16 %v2025
      %v3467 = vunpack.c.l.b16 %v2026
      %v3468 = vunpack.c.l.b16 %v2027
      %v3469 = vunpack.c.l.b16 %v2028
      %v3470 = vunpack.c.l.b16 %v2029
      %v3471 = vunpack.c.l.b16 %v2030
      %v3472 = vunpack.c.l.b16 %v2031
      %v3473 = vunpack.c.l.b16 %v2032
      %v3474 = vunpack.c.l.b16 %v2033
      %v3475 = vunpack.c.l.b16 %v2034
      %v3476 = vunpack.c.l.b16 %v2035
      %v3477 = vunpack.c.l.b16 %v2036
      %v3478 = vunpack.c.l.b16 %v2037
      %v3479 = vunpack.c.l.b16 %v2038
      %v3480 = vunpack.c.l.b16 %v2039
      %v3481 = vunpack.c.l.b16 %v2040
      %v3482 = vunpack.c.l.b16 %v2041
      %v3483 = vunpack.c.l.b16 %v2042
      %v3484 = vunpack.c.l.b16 %v2043
      %v3485 = vunpack.c.l.b16 %v2044
      %v3486 = vunpack.c.l.b16 %v2045
      %v3487 = vunpack.c.l.b16 %v2046
      %v3488 = vunpack.c.l.b16 %v2047
      %v3489 = vunpack.c.l.b16 %v2048
      %v3490 = vunpack.c.l.b16 %v2049
      %v3491 = vunpack.c.l.b16 %v2050
      %v3492 = vunpack.c.l.b16 %v2051
      %v3493 = vpack.c.b16 %v3462, %v3461
      %v3494 = vpack.c.b16 %v3464, %v3463
      %v3495 = vpack.c.b16 %v3466, %v3465
      %v3496 = vpack.c.b16 %v3468, %v3467
      %v3497 = vpack.c.b16 %v3470, %v3469
      %v3498 = vpack.c.b16 %v3472, %v3471
      %v3499 = vpack.c.b16 %v3474, %v3473
      %v3500 = vpack.c.b16 %v3476, %v3475
      %v3501 = vpack.c.b16 %v3478, %v3477
      %v3502 = vpack.c.b16 %v3480, %v3479
      %v3503 = vpack.c.b16 %v3482, %v3481
      %v3504 = vpack.c.b16 %v3484, %v3483
      %v3505 = vpack.c.b16 %v3486, %v3485
      %v3506 = vpack.c.b16 %v3488, %v3487
      %v3507 = vpack.c.b16 %v3490, %v3489
      %v3508 = vpack.c.b16 %v3492, %v3491
      %v3525 = vunpack.c.l.b16 %v2081
      %v3526 = vunpack.c.l.b16 %v2091
      %v3527 = vunpack.c.l.b16 %v2105
      %v3528 = vunpack.c.l.b16 %v2115
      %v3529 = vunpack.c.l.b16 %v2129
      %v3530 = vunpack.c.l.b16 %v2139
      %v3531 = vunpack.c.l.b16 %v2153
      %v3532 = vunpack.c.l.b16 %v2163
      %v3533 = vunpack.c.l.b16 %v2177
      %v3534 = vunpack.c.l.b16 %v2187
      %v3535 = vunpack.c.l.b16 %v2201
      %v3536 = vunpack.c.l.b16 %v2211
      %v3537 = vunpack.c.l.b16 %v2225
      %v3538 = vunpack.c.l.b16 %v2235
      %v3539 = vunpack.c.l.b16 %v2249
      %v3540 = vunpack.c.l.b16 %v2259
      %v3541 = vunpack.c.l.b16 %v2273
      %v3542 = vunpack.c.l.b16 %v2283
      %v3543 = vunpack.c.l.b16 %v2297
      %v3544 = vunpack.c.l.b16 %v2307
      %v3545 = vunpack.c.l.b16 %v2321
      %v3546 = vunpack.c.l.b16 %v2331
      %v3547 = vunpack.c.l.b16 %v2345
      %v3548 = vunpack.c.l.b16 %v2355
      %v3549 = vunpack.c.l.b16 %v2369
      %v3550 = vunpack.c.l.b16 %v2379
      %v3551 = vunpack.c.l.b16 %v2393
      %v3552 = vunpack.c.l.b16 %v2403
      %v3553 = vunpack.c.l.b16 %v2417
      %v3554 = vunpack.c.l.b16 %v2427
      %v3555 = vunpack.c.l.b16 %v2441
      %v3556 = vunpack.c.l.b16 %v2451
      %v3557 = vpack.c.b16 %v3526, %v3525
      %v3558 = vpack.c.b16 %v3528, %v3527
      %v3559 = vpack.c.b16 %v3530, %v3529
      %v3560 = vpack.c.b16 %v3532, %v3531
      %v3561 = vpack.c.b16 %v3534, %v3533
      %v3562 = vpack.c.b16 %v3536, %v3535
      %v3563 = vpack.c.b16 %v3538, %v3537
      %v3564 = vpack.c.b16 %v3540, %v3539
      %v3565 = vpack.c.b16 %v3542, %v3541
      %v3566 = vpack.c.b16 %v3544, %v3543
      %v3567 = vpack.c.b16 %v3546, %v3545
      %v3568 = vpack.c.b16 %v3548, %v3547
      %v3569 = vpack.c.b16 %v3550, %v3549
      %v3570 = vpack.c.b16 %v3552, %v3551
      %v3571 = vpack.c.b16 %v3554, %v3553
      %v3572 = vpack.c.b16 %v3556, %v3555
      %v3589 = vunpack.c.l.b16 %v2519
      %v3590 = vunpack.c.l.b16 %v2522
      %v3591 = vunpack.c.l.b16 %v2526
      %v3592 = vunpack.c.l.b16 %v2529
      %v3593 = vunpack.c.l.b16 %v2533
      %v3594 = vunpack.c.l.b16 %v2536
      %v3595 = vunpack.c.l.b16 %v2540
      %v3596 = vunpack.c.l.b16 %v2543
      %v3597 = vunpack.c.l.b16 %v2547
      %v3598 = vunpack.c.l.b16 %v2550
      %v3599 = vunpack.c.l.b16 %v2554
      %v3600 = vunpack.c.l.b16 %v2557
      %v3601 = vunpack.c.l.b16 %v2561
      %v3602 = vunpack.c.l.b16 %v2564
      %v3603 = vunpack.c.l.b16 %v2568
      %v3604 = vunpack.c.l.b16 %v2571
      %v3605 = vunpack.c.l.b16 %v2575
      %v3606 = vunpack.c.l.b16 %v2578
      %v3607 = vunpack.c.l.b16 %v2582
      %v3608 = vunpack.c.l.b16 %v2585
      %v3609 = vunpack.c.l.b16 %v2589
      %v3610 = vunpack.c.l.b16 %v2592
      %v3611 = vunpack.c.l.b16 %v2596
      %v3612 = vunpack.c.l.b16 %v2599
      %v3613 = vunpack.c.l.b16 %v2603
      %v3614 = vunpack.c.l.b16 %v2606
      %v3615 = vunpack.c.l.b16 %v2610
      %v3616 = vunpack.c.l.b16 %v2613
      %v3617 = vunpack.c.l.b16 %v2617
      %v3618 = vunpack.c.l.b16 %v2620
      %v3619 = vunpack.c.l.b16 %v2624
      %v3620 = vunpack.c.l.b16 %v2627
      %v3621 = vpack.c.b16 %v3590, %v3589
      %v3622 = vpack.c.b16 %v3592, %v3591
      %v3623 = vpack.c.b16 %v3594, %v3593
      %v3624 = vpack.c.b16 %v3596, %v3595
      %v3625 = vpack.c.b16 %v3598, %v3597
      %v3626 = vpack.c.b16 %v3600, %v3599
      %v3627 = vpack.c.b16 %v3602, %v3601
      %v3628 = vpack.c.b16 %v3604, %v3603
      %v3629 = vpack.c.b16 %v3606, %v3605
      %v3630 = vpack.c.b16 %v3608, %v3607
      %v3631 = vpack.c.b16 %v3610, %v3609
      %v3632 = vpack.c.b16 %v3612, %v3611
      %v3633 = vpack.c.b16 %v3614, %v3613
      %v3634 = vpack.c.b16 %v3616, %v3615
      %v3635 = vpack.c.b16 %v3618, %v3617
      %v3636 = vpack.c.b16 %v3620, %v3619
      %v3669 = vunpack.c.l.b16 %v2629
      %v3670 = vunpack.c.l.b16 %v2630
      %v3671 = vunpack.c.l.b16 %v2631
      %v3672 = vunpack.c.l.b16 %v2632
      %v3673 = vunpack.c.l.b16 %v2633
      %v3674 = vunpack.c.l.b16 %v2634
      %v3675 = vunpack.c.l.b16 %v2635
      %v3676 = vunpack.c.l.b16 %v2636
      %v3677 = vunpack.c.l.b16 %v2637
      %v3678 = vunpack.c.l.b16 %v2638
      %v3679 = vunpack.c.l.b16 %v2639
      %v3680 = vunpack.c.l.b16 %v2640
      %v3681 = vunpack.c.l.b16 %v2641
      %v3682 = vunpack.c.l.b16 %v2642
      %v3683 = vunpack.c.l.b16 %v2643
      %v3684 = vunpack.c.l.b16 %v2644
      %v3685 = vunpack.c.l.b16 %v2645
      %v3686 = vunpack.c.l.b16 %v2646
      %v3687 = vunpack.c.l.b16 %v2647
      %v3688 = vunpack.c.l.b16 %v2648
      %v3689 = vunpack.c.l.b16 %v2649
      %v3690 = vunpack.c.l.b16 %v2650
      %v3691 = vunpack.c.l.b16 %v2651
      %v3692 = vunpack.c.l.b16 %v2652
      %v3693 = vunpack.c.l.b16 %v2653
      %v3694 = vunpack.c.l.b16 %v2654
      %v3695 = vunpack.c.l.b16 %v2655
      %v3696 = vunpack.c.l.b16 %v2656
      %v3697 = vunpack.c.l.b16 %v2657
      %v3698 = vunpack.c.l.b16 %v2658
      %v3699 = vunpack.c.l.b16 %v2659
      %v3700 = vunpack.c.l.b16 %v2660
      %v3701 = vpack.c.b16 %v3670, %v3669
      %v3702 = vpack.c.b16 %v3672, %v3671
      %v3703 = vpack.c.b16 %v3674, %v3673
      %v3704 = vpack.c.b16 %v3676, %v3675
      %v3705 = vpack.c.b16 %v3678, %v3677
      %v3706 = vpack.c.b16 %v3680, %v3679
      %v3707 = vpack.c.b16 %v3682, %v3681
      %v3708 = vpack.c.b16 %v3684, %v3683
      %v3709 = vpack.c.b16 %v3686, %v3685
      %v3710 = vpack.c.b16 %v3688, %v3687
      %v3711 = vpack.c.b16 %v3690, %v3689
      %v3712 = vpack.c.b16 %v3692, %v3691
      %v3713 = vpack.c.b16 %v3694, %v3693
      %v3714 = vpack.c.b16 %v3696, %v3695
      %v3715 = vpack.c.b16 %v3698, %v3697
      %v3716 = vpack.c.b16 %v3700, %v3699
      %v3733 = vunpack.c.l.b16 %v2690
      %v3734 = vunpack.c.l.b16 %v2700
      %v3735 = vunpack.c.l.b16 %v2714
      %v3736 = vunpack.c.l.b16 %v2724
      %v3737 = vunpack.c.l.b16 %v2738
      %v3738 = vunpack.c.l.b16 %v2748
      %v3739 = vunpack.c.l.b16 %v2762
      %v3740 = vunpack.c.l.b16 %v2772
      %v3741 = vunpack.c.l.b16 %v2786
      %v3742 = vunpack.c.l.b16 %v2796
      %v3743 = vunpack.c.l.b16 %v2810
      %v3744 = vunpack.c.l.b16 %v2820
      %v3745 = vunpack.c.l.b16 %v2834
      %v3746 = vunpack.c.l.b16 %v2844
      %v3747 = vunpack.c.l.b16 %v2858
      %v3748 = vunpack.c.l.b16 %v2868
      %v3749 = vunpack.c.l.b16 %v2882
      %v3750 = vunpack.c.l.b16 %v2892
      %v3751 = vunpack.c.l.b16 %v2906
      %v3752 = vunpack.c.l.b16 %v2916
      %v3753 = vunpack.c.l.b16 %v2930
      %v3754 = vunpack.c.l.b16 %v2940
      %v3755 = vunpack.c.l.b16 %v2954
      %v3756 = vunpack.c.l.b16 %v2964
      %v3757 = vunpack.c.l.b16 %v2978
      %v3758 = vunpack.c.l.b16 %v2988
      %v3759 = vunpack.c.l.b16 %v3002
      %v3760 = vunpack.c.l.b16 %v3012
      %v3761 = vunpack.c.l.b16 %v3026
      %v3762 = vunpack.c.l.b16 %v3036
      %v3763 = vunpack.c.l.b16 %v3050
      %v3764 = vunpack.c.l.b16 %v3060
      %v3765 = vpack.c.b16 %v3734, %v3733
      %v3766 = vpack.c.b16 %v3736, %v3735
      %v3767 = vpack.c.b16 %v3738, %v3737
      %v3768 = vpack.c.b16 %v3740, %v3739
      %v3769 = vpack.c.b16 %v3742, %v3741
      %v3770 = vpack.c.b16 %v3744, %v3743
      %v3771 = vpack.c.b16 %v3746, %v3745
      %v3772 = vpack.c.b16 %v3748, %v3747
      %v3773 = vpack.c.b16 %v3750, %v3749
      %v3774 = vpack.c.b16 %v3752, %v3751
      %v3775 = vpack.c.b16 %v3754, %v3753
      %v3776 = vpack.c.b16 %v3756, %v3755
      %v3777 = vpack.c.b16 %v3758, %v3757
      %v3778 = vpack.c.b16 %v3760, %v3759
      %v3779 = vpack.c.b16 %v3762, %v3761
      %v3780 = vpack.c.b16 %v3764, %v3763
      %v3797 = vunpack.c.l.b16 %v3128
      %v3798 = vunpack.c.l.b16 %v3131
      %v3799 = vunpack.c.l.b16 %v3135
      %v3800 = vunpack.c.l.b16 %v3138
      %v3801 = vunpack.c.l.b16 %v3142
      %v3802 = vunpack.c.l.b16 %v3145
      %v3803 = vunpack.c.l.b16 %v3149
      %v3804 = vunpack.c.l.b16 %v3152
      %v3805 = vunpack.c.l.b16 %v3156
      %v3806 = vunpack.c.l.b16 %v3159
      %v3807 = vunpack.c.l.b16 %v3163
      %v3808 = vunpack.c.l.b16 %v3166
      %v3809 = vunpack.c.l.b16 %v3170
      %v3810 = vunpack.c.l.b16 %v3173
      %v3811 = vunpack.c.l.b16 %v3177
      %v3812 = vunpack.c.l.b16 %v3180
      %v3813 = vunpack.c.l.b16 %v3184
      %v3814 = vunpack.c.l.b16 %v3187
      %v3815 = vunpack.c.l.b16 %v3191
      %v3816 = vunpack.c.l.b16 %v3194
      %v3817 = vunpack.c.l.b16 %v3198
      %v3818 = vunpack.c.l.b16 %v3201
      %v3819 = vunpack.c.l.b16 %v3205
      %v3820 = vunpack.c.l.b16 %v3208
      %v3821 = vunpack.c.l.b16 %v3212
      %v3822 = vunpack.c.l.b16 %v3215
      %v3823 = vunpack.c.l.b16 %v3219
      %v3824 = vunpack.c.l.b16 %v3222
      %v3825 = vunpack.c.l.b16 %v3226
      %v3826 = vunpack.c.l.b16 %v3229
      %v3827 = vunpack.c.l.b16 %v3233
      %v3828 = vunpack.c.l.b16 %v3236
      %v3829 = vpack.c.b16 %v3798, %v3797
      %v3830 = vpack.c.b16 %v3800, %v3799
      %v3831 = vpack.c.b16 %v3802, %v3801
      %v3832 = vpack.c.b16 %v3804, %v3803
      %v3833 = vpack.c.b16 %v3806, %v3805
      %v3834 = vpack.c.b16 %v3808, %v3807
      %v3835 = vpack.c.b16 %v3810, %v3809
      %v3836 = vpack.c.b16 %v3812, %v3811
      %v3837 = vpack.c.b16 %v3814, %v3813
      %v3838 = vpack.c.b16 %v3816, %v3815
      %v3839 = vpack.c.b16 %v3818, %v3817
      %v3840 = vpack.c.b16 %v3820, %v3819
      %v3841 = vpack.c.b16 %v3822, %v3821
      %v3842 = vpack.c.b16 %v3824, %v3823
      %v3843 = vpack.c.b16 %v3826, %v3825
      %v3844 = vpack.c.b16 %v3828, %v3827
      %v3861 = vld [vmem:[%s2] sm:$0xf]
      %v3862 = vld [vmem:[%s2 + $0x4] sm:$0xf]
      %v3863 = vld [vmem:[%s2 + $0x8] sm:$0xf]
      %v3864 = vld [vmem:[%s2 + $0xc] sm:$0xf]
      %v3865 = vld [vmem:[%s2 + $0x10] sm:$0xf]
      %v3866 = vld [vmem:[%s2 + $0x14] sm:$0xf]
      %v3867 = vld [vmem:[%s2 + $0x18] sm:$0xf]
      %v3868 = vld [vmem:[%s2 + $0x1c] sm:$0xf]
      %v3869 = vld [vmem:[%s2 + $0x20] sm:$0xf]
      %v3870 = vld [vmem:[%s2 + $0x24] sm:$0xf]
      %v3871 = vld [vmem:[%s2 + $0x28] sm:$0xf]
      %v3872 = vld [vmem:[%s2 + $0x2c] sm:$0xf]
      %v3873 = vld [vmem:[%s2 + $0x30] sm:$0xf]
      %v3874 = vld [vmem:[%s2 + $0x34] sm:$0xf]
      %v3875 = vld [vmem:[%s2 + $0x38] sm:$0xf]
      %v3876 = vld [vmem:[%s2 + $0x3c] sm:$0xf]
      %v3877 = vld [vmem:[%s2 + $0x40] sm:$0xf]
      %v3878 = vld [vmem:[%s2 + $0x44] sm:$0xf]
      %v3879 = vld [vmem:[%s2 + $0x48] sm:$0xf]
      %v3880 = vld [vmem:[%s2 + $0x4c] sm:$0xf]
      %v3881 = vld [vmem:[%s2 + $0x50] sm:$0xf]
      %v3882 = vld [vmem:[%s2 + $0x54] sm:$0xf]
      %v3883 = vld [vmem:[%s2 + $0x58] sm:$0xf]
      %v3884 = vld [vmem:[%s2 + $0x5c] sm:$0xf]
      %v3885 = vld [vmem:[%s2 + $0x60] sm:$0xf]
      %v3886 = vld [vmem:[%s2 + $0x64] sm:$0xf]
      %v3887 = vld [vmem:[%s2 + $0x68] sm:$0xf]
      %v3888 = vld [vmem:[%s2 + $0x6c] sm:$0xf]
      %v3889 = vld [vmem:[%s2 + $0x70] sm:$0xf]
      %v3890 = vld [vmem:[%s2 + $0x74] sm:$0xf]
      %v3891 = vld [vmem:[%s2 + $0x78] sm:$0xf]
      %v3892 = vld [vmem:[%s2 + $0x7c] sm:$0xf]
      %v3893 = vld [vmem:[%s2 + $0x80] sm:$0xf]
      %v3894 = vld [vmem:[%s2 + $0x84] sm:$0xf]
      %v3895 = vld [vmem:[%s2 + $0x88] sm:$0xf]
      %v3896 = vld [vmem:[%s2 + $0x8c] sm:$0xf]
      %v3897 = vld [vmem:[%s2 + $0x90] sm:$0xf]
      %v3898 = vld [vmem:[%s2 + $0x94] sm:$0xf]
      %v3899 = vld [vmem:[%s2 + $0x98] sm:$0xf]
      %v3900 = vld [vmem:[%s2 + $0x9c] sm:$0xf]
      %v3901 = vld [vmem:[%s2 + $0xa0] sm:$0xf]
      %v3902 = vld [vmem:[%s2 + $0xa4] sm:$0xf]
      %v3903 = vld [vmem:[%s2 + $0xa8] sm:$0xf]
      %v3904 = vld [vmem:[%s2 + $0xac] sm:$0xf]
      %v3905 = vld [vmem:[%s2 + $0xb0] sm:$0xf]
      %v3906 = vld [vmem:[%s2 + $0xb4] sm:$0xf]
      %v3907 = vld [vmem:[%s2 + $0xb8] sm:$0xf]
      %v3908 = vld [vmem:[%s2 + $0xbc] sm:$0xf]
      %v3909 = vld [vmem:[%s2 + $0xc0] sm:$0xf]
      %v3910 = vld [vmem:[%s2 + $0xc4] sm:$0xf]
      %v3911 = vld [vmem:[%s2 + $0xc8] sm:$0xf]
      %v3912 = vld [vmem:[%s2 + $0xcc] sm:$0xf]
      %v3913 = vld [vmem:[%s2 + $0xd0] sm:$0xf]
      %v3914 = vld [vmem:[%s2 + $0xd4] sm:$0xf]
      %v3915 = vld [vmem:[%s2 + $0xd8] sm:$0xf]
      %v3916 = vld [vmem:[%s2 + $0xdc] sm:$0xf]
      %v3917 = vld [vmem:[%s2 + $0xe0] sm:$0xf]
      %v3918 = vld [vmem:[%s2 + $0xe4] sm:$0xf]
      %v3919 = vld [vmem:[%s2 + $0xe8] sm:$0xf]
      %v3920 = vld [vmem:[%s2 + $0xec] sm:$0xf]
      %v3921 = vld [vmem:[%s2 + $0xf0] sm:$0xf]
      %v3922 = vld [vmem:[%s2 + $0xf4] sm:$0xf]
      %v3923 = vld [vmem:[%s2 + $0xf8] sm:$0xf]
      %v3924 = vld [vmem:[%s2 + $0xfc] sm:$0xf]
      %v3925 = vld [vmem:[%s2 + $0x100] sm:$0xf]
      %v3926 = vld [vmem:[%s2 + $0x104] sm:$0xf]
      %v3927 = vld [vmem:[%s2 + $0x108] sm:$0xf]
      %v3928 = vld [vmem:[%s2 + $0x10c] sm:$0xf]
      %v3929 = vld [vmem:[%s2 + $0x110] sm:$0xf]
      %v3930 = vld [vmem:[%s2 + $0x114] sm:$0xf]
      %v3931 = vld [vmem:[%s2 + $0x118] sm:$0xf]
      %v3932 = vld [vmem:[%s2 + $0x11c] sm:$0xf]
      %v3933 = vld [vmem:[%s2 + $0x120] sm:$0xf]
      %v3934 = vld [vmem:[%s2 + $0x124] sm:$0xf]
      %v3935 = vld [vmem:[%s2 + $0x128] sm:$0xf]
      %v3936 = vld [vmem:[%s2 + $0x12c] sm:$0xf]
      %v3937 = vld [vmem:[%s2 + $0x130] sm:$0xf]
      %v3938 = vld [vmem:[%s2 + $0x134] sm:$0xf]
      %v3939 = vld [vmem:[%s2 + $0x138] sm:$0xf]
      %v3940 = vld [vmem:[%s2 + $0x13c] sm:$0xf]
      %v3941 = vld [vmem:[%s2 + $0x140] sm:$0xf]
      %v3942 = vld [vmem:[%s2 + $0x144] sm:$0xf]
      %v3943 = vld [vmem:[%s2 + $0x148] sm:$0xf]
      %v3944 = vld [vmem:[%s2 + $0x14c] sm:$0xf]
      %v3945 = vld [vmem:[%s2 + $0x150] sm:$0xf]
      %v3946 = vld [vmem:[%s2 + $0x154] sm:$0xf]
      %v3947 = vld [vmem:[%s2 + $0x158] sm:$0xf]
      %v3948 = vld [vmem:[%s2 + $0x15c] sm:$0xf]
      %v3949 = vld [vmem:[%s2 + $0x160] sm:$0xf]
      %v3950 = vld [vmem:[%s2 + $0x164] sm:$0xf]
      %v3951 = vld [vmem:[%s2 + $0x168] sm:$0xf]
      %v3952 = vld [vmem:[%s2 + $0x16c] sm:$0xf]
      %v3953 = vld [vmem:[%s2 + $0x170] sm:$0xf]
      %v3954 = vld [vmem:[%s2 + $0x174] sm:$0xf]
      %v3955 = vld [vmem:[%s2 + $0x178] sm:$0xf]
      %v3956 = vld [vmem:[%s2 + $0x17c] sm:$0xf]
      %v3957 = vld [vmem:[%s2 + $0x180] sm:$0xf]
      %v3958 = vld [vmem:[%s2 + $0x184] sm:$0xf]
      %v3959 = vld [vmem:[%s2 + $0x188] sm:$0xf]
      %v3960 = vld [vmem:[%s2 + $0x18c] sm:$0xf]
      %v3961 = vld [vmem:[%s2 + $0x190] sm:$0xf]
      %v3962 = vld [vmem:[%s2 + $0x194] sm:$0xf]
      %v3963 = vld [vmem:[%s2 + $0x198] sm:$0xf]
      %v3964 = vld [vmem:[%s2 + $0x19c] sm:$0xf]
      %v3965 = vld [vmem:[%s2 + $0x1a0] sm:$0xf]
      %v3966 = vld [vmem:[%s2 + $0x1a4] sm:$0xf]
      %v3967 = vld [vmem:[%s2 + $0x1a8] sm:$0xf]
      %v3968 = vld [vmem:[%s2 + $0x1ac] sm:$0xf]
      %v3969 = vld [vmem:[%s2 + $0x1b0] sm:$0xf]
      %v3970 = vld [vmem:[%s2 + $0x1b4] sm:$0xf]
      %v3971 = vld [vmem:[%s2 + $0x1b8] sm:$0xf]
      %v3972 = vld [vmem:[%s2 + $0x1bc] sm:$0xf]
      %v3973 = vld [vmem:[%s2 + $0x1c0] sm:$0xf]
      %v3974 = vld [vmem:[%s2 + $0x1c4] sm:$0xf]
      %v3975 = vld [vmem:[%s2 + $0x1c8] sm:$0xf]
      %v3976 = vld [vmem:[%s2 + $0x1cc] sm:$0xf]
      %v3977 = vld [vmem:[%s2 + $0x1d0] sm:$0xf]
      %v3978 = vld [vmem:[%s2 + $0x1d4] sm:$0xf]
      %v3979 = vld [vmem:[%s2 + $0x1d8] sm:$0xf]
      %v3980 = vld [vmem:[%s2 + $0x1dc] sm:$0xf]
      %v3981 = vld [vmem:[%s2 + $0x1e0] sm:$0xf]
      %v3982 = vld [vmem:[%s2 + $0x1e4] sm:$0xf]
      %v3983 = vld [vmem:[%s2 + $0x1e8] sm:$0xf]
      %v3984 = vld [vmem:[%s2 + $0x1ec] sm:$0xf]
      %v3985 = vld [vmem:[%s2 + $0x1f0] sm:$0xf]
      %v3986 = vld [vmem:[%s2 + $0x1f4] sm:$0xf]
      %v3987 = vld [vmem:[%s2 + $0x1f8] sm:$0xf]
      %v3988 = vld [vmem:[%s2 + $0x1fc] sm:$0xf]
      %v3989 = vld [vmem:[%s2 + $0x200] sm:$0xf]
      %v3990 = vld [vmem:[%s2 + $0x204] sm:$0xf]
      %v3991 = vld [vmem:[%s2 + $0x208] sm:$0xf]
      %v3992 = vld [vmem:[%s2 + $0x20c] sm:$0xf]
      %v3993 = vld [vmem:[%s2 + $0x210] sm:$0xf]
      %v3994 = vld [vmem:[%s2 + $0x214] sm:$0xf]
      %v3995 = vld [vmem:[%s2 + $0x218] sm:$0xf]
      %v3996 = vld [vmem:[%s2 + $0x21c] sm:$0xf]
      %v3997 = vld [vmem:[%s2 + $0x220] sm:$0xf]
      %v3998 = vld [vmem:[%s2 + $0x224] sm:$0xf]
      %v3999 = vld [vmem:[%s2 + $0x228] sm:$0xf]
      %v4000 = vld [vmem:[%s2 + $0x22c] sm:$0xf]
      %v4001 = vld [vmem:[%s2 + $0x230] sm:$0xf]
      %v4002 = vld [vmem:[%s2 + $0x234] sm:$0xf]
      %v4003 = vld [vmem:[%s2 + $0x238] sm:$0xf]
      %v4004 = vld [vmem:[%s2 + $0x23c] sm:$0xf]
      %v4005 = vld [vmem:[%s5] sm:$0x1]
      %v4007 = vlaneseq
      %v4008 = vshrl.u32 %v4007, 7
      %v4009 = vsub.s32 0, %v4008
      %v4010 = vrot.slane %v4005, %v4009
      %v4156 = vunpack.c.l.b16 %v3861
      %v4157 = vunpack.c.l.b16 %v3862
      %v4158 = vunpack.c.l.b16 %v3863
      %v4159 = vunpack.c.l.b16 %v3864
      %v4160 = vunpack.c.l.b16 %v3865
      %v4161 = vunpack.c.l.b16 %v3866
      %v4162 = vunpack.c.l.b16 %v3867
      %v4163 = vunpack.c.l.b16 %v3868
      %v4164 = vunpack.c.l.b16 %v3869
      %v4165 = vunpack.c.l.b16 %v3870
      %v4166 = vunpack.c.l.b16 %v3871
      %v4167 = vunpack.c.l.b16 %v3872
      %v4168 = vunpack.c.l.b16 %v3873
      %v4169 = vunpack.c.l.b16 %v3874
      %v4170 = vunpack.c.l.b16 %v3875
      %v4171 = vunpack.c.l.b16 %v3876
      %v4172 = vunpack.c.l.b16 %v3877
      %v4173 = vunpack.c.l.b16 %v3878
      %v4174 = vunpack.c.l.b16 %v3879
      %v4175 = vunpack.c.l.b16 %v3880
      %v4176 = vunpack.c.l.b16 %v3881
      %v4177 = vunpack.c.l.b16 %v3882
      %v4178 = vunpack.c.l.b16 %v3883
      %v4179 = vunpack.c.l.b16 %v3884
      %v4180 = vunpack.c.l.b16 %v3885
      %v4181 = vunpack.c.l.b16 %v3886
      %v4182 = vunpack.c.l.b16 %v3887
      %v4183 = vunpack.c.l.b16 %v3888
      %v4184 = vunpack.c.l.b16 %v3889
      %v4185 = vunpack.c.l.b16 %v3890
      %v4186 = vunpack.c.l.b16 %v3891
      %v4187 = vunpack.c.l.b16 %v3892
      %v4188 = vunpack.c.l.b16 %v3893
      %v4189 = vunpack.c.l.b16 %v3894
      %v4190 = vunpack.c.l.b16 %v3895
      %v4191 = vunpack.c.l.b16 %v3896
      %v4192 = vunpack.c.l.b16 %v3897
      %v4193 = vunpack.c.l.b16 %v3898
      %v4194 = vunpack.c.l.b16 %v3899
      %v4195 = vunpack.c.l.b16 %v3900
      %v4196 = vunpack.c.l.b16 %v3901
      %v4197 = vunpack.c.l.b16 %v3902
      %v4198 = vunpack.c.l.b16 %v3903
      %v4199 = vunpack.c.l.b16 %v3904
      %v4200 = vunpack.c.l.b16 %v3905
      %v4201 = vunpack.c.l.b16 %v3906
      %v4202 = vunpack.c.l.b16 %v3907
      %v4203 = vunpack.c.l.b16 %v3908
      %v4204 = vunpack.c.l.b16 %v3909
      %v4205 = vunpack.c.l.b16 %v3910
      %v4206 = vunpack.c.l.b16 %v3911
      %v4207 = vunpack.c.l.b16 %v3912
      %v4208 = vunpack.c.l.b16 %v3913
      %v4209 = vunpack.c.l.b16 %v3914
      %v4210 = vunpack.c.l.b16 %v3915
      %v4211 = vunpack.c.l.b16 %v3916
      %v4212 = vunpack.c.l.b16 %v3917
      %v4213 = vunpack.c.l.b16 %v3918
      %v4214 = vunpack.c.l.b16 %v3919
      %v4215 = vunpack.c.l.b16 %v3920
      %v4216 = vunpack.c.l.b16 %v3921
      %v4217 = vunpack.c.l.b16 %v3922
      %v4218 = vunpack.c.l.b16 %v3923
      %v4219 = vunpack.c.l.b16 %v3924
      %v4220 = vunpack.c.l.b16 %v3925
      %v4221 = vunpack.c.l.b16 %v3926
      %v4222 = vunpack.c.l.b16 %v3927
      %v4223 = vunpack.c.l.b16 %v3928
      %v4224 = vunpack.c.l.b16 %v3929
      %v4225 = vunpack.c.l.b16 %v3930
      %v4226 = vunpack.c.l.b16 %v3931
      %v4227 = vunpack.c.l.b16 %v3932
      %v4228 = vunpack.c.l.b16 %v3933
      %v4229 = vunpack.c.l.b16 %v3934
      %v4230 = vunpack.c.l.b16 %v3935
      %v4231 = vunpack.c.l.b16 %v3936
      %v4232 = vunpack.c.l.b16 %v3937
      %v4233 = vunpack.c.l.b16 %v3938
      %v4234 = vunpack.c.l.b16 %v3939
      %v4235 = vunpack.c.l.b16 %v3940
      %v4236 = vunpack.c.l.b16 %v3941
      %v4237 = vunpack.c.l.b16 %v3942
      %v4238 = vunpack.c.l.b16 %v3943
      %v4239 = vunpack.c.l.b16 %v3944
      %v4240 = vunpack.c.l.b16 %v3945
      %v4241 = vunpack.c.l.b16 %v3946
      %v4242 = vunpack.c.l.b16 %v3947
      %v4243 = vunpack.c.l.b16 %v3948
      %v4244 = vunpack.c.l.b16 %v3949
      %v4245 = vunpack.c.l.b16 %v3950
      %v4246 = vunpack.c.l.b16 %v3951
      %v4247 = vunpack.c.l.b16 %v3952
      %v4248 = vunpack.c.l.b16 %v3953
      %v4249 = vunpack.c.l.b16 %v3954
      %v4250 = vunpack.c.l.b16 %v3955
      %v4251 = vunpack.c.l.b16 %v3956
      %v4252 = vunpack.c.l.b16 %v3957
      %v4253 = vunpack.c.l.b16 %v3958
      %v4254 = vunpack.c.l.b16 %v3959
      %v4255 = vunpack.c.l.b16 %v3960
      %v4256 = vunpack.c.l.b16 %v3961
      %v4257 = vunpack.c.l.b16 %v3962
      %v4258 = vunpack.c.l.b16 %v3963
      %v4259 = vunpack.c.l.b16 %v3964
      %v4260 = vunpack.c.l.b16 %v3965
      %v4261 = vunpack.c.l.b16 %v3966
      %v4262 = vunpack.c.l.b16 %v3967
      %v4263 = vunpack.c.l.b16 %v3968
      %v4264 = vunpack.c.l.b16 %v3969
      %v4265 = vunpack.c.l.b16 %v3970
      %v4266 = vunpack.c.l.b16 %v3971
      %v4267 = vunpack.c.l.b16 %v3972
      %v4268 = vunpack.c.l.b16 %v3973
      %v4269 = vunpack.c.l.b16 %v3974
      %v4270 = vunpack.c.l.b16 %v3975
      %v4271 = vunpack.c.l.b16 %v3976
      %v4272 = vunpack.c.l.b16 %v3977
      %v4273 = vunpack.c.l.b16 %v3978
      %v4274 = vunpack.c.l.b16 %v3979
      %v4275 = vunpack.c.l.b16 %v3980
      %v4276 = vunpack.c.l.b16 %v3981
      %v4277 = vunpack.c.l.b16 %v3982
      %v4278 = vunpack.c.l.b16 %v3983
      %v4279 = vunpack.c.l.b16 %v3984
      %v4280 = vunpack.c.l.b16 %v3985
      %v4281 = vunpack.c.l.b16 %v3986
      %v4282 = vunpack.c.l.b16 %v3987
      %v4283 = vunpack.c.l.b16 %v3988
      %v4284 = vunpack.c.l.b16 %v3989
      %v4285 = vunpack.c.l.b16 %v3990
      %v4286 = vunpack.c.l.b16 %v3991
      %v4287 = vunpack.c.l.b16 %v3992
      %v4288 = vunpack.c.l.b16 %v3993
      %v4289 = vunpack.c.l.b16 %v3994
      %v4290 = vunpack.c.l.b16 %v3995
      %v4291 = vunpack.c.l.b16 %v3996
      %v4292 = vunpack.c.l.b16 %v3997
      %v4293 = vunpack.c.l.b16 %v3998
      %v4294 = vunpack.c.l.b16 %v3999
      %v4295 = vunpack.c.l.b16 %v4000
      %v4296 = vunpack.c.l.b16 %v4001
      %v4297 = vunpack.c.l.b16 %v4002
      %v4298 = vunpack.c.l.b16 %v4003
      %v4299 = vunpack.c.l.b16 %v4004
      %v4300 = vpack.c.b16 %v4157, %v4156
      %v4301 = vpack.c.b16 %v4159, %v4158
      %v4302 = vpack.c.b16 %v4161, %v4160
      %v4303 = vpack.c.b16 %v4163, %v4162
      %v4304 = vpack.c.b16 %v4165, %v4164
      %v4305 = vpack.c.b16 %v4167, %v4166
      %v4306 = vpack.c.b16 %v4169, %v4168
      %v4307 = vpack.c.b16 %v4171, %v4170
      %v4308 = vpack.c.b16 %v4173, %v4172
      %v4309 = vpack.c.b16 %v4175, %v4174
      %v4310 = vpack.c.b16 %v4177, %v4176
      %v4311 = vpack.c.b16 %v4179, %v4178
      %v4312 = vpack.c.b16 %v4181, %v4180
      %v4313 = vpack.c.b16 %v4183, %v4182
      %v4314 = vpack.c.b16 %v4185, %v4184
      %v4315 = vpack.c.b16 %v4187, %v4186
      %v4316 = vpack.c.b16 %v4189, %v4188
      %v4317 = vpack.c.b16 %v4191, %v4190
      %v4318 = vpack.c.b16 %v4193, %v4192
      %v4319 = vpack.c.b16 %v4195, %v4194
      %v4320 = vpack.c.b16 %v4197, %v4196
      %v4321 = vpack.c.b16 %v4199, %v4198
      %v4322 = vpack.c.b16 %v4201, %v4200
      %v4323 = vpack.c.b16 %v4203, %v4202
      %v4324 = vpack.c.b16 %v4205, %v4204
      %v4325 = vpack.c.b16 %v4207, %v4206
      %v4326 = vpack.c.b16 %v4209, %v4208
      %v4327 = vpack.c.b16 %v4211, %v4210
      %v4328 = vpack.c.b16 %v4213, %v4212
      %v4329 = vpack.c.b16 %v4215, %v4214
      %v4330 = vpack.c.b16 %v4217, %v4216
      %v4331 = vpack.c.b16 %v4219, %v4218
      %v4332 = vpack.c.b16 %v4221, %v4220
      %v4333 = vpack.c.b16 %v4223, %v4222
      %v4334 = vpack.c.b16 %v4225, %v4224
      %v4335 = vpack.c.b16 %v4227, %v4226
      %v4336 = vpack.c.b16 %v4229, %v4228
      %v4337 = vpack.c.b16 %v4231, %v4230
      %v4338 = vpack.c.b16 %v4233, %v4232
      %v4339 = vpack.c.b16 %v4235, %v4234
      %v4340 = vpack.c.b16 %v4237, %v4236
      %v4341 = vpack.c.b16 %v4239, %v4238
      %v4342 = vpack.c.b16 %v4241, %v4240
      %v4343 = vpack.c.b16 %v4243, %v4242
      %v4344 = vpack.c.b16 %v4245, %v4244
      %v4345 = vpack.c.b16 %v4247, %v4246
      %v4346 = vpack.c.b16 %v4249, %v4248
      %v4347 = vpack.c.b16 %v4251, %v4250
      %v4348 = vpack.c.b16 %v4253, %v4252
      %v4349 = vpack.c.b16 %v4255, %v4254
      %v4350 = vpack.c.b16 %v4257, %v4256
      %v4351 = vpack.c.b16 %v4259, %v4258
      %v4352 = vpack.c.b16 %v4261, %v4260
      %v4353 = vpack.c.b16 %v4263, %v4262
      %v4354 = vpack.c.b16 %v4265, %v4264
      %v4355 = vpack.c.b16 %v4267, %v4266
      %v4356 = vpack.c.b16 %v4269, %v4268
      %v4357 = vpack.c.b16 %v4271, %v4270
      %v4358 = vpack.c.b16 %v4273, %v4272
      %v4359 = vpack.c.b16 %v4275, %v4274
      %v4360 = vpack.c.b16 %v4277, %v4276
      %v4361 = vpack.c.b16 %v4279, %v4278
      %v4362 = vpack.c.b16 %v4281, %v4280
      %v4363 = vpack.c.b16 %v4283, %v4282
      %v4364 = vpack.c.b16 %v4285, %v4284
      %v4365 = vpack.c.b16 %v4287, %v4286
      %v4366 = vpack.c.b16 %v4289, %v4288
      %v4367 = vpack.c.b16 %v4291, %v4290
      %v4368 = vpack.c.b16 %v4293, %v4292
      %v4369 = vpack.c.b16 %v4295, %v4294
      %v4370 = vpack.c.b16 %v4297, %v4296
      %v4371 = vpack.c.b16 %v4299, %v4298
      %4444 = vmatprep.subr.bf16.mxu0 0
      %4445 = vmatpush1.bf16.msra.mxu0 %v4307
      %4446 = vmatprep.subr.bf16.mxu0 0
      %4447 = vmatpush1.bf16.msra.mxu0 %v4306
      %4448 = vmatprep.subr.bf16.mxu0 0
      %4449 = vmatpush1.bf16.msra.mxu0 %v4305
      %4450 = vmatprep.subr.bf16.mxu0 0
      %4451 = vmatpush1.bf16.msra.mxu0 %v4304
      %4452 = vmatprep.subr.bf16.mxu0 0
      %4453 = vmatpush1.bf16.msra.mxu0 %v4303
      %4454 = vmatprep.subr.bf16.mxu0 0
      %4455 = vmatpush1.bf16.msra.mxu0 %v4302
      %4456 = vmatprep.subr.bf16.mxu0 0
      %4457 = vmatpush1.bf16.msra.mxu0 %v4301
      %4458 = vmatprep.subr.bf16.mxu0 0
      %4459 = vmatpush1.bf16.msra.mxu0 %v4300
      %4460 = vmatprep.subr.bf16.mxu0 0
      %4461 = vmatpush2.bf16.msra.mxu0 %v4315
      %4462 = vmatprep.subr.bf16.mxu0 0
      %4463 = vmatpush2.bf16.msra.mxu0 %v4314
      %4464 = vmatprep.subr.bf16.mxu0 0
      %4465 = vmatpush2.bf16.msra.mxu0 %v4313
      %4466 = vmatprep.subr.bf16.mxu0 0
      %4467 = vmatpush2.bf16.msra.mxu0 %v4312
      %4468 = vmatprep.subr.bf16.mxu0 0
      %4469 = vmatpush2.bf16.msra.mxu0 %v4311
      %4470 = vmatprep.subr.bf16.mxu0 0
      %4471 = vmatpush2.bf16.msra.mxu0 %v4310
      %4472 = vmatprep.subr.bf16.mxu0 0
      %4473 = vmatpush2.bf16.msra.mxu0 %v4309
      %4474 = vmatprep.subr.bf16.mxu0 0
      %4475 = vmatpush2.bf16.msra.mxu0 %v4308
      %4476 = vmatprep.mubr.bf16.mxu0 %v3349
      %4477 = vmatmul.mubr.bf16.gmra.mxu0 %v3285
      %v4478 = vpop.f32.mrf.mxu0
      %v4479 = vadd.f32 %v4010, %v4478
      %v4480 = vpop.f32.mrf.mxu0
      %v4481 = vpop.f32.mrf.mxu0
      %v4482 = vadd.f32 %v4010, %v4481
      %v4483 = vpop.f32.mrf.mxu0
      %4484 = vmatprep.mubr.bf16.mxu0 %v3350
      %4485 = vmatmul.mubr.bf16.gmra.mxu0 %v3286
      %v4486 = vpop.f32.mrf.mxu0
      %v4487 = vadd.f32 %v4010, %v4486
      %v4488 = vpop.f32.mrf.mxu0
      %v4489 = vpop.f32.mrf.mxu0
      %v4490 = vadd.f32 %v4010, %v4489
      %v4491 = vpop.f32.mrf.mxu0
      %4492 = vmatprep.mubr.bf16.mxu0 %v3351
      %4493 = vmatmul.mubr.bf16.gmra.mxu0 %v3287
      %v4494 = vpop.f32.mrf.mxu0
      %v4495 = vadd.f32 %v4010, %v4494
      %v4496 = vpop.f32.mrf.mxu0
      %v4497 = vpop.f32.mrf.mxu0
      %v4498 = vadd.f32 %v4010, %v4497
      %v4499 = vpop.f32.mrf.mxu0
      %4500 = vmatprep.mubr.bf16.mxu0 %v3352
      %4501 = vmatmul.mubr.bf16.gmra.mxu0 %v3288
      %v4502 = vpop.f32.mrf.mxu0
      %v4503 = vadd.f32 %v4010, %v4502
      %v4504 = vpop.f32.mrf.mxu0
      %v4505 = vpop.f32.mrf.mxu0
      %v4506 = vadd.f32 %v4010, %v4505
      %v4507 = vpop.f32.mrf.mxu0
      %4508 = vmatprep.mubr.bf16.mxu0 %v3353
      %4509 = vmatmul.mubr.bf16.gmra.mxu0 %v3289
      %v4510 = vpop.f32.mrf.mxu0
      %v4511 = vadd.f32 %v4010, %v4510
      %v4512 = vpop.f32.mrf.mxu0
      %v4513 = vpop.f32.mrf.mxu0
      %v4514 = vadd.f32 %v4010, %v4513
      %v4515 = vpop.f32.mrf.mxu0
      %4516 = vmatprep.mubr.bf16.mxu0 %v3354
      %4517 = vmatmul.mubr.bf16.gmra.mxu0 %v3290
      %v4518 = vpop.f32.mrf.mxu0
      %v4519 = vadd.f32 %v4010, %v4518
      %v4520 = vpop.f32.mrf.mxu0
      %v4521 = vpop.f32.mrf.mxu0
      %v4522 = vadd.f32 %v4010, %v4521
      %v4523 = vpop.f32.mrf.mxu0
      %4524 = vmatprep.mubr.bf16.mxu0 %v3355
      %4525 = vmatmul.mubr.bf16.gmra.mxu0 %v3291
      %v4526 = vpop.f32.mrf.mxu0
      %v4527 = vadd.f32 %v4010, %v4526
      %v4528 = vpop.f32.mrf.mxu0
      %v4529 = vpop.f32.mrf.mxu0
      %v4530 = vadd.f32 %v4010, %v4529
      %v4531 = vpop.f32.mrf.mxu0
      %4532 = vmatprep.mubr.bf16.mxu0 %v3356
      %4533 = vmatmul.mubr.bf16.gmra.mxu0 %v3292
      %v4534 = vpop.f32.mrf.mxu0
      %v4535 = vadd.f32 %v4010, %v4534
      %v4536 = vpop.f32.mrf.mxu0
      %v4537 = vpop.f32.mrf.mxu0
      %v4538 = vadd.f32 %v4010, %v4537
      %v4539 = vpop.f32.mrf.mxu0
      %4540 = vmatprep.mubr.bf16.mxu0 %v3357
      %4541 = vmatmul.mubr.bf16.gmra.mxu0 %v3293
      %v4542 = vpop.f32.mrf.mxu0
      %v4543 = vadd.f32 %v4010, %v4542
      %v4544 = vpop.f32.mrf.mxu0
      %v4545 = vpop.f32.mrf.mxu0
      %v4546 = vadd.f32 %v4010, %v4545
      %v4547 = vpop.f32.mrf.mxu0
      %4548 = vmatprep.mubr.bf16.mxu0 %v3358
      %4549 = vmatmul.mubr.bf16.gmra.mxu0 %v3294
      %v4550 = vpop.f32.mrf.mxu0
      %v4551 = vadd.f32 %v4010, %v4550
      %v4552 = vpop.f32.mrf.mxu0
      %v4553 = vpop.f32.mrf.mxu0
      %v4554 = vadd.f32 %v4010, %v4553
      %v4555 = vpop.f32.mrf.mxu0
      %4556 = vmatprep.mubr.bf16.mxu0 %v3359
      %4557 = vmatmul.mubr.bf16.gmra.mxu0 %v3295
      %v4558 = vpop.f32.mrf.mxu0
      %v4559 = vadd.f32 %v4010, %v4558
      %v4560 = vpop.f32.mrf.mxu0
      %v4561 = vpop.f32.mrf.mxu0
      %v4562 = vadd.f32 %v4010, %v4561
      %v4563 = vpop.f32.mrf.mxu0
      %4564 = vmatprep.mubr.bf16.mxu0 %v3360
      %4565 = vmatmul.mubr.bf16.gmra.mxu0 %v3296
      %v4566 = vpop.f32.mrf.mxu0
      %v4567 = vadd.f32 %v4010, %v4566
      %v4568 = vpop.f32.mrf.mxu0
      %v4569 = vpop.f32.mrf.mxu0
      %v4570 = vadd.f32 %v4010, %v4569
      %v4571 = vpop.f32.mrf.mxu0
      %4572 = vmatprep.mubr.bf16.mxu0 %v3361
      %4573 = vmatmul.mubr.bf16.gmra.mxu0 %v3297
      %v4574 = vpop.f32.mrf.mxu0
      %v4575 = vadd.f32 %v4010, %v4574
      %v4576 = vpop.f32.mrf.mxu0
      %v4577 = vpop.f32.mrf.mxu0
      %v4578 = vadd.f32 %v4010, %v4577
      %v4579 = vpop.f32.mrf.mxu0
      %4580 = vmatprep.mubr.bf16.mxu0 %v3362
      %4581 = vmatmul.mubr.bf16.gmra.mxu0 %v3298
      %v4582 = vpop.f32.mrf.mxu0
      %v4583 = vadd.f32 %v4010, %v4582
      %v4584 = vpop.f32.mrf.mxu0
      %v4585 = vpop.f32.mrf.mxu0
      %v4586 = vadd.f32 %v4010, %v4585
      %v4587 = vpop.f32.mrf.mxu0
      %4588 = vmatprep.mubr.bf16.mxu0 %v3363
      %4589 = vmatmul.mubr.bf16.gmra.mxu0 %v3299
      %v4590 = vpop.f32.mrf.mxu0
      %v4591 = vadd.f32 %v4010, %v4590
      %v4592 = vpop.f32.mrf.mxu0
      %v4593 = vpop.f32.mrf.mxu0
      %v4594 = vadd.f32 %v4010, %v4593
      %v4595 = vpop.f32.mrf.mxu0
      %4596 = vmatprep.mubr.bf16.mxu0 %v3364
      %4597 = vmatmul.mubr.bf16.gmra.mxu0 %v3300
      %v4598 = vpop.f32.mrf.mxu0
      %v4599 = vadd.f32 %v4010, %v4598
      %v4600 = vpop.f32.mrf.mxu0
      %v4601 = vpop.f32.mrf.mxu0
      %v4602 = vadd.f32 %v4010, %v4601
      %v4603 = vpop.f32.mrf.mxu0
      %4604 = vdwg.mxu0
      %4605 = vmatprep.subr.bf16.mxu0 0
      %4606 = vmatpush1.bf16.msra.mxu0 %v4323
      %4607 = vmatprep.subr.bf16.mxu0 0
      %4608 = vmatpush1.bf16.msra.mxu0 %v4322
      %4609 = vmatprep.subr.bf16.mxu0 0
      %4610 = vmatpush1.bf16.msra.mxu0 %v4321
      %4611 = vmatprep.subr.bf16.mxu0 0
      %4612 = vmatpush1.bf16.msra.mxu0 %v4320
      %4613 = vmatprep.subr.bf16.mxu0 0
      %4614 = vmatpush1.bf16.msra.mxu0 %v4319
      %4615 = vmatprep.subr.bf16.mxu0 0
      %4616 = vmatpush1.bf16.msra.mxu0 %v4318
      %4617 = vmatprep.subr.bf16.mxu0 0
      %4618 = vmatpush1.bf16.msra.mxu0 %v4317
      %4619 = vmatprep.subr.bf16.mxu0 0
      %4620 = vmatpush1.bf16.msra.mxu0 %v4316
      %4621 = vmatprep.subr.bf16.mxu0 0
      %4622 = vmatpush2.bf16.msra.mxu0 %v4331
      %4623 = vmatprep.subr.bf16.mxu0 0
      %4624 = vmatpush2.bf16.msra.mxu0 %v4330
      %4625 = vmatprep.subr.bf16.mxu0 0
      %4626 = vmatpush2.bf16.msra.mxu0 %v4329
      %4627 = vmatprep.subr.bf16.mxu0 0
      %4628 = vmatpush2.bf16.msra.mxu0 %v4328
      %4629 = vmatprep.subr.bf16.mxu0 0
      %4630 = vmatpush2.bf16.msra.mxu0 %v4327
      %4631 = vmatprep.subr.bf16.mxu0 0
      %4632 = vmatpush2.bf16.msra.mxu0 %v4326
      %4633 = vmatprep.subr.bf16.mxu0 0
      %4634 = vmatpush2.bf16.msra.mxu0 %v4325
      %4635 = vmatprep.subr.bf16.mxu0 0
      %4636 = vmatpush2.bf16.msra.mxu0 %v4324
      %4637 = vmatprep.mubr.bf16.mxu0 %v3493
      %4638 = vmatmul.mubr.bf16.gmra.mxu0 %v3413
      %v4639 = vpop.f32.mrf.mxu0
      %v4640 = vadd.f32 %v4479, %v4639
      %v4641 = vpop.f32.mrf.mxu0
      %v4642 = vpop.f32.mrf.mxu0
      %v4643 = vadd.f32 %v4482, %v4642
      %v4644 = vpop.f32.mrf.mxu0
      %4645 = vmatprep.mubr.bf16.mxu0 %v3494
      %4646 = vmatmul.mubr.bf16.gmra.mxu0 %v3414
      %v4647 = vpop.f32.mrf.mxu0
      %v4648 = vadd.f32 %v4487, %v4647
      %v4649 = vpop.f32.mrf.mxu0
      %v4650 = vpop.f32.mrf.mxu0
      %v4651 = vadd.f32 %v4490, %v4650
      %v4652 = vpop.f32.mrf.mxu0
      %4653 = vmatprep.mubr.bf16.mxu0 %v3495
      %4654 = vmatmul.mubr.bf16.gmra.mxu0 %v3415
      %v4655 = vpop.f32.mrf.mxu0
      %v4656 = vadd.f32 %v4495, %v4655
      %v4657 = vpop.f32.mrf.mxu0
      %v4658 = vpop.f32.mrf.mxu0
      %v4659 = vadd.f32 %v4498, %v4658
      %v4660 = vpop.f32.mrf.mxu0
      %4661 = vmatprep.mubr.bf16.mxu0 %v3496
      %4662 = vmatmul.mubr.bf16.gmra.mxu0 %v3416
      %v4663 = vpop.f32.mrf.mxu0
      %v4664 = vadd.f32 %v4503, %v4663
      %v4665 = vpop.f32.mrf.mxu0
      %v4666 = vpop.f32.mrf.mxu0
      %v4667 = vadd.f32 %v4506, %v4666
      %v4668 = vpop.f32.mrf.mxu0
      %4669 = vmatprep.mubr.bf16.mxu0 %v3497
      %4670 = vmatmul.mubr.bf16.gmra.mxu0 %v3417
      %v4671 = vpop.f32.mrf.mxu0
      %v4672 = vadd.f32 %v4511, %v4671
      %v4673 = vpop.f32.mrf.mxu0
      %v4674 = vpop.f32.mrf.mxu0
      %v4675 = vadd.f32 %v4514, %v4674
      %v4676 = vpop.f32.mrf.mxu0
      %4677 = vmatprep.mubr.bf16.mxu0 %v3498
      %4678 = vmatmul.mubr.bf16.gmra.mxu0 %v3418
      %v4679 = vpop.f32.mrf.mxu0
      %v4680 = vadd.f32 %v4519, %v4679
      %v4681 = vpop.f32.mrf.mxu0
      %v4682 = vpop.f32.mrf.mxu0
      %v4683 = vadd.f32 %v4522, %v4682
      %v4684 = vpop.f32.mrf.mxu0
      %4685 = vmatprep.mubr.bf16.mxu0 %v3499
      %4686 = vmatmul.mubr.bf16.gmra.mxu0 %v3419
      %v4687 = vpop.f32.mrf.mxu0
      %v4688 = vadd.f32 %v4527, %v4687
      %v4689 = vpop.f32.mrf.mxu0
      %v4690 = vpop.f32.mrf.mxu0
      %v4691 = vadd.f32 %v4530, %v4690
      %v4692 = vpop.f32.mrf.mxu0
      %4693 = vmatprep.mubr.bf16.mxu0 %v3500
      %4694 = vmatmul.mubr.bf16.gmra.mxu0 %v3420
      %v4695 = vpop.f32.mrf.mxu0
      %v4696 = vadd.f32 %v4535, %v4695
      %v4697 = vpop.f32.mrf.mxu0
      %v4698 = vpop.f32.mrf.mxu0
      %v4699 = vadd.f32 %v4538, %v4698
      %v4700 = vpop.f32.mrf.mxu0
      %4701 = vmatprep.mubr.bf16.mxu0 %v3501
      %4702 = vmatmul.mubr.bf16.gmra.mxu0 %v3421
      %v4703 = vpop.f32.mrf.mxu0
      %v4704 = vadd.f32 %v4543, %v4703
      %v4705 = vpop.f32.mrf.mxu0
      %v4706 = vpop.f32.mrf.mxu0
      %v4707 = vadd.f32 %v4546, %v4706
      %v4708 = vpop.f32.mrf.mxu0
      %4709 = vmatprep.mubr.bf16.mxu0 %v3502
      %4710 = vmatmul.mubr.bf16.gmra.mxu0 %v3422
      %v4711 = vpop.f32.mrf.mxu0
      %v4712 = vadd.f32 %v4551, %v4711
      %v4713 = vpop.f32.mrf.mxu0
      %v4714 = vpop.f32.mrf.mxu0
      %v4715 = vadd.f32 %v4554, %v4714
      %v4716 = vpop.f32.mrf.mxu0
      %4717 = vmatprep.mubr.bf16.mxu0 %v3503
      %4718 = vmatmul.mubr.bf16.gmra.mxu0 %v3423
      %v4719 = vpop.f32.mrf.mxu0
      %v4720 = vadd.f32 %v4559, %v4719
      %v4721 = vpop.f32.mrf.mxu0
      %v4722 = vpop.f32.mrf.mxu0
      %v4723 = vadd.f32 %v4562, %v4722
      %v4724 = vpop.f32.mrf.mxu0
      %4725 = vmatprep.mubr.bf16.mxu0 %v3504
      %4726 = vmatmul.mubr.bf16.gmra.mxu0 %v3424
      %v4727 = vpop.f32.mrf.mxu0
      %v4728 = vadd.f32 %v4567, %v4727
      %v4729 = vpop.f32.mrf.mxu0
      %v4730 = vpop.f32.mrf.mxu0
      %v4731 = vadd.f32 %v4570, %v4730
      %v4732 = vpop.f32.mrf.mxu0
      %4733 = vmatprep.mubr.bf16.mxu0 %v3505
      %4734 = vmatmul.mubr.bf16.gmra.mxu0 %v3425
      %v4735 = vpop.f32.mrf.mxu0
      %v4736 = vadd.f32 %v4575, %v4735
      %v4737 = vpop.f32.mrf.mxu0
      %v4738 = vpop.f32.mrf.mxu0
      %v4739 = vadd.f32 %v4578, %v4738
      %v4740 = vpop.f32.mrf.mxu0
      %4741 = vmatprep.mubr.bf16.mxu0 %v3506
      %4742 = vmatmul.mubr.bf16.gmra.mxu0 %v3426
      %v4743 = vpop.f32.mrf.mxu0
      %v4744 = vadd.f32 %v4583, %v4743
      %v4745 = vpop.f32.mrf.mxu0
      %v4746 = vpop.f32.mrf.mxu0
      %v4747 = vadd.f32 %v4586, %v4746
      %v4748 = vpop.f32.mrf.mxu0
      %4749 = vmatprep.mubr.bf16.mxu0 %v3507
      %4750 = vmatmul.mubr.bf16.gmra.mxu0 %v3427
      %v4751 = vpop.f32.mrf.mxu0
      %v4752 = vadd.f32 %v4591, %v4751
      %v4753 = vpop.f32.mrf.mxu0
      %v4754 = vpop.f32.mrf.mxu0
      %v4755 = vadd.f32 %v4594, %v4754
      %v4756 = vpop.f32.mrf.mxu0
      %4757 = vmatprep.mubr.bf16.mxu0 %v3508
      %4758 = vmatmul.mubr.bf16.gmra.mxu0 %v3428
      %v4759 = vpop.f32.mrf.mxu0
      %v4760 = vadd.f32 %v4599, %v4759
      %v4761 = vpop.f32.mrf.mxu0
      %v4762 = vpop.f32.mrf.mxu0
      %v4763 = vadd.f32 %v4602, %v4762
      %v4764 = vpop.f32.mrf.mxu0
      %4765 = vdwg.mxu0
      %4766 = vmatprep.subr.bf16.mxu0 0
      %4767 = vmatpush1.bf16.msra.mxu0 %v4339
      %4768 = vmatprep.subr.bf16.mxu0 0
      %4769 = vmatpush1.bf16.msra.mxu0 %v4338
      %4770 = vmatprep.subr.bf16.mxu0 0
      %4771 = vmatpush1.bf16.msra.mxu0 %v4337
      %4772 = vmatprep.subr.bf16.mxu0 0
      %4773 = vmatpush1.bf16.msra.mxu0 %v4336
      %4774 = vmatprep.subr.bf16.mxu0 0
      %4775 = vmatpush1.bf16.msra.mxu0 %v4335
      %4776 = vmatprep.subr.bf16.mxu0 0
      %4777 = vmatpush1.bf16.msra.mxu0 %v4334
      %4778 = vmatprep.subr.bf16.mxu0 0
      %4779 = vmatpush1.bf16.msra.mxu0 %v4333
      %4780 = vmatprep.subr.bf16.mxu0 0
      %4781 = vmatpush1.bf16.msra.mxu0 %v4332
      %4782 = vmatprep.subr.bf16.mxu0 0
      %4783 = vmatpush2.bf16.msra.mxu0 %v4347
      %4784 = vmatprep.subr.bf16.mxu0 0
      %4785 = vmatpush2.bf16.msra.mxu0 %v4346
      %4786 = vmatprep.subr.bf16.mxu0 0
      %4787 = vmatpush2.bf16.msra.mxu0 %v4345
      %4788 = vmatprep.subr.bf16.mxu0 0
      %4789 = vmatpush2.bf16.msra.mxu0 %v4344
      %4790 = vmatprep.subr.bf16.mxu0 0
      %4791 = vmatpush2.bf16.msra.mxu0 %v4343
      %4792 = vmatprep.subr.bf16.mxu0 0
      %4793 = vmatpush2.bf16.msra.mxu0 %v4342
      %4794 = vmatprep.subr.bf16.mxu0 0
      %4795 = vmatpush2.bf16.msra.mxu0 %v4341
      %4796 = vmatprep.subr.bf16.mxu0 0
      %4797 = vmatpush2.bf16.msra.mxu0 %v4340
      %4798 = vmatprep.mubr.bf16.mxu0 %v3621
      %4799 = vmatmul.mubr.bf16.gmra.mxu0 %v3557
      %v4800 = vpop.f32.mrf.mxu0
      %v4801 = vadd.f32 %v4640, %v4800
      %v4802 = vpop.f32.mrf.mxu0
      %v4803 = vpop.f32.mrf.mxu0
      %v4804 = vadd.f32 %v4643, %v4803
      %v4805 = vpop.f32.mrf.mxu0
      %4806 = vmatprep.mubr.bf16.mxu0 %v3622
      %4807 = vmatmul.mubr.bf16.gmra.mxu0 %v3558
      %v4808 = vpop.f32.mrf.mxu0
      %v4809 = vadd.f32 %v4648, %v4808
      %v4810 = vpop.f32.mrf.mxu0
      %v4811 = vpop.f32.mrf.mxu0
      %v4812 = vadd.f32 %v4651, %v4811
      %v4813 = vpop.f32.mrf.mxu0
      %4814 = vmatprep.mubr.bf16.mxu0 %v3623
      %4815 = vmatmul.mubr.bf16.gmra.mxu0 %v3559
      %v4816 = vpop.f32.mrf.mxu0
      %v4817 = vadd.f32 %v4656, %v4816
      %v4818 = vpop.f32.mrf.mxu0
      %v4819 = vpop.f32.mrf.mxu0
      %v4820 = vadd.f32 %v4659, %v4819
      %v4821 = vpop.f32.mrf.mxu0
      %4822 = vmatprep.mubr.bf16.mxu0 %v3624
      %4823 = vmatmul.mubr.bf16.gmra.mxu0 %v3560
      %v4824 = vpop.f32.mrf.mxu0
      %v4825 = vadd.f32 %v4664, %v4824
      %v4826 = vpop.f32.mrf.mxu0
      %v4827 = vpop.f32.mrf.mxu0
      %v4828 = vadd.f32 %v4667, %v4827
      %v4829 = vpop.f32.mrf.mxu0
      %4830 = vmatprep.mubr.bf16.mxu0 %v3625
      %4831 = vmatmul.mubr.bf16.gmra.mxu0 %v3561
      %v4832 = vpop.f32.mrf.mxu0
      %v4833 = vadd.f32 %v4672, %v4832
      %v4834 = vpop.f32.mrf.mxu0
      %v4835 = vpop.f32.mrf.mxu0
      %v4836 = vadd.f32 %v4675, %v4835
      %v4837 = vpop.f32.mrf.mxu0
      %4838 = vmatprep.mubr.bf16.mxu0 %v3626
      %4839 = vmatmul.mubr.bf16.gmra.mxu0 %v3562
      %v4840 = vpop.f32.mrf.mxu0
      %v4841 = vadd.f32 %v4680, %v4840
      %v4842 = vpop.f32.mrf.mxu0
      %v4843 = vpop.f32.mrf.mxu0
      %v4844 = vadd.f32 %v4683, %v4843
      %v4845 = vpop.f32.mrf.mxu0
      %4846 = vmatprep.mubr.bf16.mxu0 %v3627
      %4847 = vmatmul.mubr.bf16.gmra.mxu0 %v3563
      %v4848 = vpop.f32.mrf.mxu0
      %v4849 = vadd.f32 %v4688, %v4848
      %v4850 = vpop.f32.mrf.mxu0
      %v4851 = vpop.f32.mrf.mxu0
      %v4852 = vadd.f32 %v4691, %v4851
      %v4853 = vpop.f32.mrf.mxu0
      %4854 = vmatprep.mubr.bf16.mxu0 %v3628
      %4855 = vmatmul.mubr.bf16.gmra.mxu0 %v3564
      %v4856 = vpop.f32.mrf.mxu0
      %v4857 = vadd.f32 %v4696, %v4856
      %v4858 = vpop.f32.mrf.mxu0
      %v4859 = vpop.f32.mrf.mxu0
      %v4860 = vadd.f32 %v4699, %v4859
      %v4861 = vpop.f32.mrf.mxu0
      %4862 = vmatprep.mubr.bf16.mxu0 %v3629
      %4863 = vmatmul.mubr.bf16.gmra.mxu0 %v3565
      %v4864 = vpop.f32.mrf.mxu0
      %v4865 = vadd.f32 %v4704, %v4864
      %v4866 = vpop.f32.mrf.mxu0
      %v4867 = vpop.f32.mrf.mxu0
      %v4868 = vadd.f32 %v4707, %v4867
      %v4869 = vpop.f32.mrf.mxu0
      %4870 = vmatprep.mubr.bf16.mxu0 %v3630
      %4871 = vmatmul.mubr.bf16.gmra.mxu0 %v3566
      %v4872 = vpop.f32.mrf.mxu0
      %v4873 = vadd.f32 %v4712, %v4872
      %v4874 = vpop.f32.mrf.mxu0
      %v4875 = vpop.f32.mrf.mxu0
      %v4876 = vadd.f32 %v4715, %v4875
      %v4877 = vpop.f32.mrf.mxu0
      %4878 = vmatprep.mubr.bf16.mxu0 %v3631
      %4879 = vmatmul.mubr.bf16.gmra.mxu0 %v3567
      %v4880 = vpop.f32.mrf.mxu0
      %v4881 = vadd.f32 %v4720, %v4880
      %v4882 = vpop.f32.mrf.mxu0
      %v4883 = vpop.f32.mrf.mxu0
      %v4884 = vadd.f32 %v4723, %v4883
      %v4885 = vpop.f32.mrf.mxu0
      %4886 = vmatprep.mubr.bf16.mxu0 %v3632
      %4887 = vmatmul.mubr.bf16.gmra.mxu0 %v3568
      %v4888 = vpop.f32.mrf.mxu0
      %v4889 = vadd.f32 %v4728, %v4888
      %v4890 = vpop.f32.mrf.mxu0
      %v4891 = vpop.f32.mrf.mxu0
      %v4892 = vadd.f32 %v4731, %v4891
      %v4893 = vpop.f32.mrf.mxu0
      %4894 = vmatprep.mubr.bf16.mxu0 %v3633
      %4895 = vmatmul.mubr.bf16.gmra.mxu0 %v3569
      %v4896 = vpop.f32.mrf.mxu0
      %v4897 = vadd.f32 %v4736, %v4896
      %v4898 = vpop.f32.mrf.mxu0
      %v4899 = vpop.f32.mrf.mxu0
      %v4900 = vadd.f32 %v4739, %v4899
      %v4901 = vpop.f32.mrf.mxu0
      %4902 = vmatprep.mubr.bf16.mxu0 %v3634
      %4903 = vmatmul.mubr.bf16.gmra.mxu0 %v3570
      %v4904 = vpop.f32.mrf.mxu0
      %v4905 = vadd.f32 %v4744, %v4904
      %v4906 = vpop.f32.mrf.mxu0
      %v4907 = vpop.f32.mrf.mxu0
      %v4908 = vadd.f32 %v4747, %v4907
      %v4909 = vpop.f32.mrf.mxu0
      %4910 = vmatprep.mubr.bf16.mxu0 %v3635
      %4911 = vmatmul.mubr.bf16.gmra.mxu0 %v3571
      %v4912 = vpop.f32.mrf.mxu0
      %v4913 = vadd.f32 %v4752, %v4912
      %v4914 = vpop.f32.mrf.mxu0
      %v4915 = vpop.f32.mrf.mxu0
      %v4916 = vadd.f32 %v4755, %v4915
      %v4917 = vpop.f32.mrf.mxu0
      %4918 = vmatprep.mubr.bf16.mxu0 %v3636
      %4919 = vmatmul.mubr.bf16.gmra.mxu0 %v3572
      %v4920 = vpop.f32.mrf.mxu0
      %v4921 = vadd.f32 %v4760, %v4920
      %v4922 = vpop.f32.mrf.mxu0
      %v4923 = vpop.f32.mrf.mxu0
      %v4924 = vadd.f32 %v4763, %v4923
      %v4925 = vpop.f32.mrf.mxu0
      %4926 = vdwg.mxu0
      %4927 = vmatprep.subr.bf16.mxu0 0
      %4928 = vmatpush1.bf16.msra.mxu0 %v4355
      %4929 = vmatprep.subr.bf16.mxu0 0
      %4930 = vmatpush1.bf16.msra.mxu0 %v4354
      %4931 = vmatprep.subr.bf16.mxu0 0
      %4932 = vmatpush1.bf16.msra.mxu0 %v4353
      %4933 = vmatprep.subr.bf16.mxu0 0
      %4934 = vmatpush1.bf16.msra.mxu0 %v4352
      %4935 = vmatprep.subr.bf16.mxu0 0
      %4936 = vmatpush1.bf16.msra.mxu0 %v4351
      %4937 = vmatprep.subr.bf16.mxu0 0
      %4938 = vmatpush1.bf16.msra.mxu0 %v4350
      %4939 = vmatprep.subr.bf16.mxu0 0
      %4940 = vmatpush1.bf16.msra.mxu0 %v4349
      %4941 = vmatprep.subr.bf16.mxu0 0
      %4942 = vmatpush1.bf16.msra.mxu0 %v4348
      %4943 = vmatprep.subr.bf16.mxu0 0
      %4944 = vmatpush2.bf16.msra.mxu0 %v4363
      %4945 = vmatprep.subr.bf16.mxu0 0
      %4946 = vmatpush2.bf16.msra.mxu0 %v4362
      %4947 = vmatprep.subr.bf16.mxu0 0
      %4948 = vmatpush2.bf16.msra.mxu0 %v4361
      %4949 = vmatprep.subr.bf16.mxu0 0
      %4950 = vmatpush2.bf16.msra.mxu0 %v4360
      %4951 = vmatprep.subr.bf16.mxu0 0
      %4952 = vmatpush2.bf16.msra.mxu0 %v4359
      %4953 = vmatprep.subr.bf16.mxu0 0
      %4954 = vmatpush2.bf16.msra.mxu0 %v4358
      %4955 = vmatprep.subr.bf16.mxu0 0
      %4956 = vmatpush2.bf16.msra.mxu0 %v4357
      %4957 = vmatprep.subr.bf16.mxu0 0
      %4958 = vmatpush2.bf16.msra.mxu0 %v4356
      %4959 = vmatprep.mubr.bf16.mxu0 %v3765
      %4960 = vmatmul.mubr.bf16.gmra.mxu0 %v3701
      %v4961 = vpop.f32.mrf.mxu0
      %v4962 = vadd.f32 %v4801, %v4961
      %v4963 = vpop.f32.mrf.mxu0
      %v4964 = vpop.f32.mrf.mxu0
      %v4965 = vadd.f32 %v4804, %v4964
      %v4966 = vpop.f32.mrf.mxu0
      %4967 = vmatprep.mubr.bf16.mxu0 %v3766
      %4968 = vmatmul.mubr.bf16.gmra.mxu0 %v3702
      %v4969 = vpop.f32.mrf.mxu0
      %v4970 = vadd.f32 %v4809, %v4969
      %v4971 = vpop.f32.mrf.mxu0
      %v4972 = vpop.f32.mrf.mxu0
      %v4973 = vadd.f32 %v4812, %v4972
      %v4974 = vpop.f32.mrf.mxu0
      %4975 = vmatprep.mubr.bf16.mxu0 %v3767
      %4976 = vmatmul.mubr.bf16.gmra.mxu0 %v3703
      %v4977 = vpop.f32.mrf.mxu0
      %v4978 = vadd.f32 %v4817, %v4977
      %v4979 = vpop.f32.mrf.mxu0
      %v4980 = vpop.f32.mrf.mxu0
      %v4981 = vadd.f32 %v4820, %v4980
      %v4982 = vpop.f32.mrf.mxu0
      %4983 = vmatprep.mubr.bf16.mxu0 %v3768
      %4984 = vmatmul.mubr.bf16.gmra.mxu0 %v3704
      %v4985 = vpop.f32.mrf.mxu0
      %v4986 = vadd.f32 %v4825, %v4985
      %v4987 = vpop.f32.mrf.mxu0
      %v4988 = vpop.f32.mrf.mxu0
      %v4989 = vadd.f32 %v4828, %v4988
      %v4990 = vpop.f32.mrf.mxu0
      %4991 = vmatprep.mubr.bf16.mxu0 %v3769
      %4992 = vmatmul.mubr.bf16.gmra.mxu0 %v3705
      %v4993 = vpop.f32.mrf.mxu0
      %v4994 = vadd.f32 %v4833, %v4993
      %v4995 = vpop.f32.mrf.mxu0
      %v4996 = vpop.f32.mrf.mxu0
      %v4997 = vadd.f32 %v4836, %v4996
      %v4998 = vpop.f32.mrf.mxu0
      %4999 = vmatprep.mubr.bf16.mxu0 %v3770
      %5000 = vmatmul.mubr.bf16.gmra.mxu0 %v3706
      %v5001 = vpop.f32.mrf.mxu0
      %v5002 = vadd.f32 %v4841, %v5001
      %v5003 = vpop.f32.mrf.mxu0
      %v5004 = vpop.f32.mrf.mxu0
      %v5005 = vadd.f32 %v4844, %v5004
      %v5006 = vpop.f32.mrf.mxu0
      %5007 = vmatprep.mubr.bf16.mxu0 %v3771
      %5008 = vmatmul.mubr.bf16.gmra.mxu0 %v3707
      %v5009 = vpop.f32.mrf.mxu0
      %v5010 = vadd.f32 %v4849, %v5009
      %v5011 = vpop.f32.mrf.mxu0
      %v5012 = vpop.f32.mrf.mxu0
      %v5013 = vadd.f32 %v4852, %v5012
      %v5014 = vpop.f32.mrf.mxu0
      %5015 = vmatprep.mubr.bf16.mxu0 %v3772
      %5016 = vmatmul.mubr.bf16.gmra.mxu0 %v3708
      %v5017 = vpop.f32.mrf.mxu0
      %v5018 = vadd.f32 %v4857, %v5017
      %v5019 = vpop.f32.mrf.mxu0
      %v5020 = vpop.f32.mrf.mxu0
      %v5021 = vadd.f32 %v4860, %v5020
      %v5022 = vpop.f32.mrf.mxu0
      %5023 = vmatprep.mubr.bf16.mxu0 %v3773
      %5024 = vmatmul.mubr.bf16.gmra.mxu0 %v3709
      %v5025 = vpop.f32.mrf.mxu0
      %v5026 = vadd.f32 %v4865, %v5025
      %v5027 = vpop.f32.mrf.mxu0
      %v5028 = vpop.f32.mrf.mxu0
      %v5029 = vadd.f32 %v4868, %v5028
      %v5030 = vpop.f32.mrf.mxu0
      %5031 = vmatprep.mubr.bf16.mxu0 %v3774
      %5032 = vmatmul.mubr.bf16.gmra.mxu0 %v3710
      %v5033 = vpop.f32.mrf.mxu0
      %v5034 = vadd.f32 %v4873, %v5033
      %v5035 = vpop.f32.mrf.mxu0
      %v5036 = vpop.f32.mrf.mxu0
      %v5037 = vadd.f32 %v4876, %v5036
      %v5038 = vpop.f32.mrf.mxu0
      %5039 = vmatprep.mubr.bf16.mxu0 %v3775
      %5040 = vmatmul.mubr.bf16.gmra.mxu0 %v3711
      %v5041 = vpop.f32.mrf.mxu0
      %v5042 = vadd.f32 %v4881, %v5041
      %v5043 = vpop.f32.mrf.mxu0
      %v5044 = vpop.f32.mrf.mxu0
      %v5045 = vadd.f32 %v4884, %v5044
      %v5046 = vpop.f32.mrf.mxu0
      %5047 = vmatprep.mubr.bf16.mxu0 %v3776
      %5048 = vmatmul.mubr.bf16.gmra.mxu0 %v3712
      %v5049 = vpop.f32.mrf.mxu0
      %v5050 = vadd.f32 %v4889, %v5049
      %v5051 = vpop.f32.mrf.mxu0
      %v5052 = vpop.f32.mrf.mxu0
      %v5053 = vadd.f32 %v4892, %v5052
      %v5054 = vpop.f32.mrf.mxu0
      %5055 = vmatprep.mubr.bf16.mxu0 %v3777
      %5056 = vmatmul.mubr.bf16.gmra.mxu0 %v3713
      %v5057 = vpop.f32.mrf.mxu0
      %v5058 = vadd.f32 %v4897, %v5057
      %v5059 = vpop.f32.mrf.mxu0
      %v5060 = vpop.f32.mrf.mxu0
      %v5061 = vadd.f32 %v4900, %v5060
      %v5062 = vpop.f32.mrf.mxu0
      %5063 = vmatprep.mubr.bf16.mxu0 %v3778
      %5064 = vmatmul.mubr.bf16.gmra.mxu0 %v3714
      %v5065 = vpop.f32.mrf.mxu0
      %v5066 = vadd.f32 %v4905, %v5065
      %v5067 = vpop.f32.mrf.mxu0
      %v5068 = vpop.f32.mrf.mxu0
      %v5069 = vadd.f32 %v4908, %v5068
      %v5070 = vpop.f32.mrf.mxu0
      %5071 = vmatprep.mubr.bf16.mxu0 %v3779
      %5072 = vmatmul.mubr.bf16.gmra.mxu0 %v3715
      %v5073 = vpop.f32.mrf.mxu0
      %v5074 = vadd.f32 %v4913, %v5073
      %v5075 = vpop.f32.mrf.mxu0
      %v5076 = vpop.f32.mrf.mxu0
      %v5077 = vadd.f32 %v4916, %v5076
      %v5078 = vpop.f32.mrf.mxu0
      %5079 = vmatprep.mubr.bf16.mxu0 %v3780
      %5080 = vmatmul.mubr.bf16.gmra.mxu0 %v3716
      %v5081 = vpop.f32.mrf.mxu0
      %v5082 = vadd.f32 %v4921, %v5081
      %v5083 = vpop.f32.mrf.mxu0
      %v5084 = vpop.f32.mrf.mxu0
      %v5085 = vadd.f32 %v4924, %v5084
      %v5086 = vpop.f32.mrf.mxu0
      %5087 = vdwg.mxu0
      %5088 = vmatprep.subr.bf16.mxu0 0
      %5089 = vmatpush1.bf16.msra.mxu0 %v4371
      %5090 = vmatprep.subr.bf16.mxu0 0
      %5091 = vmatpush1.bf16.msra.mxu0 %v4370
      %5092 = vmatprep.subr.bf16.mxu0 0
      %5093 = vmatpush1.bf16.msra.mxu0 %v4369
      %5094 = vmatprep.subr.bf16.mxu0 0
      %5095 = vmatpush1.bf16.msra.mxu0 %v4368
      %5096 = vmatprep.subr.bf16.mxu0 0
      %5097 = vmatpush1.bf16.msra.mxu0 %v4367
      %5098 = vmatprep.subr.bf16.mxu0 0
      %5099 = vmatpush1.bf16.msra.mxu0 %v4366
      %5100 = vmatprep.subr.bf16.mxu0 0
      %5101 = vmatpush1.bf16.msra.mxu0 %v4365
      %5102 = vmatprep.subr.bf16.mxu0 0
      %5103 = vmatpush1.bf16.msra.mxu0 %v4364
      %5104 = vmatprep.subr.bf16.mxu0 0
      %5105 = vmatpush2.bf16.msra.mxu0 0
      %5106 = vmatprep.subr.bf16.mxu0 0
      %5107 = vmatpush2.bf16.msra.mxu0 0
      %5108 = vmatprep.subr.bf16.mxu0 0
      %5109 = vmatpush2.bf16.msra.mxu0 0
      %5110 = vmatprep.subr.bf16.mxu0 0
      %5111 = vmatpush2.bf16.msra.mxu0 0
      %5112 = vmatprep.subr.bf16.mxu0 0
      %5113 = vmatpush2.bf16.msra.mxu0 0
      %5114 = vmatprep.subr.bf16.mxu0 0
      %5115 = vmatpush2.bf16.msra.mxu0 0
      %5116 = vmatprep.subr.bf16.mxu0 0
      %5117 = vmatpush2.bf16.msra.mxu0 0
      %5118 = vmatprep.subr.bf16.mxu0 0
      %5119 = vmatpush2.bf16.msra.mxu0 0
      %5120 = vmatprep.mubr.bf16.mxu0 0
      %5121 = vmatmul.mubr.bf16.gmra.mxu0 %v3829
      %v5122 = vpop.f32.mrf.mxu0
      %v5123 = vadd.f32 %v4962, %v5122
      %v5124 = vpop.f32.mrf.mxu0
      %v5125 = vpop.f32.mrf.mxu0
      %v5126 = vadd.f32 %v4965, %v5125
      %v5127 = vpop.f32.mrf.mxu0
      %5128 = vmatprep.mubr.bf16.mxu0 0
      %5129 = vmatmul.mubr.bf16.gmra.mxu0 %v3830
      %v5130 = vpop.f32.mrf.mxu0
      %v5131 = vadd.f32 %v4970, %v5130
      %v5132 = vpop.f32.mrf.mxu0
      %v5133 = vpop.f32.mrf.mxu0
      %v5134 = vadd.f32 %v4973, %v5133
      %v5135 = vpop.f32.mrf.mxu0
      %5136 = vmatprep.mubr.bf16.mxu0 0
      %5137 = vmatmul.mubr.bf16.gmra.mxu0 %v3831
      %v5138 = vpop.f32.mrf.mxu0
      %v5139 = vadd.f32 %v4978, %v5138
      %v5140 = vpop.f32.mrf.mxu0
      %v5141 = vpop.f32.mrf.mxu0
      %v5142 = vadd.f32 %v4981, %v5141
      %v5143 = vpop.f32.mrf.mxu0
      %5144 = vmatprep.mubr.bf16.mxu0 0
      %5145 = vmatmul.mubr.bf16.gmra.mxu0 %v3832
      %v5146 = vpop.f32.mrf.mxu0
      %v5147 = vadd.f32 %v4986, %v5146
      %v5148 = vpop.f32.mrf.mxu0
      %v5149 = vpop.f32.mrf.mxu0
      %v5150 = vadd.f32 %v4989, %v5149
      %v5151 = vpop.f32.mrf.mxu0
      %5152 = vmatprep.mubr.bf16.mxu0 0
      %5153 = vmatmul.mubr.bf16.gmra.mxu0 %v3833
      %v5154 = vpop.f32.mrf.mxu0
      %v5155 = vadd.f32 %v4994, %v5154
      %v5156 = vpop.f32.mrf.mxu0
      %v5157 = vpop.f32.mrf.mxu0
      %v5158 = vadd.f32 %v4997, %v5157
      %v5159 = vpop.f32.mrf.mxu0
      %5160 = vmatprep.mubr.bf16.mxu0 0
      %5161 = vmatmul.mubr.bf16.gmra.mxu0 %v3834
      %v5162 = vpop.f32.mrf.mxu0
      %v5163 = vadd.f32 %v5002, %v5162
      %v5164 = vpop.f32.mrf.mxu0
      %v5165 = vpop.f32.mrf.mxu0
      %v5166 = vadd.f32 %v5005, %v5165
      %v5167 = vpop.f32.mrf.mxu0
      %5168 = vmatprep.mubr.bf16.mxu0 0
      %5169 = vmatmul.mubr.bf16.gmra.mxu0 %v3835
      %v5170 = vpop.f32.mrf.mxu0
      %v5171 = vadd.f32 %v5010, %v5170
      %v5172 = vpop.f32.mrf.mxu0
      %v5173 = vpop.f32.mrf.mxu0
      %v5174 = vadd.f32 %v5013, %v5173
      %v5175 = vpop.f32.mrf.mxu0
      %5176 = vmatprep.mubr.bf16.mxu0 0
      %5177 = vmatmul.mubr.bf16.gmra.mxu0 %v3836
      %v5178 = vpop.f32.mrf.mxu0
      %v5179 = vadd.f32 %v5018, %v5178
      %v5180 = vpop.f32.mrf.mxu0
      %v5181 = vpop.f32.mrf.mxu0
      %v5182 = vadd.f32 %v5021, %v5181
      %v5183 = vpop.f32.mrf.mxu0
      %5184 = vmatprep.mubr.bf16.mxu0 0
      %5185 = vmatmul.mubr.bf16.gmra.mxu0 %v3837
      %v5186 = vpop.f32.mrf.mxu0
      %v5187 = vadd.f32 %v5026, %v5186
      %v5188 = vpop.f32.mrf.mxu0
      %v5189 = vpop.f32.mrf.mxu0
      %v5190 = vadd.f32 %v5029, %v5189
      %v5191 = vpop.f32.mrf.mxu0
      %5192 = vmatprep.mubr.bf16.mxu0 0
      %5193 = vmatmul.mubr.bf16.gmra.mxu0 %v3838
      %v5194 = vpop.f32.mrf.mxu0
      %v5195 = vadd.f32 %v5034, %v5194
      %v5196 = vpop.f32.mrf.mxu0
      %v5197 = vpop.f32.mrf.mxu0
      %v5198 = vadd.f32 %v5037, %v5197
      %v5199 = vpop.f32.mrf.mxu0
      %5200 = vmatprep.mubr.bf16.mxu0 0
      %5201 = vmatmul.mubr.bf16.gmra.mxu0 %v3839
      %v5202 = vpop.f32.mrf.mxu0
      %v5203 = vadd.f32 %v5042, %v5202
      %v5204 = vpop.f32.mrf.mxu0
      %v5205 = vpop.f32.mrf.mxu0
      %v5206 = vadd.f32 %v5045, %v5205
      %v5207 = vpop.f32.mrf.mxu0
      %5208 = vmatprep.mubr.bf16.mxu0 0
      %5209 = vmatmul.mubr.bf16.gmra.mxu0 %v3840
      %v5210 = vpop.f32.mrf.mxu0
      %v5211 = vadd.f32 %v5050, %v5210
      %v5212 = vpop.f32.mrf.mxu0
      %v5213 = vpop.f32.mrf.mxu0
      %v5214 = vadd.f32 %v5053, %v5213
      %v5215 = vpop.f32.mrf.mxu0
      %5216 = vmatprep.mubr.bf16.mxu0 0
      %5217 = vmatmul.mubr.bf16.gmra.mxu0 %v3841
      %v5218 = vpop.f32.mrf.mxu0
      %v5219 = vadd.f32 %v5058, %v5218
      %v5220 = vpop.f32.mrf.mxu0
      %v5221 = vpop.f32.mrf.mxu0
      %v5222 = vadd.f32 %v5061, %v5221
      %v5223 = vpop.f32.mrf.mxu0
      %5224 = vmatprep.mubr.bf16.mxu0 0
      %5225 = vmatmul.mubr.bf16.gmra.mxu0 %v3842
      %v5226 = vpop.f32.mrf.mxu0
      %v5227 = vadd.f32 %v5066, %v5226
      %v5228 = vpop.f32.mrf.mxu0
      %v5229 = vpop.f32.mrf.mxu0
      %v5230 = vadd.f32 %v5069, %v5229
      %v5231 = vpop.f32.mrf.mxu0
      %5232 = vmatprep.mubr.bf16.mxu0 0
      %5233 = vmatmul.mubr.bf16.gmra.mxu0 %v3843
      %v5234 = vpop.f32.mrf.mxu0
      %v5235 = vadd.f32 %v5074, %v5234
      %v5236 = vpop.f32.mrf.mxu0
      %v5237 = vpop.f32.mrf.mxu0
      %v5238 = vadd.f32 %v5077, %v5237
      %v5239 = vpop.f32.mrf.mxu0
      %5240 = vmatprep.mubr.bf16.mxu0 0
      %5241 = vmatmul.mubr.bf16.gmra.mxu0 %v3844
      %v5242 = vpop.f32.mrf.mxu0
      %v5243 = vadd.f32 %v5082, %v5242
      %v5244 = vpop.f32.mrf.mxu0
      %v5245 = vpop.f32.mrf.mxu0
      %v5246 = vadd.f32 %v5085, %v5245
      %v5247 = vpop.f32.mrf.mxu0
      %5248 = vdwg.mxu0
      %v5249 = vmax.f32 %v5123, 0.0
      %v5250 = vmax.f32 %v5126, 0.0
      %v5251 = vmax.f32 %v5131, 0.0
      %v5252 = vmax.f32 %v5134, 0.0
      %v5253 = vmax.f32 %v5139, 0.0
      %v5254 = vmax.f32 %v5142, 0.0
      %v5255 = vmax.f32 %v5147, 0.0
      %v5256 = vmax.f32 %v5150, 0.0
      %v5257 = vmax.f32 %v5155, 0.0
      %v5258 = vmax.f32 %v5158, 0.0
      %v5259 = vmax.f32 %v5163, 0.0
      %v5260 = vmax.f32 %v5166, 0.0
      %v5261 = vmax.f32 %v5171, 0.0
      %v5262 = vmax.f32 %v5174, 0.0
      %v5263 = vmax.f32 %v5179, 0.0
      %v5264 = vmax.f32 %v5182, 0.0
      %v5265 = vmax.f32 %v5187, 0.0
      %v5266 = vmax.f32 %v5190, 0.0
      %v5267 = vmax.f32 %v5195, 0.0
      %v5268 = vmax.f32 %v5198, 0.0
      %v5269 = vmax.f32 %v5203, 0.0
      %v5270 = vmax.f32 %v5206, 0.0
      %v5271 = vmax.f32 %v5211, 0.0
      %v5272 = vmax.f32 %v5214, 0.0
      %v5273 = vmax.f32 %v5219, 0.0
      %v5274 = vmax.f32 %v5222, 0.0
      %v5275 = vmax.f32 %v5227, 0.0
      %v5276 = vmax.f32 %v5230, 0.0
      %v5277 = vmax.f32 %v5235, 0.0
      %v5278 = vmax.f32 %v5238, 0.0
      %v5279 = vmax.f32 %v5243, 0.0
      %v5280 = vmax.f32 %v5246, 0.0
      %5281 = vxpose.xlu0.b32.start [1/16] %v5249, 128
      %5282 = vxpose.xlu0.b32.cont [2/16] %v5250, 128
      %5283 = vxpose.xlu0.b32.cont [3/16] %v5251, 128
      %5284 = vxpose.xlu0.b32.cont [4/16] %v5252, 128
      %5285 = vxpose.xlu0.b32.cont [5/16] %v5253, 128
      %5286 = vxpose.xlu0.b32.cont [6/16] %v5254, 128
      %5287 = vxpose.xlu0.b32.cont [7/16] %v5255, 128
      %5288 = vxpose.xlu0.b32.cont [8/16] %v5256, 128
      %5289 = vxpose.xlu0.b32.cont [9/16] %v5257, 128
      %5290 = vxpose.xlu0.b32.cont [10/16] %v5258, 128
      %5291 = vxpose.xlu0.b32.cont [11/16] %v5259, 128
      %5292 = vxpose.xlu0.b32.cont [12/16] %v5260, 128
      %5293 = vxpose.xlu0.b32.cont [13/16] %v5261, 128
      %5294 = vxpose.xlu0.b32.cont [14/16] %v5262, 128
      %5295 = vxpose.xlu0.b32.cont [15/16] %v5263, 128
      %5296 = vxpose.xlu0.b32.end [16/16] %v5264, 128
      %v5297 = vpop.trf.xlu0
      %v5298 = vpop.trf.xlu0
      %v5299 = vpop.trf.xlu0
      %v5300 = vpop.trf.xlu0
      %v5301 = vpop.trf.xlu0
      %v5302 = vpop.trf.xlu0
      %v5303 = vpop.trf.xlu0
      %v5304 = vpop.trf.xlu0
      %v5305 = vpop.trf.xlu0
      %v5306 = vpop.trf.xlu0
      %v5307 = vpop.trf.xlu0
      %v5308 = vpop.trf.xlu0
      %v5309 = vpop.trf.xlu0
      %v5310 = vpop.trf.xlu0
      %v5311 = vpop.trf.xlu0
      %v5312 = vpop.trf.xlu0
      %5313 = vxpose.xlu0.b32.start [1/16] %v5265, 128
      %5314 = vxpose.xlu0.b32.cont [2/16] %v5266, 128
      %5315 = vxpose.xlu0.b32.cont [3/16] %v5267, 128
      %5316 = vxpose.xlu0.b32.cont [4/16] %v5268, 128
      %5317 = vxpose.xlu0.b32.cont [5/16] %v5269, 128
      %5318 = vxpose.xlu0.b32.cont [6/16] %v5270, 128
      %5319 = vxpose.xlu0.b32.cont [7/16] %v5271, 128
      %5320 = vxpose.xlu0.b32.cont [8/16] %v5272, 128
      %5321 = vxpose.xlu0.b32.cont [9/16] %v5273, 128
      %5322 = vxpose.xlu0.b32.cont [10/16] %v5274, 128
      %5323 = vxpose.xlu0.b32.cont [11/16] %v5275, 128
      %5324 = vxpose.xlu0.b32.cont [12/16] %v5276, 128
      %5325 = vxpose.xlu0.b32.cont [13/16] %v5277, 128
      %5326 = vxpose.xlu0.b32.cont [14/16] %v5278, 128
      %5327 = vxpose.xlu0.b32.cont [15/16] %v5279, 128
      %5328 = vxpose.xlu0.b32.end [16/16] %v5280, 128
      %v5329 = vpop.trf.xlu0
      %v5330 = vpop.trf.xlu0
      %v5331 = vpop.trf.xlu0
      %v5332 = vpop.trf.xlu0
      %v5333 = vpop.trf.xlu0
      %v5334 = vpop.trf.xlu0
      %v5335 = vpop.trf.xlu0
      %v5336 = vpop.trf.xlu0
      %v5337 = vpop.trf.xlu0
      %v5338 = vpop.trf.xlu0
      %v5339 = vpop.trf.xlu0
      %v5340 = vpop.trf.xlu0
      %v5341 = vpop.trf.xlu0
      %v5342 = vpop.trf.xlu0
      %v5343 = vpop.trf.xlu0
      %v5344 = vpop.trf.xlu0
      %5345 = vst [vmem:[%s278 + $0xc0] sm:$0xff] %v5297
      %5346 = vst [vmem:[%s278 + $0xc8] sm:$0xff] %v5329
      %5347 = vst [vmem:[%s278 + $0xd0] sm:$0xff] %v5298
      %5348 = vst [vmem:[%s278 + $0xd8] sm:$0xff] %v5330
      %5349 = vst [vmem:[%s278 + $0xe0] sm:$0xff] %v5299
      %5350 = vst [vmem:[%s278 + $0xe8] sm:$0xff] %v5331
      %5351 = vst [vmem:[%s278 + $0xf0] sm:$0xff] %v5300
      %5352 = vst [vmem:[%s278 + $0xf8] sm:$0xff] %v5332
      %5353 = vst [vmem:[%s278 + $0x100] sm:$0xff] %v5301
      %5354 = vst [vmem:[%s278 + $0x108] sm:$0xff] %v5333
      %5355 = vst [vmem:[%s278 + $0x110] sm:$0xff] %v5302
      %5356 = vst [vmem:[%s278 + $0x118] sm:$0xff] %v5334
      %5357 = vst [vmem:[%s278 + $0x120] sm:$0xff] %v5303
      %5358 = vst [vmem:[%s278 + $0x128] sm:$0xff] %v5335
      %5359 = vst [vmem:[%s278 + $0x130] sm:$0xff] %v5304
      %5360 = vst [vmem:[%s278 + $0x138] sm:$0xff] %v5336
      %5361 = vst [vmem:[%s278 + $0x140] sm:$0xff] %v5305
      %5362 = vst [vmem:[%s278 + $0x148] sm:$0xff] %v5337
      %5363 = vst [vmem:[%s278 + $0x150] sm:$0xff] %v5306
      %5364 = vst [vmem:[%s278 + $0x158] sm:$0xff] %v5338
      %5365 = vst [vmem:[%s278 + $0x160] sm:$0xff] %v5307
      %5366 = vst [vmem:[%s278 + $0x168] sm:$0xff] %v5339
      %5367 = vst [vmem:[%s278 + $0x170] sm:$0xff] %v5308
      %5368 = vst [vmem:[%s278 + $0x178] sm:$0xff] %v5340
      %v5369 = vpack.c.bf16 %v5250, %v5249
      %v5370 = vpack.c.bf16 %v5252, %v5251
      %v5371 = vpack.c.bf16 %v5254, %v5253
      %v5372 = vpack.c.bf16 %v5256, %v5255
      %v5373 = vpack.c.bf16 %v5258, %v5257
      %v5374 = vpack.c.bf16 %v5260, %v5259
      %v5375 = vpack.c.bf16 %v5262, %v5261
      %v5376 = vpack.c.bf16 %v5264, %v5263
      %v5377 = vpack.c.bf16 %v5266, %v5265
      %v5378 = vpack.c.bf16 %v5268, %v5267
      %v5379 = vpack.c.bf16 %v5270, %v5269
      %v5380 = vpack.c.bf16 %v5272, %v5271
      %v5381 = vpack.c.bf16 %v5274, %v5273
      %v5382 = vpack.c.bf16 %v5276, %v5275
      %v5383 = vpack.c.bf16 %v5278, %v5277
      %v5384 = vpack.c.bf16 %v5280, %v5279
      %v5401 = vunpack.c.l.b16 %v5369
      %v5402 = vunpack.c.h.b16 %v5369
      %v5403 = vunpack.c.l.b16 %v5370
      %v5404 = vunpack.c.h.b16 %v5370
      %v5405 = vunpack.c.l.b16 %v5371
      %v5406 = vunpack.c.h.b16 %v5371
      %v5407 = vunpack.c.l.b16 %v5372
      %v5408 = vunpack.c.h.b16 %v5372
      %v5409 = vunpack.c.l.b16 %v5373
      %v5410 = vunpack.c.h.b16 %v5373
      %v5411 = vunpack.c.l.b16 %v5374
      %v5412 = vunpack.c.h.b16 %v5374
      %v5413 = vunpack.c.l.b16 %v5375
      %v5414 = vunpack.c.h.b16 %v5375
      %v5415 = vunpack.c.l.b16 %v5376
      %v5416 = vunpack.c.h.b16 %v5376
      %v5417 = vunpack.c.l.b16 %v5377
      %v5418 = vunpack.c.h.b16 %v5377
      %v5419 = vunpack.c.l.b16 %v5378
      %v5420 = vunpack.c.h.b16 %v5378
      %v5421 = vunpack.c.l.b16 %v5379
      %v5422 = vunpack.c.h.b16 %v5379
      %v5423 = vunpack.c.l.b16 %v5380
      %v5424 = vunpack.c.h.b16 %v5380
      %v5425 = vunpack.c.l.b16 %v5381
      %v5426 = vunpack.c.h.b16 %v5381
      %v5427 = vunpack.c.l.b16 %v5382
      %v5428 = vunpack.c.h.b16 %v5382
      %v5429 = vunpack.c.l.b16 %v5383
      %v5430 = vunpack.c.h.b16 %v5383
      %v5431 = vunpack.c.l.b16 %v5384
      %v5432 = vunpack.c.h.b16 %v5384
      %v5433 = vpack.c.b16 %v5401, %v5401
      %v5434 = vpack.c.b16 %v5402, %v5402
      %v5435 = vpack.c.b16 %v5403, %v5403
      %v5436 = vpack.c.b16 %v5404, %v5404
      %v5437 = vpack.c.b16 %v5405, %v5405
      %v5438 = vpack.c.b16 %v5406, %v5406
      %v5439 = vpack.c.b16 %v5407, %v5407
      %v5440 = vpack.c.b16 %v5408, %v5408
      %v5441 = vpack.c.b16 %v5409, %v5409
      %v5442 = vpack.c.b16 %v5410, %v5410
      %v5443 = vpack.c.b16 %v5411, %v5411
      %v5444 = vpack.c.b16 %v5412, %v5412
      %v5445 = vpack.c.b16 %v5413, %v5413
      %v5446 = vpack.c.b16 %v5414, %v5414
      %v5447 = vpack.c.b16 %v5415, %v5415
      %v5448 = vpack.c.b16 %v5416, %v5416
      %v5449 = vpack.c.b16 %v5417, %v5417
      %v5450 = vpack.c.b16 %v5418, %v5418
      %v5451 = vpack.c.b16 %v5419, %v5419
      %v5452 = vpack.c.b16 %v5420, %v5420
      %v5453 = vpack.c.b16 %v5421, %v5421
      %v5454 = vpack.c.b16 %v5422, %v5422
      %v5455 = vpack.c.b16 %v5423, %v5423
      %v5456 = vpack.c.b16 %v5424, %v5424
      %v5457 = vpack.c.b16 %v5425, %v5425
      %v5458 = vpack.c.b16 %v5426, %v5426
      %v5459 = vpack.c.b16 %v5427, %v5427
      %v5460 = vpack.c.b16 %v5428, %v5428
      %v5461 = vpack.c.b16 %v5429, %v5429
      %v5462 = vpack.c.b16 %v5430, %v5430
      %v5463 = vpack.c.b16 %v5431, %v5431
      %v5464 = vpack.c.b16 %v5432, %v5432
      %v5466 = vshrl.u32 %v5433, 16
      %v5468 = vrot.slane %v5466, 7
      %v5469 = vshll.u32 %v5433, 16
      %v5471 = vor.u32 %v5468, %v5469
      %v5472 = vrot.slane %v5468, 4
      %v5474 = vshrl.u32 %v5434, 16
      %v5476 = vrot.slane %v5474, 7
      %v5477 = vshll.u32 %v5434, 16
      %v5479 = vor.u32 %v5476, %v5477
      %v5480 = vsel %vm970, %v5472, %v5479
      %v5481 = vrot.slane %v5476, 4
      %v5483 = vshrl.u32 %v5435, 16
      %v5485 = vrot.slane %v5483, 7
      %v5486 = vshll.u32 %v5435, 16
      %v5488 = vor.u32 %v5485, %v5486
      %v5489 = vrot.slane %v5485, 4
      %v5491 = vshrl.u32 %v5436, 16
      %v5493 = vrot.slane %v5491, 7
      %v5494 = vshll.u32 %v5436, 16
      %v5496 = vor.u32 %v5493, %v5494
      %v5497 = vsel %vm970, %v5489, %v5496
      %v5498 = vrot.slane %v5493, 4
      %v5500 = vshrl.u32 %v5437, 16
      %v5502 = vrot.slane %v5500, 7
      %v5503 = vshll.u32 %v5437, 16
      %v5505 = vor.u32 %v5502, %v5503
      %v5506 = vrot.slane %v5502, 4
      %v5508 = vshrl.u32 %v5438, 16
      %v5510 = vrot.slane %v5508, 7
      %v5511 = vshll.u32 %v5438, 16
      %v5513 = vor.u32 %v5510, %v5511
      %v5514 = vsel %vm970, %v5506, %v5513
      %v5515 = vrot.slane %v5510, 4
      %v5517 = vshrl.u32 %v5439, 16
      %v5519 = vrot.slane %v5517, 7
      %v5520 = vshll.u32 %v5439, 16
      %v5522 = vor.u32 %v5519, %v5520
      %v5523 = vrot.slane %v5519, 4
      %v5525 = vshrl.u32 %v5440, 16
      %v5527 = vrot.slane %v5525, 7
      %v5528 = vshll.u32 %v5440, 16
      %v5530 = vor.u32 %v5527, %v5528
      %v5531 = vsel %vm970, %v5523, %v5530
      %v5532 = vrot.slane %v5527, 4
      %v5534 = vshrl.u32 %v5441, 16
      %v5536 = vrot.slane %v5534, 7
      %v5537 = vshll.u32 %v5441, 16
      %v5539 = vor.u32 %v5536, %v5537
      %v5540 = vrot.slane %v5536, 4
      %v5542 = vshrl.u32 %v5442, 16
      %v5544 = vrot.slane %v5542, 7
      %v5545 = vshll.u32 %v5442, 16
      %v5547 = vor.u32 %v5544, %v5545
      %v5548 = vsel %vm970, %v5540, %v5547
      %v5549 = vrot.slane %v5544, 4
      %v5551 = vshrl.u32 %v5443, 16
      %v5553 = vrot.slane %v5551, 7
      %v5554 = vshll.u32 %v5443, 16
      %v5556 = vor.u32 %v5553, %v5554
      %v5557 = vrot.slane %v5553, 4
      %v5559 = vshrl.u32 %v5444, 16
      %v5561 = vrot.slane %v5559, 7
      %v5562 = vshll.u32 %v5444, 16
      %v5564 = vor.u32 %v5561, %v5562
      %v5565 = vsel %vm970, %v5557, %v5564
      %v5566 = vrot.slane %v5561, 4
      %v5568 = vshrl.u32 %v5445, 16
      %v5570 = vrot.slane %v5568, 7
      %v5571 = vshll.u32 %v5445, 16
      %v5573 = vor.u32 %v5570, %v5571
      %v5574 = vrot.slane %v5570, 4
      %v5576 = vshrl.u32 %v5446, 16
      %v5578 = vrot.slane %v5576, 7
      %v5579 = vshll.u32 %v5446, 16
      %v5581 = vor.u32 %v5578, %v5579
      %v5582 = vsel %vm970, %v5574, %v5581
      %v5583 = vrot.slane %v5578, 4
      %v5585 = vshrl.u32 %v5447, 16
      %v5587 = vrot.slane %v5585, 7
      %v5588 = vshll.u32 %v5447, 16
      %v5590 = vor.u32 %v5587, %v5588
      %v5591 = vrot.slane %v5587, 4
      %v5593 = vshrl.u32 %v5448, 16
      %v5595 = vrot.slane %v5593, 7
      %v5596 = vshll.u32 %v5448, 16
      %v5598 = vor.u32 %v5595, %v5596
      %v5599 = vsel %vm970, %v5591, %v5598
      %v5600 = vrot.slane %v5595, 4
      %v5602 = vshrl.u32 %v5449, 16
      %v5604 = vrot.slane %v5602, 7
      %v5605 = vshll.u32 %v5449, 16
      %v5607 = vor.u32 %v5604, %v5605
      %v5608 = vrot.slane %v5604, 4
      %v5610 = vshrl.u32 %v5450, 16
      %v5612 = vrot.slane %v5610, 7
      %v5613 = vshll.u32 %v5450, 16
      %v5615 = vor.u32 %v5612, %v5613
      %v5616 = vsel %vm970, %v5608, %v5615
      %v5617 = vrot.slane %v5612, 4
      %v5619 = vshrl.u32 %v5451, 16
      %v5621 = vrot.slane %v5619, 7
      %v5622 = vshll.u32 %v5451, 16
      %v5624 = vor.u32 %v5621, %v5622
      %v5625 = vrot.slane %v5621, 4
      %v5627 = vshrl.u32 %v5452, 16
      %v5629 = vrot.slane %v5627, 7
      %v5630 = vshll.u32 %v5452, 16
      %v5632 = vor.u32 %v5629, %v5630
      %v5633 = vsel %vm970, %v5625, %v5632
      %v5634 = vrot.slane %v5629, 4
      %v5636 = vshrl.u32 %v5453, 16
      %v5638 = vrot.slane %v5636, 7
      %v5639 = vshll.u32 %v5453, 16
      %v5641 = vor.u32 %v5638, %v5639
      %v5642 = vrot.slane %v5638, 4
      %v5644 = vshrl.u32 %v5454, 16
      %v5646 = vrot.slane %v5644, 7
      %v5647 = vshll.u32 %v5454, 16
      %v5649 = vor.u32 %v5646, %v5647
      %v5650 = vsel %vm970, %v5642, %v5649
      %v5651 = vrot.slane %v5646, 4
      %v5653 = vshrl.u32 %v5455, 16
      %v5655 = vrot.slane %v5653, 7
      %v5656 = vshll.u32 %v5455, 16
      %v5658 = vor.u32 %v5655, %v5656
      %v5659 = vrot.slane %v5655, 4
      %v5661 = vshrl.u32 %v5456, 16
      %v5663 = vrot.slane %v5661, 7
      %v5664 = vshll.u32 %v5456, 16
      %v5666 = vor.u32 %v5663, %v5664
      %v5667 = vsel %vm970, %v5659, %v5666
      %v5668 = vrot.slane %v5663, 4
      %v5670 = vshrl.u32 %v5457, 16
      %v5672 = vrot.slane %v5670, 7
      %v5673 = vshll.u32 %v5457, 16
      %v5675 = vor.u32 %v5672, %v5673
      %v5676 = vrot.slane %v5672, 4
      %v5678 = vshrl.u32 %v5458, 16
      %v5680 = vrot.slane %v5678, 7
      %v5681 = vshll.u32 %v5458, 16
      %v5683 = vor.u32 %v5680, %v5681
      %v5684 = vsel %vm970, %v5676, %v5683
      %v5685 = vrot.slane %v5680, 4
      %v5687 = vshrl.u32 %v5459, 16
      %v5689 = vrot.slane %v5687, 7
      %v5690 = vshll.u32 %v5459, 16
      %v5692 = vor.u32 %v5689, %v5690
      %v5693 = vrot.slane %v5689, 4
      %v5695 = vshrl.u32 %v5460, 16
      %v5697 = vrot.slane %v5695, 7
      %v5698 = vshll.u32 %v5460, 16
      %v5700 = vor.u32 %v5697, %v5698
      %v5701 = vsel %vm970, %v5693, %v5700
      %v5702 = vrot.slane %v5697, 4
      %v5704 = vshrl.u32 %v5461, 16
      %v5706 = vrot.slane %v5704, 7
      %v5707 = vshll.u32 %v5461, 16
      %v5709 = vor.u32 %v5706, %v5707
      %v5710 = vrot.slane %v5706, 4
      %v5712 = vshrl.u32 %v5462, 16
      %v5714 = vrot.slane %v5712, 7
      %v5715 = vshll.u32 %v5462, 16
      %v5717 = vor.u32 %v5714, %v5715
      %v5718 = vsel %vm970, %v5710, %v5717
      %v5719 = vrot.slane %v5714, 4
      %v5721 = vshrl.u32 %v5463, 16
      %v5723 = vrot.slane %v5721, 7
      %v5724 = vshll.u32 %v5463, 16
      %v5726 = vor.u32 %v5723, %v5724
      %v5727 = vrot.slane %v5723, 4
      %v5729 = vshrl.u32 %v5464, 16
      %v5731 = vrot.slane %v5729, 7
      %v5732 = vshll.u32 %v5464, 16
      %v5734 = vor.u32 %v5731, %v5732
      %v5735 = vsel %vm970, %v5727, %v5734
      %v5736 = vrot.slane %v5731, 4
      %v5785 = vld [vmem:[%s1291] sm:$0xf]
      %v5786 = vsel %vm1293, %v5471, %v5785
      %5787 = vst [vmem:[%s1291] sm:$0xf] %v5786
      %5788 = vst [vmem:[%s1291 + $0x4] sm:$0xf] %v5480
      %v5789 = vld [vmem:[%s1291 + $0x8] sm:$0x1]
      %v5790 = vsel %vm289, %v5481, %v5789
      %5791 = vst [vmem:[%s1291 + $0x8] sm:$0x1] %v5790
      %v5792 = vld [vmem:[%s1291 + $0xc] sm:$0xf]
      %v5793 = vsel %vm1293, %v5488, %v5792
      %5794 = vst [vmem:[%s1291 + $0xc] sm:$0xf] %v5793
      %5795 = vst [vmem:[%s1291 + $0x10] sm:$0xf] %v5497
      %v5796 = vld [vmem:[%s1291 + $0x14] sm:$0x1]
      %v5797 = vsel %vm289, %v5498, %v5796
      %5798 = vst [vmem:[%s1291 + $0x14] sm:$0x1] %v5797
      %v5799 = vld [vmem:[%s1291 + $0x18] sm:$0xf]
      %v5800 = vsel %vm1293, %v5505, %v5799
      %5801 = vst [vmem:[%s1291 + $0x18] sm:$0xf] %v5800
      %5802 = vst [vmem:[%s1291 + $0x1c] sm:$0xf] %v5514
      %v5803 = vld [vmem:[%s1291 + $0x20] sm:$0x1]
      %v5804 = vsel %vm289, %v5515, %v5803
      %5805 = vst [vmem:[%s1291 + $0x20] sm:$0x1] %v5804
      %v5806 = vld [vmem:[%s1291 + $0x24] sm:$0xf]
      %v5807 = vsel %vm1293, %v5522, %v5806
      %5808 = vst [vmem:[%s1291 + $0x24] sm:$0xf] %v5807
      %5809 = vst [vmem:[%s1291 + $0x28] sm:$0xf] %v5531
      %v5810 = vld [vmem:[%s1291 + $0x2c] sm:$0x1]
      %v5811 = vsel %vm289, %v5532, %v5810
      %5812 = vst [vmem:[%s1291 + $0x2c] sm:$0x1] %v5811
      %v5813 = vld [vmem:[%s1291 + $0x30] sm:$0xf]
      %v5814 = vsel %vm1293, %v5539, %v5813
      %5815 = vst [vmem:[%s1291 + $0x30] sm:$0xf] %v5814
      %5816 = vst [vmem:[%s1291 + $0x34] sm:$0xf] %v5548
      %v5817 = vld [vmem:[%s1291 + $0x38] sm:$0x1]
      %v5818 = vsel %vm289, %v5549, %v5817
      %5819 = vst [vmem:[%s1291 + $0x38] sm:$0x1] %v5818
      %v5820 = vld [vmem:[%s1291 + $0x3c] sm:$0xf]
      %v5821 = vsel %vm1293, %v5556, %v5820
      %5822 = vst [vmem:[%s1291 + $0x3c] sm:$0xf] %v5821
      %5823 = vst [vmem:[%s1291 + $0x40] sm:$0xf] %v5565
      %v5824 = vld [vmem:[%s1291 + $0x44] sm:$0x1]
      %v5825 = vsel %vm289, %v5566, %v5824
      %5826 = vst [vmem:[%s1291 + $0x44] sm:$0x1] %v5825
      %v5827 = vld [vmem:[%s1291 + $0x48] sm:$0xf]
      %v5828 = vsel %vm1293, %v5573, %v5827
      %5829 = vst [vmem:[%s1291 + $0x48] sm:$0xf] %v5828
      %5830 = vst [vmem:[%s1291 + $0x4c] sm:$0xf] %v5582
      %v5831 = vld [vmem:[%s1291 + $0x50] sm:$0x1]
      %v5832 = vsel %vm289, %v5583, %v5831
      %5833 = vst [vmem:[%s1291 + $0x50] sm:$0x1] %v5832
      %v5834 = vld [vmem:[%s1291 + $0x54] sm:$0xf]
      %v5835 = vsel %vm1293, %v5590, %v5834
      %5836 = vst [vmem:[%s1291 + $0x54] sm:$0xf] %v5835
      %5837 = vst [vmem:[%s1291 + $0x58] sm:$0xf] %v5599
      %v5838 = vld [vmem:[%s1291 + $0x5c] sm:$0x1]
      %v5839 = vsel %vm289, %v5600, %v5838
      %5840 = vst [vmem:[%s1291 + $0x5c] sm:$0x1] %v5839
      %v5841 = vld [vmem:[%s1291 + $0x60] sm:$0xf]
      %v5842 = vsel %vm1293, %v5607, %v5841
      %5843 = vst [vmem:[%s1291 + $0x60] sm:$0xf] %v5842
      %5844 = vst [vmem:[%s1291 + $0x64] sm:$0xf] %v5616
      %v5845 = vld [vmem:[%s1291 + $0x68] sm:$0x1]
      %v5846 = vsel %vm289, %v5617, %v5845
      %5847 = vst [vmem:[%s1291 + $0x68] sm:$0x1] %v5846
      %v5848 = vld [vmem:[%s1291 + $0x6c] sm:$0xf]
      %v5849 = vsel %vm1293, %v5624, %v5848
      %5850 = vst [vmem:[%s1291 + $0x6c] sm:$0xf] %v5849
      %5851 = vst [vmem:[%s1291 + $0x70] sm:$0xf] %v5633
      %v5852 = vld [vmem:[%s1291 + $0x74] sm:$0x1]
      %v5853 = vsel %vm289, %v5634, %v5852
      %5854 = vst [vmem:[%s1291 + $0x74] sm:$0x1] %v5853
      %v5855 = vld [vmem:[%s1291 + $0x78] sm:$0xf]
      %v5856 = vsel %vm1293, %v5641, %v5855
      %5857 = vst [vmem:[%s1291 + $0x78] sm:$0xf] %v5856
      %5858 = vst [vmem:[%s1291 + $0x7c] sm:$0xf] %v5650
      %v5859 = vld [vmem:[%s1291 + $0x80] sm:$0x1]
      %v5860 = vsel %vm289, %v5651, %v5859
      %5861 = vst [vmem:[%s1291 + $0x80] sm:$0x1] %v5860
      %v5862 = vld [vmem:[%s1291 + $0x84] sm:$0xf]
      %v5863 = vsel %vm1293, %v5658, %v5862
      %5864 = vst [vmem:[%s1291 + $0x84] sm:$0xf] %v5863
      %5865 = vst [vmem:[%s1291 + $0x88] sm:$0xf] %v5667
      %v5866 = vld [vmem:[%s1291 + $0x8c] sm:$0x1]
      %v5867 = vsel %vm289, %v5668, %v5866
      %5868 = vst [vmem:[%s1291 + $0x8c] sm:$0x1] %v5867
      %v5869 = vld [vmem:[%s1291 + $0x90] sm:$0xf]
      %v5870 = vsel %vm1293, %v5675, %v5869
      %5871 = vst [vmem:[%s1291 + $0x90] sm:$0xf] %v5870
      %5872 = vst [vmem:[%s1291 + $0x94] sm:$0xf] %v5684
      %v5873 = vld [vmem:[%s1291 + $0x98] sm:$0x1]
      %v5874 = vsel %vm289, %v5685, %v5873
      %5875 = vst [vmem:[%s1291 + $0x98] sm:$0x1] %v5874
      %v5876 = vld [vmem:[%s1291 + $0x9c] sm:$0xf]
      %v5877 = vsel %vm1293, %v5692, %v5876
      %5878 = vst [vmem:[%s1291 + $0x9c] sm:$0xf] %v5877
      %5879 = vst [vmem:[%s1291 + $0xa0] sm:$0xf] %v5701
      %v5880 = vld [vmem:[%s1291 + $0xa4] sm:$0x1]
      %v5881 = vsel %vm289, %v5702, %v5880
      %5882 = vst [vmem:[%s1291 + $0xa4] sm:$0x1] %v5881
      %v5883 = vld [vmem:[%s1291 + $0xa8] sm:$0xf]
      %v5884 = vsel %vm1293, %v5709, %v5883
      %5885 = vst [vmem:[%s1291 + $0xa8] sm:$0xf] %v5884
      %5886 = vst [vmem:[%s1291 + $0xac] sm:$0xf] %v5718
      %v5887 = vld [vmem:[%s1291 + $0xb0] sm:$0x1]
      %v5888 = vsel %vm289, %v5719, %v5887
      %5889 = vst [vmem:[%s1291 + $0xb0] sm:$0x1] %v5888
      %v5890 = vld [vmem:[%s1291 + $0xb4] sm:$0xf]
      %v5891 = vsel %vm1293, %v5726, %v5890
      %5892 = vst [vmem:[%s1291 + $0xb4] sm:$0xf] %v5891
      %5893 = vst [vmem:[%s1291 + $0xb8] sm:$0xf] %v5735
      %v5894 = vld [vmem:[%s1291 + $0xbc] sm:$0x1]
      %v5895 = vsel %vm289, %v5736, %v5894
      %5896 = vst [vmem:[%s1291 + $0xbc] sm:$0x1] %v5895
      %v5897 = vld [vmem:[#allocation2] sm:$0xf]
      %v5898 = vld [vmem:[#allocation2 + $0x4] sm:$0xf]
      %v5899 = vld [vmem:[#allocation2 + $0xc] sm:$0xf]
      %v5900 = vld [vmem:[#allocation2 + $0x10] sm:$0xf]
      %v5901 = vld [vmem:[#allocation2 + $0x18] sm:$0xf]
      %v5902 = vld [vmem:[#allocation2 + $0x1c] sm:$0xf]
      %v5903 = vld [vmem:[#allocation2 + $0x24] sm:$0xf]
      %v5904 = vld [vmem:[#allocation2 + $0x28] sm:$0xf]
      %v5905 = vld [vmem:[#allocation2 + $0x30] sm:$0xf]
      %v5906 = vld [vmem:[#allocation2 + $0x34] sm:$0xf]
      %v5907 = vld [vmem:[#allocation2 + $0x3c] sm:$0xf]
      %v5908 = vld [vmem:[#allocation2 + $0x40] sm:$0xf]
      %v5909 = vld [vmem:[#allocation2 + $0x48] sm:$0xf]
      %v5910 = vld [vmem:[#allocation2 + $0x4c] sm:$0xf]
      %v5911 = vld [vmem:[#allocation2 + $0x54] sm:$0xf]
      %v5912 = vld [vmem:[#allocation2 + $0x58] sm:$0xf]
      %v5913 = vld [vmem:[#allocation2 + $0x60] sm:$0xf]
      %v5914 = vld [vmem:[#allocation2 + $0x64] sm:$0xf]
      %v5915 = vld [vmem:[#allocation2 + $0x6c] sm:$0xf]
      %v5916 = vld [vmem:[#allocation2 + $0x70] sm:$0xf]
      %v5917 = vld [vmem:[#allocation2 + $0x78] sm:$0xf]
      %v5918 = vld [vmem:[#allocation2 + $0x7c] sm:$0xf]
      %v5919 = vld [vmem:[#allocation2 + $0x84] sm:$0xf]
      %v5920 = vld [vmem:[#allocation2 + $0x88] sm:$0xf]
      %v5921 = vld [vmem:[#allocation2 + $0x90] sm:$0xf]
      %v5922 = vld [vmem:[#allocation2 + $0x94] sm:$0xf]
      %v5923 = vld [vmem:[#allocation2 + $0x9c] sm:$0xf]
      %v5924 = vld [vmem:[#allocation2 + $0xa0] sm:$0xf]
      %v5925 = vld [vmem:[#allocation2 + $0xa8] sm:$0xf]
      %v5926 = vld [vmem:[#allocation2 + $0xac] sm:$0xf]
      %v5927 = vld [vmem:[#allocation2 + $0xb4] sm:$0xf]
      %v5928 = vld [vmem:[#allocation2 + $0xb8] sm:$0xf]
      %v5929 = vld [vmem:[#allocation2 + $0x8] sm:$0x1]
      %v5930 = vld [vmem:[#allocation2 + $0x14] sm:$0x1]
      %v5931 = vld [vmem:[#allocation2 + $0x20] sm:$0x1]
      %v5932 = vld [vmem:[#allocation2 + $0x2c] sm:$0x1]
      %v5933 = vld [vmem:[#allocation2 + $0x38] sm:$0x1]
      %v5934 = vld [vmem:[#allocation2 + $0x44] sm:$0x1]
      %v5935 = vld [vmem:[#allocation2 + $0x50] sm:$0x1]
      %v5936 = vld [vmem:[#allocation2 + $0x5c] sm:$0x1]
      %v5937 = vld [vmem:[#allocation2 + $0x68] sm:$0x1]
      %v5938 = vld [vmem:[#allocation2 + $0x74] sm:$0x1]
      %v5939 = vld [vmem:[#allocation2 + $0x80] sm:$0x1]
      %v5940 = vld [vmem:[#allocation2 + $0x8c] sm:$0x1]
      %v5941 = vld [vmem:[#allocation2 + $0x98] sm:$0x1]
      %v5942 = vld [vmem:[#allocation2 + $0xa4] sm:$0x1]
      %v5943 = vld [vmem:[#allocation2 + $0xb0] sm:$0x1]
      %v5944 = vld [vmem:[#allocation2 + $0xbc] sm:$0x1]
      %v5946 = vshrl.u32 %v5897, 16
      %v5948 = vrot.slane %v5946, 4
      %v5949 = vshll.u32 %v5897, 16
      %v5951 = vrot.slane %v5949, 5
      %v5952 = vor.u32 %v5948, %v5951
      %v5953 = vrot.slane %v5952, 4
      %v5955 = vshll.u32 %v5898, 16
      %v5957 = vrot.slane %v5955, 5
      %v5958 = vsel %vm1456, %v5953, %v5957
      %v5959 = vshrl.u32 %v5898, 16
      %v5961 = vrot.slane %v5959, 4
      %v5962 = vor.u32 %v5961, %v5957
      %v5963 = vrot.slane %v5962, 4
      %v5965 = vshll.u32 %v5929, 16
      %v5967 = vrot.slane %v5965, 5
      %v5968 = vsel %vm1456, %v5963, %v5967
      %v5970 = vshrl.u32 %v5899, 16
      %v5972 = vrot.slane %v5970, 4
      %v5973 = vshll.u32 %v5899, 16
      %v5975 = vrot.slane %v5973, 5
      %v5976 = vor.u32 %v5972, %v5975
      %v5977 = vrot.slane %v5976, 4
      %v5979 = vshll.u32 %v5900, 16
      %v5981 = vrot.slane %v5979, 5
      %v5982 = vsel %vm1456, %v5977, %v5981
      %v5983 = vshrl.u32 %v5900, 16
      %v5985 = vrot.slane %v5983, 4
      %v5986 = vor.u32 %v5985, %v5981
      %v5987 = vrot.slane %v5986, 4
      %v5989 = vshll.u32 %v5930, 16
      %v5991 = vrot.slane %v5989, 5
      %v5992 = vsel %vm1456, %v5987, %v5991
      %v5994 = vshrl.u32 %v5901, 16
      %v5996 = vrot.slane %v5994, 4
      %v5997 = vshll.u32 %v5901, 16
      %v5999 = vrot.slane %v5997, 5
      %v6000 = vor.u32 %v5996, %v5999
      %v6001 = vrot.slane %v6000, 4
      %v6003 = vshll.u32 %v5902, 16
      %v6005 = vrot.slane %v6003, 5
      %v6006 = vsel %vm1456, %v6001, %v6005
      %v6007 = vshrl.u32 %v5902, 16
      %v6009 = vrot.slane %v6007, 4
      %v6010 = vor.u32 %v6009, %v6005
      %v6011 = vrot.slane %v6010, 4
      %v6013 = vshll.u32 %v5931, 16
      %v6015 = vrot.slane %v6013, 5
      %v6016 = vsel %vm1456, %v6011, %v6015
      %v6018 = vshrl.u32 %v5903, 16
      %v6020 = vrot.slane %v6018, 4
      %v6021 = vshll.u32 %v5903, 16
      %v6023 = vrot.slane %v6021, 5
      %v6024 = vor.u32 %v6020, %v6023
      %v6025 = vrot.slane %v6024, 4
      %v6027 = vshll.u32 %v5904, 16
      %v6029 = vrot.slane %v6027, 5
      %v6030 = vsel %vm1456, %v6025, %v6029
      %v6031 = vshrl.u32 %v5904, 16
      %v6033 = vrot.slane %v6031, 4
      %v6034 = vor.u32 %v6033, %v6029
      %v6035 = vrot.slane %v6034, 4
      %v6037 = vshll.u32 %v5932, 16
      %v6039 = vrot.slane %v6037, 5
      %v6040 = vsel %vm1456, %v6035, %v6039
      %v6042 = vshrl.u32 %v5905, 16
      %v6044 = vrot.slane %v6042, 4
      %v6045 = vshll.u32 %v5905, 16
      %v6047 = vrot.slane %v6045, 5
      %v6048 = vor.u32 %v6044, %v6047
      %v6049 = vrot.slane %v6048, 4
      %v6051 = vshll.u32 %v5906, 16
      %v6053 = vrot.slane %v6051, 5
      %v6054 = vsel %vm1456, %v6049, %v6053
      %v6055 = vshrl.u32 %v5906, 16
      %v6057 = vrot.slane %v6055, 4
      %v6058 = vor.u32 %v6057, %v6053
      %v6059 = vrot.slane %v6058, 4
      %v6061 = vshll.u32 %v5933, 16
      %v6063 = vrot.slane %v6061, 5
      %v6064 = vsel %vm1456, %v6059, %v6063
      %v6066 = vshrl.u32 %v5907, 16
      %v6068 = vrot.slane %v6066, 4
      %v6069 = vshll.u32 %v5907, 16
      %v6071 = vrot.slane %v6069, 5
      %v6072 = vor.u32 %v6068, %v6071
      %v6073 = vrot.slane %v6072, 4
      %v6075 = vshll.u32 %v5908, 16
      %v6077 = vrot.slane %v6075, 5
      %v6078 = vsel %vm1456, %v6073, %v6077
      %v6079 = vshrl.u32 %v5908, 16
      %v6081 = vrot.slane %v6079, 4
      %v6082 = vor.u32 %v6081, %v6077
      %v6083 = vrot.slane %v6082, 4
      %v6085 = vshll.u32 %v5934, 16
      %v6087 = vrot.slane %v6085, 5
      %v6088 = vsel %vm1456, %v6083, %v6087
      %v6090 = vshrl.u32 %v5909, 16
      %v6092 = vrot.slane %v6090, 4
      %v6093 = vshll.u32 %v5909, 16
      %v6095 = vrot.slane %v6093, 5
      %v6096 = vor.u32 %v6092, %v6095
      %v6097 = vrot.slane %v6096, 4
      %v6099 = vshll.u32 %v5910, 16
      %v6101 = vrot.slane %v6099, 5
      %v6102 = vsel %vm1456, %v6097, %v6101
      %v6103 = vshrl.u32 %v5910, 16
      %v6105 = vrot.slane %v6103, 4
      %v6106 = vor.u32 %v6105, %v6101
      %v6107 = vrot.slane %v6106, 4
      %v6109 = vshll.u32 %v5935, 16
      %v6111 = vrot.slane %v6109, 5
      %v6112 = vsel %vm1456, %v6107, %v6111
      %v6114 = vshrl.u32 %v5911, 16
      %v6116 = vrot.slane %v6114, 4
      %v6117 = vshll.u32 %v5911, 16
      %v6119 = vrot.slane %v6117, 5
      %v6120 = vor.u32 %v6116, %v6119
      %v6121 = vrot.slane %v6120, 4
      %v6123 = vshll.u32 %v5912, 16
      %v6125 = vrot.slane %v6123, 5
      %v6126 = vsel %vm1456, %v6121, %v6125
      %v6127 = vshrl.u32 %v5912, 16
      %v6129 = vrot.slane %v6127, 4
      %v6130 = vor.u32 %v6129, %v6125
      %v6131 = vrot.slane %v6130, 4
      %v6133 = vshll.u32 %v5936, 16
      %v6135 = vrot.slane %v6133, 5
      %v6136 = vsel %vm1456, %v6131, %v6135
      %v6138 = vshrl.u32 %v5913, 16
      %v6140 = vrot.slane %v6138, 4
      %v6141 = vshll.u32 %v5913, 16
      %v6143 = vrot.slane %v6141, 5
      %v6144 = vor.u32 %v6140, %v6143
      %v6145 = vrot.slane %v6144, 4
      %v6147 = vshll.u32 %v5914, 16
      %v6149 = vrot.slane %v6147, 5
      %v6150 = vsel %vm1456, %v6145, %v6149
      %v6151 = vshrl.u32 %v5914, 16
      %v6153 = vrot.slane %v6151, 4
      %v6154 = vor.u32 %v6153, %v6149
      %v6155 = vrot.slane %v6154, 4
      %v6157 = vshll.u32 %v5937, 16
      %v6159 = vrot.slane %v6157, 5
      %v6160 = vsel %vm1456, %v6155, %v6159
      %v6162 = vshrl.u32 %v5915, 16
      %v6164 = vrot.slane %v6162, 4
      %v6165 = vshll.u32 %v5915, 16
      %v6167 = vrot.slane %v6165, 5
      %v6168 = vor.u32 %v6164, %v6167
      %v6169 = vrot.slane %v6168, 4
      %v6171 = vshll.u32 %v5916, 16
      %v6173 = vrot.slane %v6171, 5
      %v6174 = vsel %vm1456, %v6169, %v6173
      %v6175 = vshrl.u32 %v5916, 16
      %v6177 = vrot.slane %v6175, 4
      %v6178 = vor.u32 %v6177, %v6173
      %v6179 = vrot.slane %v6178, 4
      %v6181 = vshll.u32 %v5938, 16
      %v6183 = vrot.slane %v6181, 5
      %v6184 = vsel %vm1456, %v6179, %v6183
      %v6186 = vshrl.u32 %v5917, 16
      %v6188 = vrot.slane %v6186, 4
      %v6189 = vshll.u32 %v5917, 16
      %v6191 = vrot.slane %v6189, 5
      %v6192 = vor.u32 %v6188, %v6191
      %v6193 = vrot.slane %v6192, 4
      %v6195 = vshll.u32 %v5918, 16
      %v6197 = vrot.slane %v6195, 5
      %v6198 = vsel %vm1456, %v6193, %v6197
      %v6199 = vshrl.u32 %v5918, 16
      %v6201 = vrot.slane %v6199, 4
      %v6202 = vor.u32 %v6201, %v6197
      %v6203 = vrot.slane %v6202, 4
      %v6205 = vshll.u32 %v5939, 16
      %v6207 = vrot.slane %v6205, 5
      %v6208 = vsel %vm1456, %v6203, %v6207
      %v6210 = vshrl.u32 %v5919, 16
      %v6212 = vrot.slane %v6210, 4
      %v6213 = vshll.u32 %v5919, 16
      %v6215 = vrot.slane %v6213, 5
      %v6216 = vor.u32 %v6212, %v6215
      %v6217 = vrot.slane %v6216, 4
      %v6219 = vshll.u32 %v5920, 16
      %v6221 = vrot.slane %v6219, 5
      %v6222 = vsel %vm1456, %v6217, %v6221
      %v6223 = vshrl.u32 %v5920, 16
      %v6225 = vrot.slane %v6223, 4
      %v6226 = vor.u32 %v6225, %v6221
      %v6227 = vrot.slane %v6226, 4
      %v6229 = vshll.u32 %v5940, 16
      %v6231 = vrot.slane %v6229, 5
      %v6232 = vsel %vm1456, %v6227, %v6231
      %v6234 = vshrl.u32 %v5921, 16
      %v6236 = vrot.slane %v6234, 4
      %v6237 = vshll.u32 %v5921, 16
      %v6239 = vrot.slane %v6237, 5
      %v6240 = vor.u32 %v6236, %v6239
      %v6241 = vrot.slane %v6240, 4
      %v6243 = vshll.u32 %v5922, 16
      %v6245 = vrot.slane %v6243, 5
      %v6246 = vsel %vm1456, %v6241, %v6245
      %v6247 = vshrl.u32 %v5922, 16
      %v6249 = vrot.slane %v6247, 4
      %v6250 = vor.u32 %v6249, %v6245
      %v6251 = vrot.slane %v6250, 4
      %v6253 = vshll.u32 %v5941, 16
      %v6255 = vrot.slane %v6253, 5
      %v6256 = vsel %vm1456, %v6251, %v6255
      %v6258 = vshrl.u32 %v5923, 16
      %v6260 = vrot.slane %v6258, 4
      %v6261 = vshll.u32 %v5923, 16
      %v6263 = vrot.slane %v6261, 5
      %v6264 = vor.u32 %v6260, %v6263
      %v6265 = vrot.slane %v6264, 4
      %v6267 = vshll.u32 %v5924, 16
      %v6269 = vrot.slane %v6267, 5
      %v6270 = vsel %vm1456, %v6265, %v6269
      %v6271 = vshrl.u32 %v5924, 16
      %v6273 = vrot.slane %v6271, 4
      %v6274 = vor.u32 %v6273, %v6269
      %v6275 = vrot.slane %v6274, 4
      %v6277 = vshll.u32 %v5942, 16
      %v6279 = vrot.slane %v6277, 5
      %v6280 = vsel %vm1456, %v6275, %v6279
      %v6282 = vshrl.u32 %v5925, 16
      %v6284 = vrot.slane %v6282, 4
      %v6285 = vshll.u32 %v5925, 16
      %v6287 = vrot.slane %v6285, 5
      %v6288 = vor.u32 %v6284, %v6287
      %v6289 = vrot.slane %v6288, 4
      %v6291 = vshll.u32 %v5926, 16
      %v6293 = vrot.slane %v6291, 5
      %v6294 = vsel %vm1456, %v6289, %v6293
      %v6295 = vshrl.u32 %v5926, 16
      %v6297 = vrot.slane %v6295, 4
      %v6298 = vor.u32 %v6297, %v6293
      %v6299 = vrot.slane %v6298, 4
      %v6301 = vshll.u32 %v5943, 16
      %v6303 = vrot.slane %v6301, 5
      %v6304 = vsel %vm1456, %v6299, %v6303
      %v6306 = vshrl.u32 %v5927, 16
      %v6308 = vrot.slane %v6306, 4
      %v6309 = vshll.u32 %v5927, 16
      %v6311 = vrot.slane %v6309, 5
      %v6312 = vor.u32 %v6308, %v6311
      %v6313 = vrot.slane %v6312, 4
      %v6315 = vshll.u32 %v5928, 16
      %v6317 = vrot.slane %v6315, 5
      %v6318 = vsel %vm1456, %v6313, %v6317
      %v6319 = vshrl.u32 %v5928, 16
      %v6321 = vrot.slane %v6319, 4
      %v6322 = vor.u32 %v6321, %v6317
      %v6323 = vrot.slane %v6322, 4
      %v6325 = vshll.u32 %v5944, 16
      %v6327 = vrot.slane %v6325, 5
      %v6328 = vsel %vm1456, %v6323, %v6327
      %v6329 = vld [vmem:[#allocation2] sm:$0xe]
      %v6330 = vld [vmem:[#allocation2 + $0xc] sm:$0xe]
      %v6331 = vld [vmem:[#allocation2 + $0x18] sm:$0xe]
      %v6332 = vld [vmem:[#allocation2 + $0x24] sm:$0xe]
      %v6333 = vld [vmem:[#allocation2 + $0x30] sm:$0xe]
      %v6334 = vld [vmem:[#allocation2 + $0x3c] sm:$0xe]
      %v6335 = vld [vmem:[#allocation2 + $0x48] sm:$0xe]
      %v6336 = vld [vmem:[#allocation2 + $0x54] sm:$0xe]
      %v6337 = vld [vmem:[#allocation2 + $0x60] sm:$0xe]
      %v6338 = vld [vmem:[#allocation2 + $0x6c] sm:$0xe]
      %v6339 = vld [vmem:[#allocation2 + $0x78] sm:$0xe]
      %v6340 = vld [vmem:[#allocation2 + $0x84] sm:$0xe]
      %v6341 = vld [vmem:[#allocation2 + $0x90] sm:$0xe]
      %v6342 = vld [vmem:[#allocation2 + $0x9c] sm:$0xe]
      %v6343 = vld [vmem:[#allocation2 + $0xa8] sm:$0xe]
      %v6344 = vld [vmem:[#allocation2 + $0xb4] sm:$0xe]
      %v6393 = vrot.slane %v6329, 5
      %v6394 = vrot.slane %v6393, 4
      %v6395 = vrot.slane %v5898, 5
      %v6396 = vsel %vm1907, %v6394, %v6395
      %v6397 = vrot.slane %v6395, 4
      %v6398 = vrot.slane %v5929, 5
      %v6399 = vsel %vm1907, %v6397, %v6398
      %v6400 = vrot.slane %v6330, 5
      %v6401 = vrot.slane %v6400, 4
      %v6402 = vrot.slane %v5900, 5
      %v6403 = vsel %vm1907, %v6401, %v6402
      %v6404 = vrot.slane %v6402, 4
      %v6405 = vrot.slane %v5930, 5
      %v6406 = vsel %vm1907, %v6404, %v6405
      %v6407 = vrot.slane %v6331, 5
      %v6408 = vrot.slane %v6407, 4
      %v6409 = vrot.slane %v5902, 5
      %v6410 = vsel %vm1907, %v6408, %v6409
      %v6411 = vrot.slane %v6409, 4
      %v6412 = vrot.slane %v5931, 5
      %v6413 = vsel %vm1907, %v6411, %v6412
      %v6414 = vrot.slane %v6332, 5
      %v6415 = vrot.slane %v6414, 4
      %v6416 = vrot.slane %v5904, 5
      %v6417 = vsel %vm1907, %v6415, %v6416
      %v6418 = vrot.slane %v6416, 4
      %v6419 = vrot.slane %v5932, 5
      %v6420 = vsel %vm1907, %v6418, %v6419
      %v6421 = vrot.slane %v6333, 5
      %v6422 = vrot.slane %v6421, 4
      %v6423 = vrot.slane %v5906, 5
      %v6424 = vsel %vm1907, %v6422, %v6423
      %v6425 = vrot.slane %v6423, 4
      %v6426 = vrot.slane %v5933, 5
      %v6427 = vsel %vm1907, %v6425, %v6426
      %v6428 = vrot.slane %v6334, 5
      %v6429 = vrot.slane %v6428, 4
      %v6430 = vrot.slane %v5908, 5
      %v6431 = vsel %vm1907, %v6429, %v6430
      %v6432 = vrot.slane %v6430, 4
      %v6433 = vrot.slane %v5934, 5
      %v6434 = vsel %vm1907, %v6432, %v6433
      %v6435 = vrot.slane %v6335, 5
      %v6436 = vrot.slane %v6435, 4
      %v6437 = vrot.slane %v5910, 5
      %v6438 = vsel %vm1907, %v6436, %v6437
      %v6439 = vrot.slane %v6437, 4
      %v6440 = vrot.slane %v5935, 5
      %v6441 = vsel %vm1907, %v6439, %v6440
      %v6442 = vrot.slane %v6336, 5
      %v6443 = vrot.slane %v6442, 4
      %v6444 = vrot.slane %v5912, 5
      %v6445 = vsel %vm1907, %v6443, %v6444
      %v6446 = vrot.slane %v6444, 4
      %v6447 = vrot.slane %v5936, 5
      %v6448 = vsel %vm1907, %v6446, %v6447
      %v6449 = vrot.slane %v6337, 5
      %v6450 = vrot.slane %v6449, 4
      %v6451 = vrot.slane %v5914, 5
      %v6452 = vsel %vm1907, %v6450, %v6451
      %v6453 = vrot.slane %v6451, 4
      %v6454 = vrot.slane %v5937, 5
      %v6455 = vsel %vm1907, %v6453, %v6454
      %v6456 = vrot.slane %v6338, 5
      %v6457 = vrot.slane %v6456, 4
      %v6458 = vrot.slane %v5916, 5
      %v6459 = vsel %vm1907, %v6457, %v6458
      %v6460 = vrot.slane %v6458, 4
      %v6461 = vrot.slane %v5938, 5
      %v6462 = vsel %vm1907, %v6460, %v6461
      %v6463 = vrot.slane %v6339, 5
      %v6464 = vrot.slane %v6463, 4
      %v6465 = vrot.slane %v5918, 5
      %v6466 = vsel %vm1907, %v6464, %v6465
      %v6467 = vrot.slane %v6465, 4
      %v6468 = vrot.slane %v5939, 5
      %v6469 = vsel %vm1907, %v6467, %v6468
      %v6470 = vrot.slane %v6340, 5
      %v6471 = vrot.slane %v6470, 4
      %v6472 = vrot.slane %v5920, 5
      %v6473 = vsel %vm1907, %v6471, %v6472
      %v6474 = vrot.slane %v6472, 4
      %v6475 = vrot.slane %v5940, 5
      %v6476 = vsel %vm1907, %v6474, %v6475
      %v6477 = vrot.slane %v6341, 5
      %v6478 = vrot.slane %v6477, 4
      %v6479 = vrot.slane %v5922, 5
      %v6480 = vsel %vm1907, %v6478, %v6479
      %v6481 = vrot.slane %v6479, 4
      %v6482 = vrot.slane %v5941, 5
      %v6483 = vsel %vm1907, %v6481, %v6482
      %v6484 = vrot.slane %v6342, 5
      %v6485 = vrot.slane %v6484, 4
      %v6486 = vrot.slane %v5924, 5
      %v6487 = vsel %vm1907, %v6485, %v6486
      %v6488 = vrot.slane %v6486, 4
      %v6489 = vrot.slane %v5942, 5
      %v6490 = vsel %vm1907, %v6488, %v6489
      %v6491 = vrot.slane %v6343, 5
      %v6492 = vrot.slane %v6491, 4
      %v6493 = vrot.slane %v5926, 5
      %v6494 = vsel %vm1907, %v6492, %v6493
      %v6495 = vrot.slane %v6493, 4
      %v6496 = vrot.slane %v5943, 5
      %v6497 = vsel %vm1907, %v6495, %v6496
      %v6498 = vrot.slane %v6344, 5
      %v6499 = vrot.slane %v6498, 4
      %v6500 = vrot.slane %v5928, 5
      %v6501 = vsel %vm1907, %v6499, %v6500
      %v6502 = vrot.slane %v6500, 4
      %v6503 = vrot.slane %v5944, 5
      %v6504 = vsel %vm1907, %v6502, %v6503
      %v6505 = vld [vmem:[%s1291] sm:$0xf]
      %v6506 = vld [vmem:[%s1291 + $0x4] sm:$0xf]
      %v6507 = vld [vmem:[%s1291 + $0xc] sm:$0xf]
      %v6508 = vld [vmem:[%s1291 + $0x10] sm:$0xf]
      %v6509 = vld [vmem:[%s1291 + $0x18] sm:$0xf]
      %v6510 = vld [vmem:[%s1291 + $0x1c] sm:$0xf]
      %v6511 = vld [vmem:[%s1291 + $0x24] sm:$0xf]
      %v6512 = vld [vmem:[%s1291 + $0x28] sm:$0xf]
      %v6513 = vld [vmem:[%s1291 + $0x30] sm:$0xf]
      %v6514 = vld [vmem:[%s1291 + $0x34] sm:$0xf]
      %v6515 = vld [vmem:[%s1291 + $0x3c] sm:$0xf]
      %v6516 = vld [vmem:[%s1291 + $0x40] sm:$0xf]
      %v6517 = vld [vmem:[%s1291 + $0x48] sm:$0xf]
      %v6518 = vld [vmem:[%s1291 + $0x4c] sm:$0xf]
      %v6519 = vld [vmem:[%s1291 + $0x54] sm:$0xf]
      %v6520 = vld [vmem:[%s1291 + $0x58] sm:$0xf]
      %v6521 = vld [vmem:[%s1291 + $0x60] sm:$0xf]
      %v6522 = vld [vmem:[%s1291 + $0x64] sm:$0xf]
      %v6523 = vld [vmem:[%s1291 + $0x6c] sm:$0xf]
      %v6524 = vld [vmem:[%s1291 + $0x70] sm:$0xf]
      %v6525 = vld [vmem:[%s1291 + $0x78] sm:$0xf]
      %v6526 = vld [vmem:[%s1291 + $0x7c] sm:$0xf]
      %v6527 = vld [vmem:[%s1291 + $0x84] sm:$0xf]
      %v6528 = vld [vmem:[%s1291 + $0x88] sm:$0xf]
      %v6529 = vld [vmem:[%s1291 + $0x90] sm:$0xf]
      %v6530 = vld [vmem:[%s1291 + $0x94] sm:$0xf]
      %v6531 = vld [vmem:[%s1291 + $0x9c] sm:$0xf]
      %v6532 = vld [vmem:[%s1291 + $0xa0] sm:$0xf]
      %v6533 = vld [vmem:[%s1291 + $0xa8] sm:$0xf]
      %v6534 = vld [vmem:[%s1291 + $0xac] sm:$0xf]
      %v6535 = vld [vmem:[%s1291 + $0xb4] sm:$0xf]
      %v6536 = vld [vmem:[%s1291 + $0xb8] sm:$0xf]
      %v6537 = vld [vmem:[%s1291 + $0x8] sm:$0x1]
      %v6538 = vld [vmem:[%s1291 + $0x14] sm:$0x1]
      %v6539 = vld [vmem:[%s1291 + $0x20] sm:$0x1]
      %v6540 = vld [vmem:[%s1291 + $0x2c] sm:$0x1]
      %v6541 = vld [vmem:[%s1291 + $0x38] sm:$0x1]
      %v6542 = vld [vmem:[%s1291 + $0x44] sm:$0x1]
      %v6543 = vld [vmem:[%s1291 + $0x50] sm:$0x1]
      %v6544 = vld [vmem:[%s1291 + $0x5c] sm:$0x1]
      %v6545 = vld [vmem:[%s1291 + $0x68] sm:$0x1]
      %v6546 = vld [vmem:[%s1291 + $0x74] sm:$0x1]
      %v6547 = vld [vmem:[%s1291 + $0x80] sm:$0x1]
      %v6548 = vld [vmem:[%s1291 + $0x8c] sm:$0x1]
      %v6549 = vld [vmem:[%s1291 + $0x98] sm:$0x1]
      %v6550 = vld [vmem:[%s1291 + $0xa4] sm:$0x1]
      %v6551 = vld [vmem:[%s1291 + $0xb0] sm:$0x1]
      %v6552 = vld [vmem:[%s1291 + $0xbc] sm:$0x1]
      %v6554 = vshrl.u32 %v6505, 16
      %v6556 = vrot.slane %v6554, 4
      %v6557 = vshll.u32 %v6505, 16
      %v6559 = vrot.slane %v6557, 5
      %v6560 = vor.u32 %v6556, %v6559
      %v6561 = vrot.slane %v6560, 4
      %v6563 = vshll.u32 %v6506, 16
      %v6565 = vrot.slane %v6563, 5
      %v6566 = vsel %vm1456, %v6561, %v6565
      %v6567 = vshrl.u32 %v6506, 16
      %v6569 = vrot.slane %v6567, 4
      %v6570 = vor.u32 %v6569, %v6565
      %v6571 = vrot.slane %v6570, 4
      %v6573 = vshll.u32 %v6537, 16
      %v6575 = vrot.slane %v6573, 5
      %v6576 = vsel %vm1456, %v6571, %v6575
      %v6578 = vshrl.u32 %v6507, 16
      %v6580 = vrot.slane %v6578, 4
      %v6581 = vshll.u32 %v6507, 16
      %v6583 = vrot.slane %v6581, 5
      %v6584 = vor.u32 %v6580, %v6583
      %v6585 = vrot.slane %v6584, 4
      %v6587 = vshll.u32 %v6508, 16
      %v6589 = vrot.slane %v6587, 5
      %v6590 = vsel %vm1456, %v6585, %v6589
      %v6591 = vshrl.u32 %v6508, 16
      %v6593 = vrot.slane %v6591, 4
      %v6594 = vor.u32 %v6593, %v6589
      %v6595 = vrot.slane %v6594, 4
      %v6597 = vshll.u32 %v6538, 16
      %v6599 = vrot.slane %v6597, 5
      %v6600 = vsel %vm1456, %v6595, %v6599
      %v6602 = vshrl.u32 %v6509, 16
      %v6604 = vrot.slane %v6602, 4
      %v6605 = vshll.u32 %v6509, 16
      %v6607 = vrot.slane %v6605, 5
      %v6608 = vor.u32 %v6604, %v6607
      %v6609 = vrot.slane %v6608, 4
      %v6611 = vshll.u32 %v6510, 16
      %v6613 = vrot.slane %v6611, 5
      %v6614 = vsel %vm1456, %v6609, %v6613
      %v6615 = vshrl.u32 %v6510, 16
      %v6617 = vrot.slane %v6615, 4
      %v6618 = vor.u32 %v6617, %v6613
      %v6619 = vrot.slane %v6618, 4
      %v6621 = vshll.u32 %v6539, 16
      %v6623 = vrot.slane %v6621, 5
      %v6624 = vsel %vm1456, %v6619, %v6623
      %v6626 = vshrl.u32 %v6511, 16
      %v6628 = vrot.slane %v6626, 4
      %v6629 = vshll.u32 %v6511, 16
      %v6631 = vrot.slane %v6629, 5
      %v6632 = vor.u32 %v6628, %v6631
      %v6633 = vrot.slane %v6632, 4
      %v6635 = vshll.u32 %v6512, 16
      %v6637 = vrot.slane %v6635, 5
      %v6638 = vsel %vm1456, %v6633, %v6637
      %v6639 = vshrl.u32 %v6512, 16
      %v6641 = vrot.slane %v6639, 4
      %v6642 = vor.u32 %v6641, %v6637
      %v6643 = vrot.slane %v6642, 4
      %v6645 = vshll.u32 %v6540, 16
      %v6647 = vrot.slane %v6645, 5
      %v6648 = vsel %vm1456, %v6643, %v6647
      %v6650 = vshrl.u32 %v6513, 16
      %v6652 = vrot.slane %v6650, 4
      %v6653 = vshll.u32 %v6513, 16
      %v6655 = vrot.slane %v6653, 5
      %v6656 = vor.u32 %v6652, %v6655
      %v6657 = vrot.slane %v6656, 4
      %v6659 = vshll.u32 %v6514, 16
      %v6661 = vrot.slane %v6659, 5
      %v6662 = vsel %vm1456, %v6657, %v6661
      %v6663 = vshrl.u32 %v6514, 16
      %v6665 = vrot.slane %v6663, 4
      %v6666 = vor.u32 %v6665, %v6661
      %v6667 = vrot.slane %v6666, 4
      %v6669 = vshll.u32 %v6541, 16
      %v6671 = vrot.slane %v6669, 5
      %v6672 = vsel %vm1456, %v6667, %v6671
      %v6674 = vshrl.u32 %v6515, 16
      %v6676 = vrot.slane %v6674, 4
      %v6677 = vshll.u32 %v6515, 16
      %v6679 = vrot.slane %v6677, 5
      %v6680 = vor.u32 %v6676, %v6679
      %v6681 = vrot.slane %v6680, 4
      %v6683 = vshll.u32 %v6516, 16
      %v6685 = vrot.slane %v6683, 5
      %v6686 = vsel %vm1456, %v6681, %v6685
      %v6687 = vshrl.u32 %v6516, 16
      %v6689 = vrot.slane %v6687, 4
      %v6690 = vor.u32 %v6689, %v6685
      %v6691 = vrot.slane %v6690, 4
      %v6693 = vshll.u32 %v6542, 16
      %v6695 = vrot.slane %v6693, 5
      %v6696 = vsel %vm1456, %v6691, %v6695
      %v6698 = vshrl.u32 %v6517, 16
      %v6700 = vrot.slane %v6698, 4
      %v6701 = vshll.u32 %v6517, 16
      %v6703 = vrot.slane %v6701, 5
      %v6704 = vor.u32 %v6700, %v6703
      %v6705 = vrot.slane %v6704, 4
      %v6707 = vshll.u32 %v6518, 16
      %v6709 = vrot.slane %v6707, 5
      %v6710 = vsel %vm1456, %v6705, %v6709
      %v6711 = vshrl.u32 %v6518, 16
      %v6713 = vrot.slane %v6711, 4
      %v6714 = vor.u32 %v6713, %v6709
      %v6715 = vrot.slane %v6714, 4
      %v6717 = vshll.u32 %v6543, 16
      %v6719 = vrot.slane %v6717, 5
      %v6720 = vsel %vm1456, %v6715, %v6719
      %v6722 = vshrl.u32 %v6519, 16
      %v6724 = vrot.slane %v6722, 4
      %v6725 = vshll.u32 %v6519, 16
      %v6727 = vrot.slane %v6725, 5
      %v6728 = vor.u32 %v6724, %v6727
      %v6729 = vrot.slane %v6728, 4
      %v6731 = vshll.u32 %v6520, 16
      %v6733 = vrot.slane %v6731, 5
      %v6734 = vsel %vm1456, %v6729, %v6733
      %v6735 = vshrl.u32 %v6520, 16
      %v6737 = vrot.slane %v6735, 4
      %v6738 = vor.u32 %v6737, %v6733
      %v6739 = vrot.slane %v6738, 4
      %v6741 = vshll.u32 %v6544, 16
      %v6743 = vrot.slane %v6741, 5
      %v6744 = vsel %vm1456, %v6739, %v6743
      %v6746 = vshrl.u32 %v6521, 16
      %v6748 = vrot.slane %v6746, 4
      %v6749 = vshll.u32 %v6521, 16
      %v6751 = vrot.slane %v6749, 5
      %v6752 = vor.u32 %v6748, %v6751
      %v6753 = vrot.slane %v6752, 4
      %v6755 = vshll.u32 %v6522, 16
      %v6757 = vrot.slane %v6755, 5
      %v6758 = vsel %vm1456, %v6753, %v6757
      %v6759 = vshrl.u32 %v6522, 16
      %v6761 = vrot.slane %v6759, 4
      %v6762 = vor.u32 %v6761, %v6757
      %v6763 = vrot.slane %v6762, 4
      %v6765 = vshll.u32 %v6545, 16
      %v6767 = vrot.slane %v6765, 5
      %v6768 = vsel %vm1456, %v6763, %v6767
      %v6770 = vshrl.u32 %v6523, 16
      %v6772 = vrot.slane %v6770, 4
      %v6773 = vshll.u32 %v6523, 16
      %v6775 = vrot.slane %v6773, 5
      %v6776 = vor.u32 %v6772, %v6775
      %v6777 = vrot.slane %v6776, 4
      %v6779 = vshll.u32 %v6524, 16
      %v6781 = vrot.slane %v6779, 5
      %v6782 = vsel %vm1456, %v6777, %v6781
      %v6783 = vshrl.u32 %v6524, 16
      %v6785 = vrot.slane %v6783, 4
      %v6786 = vor.u32 %v6785, %v6781
      %v6787 = vrot.slane %v6786, 4
      %v6789 = vshll.u32 %v6546, 16
      %v6791 = vrot.slane %v6789, 5
      %v6792 = vsel %vm1456, %v6787, %v6791
      %v6794 = vshrl.u32 %v6525, 16
      %v6796 = vrot.slane %v6794, 4
      %v6797 = vshll.u32 %v6525, 16
      %v6799 = vrot.slane %v6797, 5
      %v6800 = vor.u32 %v6796, %v6799
      %v6801 = vrot.slane %v6800, 4
      %v6803 = vshll.u32 %v6526, 16
      %v6805 = vrot.slane %v6803, 5
      %v6806 = vsel %vm1456, %v6801, %v6805
      %v6807 = vshrl.u32 %v6526, 16
      %v6809 = vrot.slane %v6807, 4
      %v6810 = vor.u32 %v6809, %v6805
      %v6811 = vrot.slane %v6810, 4
      %v6813 = vshll.u32 %v6547, 16
      %v6815 = vrot.slane %v6813, 5
      %v6816 = vsel %vm1456, %v6811, %v6815
      %v6818 = vshrl.u32 %v6527, 16
      %v6820 = vrot.slane %v6818, 4
      %v6821 = vshll.u32 %v6527, 16
      %v6823 = vrot.slane %v6821, 5
      %v6824 = vor.u32 %v6820, %v6823
      %v6825 = vrot.slane %v6824, 4
      %v6827 = vshll.u32 %v6528, 16
      %v6829 = vrot.slane %v6827, 5
      %v6830 = vsel %vm1456, %v6825, %v6829
      %v6831 = vshrl.u32 %v6528, 16
      %v6833 = vrot.slane %v6831, 4
      %v6834 = vor.u32 %v6833, %v6829
      %v6835 = vrot.slane %v6834, 4
      %v6837 = vshll.u32 %v6548, 16
      %v6839 = vrot.slane %v6837, 5
      %v6840 = vsel %vm1456, %v6835, %v6839
      %v6842 = vshrl.u32 %v6529, 16
      %v6844 = vrot.slane %v6842, 4
      %v6845 = vshll.u32 %v6529, 16
      %v6847 = vrot.slane %v6845, 5
      %v6848 = vor.u32 %v6844, %v6847
      %v6849 = vrot.slane %v6848, 4
      %v6851 = vshll.u32 %v6530, 16
      %v6853 = vrot.slane %v6851, 5
      %v6854 = vsel %vm1456, %v6849, %v6853
      %v6855 = vshrl.u32 %v6530, 16
      %v6857 = vrot.slane %v6855, 4
      %v6858 = vor.u32 %v6857, %v6853
      %v6859 = vrot.slane %v6858, 4
      %v6861 = vshll.u32 %v6549, 16
      %v6863 = vrot.slane %v6861, 5
      %v6864 = vsel %vm1456, %v6859, %v6863
      %v6866 = vshrl.u32 %v6531, 16
      %v6868 = vrot.slane %v6866, 4
      %v6869 = vshll.u32 %v6531, 16
      %v6871 = vrot.slane %v6869, 5
      %v6872 = vor.u32 %v6868, %v6871
      %v6873 = vrot.slane %v6872, 4
      %v6875 = vshll.u32 %v6532, 16
      %v6877 = vrot.slane %v6875, 5
      %v6878 = vsel %vm1456, %v6873, %v6877
      %v6879 = vshrl.u32 %v6532, 16
      %v6881 = vrot.slane %v6879, 4
      %v6882 = vor.u32 %v6881, %v6877
      %v6883 = vrot.slane %v6882, 4
      %v6885 = vshll.u32 %v6550, 16
      %v6887 = vrot.slane %v6885, 5
      %v6888 = vsel %vm1456, %v6883, %v6887
      %v6890 = vshrl.u32 %v6533, 16
      %v6892 = vrot.slane %v6890, 4
      %v6893 = vshll.u32 %v6533, 16
      %v6895 = vrot.slane %v6893, 5
      %v6896 = vor.u32 %v6892, %v6895
      %v6897 = vrot.slane %v6896, 4
      %v6899 = vshll.u32 %v6534, 16
      %v6901 = vrot.slane %v6899, 5
      %v6902 = vsel %vm1456, %v6897, %v6901
      %v6903 = vshrl.u32 %v6534, 16
      %v6905 = vrot.slane %v6903, 4
      %v6906 = vor.u32 %v6905, %v6901
      %v6907 = vrot.slane %v6906, 4
      %v6909 = vshll.u32 %v6551, 16
      %v6911 = vrot.slane %v6909, 5
      %v6912 = vsel %vm1456, %v6907, %v6911
      %v6914 = vshrl.u32 %v6535, 16
      %v6916 = vrot.slane %v6914, 4
      %v6917 = vshll.u32 %v6535, 16
      %v6919 = vrot.slane %v6917, 5
      %v6920 = vor.u32 %v6916, %v6919
      %v6921 = vrot.slane %v6920, 4
      %v6923 = vshll.u32 %v6536, 16
      %v6925 = vrot.slane %v6923, 5
      %v6926 = vsel %vm1456, %v6921, %v6925
      %v6927 = vshrl.u32 %v6536, 16
      %v6929 = vrot.slane %v6927, 4
      %v6930 = vor.u32 %v6929, %v6925
      %v6931 = vrot.slane %v6930, 4
      %v6933 = vshll.u32 %v6552, 16
      %v6935 = vrot.slane %v6933, 5
      %v6936 = vsel %vm1456, %v6931, %v6935
      %v6937 = vld [vmem:[%s1291] sm:$0xe]
      %v6938 = vld [vmem:[%s1291 + $0xc] sm:$0xe]
      %v6939 = vld [vmem:[%s1291 + $0x18] sm:$0xe]
      %v6940 = vld [vmem:[%s1291 + $0x24] sm:$0xe]
      %v6941 = vld [vmem:[%s1291 + $0x30] sm:$0xe]
      %v6942 = vld [vmem:[%s1291 + $0x3c] sm:$0xe]
      %v6943 = vld [vmem:[%s1291 + $0x48] sm:$0xe]
      %v6944 = vld [vmem:[%s1291 + $0x54] sm:$0xe]
      %v6945 = vld [vmem:[%s1291 + $0x60] sm:$0xe]
      %v6946 = vld [vmem:[%s1291 + $0x6c] sm:$0xe]
      %v6947 = vld [vmem:[%s1291 + $0x78] sm:$0xe]
      %v6948 = vld [vmem:[%s1291 + $0x84] sm:$0xe]
      %v6949 = vld [vmem:[%s1291 + $0x90] sm:$0xe]
      %v6950 = vld [vmem:[%s1291 + $0x9c] sm:$0xe]
      %v6951 = vld [vmem:[%s1291 + $0xa8] sm:$0xe]
      %v6952 = vld [vmem:[%s1291 + $0xb4] sm:$0xe]
      %v7001 = vrot.slane %v6937, 5
      %v7002 = vrot.slane %v7001, 4
      %v7003 = vrot.slane %v6506, 5
      %v7004 = vsel %vm1907, %v7002, %v7003
      %v7005 = vrot.slane %v7003, 4
      %v7006 = vrot.slane %v6537, 5
      %v7007 = vsel %vm1907, %v7005, %v7006
      %v7008 = vrot.slane %v6938, 5
      %v7009 = vrot.slane %v7008, 4
      %v7010 = vrot.slane %v6508, 5
      %v7011 = vsel %vm1907, %v7009, %v7010
      %v7012 = vrot.slane %v7010, 4
      %v7013 = vrot.slane %v6538, 5
      %v7014 = vsel %vm1907, %v7012, %v7013
      %v7015 = vrot.slane %v6939, 5
      %v7016 = vrot.slane %v7015, 4
      %v7017 = vrot.slane %v6510, 5
      %v7018 = vsel %vm1907, %v7016, %v7017
      %v7019 = vrot.slane %v7017, 4
      %v7020 = vrot.slane %v6539, 5
      %v7021 = vsel %vm1907, %v7019, %v7020
      %v7022 = vrot.slane %v6940, 5
      %v7023 = vrot.slane %v7022, 4
      %v7024 = vrot.slane %v6512, 5
      %v7025 = vsel %vm1907, %v7023, %v7024
      %v7026 = vrot.slane %v7024, 4
      %v7027 = vrot.slane %v6540, 5
      %v7028 = vsel %vm1907, %v7026, %v7027
      %v7029 = vrot.slane %v6941, 5
      %v7030 = vrot.slane %v7029, 4
      %v7031 = vrot.slane %v6514, 5
      %v7032 = vsel %vm1907, %v7030, %v7031
      %v7033 = vrot.slane %v7031, 4
      %v7034 = vrot.slane %v6541, 5
      %v7035 = vsel %vm1907, %v7033, %v7034
      %v7036 = vrot.slane %v6942, 5
      %v7037 = vrot.slane %v7036, 4
      %v7038 = vrot.slane %v6516, 5
      %v7039 = vsel %vm1907, %v7037, %v7038
      %v7040 = vrot.slane %v7038, 4
      %v7041 = vrot.slane %v6542, 5
      %v7042 = vsel %vm1907, %v7040, %v7041
      %v7043 = vrot.slane %v6943, 5
      %v7044 = vrot.slane %v7043, 4
      %v7045 = vrot.slane %v6518, 5
      %v7046 = vsel %vm1907, %v7044, %v7045
      %v7047 = vrot.slane %v7045, 4
      %v7048 = vrot.slane %v6543, 5
      %v7049 = vsel %vm1907, %v7047, %v7048
      %v7050 = vrot.slane %v6944, 5
      %v7051 = vrot.slane %v7050, 4
      %v7052 = vrot.slane %v6520, 5
      %v7053 = vsel %vm1907, %v7051, %v7052
      %v7054 = vrot.slane %v7052, 4
      %v7055 = vrot.slane %v6544, 5
      %v7056 = vsel %vm1907, %v7054, %v7055
      %v7057 = vrot.slane %v6945, 5
      %v7058 = vrot.slane %v7057, 4
      %v7059 = vrot.slane %v6522, 5
      %v7060 = vsel %vm1907, %v7058, %v7059
      %v7061 = vrot.slane %v7059, 4
      %v7062 = vrot.slane %v6545, 5
      %v7063 = vsel %vm1907, %v7061, %v7062
      %v7064 = vrot.slane %v6946, 5
      %v7065 = vrot.slane %v7064, 4
      %v7066 = vrot.slane %v6524, 5
      %v7067 = vsel %vm1907, %v7065, %v7066
      %v7068 = vrot.slane %v7066, 4
      %v7069 = vrot.slane %v6546, 5
      %v7070 = vsel %vm1907, %v7068, %v7069
      %v7071 = vrot.slane %v6947, 5
      %v7072 = vrot.slane %v7071, 4
      %v7073 = vrot.slane %v6526, 5
      %v7074 = vsel %vm1907, %v7072, %v7073
      %v7075 = vrot.slane %v7073, 4
      %v7076 = vrot.slane %v6547, 5
      %v7077 = vsel %vm1907, %v7075, %v7076
      %v7078 = vrot.slane %v6948, 5
      %v7079 = vrot.slane %v7078, 4
      %v7080 = vrot.slane %v6528, 5
      %v7081 = vsel %vm1907, %v7079, %v7080
      %v7082 = vrot.slane %v7080, 4
      %v7083 = vrot.slane %v6548, 5
      %v7084 = vsel %vm1907, %v7082, %v7083
      %v7085 = vrot.slane %v6949, 5
      %v7086 = vrot.slane %v7085, 4
      %v7087 = vrot.slane %v6530, 5
      %v7088 = vsel %vm1907, %v7086, %v7087
      %v7089 = vrot.slane %v7087, 4
      %v7090 = vrot.slane %v6549, 5
      %v7091 = vsel %vm1907, %v7089, %v7090
      %v7092 = vrot.slane %v6950, 5
      %v7093 = vrot.slane %v7092, 4
      %v7094 = vrot.slane %v6532, 5
      %v7095 = vsel %vm1907, %v7093, %v7094
      %v7096 = vrot.slane %v7094, 4
      %v7097 = vrot.slane %v6550, 5
      %v7098 = vsel %vm1907, %v7096, %v7097
      %v7099 = vrot.slane %v6951, 5
      %v7100 = vrot.slane %v7099, 4
      %v7101 = vrot.slane %v6534, 5
      %v7102 = vsel %vm1907, %v7100, %v7101
      %v7103 = vrot.slane %v7101, 4
      %v7104 = vrot.slane %v6551, 5
      %v7105 = vsel %vm1907, %v7103, %v7104
      %v7106 = vrot.slane %v6952, 5
      %v7107 = vrot.slane %v7106, 4
      %v7108 = vrot.slane %v6536, 5
      %v7109 = vsel %vm1907, %v7107, %v7108
      %v7110 = vrot.slane %v7108, 4
      %v7111 = vrot.slane %v6552, 5
      %v7112 = vsel %vm1907, %v7110, %v7111
      %v7113 = vld [vmem:[%s2628] sm:$0xf]
      %v7114 = vld [vmem:[%s2628 + $0x4] sm:$0xf]
      %v7115 = vld [vmem:[%s2628 + $0xc] sm:$0xf]
      %v7116 = vld [vmem:[%s2628 + $0x10] sm:$0xf]
      %v7117 = vld [vmem:[%s2628 + $0x18] sm:$0xf]
      %v7118 = vld [vmem:[%s2628 + $0x1c] sm:$0xf]
      %v7119 = vld [vmem:[%s2628 + $0x24] sm:$0xf]
      %v7120 = vld [vmem:[%s2628 + $0x28] sm:$0xf]
      %v7121 = vld [vmem:[%s2628 + $0x30] sm:$0xf]
      %v7122 = vld [vmem:[%s2628 + $0x34] sm:$0xf]
      %v7123 = vld [vmem:[%s2628 + $0x3c] sm:$0xf]
      %v7124 = vld [vmem:[%s2628 + $0x40] sm:$0xf]
      %v7125 = vld [vmem:[%s2628 + $0x48] sm:$0xf]
      %v7126 = vld [vmem:[%s2628 + $0x4c] sm:$0xf]
      %v7127 = vld [vmem:[%s2628 + $0x54] sm:$0xf]
      %v7128 = vld [vmem:[%s2628 + $0x58] sm:$0xf]
      %v7129 = vld [vmem:[%s2628 + $0x60] sm:$0xf]
      %v7130 = vld [vmem:[%s2628 + $0x64] sm:$0xf]
      %v7131 = vld [vmem:[%s2628 + $0x6c] sm:$0xf]
      %v7132 = vld [vmem:[%s2628 + $0x70] sm:$0xf]
      %v7133 = vld [vmem:[%s2628 + $0x78] sm:$0xf]
      %v7134 = vld [vmem:[%s2628 + $0x7c] sm:$0xf]
      %v7135 = vld [vmem:[%s2628 + $0x84] sm:$0xf]
      %v7136 = vld [vmem:[%s2628 + $0x88] sm:$0xf]
      %v7137 = vld [vmem:[%s2628 + $0x90] sm:$0xf]
      %v7138 = vld [vmem:[%s2628 + $0x94] sm:$0xf]
      %v7139 = vld [vmem:[%s2628 + $0x9c] sm:$0xf]
      %v7140 = vld [vmem:[%s2628 + $0xa0] sm:$0xf]
      %v7141 = vld [vmem:[%s2628 + $0xa8] sm:$0xf]
      %v7142 = vld [vmem:[%s2628 + $0xac] sm:$0xf]
      %v7143 = vld [vmem:[%s2628 + $0xb4] sm:$0xf]
      %v7144 = vld [vmem:[%s2628 + $0xb8] sm:$0xf]
      %v7145 = vld [vmem:[%s2628 + $0x8] sm:$0x1]
      %v7146 = vld [vmem:[%s2628 + $0x14] sm:$0x1]
      %v7147 = vld [vmem:[%s2628 + $0x20] sm:$0x1]
      %v7148 = vld [vmem:[%s2628 + $0x2c] sm:$0x1]
      %v7149 = vld [vmem:[%s2628 + $0x38] sm:$0x1]
      %v7150 = vld [vmem:[%s2628 + $0x44] sm:$0x1]
      %v7151 = vld [vmem:[%s2628 + $0x50] sm:$0x1]
      %v7152 = vld [vmem:[%s2628 + $0x5c] sm:$0x1]
      %v7153 = vld [vmem:[%s2628 + $0x68] sm:$0x1]
      %v7154 = vld [vmem:[%s2628 + $0x74] sm:$0x1]
      %v7155 = vld [vmem:[%s2628 + $0x80] sm:$0x1]
      %v7156 = vld [vmem:[%s2628 + $0x8c] sm:$0x1]
      %v7157 = vld [vmem:[%s2628 + $0x98] sm:$0x1]
      %v7158 = vld [vmem:[%s2628 + $0xa4] sm:$0x1]
      %v7159 = vld [vmem:[%s2628 + $0xb0] sm:$0x1]
      %v7160 = vld [vmem:[%s2628 + $0xbc] sm:$0x1]
      %v7162 = vshrl.u32 %v7113, 16
      %v7164 = vrot.slane %v7162, 4
      %v7165 = vshll.u32 %v7113, 16
      %v7167 = vrot.slane %v7165, 5
      %v7168 = vor.u32 %v7164, %v7167
      %v7169 = vrot.slane %v7168, 4
      %v7171 = vshll.u32 %v7114, 16
      %v7173 = vrot.slane %v7171, 5
      %v7174 = vsel %vm1456, %v7169, %v7173
      %v7175 = vshrl.u32 %v7114, 16
      %v7177 = vrot.slane %v7175, 4
      %v7178 = vor.u32 %v7177, %v7173
      %v7179 = vrot.slane %v7178, 4
      %v7181 = vshll.u32 %v7145, 16
      %v7183 = vrot.slane %v7181, 5
      %v7184 = vsel %vm1456, %v7179, %v7183
      %v7186 = vshrl.u32 %v7115, 16
      %v7188 = vrot.slane %v7186, 4
      %v7189 = vshll.u32 %v7115, 16
      %v7191 = vrot.slane %v7189, 5
      %v7192 = vor.u32 %v7188, %v7191
      %v7193 = vrot.slane %v7192, 4
      %v7195 = vshll.u32 %v7116, 16
      %v7197 = vrot.slane %v7195, 5
      %v7198 = vsel %vm1456, %v7193, %v7197
      %v7199 = vshrl.u32 %v7116, 16
      %v7201 = vrot.slane %v7199, 4
      %v7202 = vor.u32 %v7201, %v7197
      %v7203 = vrot.slane %v7202, 4
      %v7205 = vshll.u32 %v7146, 16
      %v7207 = vrot.slane %v7205, 5
      %v7208 = vsel %vm1456, %v7203, %v7207
      %v7210 = vshrl.u32 %v7117, 16
      %v7212 = vrot.slane %v7210, 4
      %v7213 = vshll.u32 %v7117, 16
      %v7215 = vrot.slane %v7213, 5
      %v7216 = vor.u32 %v7212, %v7215
      %v7217 = vrot.slane %v7216, 4
      %v7219 = vshll.u32 %v7118, 16
      %v7221 = vrot.slane %v7219, 5
      %v7222 = vsel %vm1456, %v7217, %v7221
      %v7223 = vshrl.u32 %v7118, 16
      %v7225 = vrot.slane %v7223, 4
      %v7226 = vor.u32 %v7225, %v7221
      %v7227 = vrot.slane %v7226, 4
      %v7229 = vshll.u32 %v7147, 16
      %v7231 = vrot.slane %v7229, 5
      %v7232 = vsel %vm1456, %v7227, %v7231
      %v7234 = vshrl.u32 %v7119, 16
      %v7236 = vrot.slane %v7234, 4
      %v7237 = vshll.u32 %v7119, 16
      %v7239 = vrot.slane %v7237, 5
      %v7240 = vor.u32 %v7236, %v7239
      %v7241 = vrot.slane %v7240, 4
      %v7243 = vshll.u32 %v7120, 16
      %v7245 = vrot.slane %v7243, 5
      %v7246 = vsel %vm1456, %v7241, %v7245
      %v7247 = vshrl.u32 %v7120, 16
      %v7249 = vrot.slane %v7247, 4
      %v7250 = vor.u32 %v7249, %v7245
      %v7251 = vrot.slane %v7250, 4
      %v7253 = vshll.u32 %v7148, 16
      %v7255 = vrot.slane %v7253, 5
      %v7256 = vsel %vm1456, %v7251, %v7255
      %v7258 = vshrl.u32 %v7121, 16
      %v7260 = vrot.slane %v7258, 4
      %v7261 = vshll.u32 %v7121, 16
      %v7263 = vrot.slane %v7261, 5
      %v7264 = vor.u32 %v7260, %v7263
      %v7265 = vrot.slane %v7264, 4
      %v7267 = vshll.u32 %v7122, 16
      %v7269 = vrot.slane %v7267, 5
      %v7270 = vsel %vm1456, %v7265, %v7269
      %v7271 = vshrl.u32 %v7122, 16
      %v7273 = vrot.slane %v7271, 4
      %v7274 = vor.u32 %v7273, %v7269
      %v7275 = vrot.slane %v7274, 4
      %v7277 = vshll.u32 %v7149, 16
      %v7279 = vrot.slane %v7277, 5
      %v7280 = vsel %vm1456, %v7275, %v7279
      %v7282 = vshrl.u32 %v7123, 16
      %v7284 = vrot.slane %v7282, 4
      %v7285 = vshll.u32 %v7123, 16
      %v7287 = vrot.slane %v7285, 5
      %v7288 = vor.u32 %v7284, %v7287
      %v7289 = vrot.slane %v7288, 4
      %v7291 = vshll.u32 %v7124, 16
      %v7293 = vrot.slane %v7291, 5
      %v7294 = vsel %vm1456, %v7289, %v7293
      %v7295 = vshrl.u32 %v7124, 16
      %v7297 = vrot.slane %v7295, 4
      %v7298 = vor.u32 %v7297, %v7293
      %v7299 = vrot.slane %v7298, 4
      %v7301 = vshll.u32 %v7150, 16
      %v7303 = vrot.slane %v7301, 5
      %v7304 = vsel %vm1456, %v7299, %v7303
      %v7306 = vshrl.u32 %v7125, 16
      %v7308 = vrot.slane %v7306, 4
      %v7309 = vshll.u32 %v7125, 16
      %v7311 = vrot.slane %v7309, 5
      %v7312 = vor.u32 %v7308, %v7311
      %v7313 = vrot.slane %v7312, 4
      %v7315 = vshll.u32 %v7126, 16
      %v7317 = vrot.slane %v7315, 5
      %v7318 = vsel %vm1456, %v7313, %v7317
      %v7319 = vshrl.u32 %v7126, 16
      %v7321 = vrot.slane %v7319, 4
      %v7322 = vor.u32 %v7321, %v7317
      %v7323 = vrot.slane %v7322, 4
      %v7325 = vshll.u32 %v7151, 16
      %v7327 = vrot.slane %v7325, 5
      %v7328 = vsel %vm1456, %v7323, %v7327
      %v7330 = vshrl.u32 %v7127, 16
      %v7332 = vrot.slane %v7330, 4
      %v7333 = vshll.u32 %v7127, 16
      %v7335 = vrot.slane %v7333, 5
      %v7336 = vor.u32 %v7332, %v7335
      %v7337 = vrot.slane %v7336, 4
      %v7339 = vshll.u32 %v7128, 16
      %v7341 = vrot.slane %v7339, 5
      %v7342 = vsel %vm1456, %v7337, %v7341
      %v7343 = vshrl.u32 %v7128, 16
      %v7345 = vrot.slane %v7343, 4
      %v7346 = vor.u32 %v7345, %v7341
      %v7347 = vrot.slane %v7346, 4
      %v7349 = vshll.u32 %v7152, 16
      %v7351 = vrot.slane %v7349, 5
      %v7352 = vsel %vm1456, %v7347, %v7351
      %v7354 = vshrl.u32 %v7129, 16
      %v7356 = vrot.slane %v7354, 4
      %v7357 = vshll.u32 %v7129, 16
      %v7359 = vrot.slane %v7357, 5
      %v7360 = vor.u32 %v7356, %v7359
      %v7361 = vrot.slane %v7360, 4
      %v7363 = vshll.u32 %v7130, 16
      %v7365 = vrot.slane %v7363, 5
      %v7366 = vsel %vm1456, %v7361, %v7365
      %v7367 = vshrl.u32 %v7130, 16
      %v7369 = vrot.slane %v7367, 4
      %v7370 = vor.u32 %v7369, %v7365
      %v7371 = vrot.slane %v7370, 4
      %v7373 = vshll.u32 %v7153, 16
      %v7375 = vrot.slane %v7373, 5
      %v7376 = vsel %vm1456, %v7371, %v7375
      %v7378 = vshrl.u32 %v7131, 16
      %v7380 = vrot.slane %v7378, 4
      %v7381 = vshll.u32 %v7131, 16
      %v7383 = vrot.slane %v7381, 5
      %v7384 = vor.u32 %v7380, %v7383
      %v7385 = vrot.slane %v7384, 4
      %v7387 = vshll.u32 %v7132, 16
      %v7389 = vrot.slane %v7387, 5
      %v7390 = vsel %vm1456, %v7385, %v7389
      %v7391 = vshrl.u32 %v7132, 16
      %v7393 = vrot.slane %v7391, 4
      %v7394 = vor.u32 %v7393, %v7389
      %v7395 = vrot.slane %v7394, 4
      %v7397 = vshll.u32 %v7154, 16
      %v7399 = vrot.slane %v7397, 5
      %v7400 = vsel %vm1456, %v7395, %v7399
      %v7402 = vshrl.u32 %v7133, 16
      %v7404 = vrot.slane %v7402, 4
      %v7405 = vshll.u32 %v7133, 16
      %v7407 = vrot.slane %v7405, 5
      %v7408 = vor.u32 %v7404, %v7407
      %v7409 = vrot.slane %v7408, 4
      %v7411 = vshll.u32 %v7134, 16
      %v7413 = vrot.slane %v7411, 5
      %v7414 = vsel %vm1456, %v7409, %v7413
      %v7415 = vshrl.u32 %v7134, 16
      %v7417 = vrot.slane %v7415, 4
      %v7418 = vor.u32 %v7417, %v7413
      %v7419 = vrot.slane %v7418, 4
      %v7421 = vshll.u32 %v7155, 16
      %v7423 = vrot.slane %v7421, 5
      %v7424 = vsel %vm1456, %v7419, %v7423
      %v7426 = vshrl.u32 %v7135, 16
      %v7428 = vrot.slane %v7426, 4
      %v7429 = vshll.u32 %v7135, 16
      %v7431 = vrot.slane %v7429, 5
      %v7432 = vor.u32 %v7428, %v7431
      %v7433 = vrot.slane %v7432, 4
      %v7435 = vshll.u32 %v7136, 16
      %v7437 = vrot.slane %v7435, 5
      %v7438 = vsel %vm1456, %v7433, %v7437
      %v7439 = vshrl.u32 %v7136, 16
      %v7441 = vrot.slane %v7439, 4
      %v7442 = vor.u32 %v7441, %v7437
      %v7443 = vrot.slane %v7442, 4
      %v7445 = vshll.u32 %v7156, 16
      %v7447 = vrot.slane %v7445, 5
      %v7448 = vsel %vm1456, %v7443, %v7447
      %v7450 = vshrl.u32 %v7137, 16
      %v7452 = vrot.slane %v7450, 4
      %v7453 = vshll.u32 %v7137, 16
      %v7455 = vrot.slane %v7453, 5
      %v7456 = vor.u32 %v7452, %v7455
      %v7457 = vrot.slane %v7456, 4
      %v7459 = vshll.u32 %v7138, 16
      %v7461 = vrot.slane %v7459, 5
      %v7462 = vsel %vm1456, %v7457, %v7461
      %v7463 = vshrl.u32 %v7138, 16
      %v7465 = vrot.slane %v7463, 4
      %v7466 = vor.u32 %v7465, %v7461
      %v7467 = vrot.slane %v7466, 4
      %v7469 = vshll.u32 %v7157, 16
      %v7471 = vrot.slane %v7469, 5
      %v7472 = vsel %vm1456, %v7467, %v7471
      %v7474 = vshrl.u32 %v7139, 16
      %v7476 = vrot.slane %v7474, 4
      %v7477 = vshll.u32 %v7139, 16
      %v7479 = vrot.slane %v7477, 5
      %v7480 = vor.u32 %v7476, %v7479
      %v7481 = vrot.slane %v7480, 4
      %v7483 = vshll.u32 %v7140, 16
      %v7485 = vrot.slane %v7483, 5
      %v7486 = vsel %vm1456, %v7481, %v7485
      %v7487 = vshrl.u32 %v7140, 16
      %v7489 = vrot.slane %v7487, 4
      %v7490 = vor.u32 %v7489, %v7485
      %v7491 = vrot.slane %v7490, 4
      %v7493 = vshll.u32 %v7158, 16
      %v7495 = vrot.slane %v7493, 5
      %v7496 = vsel %vm1456, %v7491, %v7495
      %v7498 = vshrl.u32 %v7141, 16
      %v7500 = vrot.slane %v7498, 4
      %v7501 = vshll.u32 %v7141, 16
      %v7503 = vrot.slane %v7501, 5
      %v7504 = vor.u32 %v7500, %v7503
      %v7505 = vrot.slane %v7504, 4
      %v7507 = vshll.u32 %v7142, 16
      %v7509 = vrot.slane %v7507, 5
      %v7510 = vsel %vm1456, %v7505, %v7509
      %v7511 = vshrl.u32 %v7142, 16
      %v7513 = vrot.slane %v7511, 4
      %v7514 = vor.u32 %v7513, %v7509
      %v7515 = vrot.slane %v7514, 4
      %v7517 = vshll.u32 %v7159, 16
      %v7519 = vrot.slane %v7517, 5
      %v7520 = vsel %vm1456, %v7515, %v7519
      %v7522 = vshrl.u32 %v7143, 16
      %v7524 = vrot.slane %v7522, 4
      %v7525 = vshll.u32 %v7143, 16
      %v7527 = vrot.slane %v7525, 5
      %v7528 = vor.u32 %v7524, %v7527
      %v7529 = vrot.slane %v7528, 4
      %v7531 = vshll.u32 %v7144, 16
      %v7533 = vrot.slane %v7531, 5
      %v7534 = vsel %vm1456, %v7529, %v7533
      %v7535 = vshrl.u32 %v7144, 16
      %v7537 = vrot.slane %v7535, 4
      %v7538 = vor.u32 %v7537, %v7533
      %v7539 = vrot.slane %v7538, 4
      %v7541 = vshll.u32 %v7160, 16
      %v7543 = vrot.slane %v7541, 5
      %v7544 = vsel %vm1456, %v7539, %v7543
      %v7545 = vld [vmem:[%s2628] sm:$0xe]
      %v7546 = vld [vmem:[%s2628 + $0xc] sm:$0xe]
      %v7547 = vld [vmem:[%s2628 + $0x18] sm:$0xe]
      %v7548 = vld [vmem:[%s2628 + $0x24] sm:$0xe]
      %v7549 = vld [vmem:[%s2628 + $0x30] sm:$0xe]
      %v7550 = vld [vmem:[%s2628 + $0x3c] sm:$0xe]
      %v7551 = vld [vmem:[%s2628 + $0x48] sm:$0xe]
      %v7552 = vld [vmem:[%s2628 + $0x54] sm:$0xe]
      %v7553 = vld [vmem:[%s2628 + $0x60] sm:$0xe]
      %v7554 = vld [vmem:[%s2628 + $0x6c] sm:$0xe]
      %v7555 = vld [vmem:[%s2628 + $0x78] sm:$0xe]
      %v7556 = vld [vmem:[%s2628 + $0x84] sm:$0xe]
      %v7557 = vld [vmem:[%s2628 + $0x90] sm:$0xe]
      %v7558 = vld [vmem:[%s2628 + $0x9c] sm:$0xe]
      %v7559 = vld [vmem:[%s2628 + $0xa8] sm:$0xe]
      %v7560 = vld [vmem:[%s2628 + $0xb4] sm:$0xe]
      %v7609 = vrot.slane %v7545, 5
      %v7610 = vrot.slane %v7609, 4
      %v7611 = vrot.slane %v7114, 5
      %v7612 = vsel %vm1907, %v7610, %v7611
      %v7613 = vrot.slane %v7611, 4
      %v7614 = vrot.slane %v7145, 5
      %v7615 = vsel %vm1907, %v7613, %v7614
      %v7616 = vrot.slane %v7546, 5
      %v7617 = vrot.slane %v7616, 4
      %v7618 = vrot.slane %v7116, 5
      %v7619 = vsel %vm1907, %v7617, %v7618
      %v7620 = vrot.slane %v7618, 4
      %v7621 = vrot.slane %v7146, 5
      %v7622 = vsel %vm1907, %v7620, %v7621
      %v7623 = vrot.slane %v7547, 5
      %v7624 = vrot.slane %v7623, 4
      %v7625 = vrot.slane %v7118, 5
      %v7626 = vsel %vm1907, %v7624, %v7625
      %v7627 = vrot.slane %v7625, 4
      %v7628 = vrot.slane %v7147, 5
      %v7629 = vsel %vm1907, %v7627, %v7628
      %v7630 = vrot.slane %v7548, 5
      %v7631 = vrot.slane %v7630, 4
      %v7632 = vrot.slane %v7120, 5
      %v7633 = vsel %vm1907, %v7631, %v7632
      %v7634 = vrot.slane %v7632, 4
      %v7635 = vrot.slane %v7148, 5
      %v7636 = vsel %vm1907, %v7634, %v7635
      %v7637 = vrot.slane %v7549, 5
      %v7638 = vrot.slane %v7637, 4
      %v7639 = vrot.slane %v7122, 5
      %v7640 = vsel %vm1907, %v7638, %v7639
      %v7641 = vrot.slane %v7639, 4
      %v7642 = vrot.slane %v7149, 5
      %v7643 = vsel %vm1907, %v7641, %v7642
      %v7644 = vrot.slane %v7550, 5
      %v7645 = vrot.slane %v7644, 4
      %v7646 = vrot.slane %v7124, 5
      %v7647 = vsel %vm1907, %v7645, %v7646
      %v7648 = vrot.slane %v7646, 4
      %v7649 = vrot.slane %v7150, 5
      %v7650 = vsel %vm1907, %v7648, %v7649
      %v7651 = vrot.slane %v7551, 5
      %v7652 = vrot.slane %v7651, 4
      %v7653 = vrot.slane %v7126, 5
      %v7654 = vsel %vm1907, %v7652, %v7653
      %v7655 = vrot.slane %v7653, 4
      %v7656 = vrot.slane %v7151, 5
      %v7657 = vsel %vm1907, %v7655, %v7656
      %v7658 = vrot.slane %v7552, 5
      %v7659 = vrot.slane %v7658, 4
      %v7660 = vrot.slane %v7128, 5
      %v7661 = vsel %vm1907, %v7659, %v7660
      %v7662 = vrot.slane %v7660, 4
      %v7663 = vrot.slane %v7152, 5
      %v7664 = vsel %vm1907, %v7662, %v7663
      %v7665 = vrot.slane %v7553, 5
      %v7666 = vrot.slane %v7665, 4
      %v7667 = vrot.slane %v7130, 5
      %v7668 = vsel %vm1907, %v7666, %v7667
      %v7669 = vrot.slane %v7667, 4
      %v7670 = vrot.slane %v7153, 5
      %v7671 = vsel %vm1907, %v7669, %v7670
      %v7672 = vrot.slane %v7554, 5
      %v7673 = vrot.slane %v7672, 4
      %v7674 = vrot.slane %v7132, 5
      %v7675 = vsel %vm1907, %v7673, %v7674
      %v7676 = vrot.slane %v7674, 4
      %v7677 = vrot.slane %v7154, 5
      %v7678 = vsel %vm1907, %v7676, %v7677
      %v7679 = vrot.slane %v7555, 5
      %v7680 = vrot.slane %v7679, 4
      %v7681 = vrot.slane %v7134, 5
      %v7682 = vsel %vm1907, %v7680, %v7681
      %v7683 = vrot.slane %v7681, 4
      %v7684 = vrot.slane %v7155, 5
      %v7685 = vsel %vm1907, %v7683, %v7684
      %v7686 = vrot.slane %v7556, 5
      %v7687 = vrot.slane %v7686, 4
      %v7688 = vrot.slane %v7136, 5
      %v7689 = vsel %vm1907, %v7687, %v7688
      %v7690 = vrot.slane %v7688, 4
      %v7691 = vrot.slane %v7156, 5
      %v7692 = vsel %vm1907, %v7690, %v7691
      %v7693 = vrot.slane %v7557, 5
      %v7694 = vrot.slane %v7693, 4
      %v7695 = vrot.slane %v7138, 5
      %v7696 = vsel %vm1907, %v7694, %v7695
      %v7697 = vrot.slane %v7695, 4
      %v7698 = vrot.slane %v7157, 5
      %v7699 = vsel %vm1907, %v7697, %v7698
      %v7700 = vrot.slane %v7558, 5
      %v7701 = vrot.slane %v7700, 4
      %v7702 = vrot.slane %v7140, 5
      %v7703 = vsel %vm1907, %v7701, %v7702
      %v7704 = vrot.slane %v7702, 4
      %v7705 = vrot.slane %v7158, 5
      %v7706 = vsel %vm1907, %v7704, %v7705
      %v7707 = vrot.slane %v7559, 5
      %v7708 = vrot.slane %v7707, 4
      %v7709 = vrot.slane %v7142, 5
      %v7710 = vsel %vm1907, %v7708, %v7709
      %v7711 = vrot.slane %v7709, 4
      %v7712 = vrot.slane %v7159, 5
      %v7713 = vsel %vm1907, %v7711, %v7712
      %v7714 = vrot.slane %v7560, 5
      %v7715 = vrot.slane %v7714, 4
      %v7716 = vrot.slane %v7144, 5
      %v7717 = vsel %vm1907, %v7715, %v7716
      %v7718 = vrot.slane %v7716, 4
      %v7719 = vrot.slane %v7160, 5
      %v7720 = vsel %vm1907, %v7718, %v7719
      %v7737 = vunpack.c.l.b16 %v5897
      %v7738 = vunpack.c.l.b16 %v5898
      %v7739 = vunpack.c.l.b16 %v5899
      %v7740 = vunpack.c.l.b16 %v5900
      %v7741 = vunpack.c.l.b16 %v5901
      %v7742 = vunpack.c.l.b16 %v5902
      %v7743 = vunpack.c.l.b16 %v5903
      %v7744 = vunpack.c.l.b16 %v5904
      %v7745 = vunpack.c.l.b16 %v5905
      %v7746 = vunpack.c.l.b16 %v5906
      %v7747 = vunpack.c.l.b16 %v5907
      %v7748 = vunpack.c.l.b16 %v5908
      %v7749 = vunpack.c.l.b16 %v5909
      %v7750 = vunpack.c.l.b16 %v5910
      %v7751 = vunpack.c.l.b16 %v5911
      %v7752 = vunpack.c.l.b16 %v5912
      %v7753 = vunpack.c.l.b16 %v5913
      %v7754 = vunpack.c.l.b16 %v5914
      %v7755 = vunpack.c.l.b16 %v5915
      %v7756 = vunpack.c.l.b16 %v5916
      %v7757 = vunpack.c.l.b16 %v5917
      %v7758 = vunpack.c.l.b16 %v5918
      %v7759 = vunpack.c.l.b16 %v5919
      %v7760 = vunpack.c.l.b16 %v5920
      %v7761 = vunpack.c.l.b16 %v5921
      %v7762 = vunpack.c.l.b16 %v5922
      %v7763 = vunpack.c.l.b16 %v5923
      %v7764 = vunpack.c.l.b16 %v5924
      %v7765 = vunpack.c.l.b16 %v5925
      %v7766 = vunpack.c.l.b16 %v5926
      %v7767 = vunpack.c.l.b16 %v5927
      %v7768 = vunpack.c.l.b16 %v5928
      %v7769 = vpack.c.b16 %v7738, %v7737
      %v7770 = vpack.c.b16 %v7740, %v7739
      %v7771 = vpack.c.b16 %v7742, %v7741
      %v7772 = vpack.c.b16 %v7744, %v7743
      %v7773 = vpack.c.b16 %v7746, %v7745
      %v7774 = vpack.c.b16 %v7748, %v7747
      %v7775 = vpack.c.b16 %v7750, %v7749
      %v7776 = vpack.c.b16 %v7752, %v7751
      %v7777 = vpack.c.b16 %v7754, %v7753
      %v7778 = vpack.c.b16 %v7756, %v7755
      %v7779 = vpack.c.b16 %v7758, %v7757
      %v7780 = vpack.c.b16 %v7760, %v7759
      %v7781 = vpack.c.b16 %v7762, %v7761
      %v7782 = vpack.c.b16 %v7764, %v7763
      %v7783 = vpack.c.b16 %v7766, %v7765
      %v7784 = vpack.c.b16 %v7768, %v7767
      %v7801 = vunpack.c.l.b16 %v5958
      %v7802 = vunpack.c.l.b16 %v5968
      %v7803 = vunpack.c.l.b16 %v5982
      %v7804 = vunpack.c.l.b16 %v5992
      %v7805 = vunpack.c.l.b16 %v6006
      %v7806 = vunpack.c.l.b16 %v6016
      %v7807 = vunpack.c.l.b16 %v6030
      %v7808 = vunpack.c.l.b16 %v6040
      %v7809 = vunpack.c.l.b16 %v6054
      %v7810 = vunpack.c.l.b16 %v6064
      %v7811 = vunpack.c.l.b16 %v6078
      %v7812 = vunpack.c.l.b16 %v6088
      %v7813 = vunpack.c.l.b16 %v6102
      %v7814 = vunpack.c.l.b16 %v6112
      %v7815 = vunpack.c.l.b16 %v6126
      %v7816 = vunpack.c.l.b16 %v6136
      %v7817 = vunpack.c.l.b16 %v6150
      %v7818 = vunpack.c.l.b16 %v6160
      %v7819 = vunpack.c.l.b16 %v6174
      %v7820 = vunpack.c.l.b16 %v6184
      %v7821 = vunpack.c.l.b16 %v6198
      %v7822 = vunpack.c.l.b16 %v6208
      %v7823 = vunpack.c.l.b16 %v6222
      %v7824 = vunpack.c.l.b16 %v6232
      %v7825 = vunpack.c.l.b16 %v6246
      %v7826 = vunpack.c.l.b16 %v6256
      %v7827 = vunpack.c.l.b16 %v6270
      %v7828 = vunpack.c.l.b16 %v6280
      %v7829 = vunpack.c.l.b16 %v6294
      %v7830 = vunpack.c.l.b16 %v6304
      %v7831 = vunpack.c.l.b16 %v6318
      %v7832 = vunpack.c.l.b16 %v6328
      %v7833 = vpack.c.b16 %v7802, %v7801
      %v7834 = vpack.c.b16 %v7804, %v7803
      %v7835 = vpack.c.b16 %v7806, %v7805
      %v7836 = vpack.c.b16 %v7808, %v7807
      %v7837 = vpack.c.b16 %v7810, %v7809
      %v7838 = vpack.c.b16 %v7812, %v7811
      %v7839 = vpack.c.b16 %v7814, %v7813
      %v7840 = vpack.c.b16 %v7816, %v7815
      %v7841 = vpack.c.b16 %v7818, %v7817
      %v7842 = vpack.c.b16 %v7820, %v7819
      %v7843 = vpack.c.b16 %v7822, %v7821
      %v7844 = vpack.c.b16 %v7824, %v7823
      %v7845 = vpack.c.b16 %v7826, %v7825
      %v7846 = vpack.c.b16 %v7828, %v7827
      %v7847 = vpack.c.b16 %v7830, %v7829
      %v7848 = vpack.c.b16 %v7832, %v7831
      %v7865 = vunpack.c.l.b16 %v6396
      %v7866 = vunpack.c.l.b16 %v6399
      %v7867 = vunpack.c.l.b16 %v6403
      %v7868 = vunpack.c.l.b16 %v6406
      %v7869 = vunpack.c.l.b16 %v6410
      %v7870 = vunpack.c.l.b16 %v6413
      %v7871 = vunpack.c.l.b16 %v6417
      %v7872 = vunpack.c.l.b16 %v6420
      %v7873 = vunpack.c.l.b16 %v6424
      %v7874 = vunpack.c.l.b16 %v6427
      %v7875 = vunpack.c.l.b16 %v6431
      %v7876 = vunpack.c.l.b16 %v6434
      %v7877 = vunpack.c.l.b16 %v6438
      %v7878 = vunpack.c.l.b16 %v6441
      %v7879 = vunpack.c.l.b16 %v6445
      %v7880 = vunpack.c.l.b16 %v6448
      %v7881 = vunpack.c.l.b16 %v6452
      %v7882 = vunpack.c.l.b16 %v6455
      %v7883 = vunpack.c.l.b16 %v6459
      %v7884 = vunpack.c.l.b16 %v6462
      %v7885 = vunpack.c.l.b16 %v6466
      %v7886 = vunpack.c.l.b16 %v6469
      %v7887 = vunpack.c.l.b16 %v6473
      %v7888 = vunpack.c.l.b16 %v6476
      %v7889 = vunpack.c.l.b16 %v6480
      %v7890 = vunpack.c.l.b16 %v6483
      %v7891 = vunpack.c.l.b16 %v6487
      %v7892 = vunpack.c.l.b16 %v6490
      %v7893 = vunpack.c.l.b16 %v6494
      %v7894 = vunpack.c.l.b16 %v6497
      %v7895 = vunpack.c.l.b16 %v6501
      %v7896 = vunpack.c.l.b16 %v6504
      %v7897 = vpack.c.b16 %v7866, %v7865
      %v7898 = vpack.c.b16 %v7868, %v7867
      %v7899 = vpack.c.b16 %v7870, %v7869
      %v7900 = vpack.c.b16 %v7872, %v7871
      %v7901 = vpack.c.b16 %v7874, %v7873
      %v7902 = vpack.c.b16 %v7876, %v7875
      %v7903 = vpack.c.b16 %v7878, %v7877
      %v7904 = vpack.c.b16 %v7880, %v7879
      %v7905 = vpack.c.b16 %v7882, %v7881
      %v7906 = vpack.c.b16 %v7884, %v7883
      %v7907 = vpack.c.b16 %v7886, %v7885
      %v7908 = vpack.c.b16 %v7888, %v7887
      %v7909 = vpack.c.b16 %v7890, %v7889
      %v7910 = vpack.c.b16 %v7892, %v7891
      %v7911 = vpack.c.b16 %v7894, %v7893
      %v7912 = vpack.c.b16 %v7896, %v7895
      %v7945 = vunpack.c.l.b16 %v6505
      %v7946 = vunpack.c.l.b16 %v6506
      %v7947 = vunpack.c.l.b16 %v6507
      %v7948 = vunpack.c.l.b16 %v6508
      %v7949 = vunpack.c.l.b16 %v6509
      %v7950 = vunpack.c.l.b16 %v6510
      %v7951 = vunpack.c.l.b16 %v6511
      %v7952 = vunpack.c.l.b16 %v6512
      %v7953 = vunpack.c.l.b16 %v6513
      %v7954 = vunpack.c.l.b16 %v6514
      %v7955 = vunpack.c.l.b16 %v6515
      %v7956 = vunpack.c.l.b16 %v6516
      %v7957 = vunpack.c.l.b16 %v6517
      %v7958 = vunpack.c.l.b16 %v6518
      %v7959 = vunpack.c.l.b16 %v6519
      %v7960 = vunpack.c.l.b16 %v6520
      %v7961 = vunpack.c.l.b16 %v6521
      %v7962 = vunpack.c.l.b16 %v6522
      %v7963 = vunpack.c.l.b16 %v6523
      %v7964 = vunpack.c.l.b16 %v6524
      %v7965 = vunpack.c.l.b16 %v6525
      %v7966 = vunpack.c.l.b16 %v6526
      %v7967 = vunpack.c.l.b16 %v6527
      %v7968 = vunpack.c.l.b16 %v6528
      %v7969 = vunpack.c.l.b16 %v6529
      %v7970 = vunpack.c.l.b16 %v6530
      %v7971 = vunpack.c.l.b16 %v6531
      %v7972 = vunpack.c.l.b16 %v6532
      %v7973 = vunpack.c.l.b16 %v6533
      %v7974 = vunpack.c.l.b16 %v6534
      %v7975 = vunpack.c.l.b16 %v6535
      %v7976 = vunpack.c.l.b16 %v6536
      %v7977 = vpack.c.b16 %v7946, %v7945
      %v7978 = vpack.c.b16 %v7948, %v7947
      %v7979 = vpack.c.b16 %v7950, %v7949
      %v7980 = vpack.c.b16 %v7952, %v7951
      %v7981 = vpack.c.b16 %v7954, %v7953
      %v7982 = vpack.c.b16 %v7956, %v7955
      %v7983 = vpack.c.b16 %v7958, %v7957
      %v7984 = vpack.c.b16 %v7960, %v7959
      %v7985 = vpack.c.b16 %v7962, %v7961
      %v7986 = vpack.c.b16 %v7964, %v7963
      %v7987 = vpack.c.b16 %v7966, %v7965
      %v7988 = vpack.c.b16 %v7968, %v7967
      %v7989 = vpack.c.b16 %v7970, %v7969
      %v7990 = vpack.c.b16 %v7972, %v7971
      %v7991 = vpack.c.b16 %v7974, %v7973
      %v7992 = vpack.c.b16 %v7976, %v7975
      %v8009 = vunpack.c.l.b16 %v6566
      %v8010 = vunpack.c.l.b16 %v6576
      %v8011 = vunpack.c.l.b16 %v6590
      %v8012 = vunpack.c.l.b16 %v6600
      %v8013 = vunpack.c.l.b16 %v6614
      %v8014 = vunpack.c.l.b16 %v6624
      %v8015 = vunpack.c.l.b16 %v6638
      %v8016 = vunpack.c.l.b16 %v6648
      %v8017 = vunpack.c.l.b16 %v6662
      %v8018 = vunpack.c.l.b16 %v6672
      %v8019 = vunpack.c.l.b16 %v6686
      %v8020 = vunpack.c.l.b16 %v6696
      %v8021 = vunpack.c.l.b16 %v6710
      %v8022 = vunpack.c.l.b16 %v6720
      %v8023 = vunpack.c.l.b16 %v6734
      %v8024 = vunpack.c.l.b16 %v6744
      %v8025 = vunpack.c.l.b16 %v6758
      %v8026 = vunpack.c.l.b16 %v6768
      %v8027 = vunpack.c.l.b16 %v6782
      %v8028 = vunpack.c.l.b16 %v6792
      %v8029 = vunpack.c.l.b16 %v6806
      %v8030 = vunpack.c.l.b16 %v6816
      %v8031 = vunpack.c.l.b16 %v6830
      %v8032 = vunpack.c.l.b16 %v6840
      %v8033 = vunpack.c.l.b16 %v6854
      %v8034 = vunpack.c.l.b16 %v6864
      %v8035 = vunpack.c.l.b16 %v6878
      %v8036 = vunpack.c.l.b16 %v6888
      %v8037 = vunpack.c.l.b16 %v6902
      %v8038 = vunpack.c.l.b16 %v6912
      %v8039 = vunpack.c.l.b16 %v6926
      %v8040 = vunpack.c.l.b16 %v6936
      %v8041 = vpack.c.b16 %v8010, %v8009
      %v8042 = vpack.c.b16 %v8012, %v8011
      %v8043 = vpack.c.b16 %v8014, %v8013
      %v8044 = vpack.c.b16 %v8016, %v8015
      %v8045 = vpack.c.b16 %v8018, %v8017
      %v8046 = vpack.c.b16 %v8020, %v8019
      %v8047 = vpack.c.b16 %v8022, %v8021
      %v8048 = vpack.c.b16 %v8024, %v8023
      %v8049 = vpack.c.b16 %v8026, %v8025
      %v8050 = vpack.c.b16 %v8028, %v8027
      %v8051 = vpack.c.b16 %v8030, %v8029
      %v8052 = vpack.c.b16 %v8032, %v8031
      %v8053 = vpack.c.b16 %v8034, %v8033
      %v8054 = vpack.c.b16 %v8036, %v8035
      %v8055 = vpack.c.b16 %v8038, %v8037
      %v8056 = vpack.c.b16 %v8040, %v8039
      %v8073 = vunpack.c.l.b16 %v7004
      %v8074 = vunpack.c.l.b16 %v7007
      %v8075 = vunpack.c.l.b16 %v7011
      %v8076 = vunpack.c.l.b16 %v7014
      %v8077 = vunpack.c.l.b16 %v7018
      %v8078 = vunpack.c.l.b16 %v7021
      %v8079 = vunpack.c.l.b16 %v7025
      %v8080 = vunpack.c.l.b16 %v7028
      %v8081 = vunpack.c.l.b16 %v7032
      %v8082 = vunpack.c.l.b16 %v7035
      %v8083 = vunpack.c.l.b16 %v7039
      %v8084 = vunpack.c.l.b16 %v7042
      %v8085 = vunpack.c.l.b16 %v7046
      %v8086 = vunpack.c.l.b16 %v7049
      %v8087 = vunpack.c.l.b16 %v7053
      %v8088 = vunpack.c.l.b16 %v7056
      %v8089 = vunpack.c.l.b16 %v7060
      %v8090 = vunpack.c.l.b16 %v7063
      %v8091 = vunpack.c.l.b16 %v7067
      %v8092 = vunpack.c.l.b16 %v7070
      %v8093 = vunpack.c.l.b16 %v7074
      %v8094 = vunpack.c.l.b16 %v7077
      %v8095 = vunpack.c.l.b16 %v7081
      %v8096 = vunpack.c.l.b16 %v7084
      %v8097 = vunpack.c.l.b16 %v7088
      %v8098 = vunpack.c.l.b16 %v7091
      %v8099 = vunpack.c.l.b16 %v7095
      %v8100 = vunpack.c.l.b16 %v7098
      %v8101 = vunpack.c.l.b16 %v7102
      %v8102 = vunpack.c.l.b16 %v7105
      %v8103 = vunpack.c.l.b16 %v7109
      %v8104 = vunpack.c.l.b16 %v7112
      %v8105 = vpack.c.b16 %v8074, %v8073
      %v8106 = vpack.c.b16 %v8076, %v8075
      %v8107 = vpack.c.b16 %v8078, %v8077
      %v8108 = vpack.c.b16 %v8080, %v8079
      %v8109 = vpack.c.b16 %v8082, %v8081
      %v8110 = vpack.c.b16 %v8084, %v8083
      %v8111 = vpack.c.b16 %v8086, %v8085
      %v8112 = vpack.c.b16 %v8088, %v8087
      %v8113 = vpack.c.b16 %v8090, %v8089
      %v8114 = vpack.c.b16 %v8092, %v8091
      %v8115 = vpack.c.b16 %v8094, %v8093
      %v8116 = vpack.c.b16 %v8096, %v8095
      %v8117 = vpack.c.b16 %v8098, %v8097
      %v8118 = vpack.c.b16 %v8100, %v8099
      %v8119 = vpack.c.b16 %v8102, %v8101
      %v8120 = vpack.c.b16 %v8104, %v8103
      %v8153 = vunpack.c.l.b16 %v7113
      %v8154 = vunpack.c.l.b16 %v7114
      %v8155 = vunpack.c.l.b16 %v7115
      %v8156 = vunpack.c.l.b16 %v7116
      %v8157 = vunpack.c.l.b16 %v7117
      %v8158 = vunpack.c.l.b16 %v7118
      %v8159 = vunpack.c.l.b16 %v7119
      %v8160 = vunpack.c.l.b16 %v7120
      %v8161 = vunpack.c.l.b16 %v7121
      %v8162 = vunpack.c.l.b16 %v7122
      %v8163 = vunpack.c.l.b16 %v7123
      %v8164 = vunpack.c.l.b16 %v7124
      %v8165 = vunpack.c.l.b16 %v7125
      %v8166 = vunpack.c.l.b16 %v7126
      %v8167 = vunpack.c.l.b16 %v7127
      %v8168 = vunpack.c.l.b16 %v7128
      %v8169 = vunpack.c.l.b16 %v7129
      %v8170 = vunpack.c.l.b16 %v7130
      %v8171 = vunpack.c.l.b16 %v7131
      %v8172 = vunpack.c.l.b16 %v7132
      %v8173 = vunpack.c.l.b16 %v7133
      %v8174 = vunpack.c.l.b16 %v7134
      %v8175 = vunpack.c.l.b16 %v7135
      %v8176 = vunpack.c.l.b16 %v7136
      %v8177 = vunpack.c.l.b16 %v7137
      %v8178 = vunpack.c.l.b16 %v7138
      %v8179 = vunpack.c.l.b16 %v7139
      %v8180 = vunpack.c.l.b16 %v7140
      %v8181 = vunpack.c.l.b16 %v7141
      %v8182 = vunpack.c.l.b16 %v7142
      %v8183 = vunpack.c.l.b16 %v7143
      %v8184 = vunpack.c.l.b16 %v7144
      %v8185 = vpack.c.b16 %v8154, %v8153
      %v8186 = vpack.c.b16 %v8156, %v8155
      %v8187 = vpack.c.b16 %v8158, %v8157
      %v8188 = vpack.c.b16 %v8160, %v8159
      %v8189 = vpack.c.b16 %v8162, %v8161
      %v8190 = vpack.c.b16 %v8164, %v8163
      %v8191 = vpack.c.b16 %v8166, %v8165
      %v8192 = vpack.c.b16 %v8168, %v8167
      %v8193 = vpack.c.b16 %v8170, %v8169
      %v8194 = vpack.c.b16 %v8172, %v8171
      %v8195 = vpack.c.b16 %v8174, %v8173
      %v8196 = vpack.c.b16 %v8176, %v8175
      %v8197 = vpack.c.b16 %v8178, %v8177
      %v8198 = vpack.c.b16 %v8180, %v8179
      %v8199 = vpack.c.b16 %v8182, %v8181
      %v8200 = vpack.c.b16 %v8184, %v8183
      %v8217 = vunpack.c.l.b16 %v7174
      %v8218 = vunpack.c.l.b16 %v7184
      %v8219 = vunpack.c.l.b16 %v7198
      %v8220 = vunpack.c.l.b16 %v7208
      %v8221 = vunpack.c.l.b16 %v7222
      %v8222 = vunpack.c.l.b16 %v7232
      %v8223 = vunpack.c.l.b16 %v7246
      %v8224 = vunpack.c.l.b16 %v7256
      %v8225 = vunpack.c.l.b16 %v7270
      %v8226 = vunpack.c.l.b16 %v7280
      %v8227 = vunpack.c.l.b16 %v7294
      %v8228 = vunpack.c.l.b16 %v7304
      %v8229 = vunpack.c.l.b16 %v7318
      %v8230 = vunpack.c.l.b16 %v7328
      %v8231 = vunpack.c.l.b16 %v7342
      %v8232 = vunpack.c.l.b16 %v7352
      %v8233 = vunpack.c.l.b16 %v7366
      %v8234 = vunpack.c.l.b16 %v7376
      %v8235 = vunpack.c.l.b16 %v7390
      %v8236 = vunpack.c.l.b16 %v7400
      %v8237 = vunpack.c.l.b16 %v7414
      %v8238 = vunpack.c.l.b16 %v7424
      %v8239 = vunpack.c.l.b16 %v7438
      %v8240 = vunpack.c.l.b16 %v7448
      %v8241 = vunpack.c.l.b16 %v7462
      %v8242 = vunpack.c.l.b16 %v7472
      %v8243 = vunpack.c.l.b16 %v7486
      %v8244 = vunpack.c.l.b16 %v7496
      %v8245 = vunpack.c.l.b16 %v7510
      %v8246 = vunpack.c.l.b16 %v7520
      %v8247 = vunpack.c.l.b16 %v7534
      %v8248 = vunpack.c.l.b16 %v7544
      %v8249 = vpack.c.b16 %v8218, %v8217
      %v8250 = vpack.c.b16 %v8220, %v8219
      %v8251 = vpack.c.b16 %v8222, %v8221
      %v8252 = vpack.c.b16 %v8224, %v8223
      %v8253 = vpack.c.b16 %v8226, %v8225
      %v8254 = vpack.c.b16 %v8228, %v8227
      %v8255 = vpack.c.b16 %v8230, %v8229
      %v8256 = vpack.c.b16 %v8232, %v8231
      %v8257 = vpack.c.b16 %v8234, %v8233
      %v8258 = vpack.c.b16 %v8236, %v8235
      %v8259 = vpack.c.b16 %v8238, %v8237
      %v8260 = vpack.c.b16 %v8240, %v8239
      %v8261 = vpack.c.b16 %v8242, %v8241
      %v8262 = vpack.c.b16 %v8244, %v8243
      %v8263 = vpack.c.b16 %v8246, %v8245
      %v8264 = vpack.c.b16 %v8248, %v8247
      %v8281 = vunpack.c.l.b16 %v7612
      %v8282 = vunpack.c.l.b16 %v7615
      %v8283 = vunpack.c.l.b16 %v7619
      %v8284 = vunpack.c.l.b16 %v7622
      %v8285 = vunpack.c.l.b16 %v7626
      %v8286 = vunpack.c.l.b16 %v7629
      %v8287 = vunpack.c.l.b16 %v7633
      %v8288 = vunpack.c.l.b16 %v7636
      %v8289 = vunpack.c.l.b16 %v7640
      %v8290 = vunpack.c.l.b16 %v7643
      %v8291 = vunpack.c.l.b16 %v7647
      %v8292 = vunpack.c.l.b16 %v7650
      %v8293 = vunpack.c.l.b16 %v7654
      %v8294 = vunpack.c.l.b16 %v7657
      %v8295 = vunpack.c.l.b16 %v7661
      %v8296 = vunpack.c.l.b16 %v7664
      %v8297 = vunpack.c.l.b16 %v7668
      %v8298 = vunpack.c.l.b16 %v7671
      %v8299 = vunpack.c.l.b16 %v7675
      %v8300 = vunpack.c.l.b16 %v7678
      %v8301 = vunpack.c.l.b16 %v7682
      %v8302 = vunpack.c.l.b16 %v7685
      %v8303 = vunpack.c.l.b16 %v7689
      %v8304 = vunpack.c.l.b16 %v7692
      %v8305 = vunpack.c.l.b16 %v7696
      %v8306 = vunpack.c.l.b16 %v7699
      %v8307 = vunpack.c.l.b16 %v7703
      %v8308 = vunpack.c.l.b16 %v7706
      %v8309 = vunpack.c.l.b16 %v7710
      %v8310 = vunpack.c.l.b16 %v7713
      %v8311 = vunpack.c.l.b16 %v7717
      %v8312 = vunpack.c.l.b16 %v7720
      %v8313 = vpack.c.b16 %v8282, %v8281
      %v8314 = vpack.c.b16 %v8284, %v8283
      %v8315 = vpack.c.b16 %v8286, %v8285
      %v8316 = vpack.c.b16 %v8288, %v8287
      %v8317 = vpack.c.b16 %v8290, %v8289
      %v8318 = vpack.c.b16 %v8292, %v8291
      %v8319 = vpack.c.b16 %v8294, %v8293
      %v8320 = vpack.c.b16 %v8296, %v8295
      %v8321 = vpack.c.b16 %v8298, %v8297
      %v8322 = vpack.c.b16 %v8300, %v8299
      %v8323 = vpack.c.b16 %v8302, %v8301
      %v8324 = vpack.c.b16 %v8304, %v8303
      %v8325 = vpack.c.b16 %v8306, %v8305
      %v8326 = vpack.c.b16 %v8308, %v8307
      %v8327 = vpack.c.b16 %v8310, %v8309
      %v8328 = vpack.c.b16 %v8312, %v8311
      %v8345 = vld [vmem:[%s3] sm:$0xf]
      %v8346 = vld [vmem:[%s3 + $0x4] sm:$0xf]
      %v8347 = vld [vmem:[%s3 + $0x8] sm:$0xf]
      %v8348 = vld [vmem:[%s3 + $0xc] sm:$0xf]
      %v8349 = vld [vmem:[%s3 + $0x10] sm:$0xf]
      %v8350 = vld [vmem:[%s3 + $0x14] sm:$0xf]
      %v8351 = vld [vmem:[%s3 + $0x18] sm:$0xf]
      %v8352 = vld [vmem:[%s3 + $0x1c] sm:$0xf]
      %v8353 = vld [vmem:[%s3 + $0x20] sm:$0xf]
      %v8354 = vld [vmem:[%s3 + $0x24] sm:$0xf]
      %v8355 = vld [vmem:[%s3 + $0x28] sm:$0xf]
      %v8356 = vld [vmem:[%s3 + $0x2c] sm:$0xf]
      %v8357 = vld [vmem:[%s3 + $0x30] sm:$0xf]
      %v8358 = vld [vmem:[%s3 + $0x34] sm:$0xf]
      %v8359 = vld [vmem:[%s3 + $0x38] sm:$0xf]
      %v8360 = vld [vmem:[%s3 + $0x3c] sm:$0xf]
      %v8361 = vld [vmem:[%s3 + $0x40] sm:$0xf]
      %v8362 = vld [vmem:[%s3 + $0x44] sm:$0xf]
      %v8363 = vld [vmem:[%s3 + $0x48] sm:$0xf]
      %v8364 = vld [vmem:[%s3 + $0x4c] sm:$0xf]
      %v8365 = vld [vmem:[%s3 + $0x50] sm:$0xf]
      %v8366 = vld [vmem:[%s3 + $0x54] sm:$0xf]
      %v8367 = vld [vmem:[%s3 + $0x58] sm:$0xf]
      %v8368 = vld [vmem:[%s3 + $0x5c] sm:$0xf]
      %v8369 = vld [vmem:[%s3 + $0x60] sm:$0xf]
      %v8370 = vld [vmem:[%s3 + $0x64] sm:$0xf]
      %v8371 = vld [vmem:[%s3 + $0x68] sm:$0xf]
      %v8372 = vld [vmem:[%s3 + $0x6c] sm:$0xf]
      %v8373 = vld [vmem:[%s3 + $0x70] sm:$0xf]
      %v8374 = vld [vmem:[%s3 + $0x74] sm:$0xf]
      %v8375 = vld [vmem:[%s3 + $0x78] sm:$0xf]
      %v8376 = vld [vmem:[%s3 + $0x7c] sm:$0xf]
      %v8377 = vld [vmem:[%s3 + $0x80] sm:$0xf]
      %v8378 = vld [vmem:[%s3 + $0x84] sm:$0xf]
      %v8379 = vld [vmem:[%s3 + $0x88] sm:$0xf]
      %v8380 = vld [vmem:[%s3 + $0x8c] sm:$0xf]
      %v8381 = vld [vmem:[%s3 + $0x90] sm:$0xf]
      %v8382 = vld [vmem:[%s3 + $0x94] sm:$0xf]
      %v8383 = vld [vmem:[%s3 + $0x98] sm:$0xf]
      %v8384 = vld [vmem:[%s3 + $0x9c] sm:$0xf]
      %v8385 = vld [vmem:[%s3 + $0xa0] sm:$0xf]
      %v8386 = vld [vmem:[%s3 + $0xa4] sm:$0xf]
      %v8387 = vld [vmem:[%s3 + $0xa8] sm:$0xf]
      %v8388 = vld [vmem:[%s3 + $0xac] sm:$0xf]
      %v8389 = vld [vmem:[%s3 + $0xb0] sm:$0xf]
      %v8390 = vld [vmem:[%s3 + $0xb4] sm:$0xf]
      %v8391 = vld [vmem:[%s3 + $0xb8] sm:$0xf]
      %v8392 = vld [vmem:[%s3 + $0xbc] sm:$0xf]
      %v8393 = vld [vmem:[%s3 + $0xc0] sm:$0xf]
      %v8394 = vld [vmem:[%s3 + $0xc4] sm:$0xf]
      %v8395 = vld [vmem:[%s3 + $0xc8] sm:$0xf]
      %v8396 = vld [vmem:[%s3 + $0xcc] sm:$0xf]
      %v8397 = vld [vmem:[%s3 + $0xd0] sm:$0xf]
      %v8398 = vld [vmem:[%s3 + $0xd4] sm:$0xf]
      %v8399 = vld [vmem:[%s3 + $0xd8] sm:$0xf]
      %v8400 = vld [vmem:[%s3 + $0xdc] sm:$0xf]
      %v8401 = vld [vmem:[%s3 + $0xe0] sm:$0xf]
      %v8402 = vld [vmem:[%s3 + $0xe4] sm:$0xf]
      %v8403 = vld [vmem:[%s3 + $0xe8] sm:$0xf]
      %v8404 = vld [vmem:[%s3 + $0xec] sm:$0xf]
      %v8405 = vld [vmem:[%s3 + $0xf0] sm:$0xf]
      %v8406 = vld [vmem:[%s3 + $0xf4] sm:$0xf]
      %v8407 = vld [vmem:[%s3 + $0xf8] sm:$0xf]
      %v8408 = vld [vmem:[%s3 + $0xfc] sm:$0xf]
      %v8409 = vld [vmem:[%s3 + $0x100] sm:$0xf]
      %v8410 = vld [vmem:[%s3 + $0x104] sm:$0xf]
      %v8411 = vld [vmem:[%s3 + $0x108] sm:$0xf]
      %v8412 = vld [vmem:[%s3 + $0x10c] sm:$0xf]
      %v8413 = vld [vmem:[%s3 + $0x110] sm:$0xf]
      %v8414 = vld [vmem:[%s3 + $0x114] sm:$0xf]
      %v8415 = vld [vmem:[%s3 + $0x118] sm:$0xf]
      %v8416 = vld [vmem:[%s3 + $0x11c] sm:$0xf]
      %v8417 = vld [vmem:[%s3 + $0x120] sm:$0xf]
      %v8418 = vld [vmem:[%s3 + $0x124] sm:$0xf]
      %v8419 = vld [vmem:[%s3 + $0x128] sm:$0xf]
      %v8420 = vld [vmem:[%s3 + $0x12c] sm:$0xf]
      %v8421 = vld [vmem:[%s3 + $0x130] sm:$0xf]
      %v8422 = vld [vmem:[%s3 + $0x134] sm:$0xf]
      %v8423 = vld [vmem:[%s3 + $0x138] sm:$0xf]
      %v8424 = vld [vmem:[%s3 + $0x13c] sm:$0xf]
      %v8425 = vld [vmem:[%s3 + $0x140] sm:$0xf]
      %v8426 = vld [vmem:[%s3 + $0x144] sm:$0xf]
      %v8427 = vld [vmem:[%s3 + $0x148] sm:$0xf]
      %v8428 = vld [vmem:[%s3 + $0x14c] sm:$0xf]
      %v8429 = vld [vmem:[%s3 + $0x150] sm:$0xf]
      %v8430 = vld [vmem:[%s3 + $0x154] sm:$0xf]
      %v8431 = vld [vmem:[%s3 + $0x158] sm:$0xf]
      %v8432 = vld [vmem:[%s3 + $0x15c] sm:$0xf]
      %v8433 = vld [vmem:[%s3 + $0x160] sm:$0xf]
      %v8434 = vld [vmem:[%s3 + $0x164] sm:$0xf]
      %v8435 = vld [vmem:[%s3 + $0x168] sm:$0xf]
      %v8436 = vld [vmem:[%s3 + $0x16c] sm:$0xf]
      %v8437 = vld [vmem:[%s3 + $0x170] sm:$0xf]
      %v8438 = vld [vmem:[%s3 + $0x174] sm:$0xf]
      %v8439 = vld [vmem:[%s3 + $0x178] sm:$0xf]
      %v8440 = vld [vmem:[%s3 + $0x17c] sm:$0xf]
      %v8441 = vld [vmem:[%s3 + $0x180] sm:$0xf]
      %v8442 = vld [vmem:[%s3 + $0x184] sm:$0xf]
      %v8443 = vld [vmem:[%s3 + $0x188] sm:$0xf]
      %v8444 = vld [vmem:[%s3 + $0x18c] sm:$0xf]
      %v8445 = vld [vmem:[%s3 + $0x190] sm:$0xf]
      %v8446 = vld [vmem:[%s3 + $0x194] sm:$0xf]
      %v8447 = vld [vmem:[%s3 + $0x198] sm:$0xf]
      %v8448 = vld [vmem:[%s3 + $0x19c] sm:$0xf]
      %v8449 = vld [vmem:[%s3 + $0x1a0] sm:$0xf]
      %v8450 = vld [vmem:[%s3 + $0x1a4] sm:$0xf]
      %v8451 = vld [vmem:[%s3 + $0x1a8] sm:$0xf]
      %v8452 = vld [vmem:[%s3 + $0x1ac] sm:$0xf]
      %v8453 = vld [vmem:[%s3 + $0x1b0] sm:$0xf]
      %v8454 = vld [vmem:[%s3 + $0x1b4] sm:$0xf]
      %v8455 = vld [vmem:[%s3 + $0x1b8] sm:$0xf]
      %v8456 = vld [vmem:[%s3 + $0x1bc] sm:$0xf]
      %v8457 = vld [vmem:[%s3 + $0x1c0] sm:$0xf]
      %v8458 = vld [vmem:[%s3 + $0x1c4] sm:$0xf]
      %v8459 = vld [vmem:[%s3 + $0x1c8] sm:$0xf]
      %v8460 = vld [vmem:[%s3 + $0x1cc] sm:$0xf]
      %v8461 = vld [vmem:[%s3 + $0x1d0] sm:$0xf]
      %v8462 = vld [vmem:[%s3 + $0x1d4] sm:$0xf]
      %v8463 = vld [vmem:[%s3 + $0x1d8] sm:$0xf]
      %v8464 = vld [vmem:[%s3 + $0x1dc] sm:$0xf]
      %v8465 = vld [vmem:[%s3 + $0x1e0] sm:$0xf]
      %v8466 = vld [vmem:[%s3 + $0x1e4] sm:$0xf]
      %v8467 = vld [vmem:[%s3 + $0x1e8] sm:$0xf]
      %v8468 = vld [vmem:[%s3 + $0x1ec] sm:$0xf]
      %v8469 = vld [vmem:[%s3 + $0x1f0] sm:$0xf]
      %v8470 = vld [vmem:[%s3 + $0x1f4] sm:$0xf]
      %v8471 = vld [vmem:[%s3 + $0x1f8] sm:$0xf]
      %v8472 = vld [vmem:[%s3 + $0x1fc] sm:$0xf]
      %v8473 = vld [vmem:[%s3 + $0x200] sm:$0xf]
      %v8474 = vld [vmem:[%s3 + $0x204] sm:$0xf]
      %v8475 = vld [vmem:[%s3 + $0x208] sm:$0xf]
      %v8476 = vld [vmem:[%s3 + $0x20c] sm:$0xf]
      %v8477 = vld [vmem:[%s3 + $0x210] sm:$0xf]
      %v8478 = vld [vmem:[%s3 + $0x214] sm:$0xf]
      %v8479 = vld [vmem:[%s3 + $0x218] sm:$0xf]
      %v8480 = vld [vmem:[%s3 + $0x21c] sm:$0xf]
      %v8481 = vld [vmem:[%s3 + $0x220] sm:$0xf]
      %v8482 = vld [vmem:[%s3 + $0x224] sm:$0xf]
      %v8483 = vld [vmem:[%s3 + $0x228] sm:$0xf]
      %v8484 = vld [vmem:[%s3 + $0x22c] sm:$0xf]
      %v8485 = vld [vmem:[%s3 + $0x230] sm:$0xf]
      %v8486 = vld [vmem:[%s3 + $0x234] sm:$0xf]
      %v8487 = vld [vmem:[%s3 + $0x238] sm:$0xf]
      %v8488 = vld [vmem:[%s3 + $0x23c] sm:$0xf]
      %v8489 = vld [vmem:[%s6] sm:$0x1]
      %v8491 = vlaneseq
      %v8492 = vshrl.u32 %v8491, 7
      %v8493 = vsub.s32 0, %v8492
      %v8494 = vrot.slane %v8489, %v8493
      %v8640 = vunpack.c.l.b16 %v8345
      %v8641 = vunpack.c.l.b16 %v8346
      %v8642 = vunpack.c.l.b16 %v8347
      %v8643 = vunpack.c.l.b16 %v8348
      %v8644 = vunpack.c.l.b16 %v8349
      %v8645 = vunpack.c.l.b16 %v8350
      %v8646 = vunpack.c.l.b16 %v8351
      %v8647 = vunpack.c.l.b16 %v8352
      %v8648 = vunpack.c.l.b16 %v8353
      %v8649 = vunpack.c.l.b16 %v8354
      %v8650 = vunpack.c.l.b16 %v8355
      %v8651 = vunpack.c.l.b16 %v8356
      %v8652 = vunpack.c.l.b16 %v8357
      %v8653 = vunpack.c.l.b16 %v8358
      %v8654 = vunpack.c.l.b16 %v8359
      %v8655 = vunpack.c.l.b16 %v8360
      %v8656 = vunpack.c.l.b16 %v8361
      %v8657 = vunpack.c.l.b16 %v8362
      %v8658 = vunpack.c.l.b16 %v8363
      %v8659 = vunpack.c.l.b16 %v8364
      %v8660 = vunpack.c.l.b16 %v8365
      %v8661 = vunpack.c.l.b16 %v8366
      %v8662 = vunpack.c.l.b16 %v8367
      %v8663 = vunpack.c.l.b16 %v8368
      %v8664 = vunpack.c.l.b16 %v8369
      %v8665 = vunpack.c.l.b16 %v8370
      %v8666 = vunpack.c.l.b16 %v8371
      %v8667 = vunpack.c.l.b16 %v8372
      %v8668 = vunpack.c.l.b16 %v8373
      %v8669 = vunpack.c.l.b16 %v8374
      %v8670 = vunpack.c.l.b16 %v8375
      %v8671 = vunpack.c.l.b16 %v8376
      %v8672 = vunpack.c.l.b16 %v8377
      %v8673 = vunpack.c.l.b16 %v8378
      %v8674 = vunpack.c.l.b16 %v8379
      %v8675 = vunpack.c.l.b16 %v8380
      %v8676 = vunpack.c.l.b16 %v8381
      %v8677 = vunpack.c.l.b16 %v8382
      %v8678 = vunpack.c.l.b16 %v8383
      %v8679 = vunpack.c.l.b16 %v8384
      %v8680 = vunpack.c.l.b16 %v8385
      %v8681 = vunpack.c.l.b16 %v8386
      %v8682 = vunpack.c.l.b16 %v8387
      %v8683 = vunpack.c.l.b16 %v8388
      %v8684 = vunpack.c.l.b16 %v8389
      %v8685 = vunpack.c.l.b16 %v8390
      %v8686 = vunpack.c.l.b16 %v8391
      %v8687 = vunpack.c.l.b16 %v8392
      %v8688 = vunpack.c.l.b16 %v8393
      %v8689 = vunpack.c.l.b16 %v8394
      %v8690 = vunpack.c.l.b16 %v8395
      %v8691 = vunpack.c.l.b16 %v8396
      %v8692 = vunpack.c.l.b16 %v8397
      %v8693 = vunpack.c.l.b16 %v8398
      %v8694 = vunpack.c.l.b16 %v8399
      %v8695 = vunpack.c.l.b16 %v8400
      %v8696 = vunpack.c.l.b16 %v8401
      %v8697 = vunpack.c.l.b16 %v8402
      %v8698 = vunpack.c.l.b16 %v8403
      %v8699 = vunpack.c.l.b16 %v8404
      %v8700 = vunpack.c.l.b16 %v8405
      %v8701 = vunpack.c.l.b16 %v8406
      %v8702 = vunpack.c.l.b16 %v8407
      %v8703 = vunpack.c.l.b16 %v8408
      %v8704 = vunpack.c.l.b16 %v8409
      %v8705 = vunpack.c.l.b16 %v8410
      %v8706 = vunpack.c.l.b16 %v8411
      %v8707 = vunpack.c.l.b16 %v8412
      %v8708 = vunpack.c.l.b16 %v8413
      %v8709 = vunpack.c.l.b16 %v8414
      %v8710 = vunpack.c.l.b16 %v8415
      %v8711 = vunpack.c.l.b16 %v8416
      %v8712 = vunpack.c.l.b16 %v8417
      %v8713 = vunpack.c.l.b16 %v8418
      %v8714 = vunpack.c.l.b16 %v8419
      %v8715 = vunpack.c.l.b16 %v8420
      %v8716 = vunpack.c.l.b16 %v8421
      %v8717 = vunpack.c.l.b16 %v8422
      %v8718 = vunpack.c.l.b16 %v8423
      %v8719 = vunpack.c.l.b16 %v8424
      %v8720 = vunpack.c.l.b16 %v8425
      %v8721 = vunpack.c.l.b16 %v8426
      %v8722 = vunpack.c.l.b16 %v8427
      %v8723 = vunpack.c.l.b16 %v8428
      %v8724 = vunpack.c.l.b16 %v8429
      %v8725 = vunpack.c.l.b16 %v8430
      %v8726 = vunpack.c.l.b16 %v8431
      %v8727 = vunpack.c.l.b16 %v8432
      %v8728 = vunpack.c.l.b16 %v8433
      %v8729 = vunpack.c.l.b16 %v8434
      %v8730 = vunpack.c.l.b16 %v8435
      %v8731 = vunpack.c.l.b16 %v8436
      %v8732 = vunpack.c.l.b16 %v8437
      %v8733 = vunpack.c.l.b16 %v8438
      %v8734 = vunpack.c.l.b16 %v8439
      %v8735 = vunpack.c.l.b16 %v8440
      %v8736 = vunpack.c.l.b16 %v8441
      %v8737 = vunpack.c.l.b16 %v8442
      %v8738 = vunpack.c.l.b16 %v8443
      %v8739 = vunpack.c.l.b16 %v8444
      %v8740 = vunpack.c.l.b16 %v8445
      %v8741 = vunpack.c.l.b16 %v8446
      %v8742 = vunpack.c.l.b16 %v8447
      %v8743 = vunpack.c.l.b16 %v8448
      %v8744 = vunpack.c.l.b16 %v8449
      %v8745 = vunpack.c.l.b16 %v8450
      %v8746 = vunpack.c.l.b16 %v8451
      %v8747 = vunpack.c.l.b16 %v8452
      %v8748 = vunpack.c.l.b16 %v8453
      %v8749 = vunpack.c.l.b16 %v8454
      %v8750 = vunpack.c.l.b16 %v8455
      %v8751 = vunpack.c.l.b16 %v8456
      %v8752 = vunpack.c.l.b16 %v8457
      %v8753 = vunpack.c.l.b16 %v8458
      %v8754 = vunpack.c.l.b16 %v8459
      %v8755 = vunpack.c.l.b16 %v8460
      %v8756 = vunpack.c.l.b16 %v8461
      %v8757 = vunpack.c.l.b16 %v8462
      %v8758 = vunpack.c.l.b16 %v8463
      %v8759 = vunpack.c.l.b16 %v8464
      %v8760 = vunpack.c.l.b16 %v8465
      %v8761 = vunpack.c.l.b16 %v8466
      %v8762 = vunpack.c.l.b16 %v8467
      %v8763 = vunpack.c.l.b16 %v8468
      %v8764 = vunpack.c.l.b16 %v8469
      %v8765 = vunpack.c.l.b16 %v8470
      %v8766 = vunpack.c.l.b16 %v8471
      %v8767 = vunpack.c.l.b16 %v8472
      %v8768 = vunpack.c.l.b16 %v8473
      %v8769 = vunpack.c.l.b16 %v8474
      %v8770 = vunpack.c.l.b16 %v8475
      %v8771 = vunpack.c.l.b16 %v8476
      %v8772 = vunpack.c.l.b16 %v8477
      %v8773 = vunpack.c.l.b16 %v8478
      %v8774 = vunpack.c.l.b16 %v8479
      %v8775 = vunpack.c.l.b16 %v8480
      %v8776 = vunpack.c.l.b16 %v8481
      %v8777 = vunpack.c.l.b16 %v8482
      %v8778 = vunpack.c.l.b16 %v8483
      %v8779 = vunpack.c.l.b16 %v8484
      %v8780 = vunpack.c.l.b16 %v8485
      %v8781 = vunpack.c.l.b16 %v8486
      %v8782 = vunpack.c.l.b16 %v8487
      %v8783 = vunpack.c.l.b16 %v8488
      %v8784 = vpack.c.b16 %v8641, %v8640
      %v8785 = vpack.c.b16 %v8643, %v8642
      %v8786 = vpack.c.b16 %v8645, %v8644
      %v8787 = vpack.c.b16 %v8647, %v8646
      %v8788 = vpack.c.b16 %v8649, %v8648
      %v8789 = vpack.c.b16 %v8651, %v8650
      %v8790 = vpack.c.b16 %v8653, %v8652
      %v8791 = vpack.c.b16 %v8655, %v8654
      %v8792 = vpack.c.b16 %v8657, %v8656
      %v8793 = vpack.c.b16 %v8659, %v8658
      %v8794 = vpack.c.b16 %v8661, %v8660
      %v8795 = vpack.c.b16 %v8663, %v8662
      %v8796 = vpack.c.b16 %v8665, %v8664
      %v8797 = vpack.c.b16 %v8667, %v8666
      %v8798 = vpack.c.b16 %v8669, %v8668
      %v8799 = vpack.c.b16 %v8671, %v8670
      %v8800 = vpack.c.b16 %v8673, %v8672
      %v8801 = vpack.c.b16 %v8675, %v8674
      %v8802 = vpack.c.b16 %v8677, %v8676
      %v8803 = vpack.c.b16 %v8679, %v8678
      %v8804 = vpack.c.b16 %v8681, %v8680
      %v8805 = vpack.c.b16 %v8683, %v8682
      %v8806 = vpack.c.b16 %v8685, %v8684
      %v8807 = vpack.c.b16 %v8687, %v8686
      %v8808 = vpack.c.b16 %v8689, %v8688
      %v8809 = vpack.c.b16 %v8691, %v8690
      %v8810 = vpack.c.b16 %v8693, %v8692
      %v8811 = vpack.c.b16 %v8695, %v8694
      %v8812 = vpack.c.b16 %v8697, %v8696
      %v8813 = vpack.c.b16 %v8699, %v8698
      %v8814 = vpack.c.b16 %v8701, %v8700
      %v8815 = vpack.c.b16 %v8703, %v8702
      %v8816 = vpack.c.b16 %v8705, %v8704
      %v8817 = vpack.c.b16 %v8707, %v8706
      %v8818 = vpack.c.b16 %v8709, %v8708
      %v8819 = vpack.c.b16 %v8711, %v8710
      %v8820 = vpack.c.b16 %v8713, %v8712
      %v8821 = vpack.c.b16 %v8715, %v8714
      %v8822 = vpack.c.b16 %v8717, %v8716
      %v8823 = vpack.c.b16 %v8719, %v8718
      %v8824 = vpack.c.b16 %v8721, %v8720
      %v8825 = vpack.c.b16 %v8723, %v8722
      %v8826 = vpack.c.b16 %v8725, %v8724
      %v8827 = vpack.c.b16 %v8727, %v8726
      %v8828 = vpack.c.b16 %v8729, %v8728
      %v8829 = vpack.c.b16 %v8731, %v8730
      %v8830 = vpack.c.b16 %v8733, %v8732
      %v8831 = vpack.c.b16 %v8735, %v8734
      %v8832 = vpack.c.b16 %v8737, %v8736
      %v8833 = vpack.c.b16 %v8739, %v8738
      %v8834 = vpack.c.b16 %v8741, %v8740
      %v8835 = vpack.c.b16 %v8743, %v8742
      %v8836 = vpack.c.b16 %v8745, %v8744
      %v8837 = vpack.c.b16 %v8747, %v8746
      %v8838 = vpack.c.b16 %v8749, %v8748
      %v8839 = vpack.c.b16 %v8751, %v8750
      %v8840 = vpack.c.b16 %v8753, %v8752
      %v8841 = vpack.c.b16 %v8755, %v8754
      %v8842 = vpack.c.b16 %v8757, %v8756
      %v8843 = vpack.c.b16 %v8759, %v8758
      %v8844 = vpack.c.b16 %v8761, %v8760
      %v8845 = vpack.c.b16 %v8763, %v8762
      %v8846 = vpack.c.b16 %v8765, %v8764
      %v8847 = vpack.c.b16 %v8767, %v8766
      %v8848 = vpack.c.b16 %v8769, %v8768
      %v8849 = vpack.c.b16 %v8771, %v8770
      %v8850 = vpack.c.b16 %v8773, %v8772
      %v8851 = vpack.c.b16 %v8775, %v8774
      %v8852 = vpack.c.b16 %v8777, %v8776
      %v8853 = vpack.c.b16 %v8779, %v8778
      %v8854 = vpack.c.b16 %v8781, %v8780
      %v8855 = vpack.c.b16 %v8783, %v8782
      %8928 = vmatprep.subr.bf16.mxu0 0
      %8929 = vmatpush1.bf16.msra.mxu0 %v8791
      %8930 = vmatprep.subr.bf16.mxu0 0
      %8931 = vmatpush1.bf16.msra.mxu0 %v8790
      %8932 = vmatprep.subr.bf16.mxu0 0
      %8933 = vmatpush1.bf16.msra.mxu0 %v8789
      %8934 = vmatprep.subr.bf16.mxu0 0
      %8935 = vmatpush1.bf16.msra.mxu0 %v8788
      %8936 = vmatprep.subr.bf16.mxu0 0
      %8937 = vmatpush1.bf16.msra.mxu0 %v8787
      %8938 = vmatprep.subr.bf16.mxu0 0
      %8939 = vmatpush1.bf16.msra.mxu0 %v8786
      %8940 = vmatprep.subr.bf16.mxu0 0
      %8941 = vmatpush1.bf16.msra.mxu0 %v8785
      %8942 = vmatprep.subr.bf16.mxu0 0
      %8943 = vmatpush1.bf16.msra.mxu0 %v8784
      %8944 = vmatprep.subr.bf16.mxu0 0
      %8945 = vmatpush2.bf16.msra.mxu0 %v8799
      %8946 = vmatprep.subr.bf16.mxu0 0
      %8947 = vmatpush2.bf16.msra.mxu0 %v8798
      %8948 = vmatprep.subr.bf16.mxu0 0
      %8949 = vmatpush2.bf16.msra.mxu0 %v8797
      %8950 = vmatprep.subr.bf16.mxu0 0
      %8951 = vmatpush2.bf16.msra.mxu0 %v8796
      %8952 = vmatprep.subr.bf16.mxu0 0
      %8953 = vmatpush2.bf16.msra.mxu0 %v8795
      %8954 = vmatprep.subr.bf16.mxu0 0
      %8955 = vmatpush2.bf16.msra.mxu0 %v8794
      %8956 = vmatprep.subr.bf16.mxu0 0
      %8957 = vmatpush2.bf16.msra.mxu0 %v8793
      %8958 = vmatprep.subr.bf16.mxu0 0
      %8959 = vmatpush2.bf16.msra.mxu0 %v8792
      %8960 = vmatprep.mubr.bf16.mxu0 %v7833
      %8961 = vmatmul.mubr.bf16.gmra.mxu0 %v7769
      %v8962 = vpop.f32.mrf.mxu0
      %v8963 = vadd.f32 %v8494, %v8962
      %v8964 = vpop.f32.mrf.mxu0
      %v8965 = vpop.f32.mrf.mxu0
      %v8966 = vadd.f32 %v8494, %v8965
      %v8967 = vpop.f32.mrf.mxu0
      %8968 = vmatprep.mubr.bf16.mxu0 %v7834
      %8969 = vmatmul.mubr.bf16.gmra.mxu0 %v7770
      %v8970 = vpop.f32.mrf.mxu0
      %v8971 = vadd.f32 %v8494, %v8970
      %v8972 = vpop.f32.mrf.mxu0
      %v8973 = vpop.f32.mrf.mxu0
      %v8974 = vadd.f32 %v8494, %v8973
      %v8975 = vpop.f32.mrf.mxu0
      %8976 = vmatprep.mubr.bf16.mxu0 %v7835
      %8977 = vmatmul.mubr.bf16.gmra.mxu0 %v7771
      %v8978 = vpop.f32.mrf.mxu0
      %v8979 = vadd.f32 %v8494, %v8978
      %v8980 = vpop.f32.mrf.mxu0
      %v8981 = vpop.f32.mrf.mxu0
      %v8982 = vadd.f32 %v8494, %v8981
      %v8983 = vpop.f32.mrf.mxu0
      %8984 = vmatprep.mubr.bf16.mxu0 %v7836
      %8985 = vmatmul.mubr.bf16.gmra.mxu0 %v7772
      %v8986 = vpop.f32.mrf.mxu0
      %v8987 = vadd.f32 %v8494, %v8986
      %v8988 = vpop.f32.mrf.mxu0
      %v8989 = vpop.f32.mrf.mxu0
      %v8990 = vadd.f32 %v8494, %v8989
      %v8991 = vpop.f32.mrf.mxu0
      %8992 = vmatprep.mubr.bf16.mxu0 %v7837
      %8993 = vmatmul.mubr.bf16.gmra.mxu0 %v7773
      %v8994 = vpop.f32.mrf.mxu0
      %v8995 = vadd.f32 %v8494, %v8994
      %v8996 = vpop.f32.mrf.mxu0
      %v8997 = vpop.f32.mrf.mxu0
      %v8998 = vadd.f32 %v8494, %v8997
      %v8999 = vpop.f32.mrf.mxu0
      %9000 = vmatprep.mubr.bf16.mxu0 %v7838
      %9001 = vmatmul.mubr.bf16.gmra.mxu0 %v7774
      %v9002 = vpop.f32.mrf.mxu0
      %v9003 = vadd.f32 %v8494, %v9002
      %v9004 = vpop.f32.mrf.mxu0
      %v9005 = vpop.f32.mrf.mxu0
      %v9006 = vadd.f32 %v8494, %v9005
      %v9007 = vpop.f32.mrf.mxu0
      %9008 = vmatprep.mubr.bf16.mxu0 %v7839
      %9009 = vmatmul.mubr.bf16.gmra.mxu0 %v7775
      %v9010 = vpop.f32.mrf.mxu0
      %v9011 = vadd.f32 %v8494, %v9010
      %v9012 = vpop.f32.mrf.mxu0
      %v9013 = vpop.f32.mrf.mxu0
      %v9014 = vadd.f32 %v8494, %v9013
      %v9015 = vpop.f32.mrf.mxu0
      %9016 = vmatprep.mubr.bf16.mxu0 %v7840
      %9017 = vmatmul.mubr.bf16.gmra.mxu0 %v7776
      %v9018 = vpop.f32.mrf.mxu0
      %v9019 = vadd.f32 %v8494, %v9018
      %v9020 = vpop.f32.mrf.mxu0
      %v9021 = vpop.f32.mrf.mxu0
      %v9022 = vadd.f32 %v8494, %v9021
      %v9023 = vpop.f32.mrf.mxu0
      %9024 = vmatprep.mubr.bf16.mxu0 %v7841
      %9025 = vmatmul.mubr.bf16.gmra.mxu0 %v7777
      %v9026 = vpop.f32.mrf.mxu0
      %v9027 = vadd.f32 %v8494, %v9026
      %v9028 = vpop.f32.mrf.mxu0
      %v9029 = vpop.f32.mrf.mxu0
      %v9030 = vadd.f32 %v8494, %v9029
      %v9031 = vpop.f32.mrf.mxu0
      %9032 = vmatprep.mubr.bf16.mxu0 %v7842
      %9033 = vmatmul.mubr.bf16.gmra.mxu0 %v7778
      %v9034 = vpop.f32.mrf.mxu0
      %v9035 = vadd.f32 %v8494, %v9034
      %v9036 = vpop.f32.mrf.mxu0
      %v9037 = vpop.f32.mrf.mxu0
      %v9038 = vadd.f32 %v8494, %v9037
      %v9039 = vpop.f32.mrf.mxu0
      %9040 = vmatprep.mubr.bf16.mxu0 %v7843
      %9041 = vmatmul.mubr.bf16.gmra.mxu0 %v7779
      %v9042 = vpop.f32.mrf.mxu0
      %v9043 = vadd.f32 %v8494, %v9042
      %v9044 = vpop.f32.mrf.mxu0
      %v9045 = vpop.f32.mrf.mxu0
      %v9046 = vadd.f32 %v8494, %v9045
      %v9047 = vpop.f32.mrf.mxu0
      %9048 = vmatprep.mubr.bf16.mxu0 %v7844
      %9049 = vmatmul.mubr.bf16.gmra.mxu0 %v7780
      %v9050 = vpop.f32.mrf.mxu0
      %v9051 = vadd.f32 %v8494, %v9050
      %v9052 = vpop.f32.mrf.mxu0
      %v9053 = vpop.f32.mrf.mxu0
      %v9054 = vadd.f32 %v8494, %v9053
      %v9055 = vpop.f32.mrf.mxu0
      %9056 = vmatprep.mubr.bf16.mxu0 %v7845
      %9057 = vmatmul.mubr.bf16.gmra.mxu0 %v7781
      %v9058 = vpop.f32.mrf.mxu0
      %v9059 = vadd.f32 %v8494, %v9058
      %v9060 = vpop.f32.mrf.mxu0
      %v9061 = vpop.f32.mrf.mxu0
      %v9062 = vadd.f32 %v8494, %v9061
      %v9063 = vpop.f32.mrf.mxu0
      %9064 = vmatprep.mubr.bf16.mxu0 %v7846
      %9065 = vmatmul.mubr.bf16.gmra.mxu0 %v7782
      %v9066 = vpop.f32.mrf.mxu0
      %v9067 = vadd.f32 %v8494, %v9066
      %v9068 = vpop.f32.mrf.mxu0
      %v9069 = vpop.f32.mrf.mxu0
      %v9070 = vadd.f32 %v8494, %v9069
      %v9071 = vpop.f32.mrf.mxu0
      %9072 = vmatprep.mubr.bf16.mxu0 %v7847
      %9073 = vmatmul.mubr.bf16.gmra.mxu0 %v7783
      %v9074 = vpop.f32.mrf.mxu0
      %v9075 = vadd.f32 %v8494, %v9074
      %v9076 = vpop.f32.mrf.mxu0
      %v9077 = vpop.f32.mrf.mxu0
      %v9078 = vadd.f32 %v8494, %v9077
      %v9079 = vpop.f32.mrf.mxu0
      %9080 = vmatprep.mubr.bf16.mxu0 %v7848
      %9081 = vmatmul.mubr.bf16.gmra.mxu0 %v7784
      %v9082 = vpop.f32.mrf.mxu0
      %v9083 = vadd.f32 %v8494, %v9082
      %v9084 = vpop.f32.mrf.mxu0
      %v9085 = vpop.f32.mrf.mxu0
      %v9086 = vadd.f32 %v8494, %v9085
      %v9087 = vpop.f32.mrf.mxu0
      %9088 = vdwg.mxu0
      %9089 = vmatprep.subr.bf16.mxu0 0
      %9090 = vmatpush1.bf16.msra.mxu0 %v8807
      %9091 = vmatprep.subr.bf16.mxu0 0
      %9092 = vmatpush1.bf16.msra.mxu0 %v8806
      %9093 = vmatprep.subr.bf16.mxu0 0
      %9094 = vmatpush1.bf16.msra.mxu0 %v8805
      %9095 = vmatprep.subr.bf16.mxu0 0
      %9096 = vmatpush1.bf16.msra.mxu0 %v8804
      %9097 = vmatprep.subr.bf16.mxu0 0
      %9098 = vmatpush1.bf16.msra.mxu0 %v8803
      %9099 = vmatprep.subr.bf16.mxu0 0
      %9100 = vmatpush1.bf16.msra.mxu0 %v8802
      %9101 = vmatprep.subr.bf16.mxu0 0
      %9102 = vmatpush1.bf16.msra.mxu0 %v8801
      %9103 = vmatprep.subr.bf16.mxu0 0
      %9104 = vmatpush1.bf16.msra.mxu0 %v8800
      %9105 = vmatprep.subr.bf16.mxu0 0
      %9106 = vmatpush2.bf16.msra.mxu0 %v8815
      %9107 = vmatprep.subr.bf16.mxu0 0
      %9108 = vmatpush2.bf16.msra.mxu0 %v8814
      %9109 = vmatprep.subr.bf16.mxu0 0
      %9110 = vmatpush2.bf16.msra.mxu0 %v8813
      %9111 = vmatprep.subr.bf16.mxu0 0
      %9112 = vmatpush2.bf16.msra.mxu0 %v8812
      %9113 = vmatprep.subr.bf16.mxu0 0
      %9114 = vmatpush2.bf16.msra.mxu0 %v8811
      %9115 = vmatprep.subr.bf16.mxu0 0
      %9116 = vmatpush2.bf16.msra.mxu0 %v8810
      %9117 = vmatprep.subr.bf16.mxu0 0
      %9118 = vmatpush2.bf16.msra.mxu0 %v8809
      %9119 = vmatprep.subr.bf16.mxu0 0
      %9120 = vmatpush2.bf16.msra.mxu0 %v8808
      %9121 = vmatprep.mubr.bf16.mxu0 %v7977
      %9122 = vmatmul.mubr.bf16.gmra.mxu0 %v7897
      %v9123 = vpop.f32.mrf.mxu0
      %v9124 = vadd.f32 %v8963, %v9123
      %v9125 = vpop.f32.mrf.mxu0
      %v9126 = vpop.f32.mrf.mxu0
      %v9127 = vadd.f32 %v8966, %v9126
      %v9128 = vpop.f32.mrf.mxu0
      %9129 = vmatprep.mubr.bf16.mxu0 %v7978
      %9130 = vmatmul.mubr.bf16.gmra.mxu0 %v7898
      %v9131 = vpop.f32.mrf.mxu0
      %v9132 = vadd.f32 %v8971, %v9131
      %v9133 = vpop.f32.mrf.mxu0
      %v9134 = vpop.f32.mrf.mxu0
      %v9135 = vadd.f32 %v8974, %v9134
      %v9136 = vpop.f32.mrf.mxu0
      %9137 = vmatprep.mubr.bf16.mxu0 %v7979
      %9138 = vmatmul.mubr.bf16.gmra.mxu0 %v7899
      %v9139 = vpop.f32.mrf.mxu0
      %v9140 = vadd.f32 %v8979, %v9139
      %v9141 = vpop.f32.mrf.mxu0
      %v9142 = vpop.f32.mrf.mxu0
      %v9143 = vadd.f32 %v8982, %v9142
      %v9144 = vpop.f32.mrf.mxu0
      %9145 = vmatprep.mubr.bf16.mxu0 %v7980
      %9146 = vmatmul.mubr.bf16.gmra.mxu0 %v7900
      %v9147 = vpop.f32.mrf.mxu0
      %v9148 = vadd.f32 %v8987, %v9147
      %v9149 = vpop.f32.mrf.mxu0
      %v9150 = vpop.f32.mrf.mxu0
      %v9151 = vadd.f32 %v8990, %v9150
      %v9152 = vpop.f32.mrf.mxu0
      %9153 = vmatprep.mubr.bf16.mxu0 %v7981
      %9154 = vmatmul.mubr.bf16.gmra.mxu0 %v7901
      %v9155 = vpop.f32.mrf.mxu0
      %v9156 = vadd.f32 %v8995, %v9155
      %v9157 = vpop.f32.mrf.mxu0
      %v9158 = vpop.f32.mrf.mxu0
      %v9159 = vadd.f32 %v8998, %v9158
      %v9160 = vpop.f32.mrf.mxu0
      %9161 = vmatprep.mubr.bf16.mxu0 %v7982
      %9162 = vmatmul.mubr.bf16.gmra.mxu0 %v7902
      %v9163 = vpop.f32.mrf.mxu0
      %v9164 = vadd.f32 %v9003, %v9163
      %v9165 = vpop.f32.mrf.mxu0
      %v9166 = vpop.f32.mrf.mxu0
      %v9167 = vadd.f32 %v9006, %v9166
      %v9168 = vpop.f32.mrf.mxu0
      %9169 = vmatprep.mubr.bf16.mxu0 %v7983
      %9170 = vmatmul.mubr.bf16.gmra.mxu0 %v7903
      %v9171 = vpop.f32.mrf.mxu0
      %v9172 = vadd.f32 %v9011, %v9171
      %v9173 = vpop.f32.mrf.mxu0
      %v9174 = vpop.f32.mrf.mxu0
      %v9175 = vadd.f32 %v9014, %v9174
      %v9176 = vpop.f32.mrf.mxu0
      %9177 = vmatprep.mubr.bf16.mxu0 %v7984
      %9178 = vmatmul.mubr.bf16.gmra.mxu0 %v7904
      %v9179 = vpop.f32.mrf.mxu0
      %v9180 = vadd.f32 %v9019, %v9179
      %v9181 = vpop.f32.mrf.mxu0
      %v9182 = vpop.f32.mrf.mxu0
      %v9183 = vadd.f32 %v9022, %v9182
      %v9184 = vpop.f32.mrf.mxu0
      %9185 = vmatprep.mubr.bf16.mxu0 %v7985
      %9186 = vmatmul.mubr.bf16.gmra.mxu0 %v7905
      %v9187 = vpop.f32.mrf.mxu0
      %v9188 = vadd.f32 %v9027, %v9187
      %v9189 = vpop.f32.mrf.mxu0
      %v9190 = vpop.f32.mrf.mxu0
      %v9191 = vadd.f32 %v9030, %v9190
      %v9192 = vpop.f32.mrf.mxu0
      %9193 = vmatprep.mubr.bf16.mxu0 %v7986
      %9194 = vmatmul.mubr.bf16.gmra.mxu0 %v7906
      %v9195 = vpop.f32.mrf.mxu0
      %v9196 = vadd.f32 %v9035, %v9195
      %v9197 = vpop.f32.mrf.mxu0
      %v9198 = vpop.f32.mrf.mxu0
      %v9199 = vadd.f32 %v9038, %v9198
      %v9200 = vpop.f32.mrf.mxu0
      %9201 = vmatprep.mubr.bf16.mxu0 %v7987
      %9202 = vmatmul.mubr.bf16.gmra.mxu0 %v7907
      %v9203 = vpop.f32.mrf.mxu0
      %v9204 = vadd.f32 %v9043, %v9203
      %v9205 = vpop.f32.mrf.mxu0
      %v9206 = vpop.f32.mrf.mxu0
      %v9207 = vadd.f32 %v9046, %v9206
      %v9208 = vpop.f32.mrf.mxu0
      %9209 = vmatprep.mubr.bf16.mxu0 %v7988
      %9210 = vmatmul.mubr.bf16.gmra.mxu0 %v7908
      %v9211 = vpop.f32.mrf.mxu0
      %v9212 = vadd.f32 %v9051, %v9211
      %v9213 = vpop.f32.mrf.mxu0
      %v9214 = vpop.f32.mrf.mxu0
      %v9215 = vadd.f32 %v9054, %v9214
      %v9216 = vpop.f32.mrf.mxu0
      %9217 = vmatprep.mubr.bf16.mxu0 %v7989
      %9218 = vmatmul.mubr.bf16.gmra.mxu0 %v7909
      %v9219 = vpop.f32.mrf.mxu0
      %v9220 = vadd.f32 %v9059, %v9219
      %v9221 = vpop.f32.mrf.mxu0
      %v9222 = vpop.f32.mrf.mxu0
      %v9223 = vadd.f32 %v9062, %v9222
      %v9224 = vpop.f32.mrf.mxu0
      %9225 = vmatprep.mubr.bf16.mxu0 %v7990
      %9226 = vmatmul.mubr.bf16.gmra.mxu0 %v7910
      %v9227 = vpop.f32.mrf.mxu0
      %v9228 = vadd.f32 %v9067, %v9227
      %v9229 = vpop.f32.mrf.mxu0
      %v9230 = vpop.f32.mrf.mxu0
      %v9231 = vadd.f32 %v9070, %v9230
      %v9232 = vpop.f32.mrf.mxu0
      %9233 = vmatprep.mubr.bf16.mxu0 %v7991
      %9234 = vmatmul.mubr.bf16.gmra.mxu0 %v7911
      %v9235 = vpop.f32.mrf.mxu0
      %v9236 = vadd.f32 %v9075, %v9235
      %v9237 = vpop.f32.mrf.mxu0
      %v9238 = vpop.f32.mrf.mxu0
      %v9239 = vadd.f32 %v9078, %v9238
      %v9240 = vpop.f32.mrf.mxu0
      %9241 = vmatprep.mubr.bf16.mxu0 %v7992
      %9242 = vmatmul.mubr.bf16.gmra.mxu0 %v7912
      %v9243 = vpop.f32.mrf.mxu0
      %v9244 = vadd.f32 %v9083, %v9243
      %v9245 = vpop.f32.mrf.mxu0
      %v9246 = vpop.f32.mrf.mxu0
      %v9247 = vadd.f32 %v9086, %v9246
      %v9248 = vpop.f32.mrf.mxu0
      %9249 = vdwg.mxu0
      %9250 = vmatprep.subr.bf16.mxu0 0
      %9251 = vmatpush1.bf16.msra.mxu0 %v8823
      %9252 = vmatprep.subr.bf16.mxu0 0
      %9253 = vmatpush1.bf16.msra.mxu0 %v8822
      %9254 = vmatprep.subr.bf16.mxu0 0
      %9255 = vmatpush1.bf16.msra.mxu0 %v8821
      %9256 = vmatprep.subr.bf16.mxu0 0
      %9257 = vmatpush1.bf16.msra.mxu0 %v8820
      %9258 = vmatprep.subr.bf16.mxu0 0
      %9259 = vmatpush1.bf16.msra.mxu0 %v8819
      %9260 = vmatprep.subr.bf16.mxu0 0
      %9261 = vmatpush1.bf16.msra.mxu0 %v8818
      %9262 = vmatprep.subr.bf16.mxu0 0
      %9263 = vmatpush1.bf16.msra.mxu0 %v8817
      %9264 = vmatprep.subr.bf16.mxu0 0
      %9265 = vmatpush1.bf16.msra.mxu0 %v8816
      %9266 = vmatprep.subr.bf16.mxu0 0
      %9267 = vmatpush2.bf16.msra.mxu0 %v8831
      %9268 = vmatprep.subr.bf16.mxu0 0
      %9269 = vmatpush2.bf16.msra.mxu0 %v8830
      %9270 = vmatprep.subr.bf16.mxu0 0
      %9271 = vmatpush2.bf16.msra.mxu0 %v8829
      %9272 = vmatprep.subr.bf16.mxu0 0
      %9273 = vmatpush2.bf16.msra.mxu0 %v8828
      %9274 = vmatprep.subr.bf16.mxu0 0
      %9275 = vmatpush2.bf16.msra.mxu0 %v8827
      %9276 = vmatprep.subr.bf16.mxu0 0
      %9277 = vmatpush2.bf16.msra.mxu0 %v8826
      %9278 = vmatprep.subr.bf16.mxu0 0
      %9279 = vmatpush2.bf16.msra.mxu0 %v8825
      %9280 = vmatprep.subr.bf16.mxu0 0
      %9281 = vmatpush2.bf16.msra.mxu0 %v8824
      %9282 = vmatprep.mubr.bf16.mxu0 %v8105
      %9283 = vmatmul.mubr.bf16.gmra.mxu0 %v8041
      %v9284 = vpop.f32.mrf.mxu0
      %v9285 = vadd.f32 %v9124, %v9284
      %v9286 = vpop.f32.mrf.mxu0
      %v9287 = vpop.f32.mrf.mxu0
      %v9288 = vadd.f32 %v9127, %v9287
      %v9289 = vpop.f32.mrf.mxu0
      %9290 = vmatprep.mubr.bf16.mxu0 %v8106
      %9291 = vmatmul.mubr.bf16.gmra.mxu0 %v8042
      %v9292 = vpop.f32.mrf.mxu0
      %v9293 = vadd.f32 %v9132, %v9292
      %v9294 = vpop.f32.mrf.mxu0
      %v9295 = vpop.f32.mrf.mxu0
      %v9296 = vadd.f32 %v9135, %v9295
      %v9297 = vpop.f32.mrf.mxu0
      %9298 = vmatprep.mubr.bf16.mxu0 %v8107
      %9299 = vmatmul.mubr.bf16.gmra.mxu0 %v8043
      %v9300 = vpop.f32.mrf.mxu0
      %v9301 = vadd.f32 %v9140, %v9300
      %v9302 = vpop.f32.mrf.mxu0
      %v9303 = vpop.f32.mrf.mxu0
      %v9304 = vadd.f32 %v9143, %v9303
      %v9305 = vpop.f32.mrf.mxu0
      %9306 = vmatprep.mubr.bf16.mxu0 %v8108
      %9307 = vmatmul.mubr.bf16.gmra.mxu0 %v8044
      %v9308 = vpop.f32.mrf.mxu0
      %v9309 = vadd.f32 %v9148, %v9308
      %v9310 = vpop.f32.mrf.mxu0
      %v9311 = vpop.f32.mrf.mxu0
      %v9312 = vadd.f32 %v9151, %v9311
      %v9313 = vpop.f32.mrf.mxu0
      %9314 = vmatprep.mubr.bf16.mxu0 %v8109
      %9315 = vmatmul.mubr.bf16.gmra.mxu0 %v8045
      %v9316 = vpop.f32.mrf.mxu0
      %v9317 = vadd.f32 %v9156, %v9316
      %v9318 = vpop.f32.mrf.mxu0
      %v9319 = vpop.f32.mrf.mxu0
      %v9320 = vadd.f32 %v9159, %v9319
      %v9321 = vpop.f32.mrf.mxu0
      %9322 = vmatprep.mubr.bf16.mxu0 %v8110
      %9323 = vmatmul.mubr.bf16.gmra.mxu0 %v8046
      %v9324 = vpop.f32.mrf.mxu0
      %v9325 = vadd.f32 %v9164, %v9324
      %v9326 = vpop.f32.mrf.mxu0
      %v9327 = vpop.f32.mrf.mxu0
      %v9328 = vadd.f32 %v9167, %v9327
      %v9329 = vpop.f32.mrf.mxu0
      %9330 = vmatprep.mubr.bf16.mxu0 %v8111
      %9331 = vmatmul.mubr.bf16.gmra.mxu0 %v8047
      %v9332 = vpop.f32.mrf.mxu0
      %v9333 = vadd.f32 %v9172, %v9332
      %v9334 = vpop.f32.mrf.mxu0
      %v9335 = vpop.f32.mrf.mxu0
      %v9336 = vadd.f32 %v9175, %v9335
      %v9337 = vpop.f32.mrf.mxu0
      %9338 = vmatprep.mubr.bf16.mxu0 %v8112
      %9339 = vmatmul.mubr.bf16.gmra.mxu0 %v8048
      %v9340 = vpop.f32.mrf.mxu0
      %v9341 = vadd.f32 %v9180, %v9340
      %v9342 = vpop.f32.mrf.mxu0
      %v9343 = vpop.f32.mrf.mxu0
      %v9344 = vadd.f32 %v9183, %v9343
      %v9345 = vpop.f32.mrf.mxu0
      %9346 = vmatprep.mubr.bf16.mxu0 %v8113
      %9347 = vmatmul.mubr.bf16.gmra.mxu0 %v8049
      %v9348 = vpop.f32.mrf.mxu0
      %v9349 = vadd.f32 %v9188, %v9348
      %v9350 = vpop.f32.mrf.mxu0
      %v9351 = vpop.f32.mrf.mxu0
      %v9352 = vadd.f32 %v9191, %v9351
      %v9353 = vpop.f32.mrf.mxu0
      %9354 = vmatprep.mubr.bf16.mxu0 %v8114
      %9355 = vmatmul.mubr.bf16.gmra.mxu0 %v8050
      %v9356 = vpop.f32.mrf.mxu0
      %v9357 = vadd.f32 %v9196, %v9356
      %v9358 = vpop.f32.mrf.mxu0
      %v9359 = vpop.f32.mrf.mxu0
      %v9360 = vadd.f32 %v9199, %v9359
      %v9361 = vpop.f32.mrf.mxu0
      %9362 = vmatprep.mubr.bf16.mxu0 %v8115
      %9363 = vmatmul.mubr.bf16.gmra.mxu0 %v8051
      %v9364 = vpop.f32.mrf.mxu0
      %v9365 = vadd.f32 %v9204, %v9364
      %v9366 = vpop.f32.mrf.mxu0
      %v9367 = vpop.f32.mrf.mxu0
      %v9368 = vadd.f32 %v9207, %v9367
      %v9369 = vpop.f32.mrf.mxu0
      %9370 = vmatprep.mubr.bf16.mxu0 %v8116
      %9371 = vmatmul.mubr.bf16.gmra.mxu0 %v8052
      %v9372 = vpop.f32.mrf.mxu0
      %v9373 = vadd.f32 %v9212, %v9372
      %v9374 = vpop.f32.mrf.mxu0
      %v9375 = vpop.f32.mrf.mxu0
      %v9376 = vadd.f32 %v9215, %v9375
      %v9377 = vpop.f32.mrf.mxu0
      %9378 = vmatprep.mubr.bf16.mxu0 %v8117
      %9379 = vmatmul.mubr.bf16.gmra.mxu0 %v8053
      %v9380 = vpop.f32.mrf.mxu0
      %v9381 = vadd.f32 %v9220, %v9380
      %v9382 = vpop.f32.mrf.mxu0
      %v9383 = vpop.f32.mrf.mxu0
      %v9384 = vadd.f32 %v9223, %v9383
      %v9385 = vpop.f32.mrf.mxu0
      %9386 = vmatprep.mubr.bf16.mxu0 %v8118
      %9387 = vmatmul.mubr.bf16.gmra.mxu0 %v8054
      %v9388 = vpop.f32.mrf.mxu0
      %v9389 = vadd.f32 %v9228, %v9388
      %v9390 = vpop.f32.mrf.mxu0
      %v9391 = vpop.f32.mrf.mxu0
      %v9392 = vadd.f32 %v9231, %v9391
      %v9393 = vpop.f32.mrf.mxu0
      %9394 = vmatprep.mubr.bf16.mxu0 %v8119
      %9395 = vmatmul.mubr.bf16.gmra.mxu0 %v8055
      %v9396 = vpop.f32.mrf.mxu0
      %v9397 = vadd.f32 %v9236, %v9396
      %v9398 = vpop.f32.mrf.mxu0
      %v9399 = vpop.f32.mrf.mxu0
      %v9400 = vadd.f32 %v9239, %v9399
      %v9401 = vpop.f32.mrf.mxu0
      %9402 = vmatprep.mubr.bf16.mxu0 %v8120
      %9403 = vmatmul.mubr.bf16.gmra.mxu0 %v8056
      %v9404 = vpop.f32.mrf.mxu0
      %v9405 = vadd.f32 %v9244, %v9404
      %v9406 = vpop.f32.mrf.mxu0
      %v9407 = vpop.f32.mrf.mxu0
      %v9408 = vadd.f32 %v9247, %v9407
      %v9409 = vpop.f32.mrf.mxu0
      %9410 = vdwg.mxu0
      %9411 = vmatprep.subr.bf16.mxu0 0
      %9412 = vmatpush1.bf16.msra.mxu0 %v8839
      %9413 = vmatprep.subr.bf16.mxu0 0
      %9414 = vmatpush1.bf16.msra.mxu0 %v8838
      %9415 = vmatprep.subr.bf16.mxu0 0
      %9416 = vmatpush1.bf16.msra.mxu0 %v8837
      %9417 = vmatprep.subr.bf16.mxu0 0
      %9418 = vmatpush1.bf16.msra.mxu0 %v8836
      %9419 = vmatprep.subr.bf16.mxu0 0
      %9420 = vmatpush1.bf16.msra.mxu0 %v8835
      %9421 = vmatprep.subr.bf16.mxu0 0
      %9422 = vmatpush1.bf16.msra.mxu0 %v8834
      %9423 = vmatprep.subr.bf16.mxu0 0
      %9424 = vmatpush1.bf16.msra.mxu0 %v8833
      %9425 = vmatprep.subr.bf16.mxu0 0
      %9426 = vmatpush1.bf16.msra.mxu0 %v8832
      %9427 = vmatprep.subr.bf16.mxu0 0
      %9428 = vmatpush2.bf16.msra.mxu0 %v8847
      %9429 = vmatprep.subr.bf16.mxu0 0
      %9430 = vmatpush2.bf16.msra.mxu0 %v8846
      %9431 = vmatprep.subr.bf16.mxu0 0
      %9432 = vmatpush2.bf16.msra.mxu0 %v8845
      %9433 = vmatprep.subr.bf16.mxu0 0
      %9434 = vmatpush2.bf16.msra.mxu0 %v8844
      %9435 = vmatprep.subr.bf16.mxu0 0
      %9436 = vmatpush2.bf16.msra.mxu0 %v8843
      %9437 = vmatprep.subr.bf16.mxu0 0
      %9438 = vmatpush2.bf16.msra.mxu0 %v8842
      %9439 = vmatprep.subr.bf16.mxu0 0
      %9440 = vmatpush2.bf16.msra.mxu0 %v8841
      %9441 = vmatprep.subr.bf16.mxu0 0
      %9442 = vmatpush2.bf16.msra.mxu0 %v8840
      %9443 = vmatprep.mubr.bf16.mxu0 %v8249
      %9444 = vmatmul.mubr.bf16.gmra.mxu0 %v8185
      %v9445 = vpop.f32.mrf.mxu0
      %v9446 = vadd.f32 %v9285, %v9445
      %v9447 = vpop.f32.mrf.mxu0
      %v9448 = vpop.f32.mrf.mxu0
      %v9449 = vadd.f32 %v9288, %v9448
      %v9450 = vpop.f32.mrf.mxu0
      %9451 = vmatprep.mubr.bf16.mxu0 %v8250
      %9452 = vmatmul.mubr.bf16.gmra.mxu0 %v8186
      %v9453 = vpop.f32.mrf.mxu0
      %v9454 = vadd.f32 %v9293, %v9453
      %v9455 = vpop.f32.mrf.mxu0
      %v9456 = vpop.f32.mrf.mxu0
      %v9457 = vadd.f32 %v9296, %v9456
      %v9458 = vpop.f32.mrf.mxu0
      %9459 = vmatprep.mubr.bf16.mxu0 %v8251
      %9460 = vmatmul.mubr.bf16.gmra.mxu0 %v8187
      %v9461 = vpop.f32.mrf.mxu0
      %v9462 = vadd.f32 %v9301, %v9461
      %v9463 = vpop.f32.mrf.mxu0
      %v9464 = vpop.f32.mrf.mxu0
      %v9465 = vadd.f32 %v9304, %v9464
      %v9466 = vpop.f32.mrf.mxu0
      %9467 = vmatprep.mubr.bf16.mxu0 %v8252
      %9468 = vmatmul.mubr.bf16.gmra.mxu0 %v8188
      %v9469 = vpop.f32.mrf.mxu0
      %v9470 = vadd.f32 %v9309, %v9469
      %v9471 = vpop.f32.mrf.mxu0
      %v9472 = vpop.f32.mrf.mxu0
      %v9473 = vadd.f32 %v9312, %v9472
      %v9474 = vpop.f32.mrf.mxu0
      %9475 = vmatprep.mubr.bf16.mxu0 %v8253
      %9476 = vmatmul.mubr.bf16.gmra.mxu0 %v8189
      %v9477 = vpop.f32.mrf.mxu0
      %v9478 = vadd.f32 %v9317, %v9477
      %v9479 = vpop.f32.mrf.mxu0
      %v9480 = vpop.f32.mrf.mxu0
      %v9481 = vadd.f32 %v9320, %v9480
      %v9482 = vpop.f32.mrf.mxu0
      %9483 = vmatprep.mubr.bf16.mxu0 %v8254
      %9484 = vmatmul.mubr.bf16.gmra.mxu0 %v8190
      %v9485 = vpop.f32.mrf.mxu0
      %v9486 = vadd.f32 %v9325, %v9485
      %v9487 = vpop.f32.mrf.mxu0
      %v9488 = vpop.f32.mrf.mxu0
      %v9489 = vadd.f32 %v9328, %v9488
      %v9490 = vpop.f32.mrf.mxu0
      %9491 = vmatprep.mubr.bf16.mxu0 %v8255
      %9492 = vmatmul.mubr.bf16.gmra.mxu0 %v8191
      %v9493 = vpop.f32.mrf.mxu0
      %v9494 = vadd.f32 %v9333, %v9493
      %v9495 = vpop.f32.mrf.mxu0
      %v9496 = vpop.f32.mrf.mxu0
      %v9497 = vadd.f32 %v9336, %v9496
      %v9498 = vpop.f32.mrf.mxu0
      %9499 = vmatprep.mubr.bf16.mxu0 %v8256
      %9500 = vmatmul.mubr.bf16.gmra.mxu0 %v8192
      %v9501 = vpop.f32.mrf.mxu0
      %v9502 = vadd.f32 %v9341, %v9501
      %v9503 = vpop.f32.mrf.mxu0
      %v9504 = vpop.f32.mrf.mxu0
      %v9505 = vadd.f32 %v9344, %v9504
      %v9506 = vpop.f32.mrf.mxu0
      %9507 = vmatprep.mubr.bf16.mxu0 %v8257
      %9508 = vmatmul.mubr.bf16.gmra.mxu0 %v8193
      %v9509 = vpop.f32.mrf.mxu0
      %v9510 = vadd.f32 %v9349, %v9509
      %v9511 = vpop.f32.mrf.mxu0
      %v9512 = vpop.f32.mrf.mxu0
      %v9513 = vadd.f32 %v9352, %v9512
      %v9514 = vpop.f32.mrf.mxu0
      %9515 = vmatprep.mubr.bf16.mxu0 %v8258
      %9516 = vmatmul.mubr.bf16.gmra.mxu0 %v8194
      %v9517 = vpop.f32.mrf.mxu0
      %v9518 = vadd.f32 %v9357, %v9517
      %v9519 = vpop.f32.mrf.mxu0
      %v9520 = vpop.f32.mrf.mxu0
      %v9521 = vadd.f32 %v9360, %v9520
      %v9522 = vpop.f32.mrf.mxu0
      %9523 = vmatprep.mubr.bf16.mxu0 %v8259
      %9524 = vmatmul.mubr.bf16.gmra.mxu0 %v8195
      %v9525 = vpop.f32.mrf.mxu0
      %v9526 = vadd.f32 %v9365, %v9525
      %v9527 = vpop.f32.mrf.mxu0
      %v9528 = vpop.f32.mrf.mxu0
      %v9529 = vadd.f32 %v9368, %v9528
      %v9530 = vpop.f32.mrf.mxu0
      %9531 = vmatprep.mubr.bf16.mxu0 %v8260
      %9532 = vmatmul.mubr.bf16.gmra.mxu0 %v8196
      %v9533 = vpop.f32.mrf.mxu0
      %v9534 = vadd.f32 %v9373, %v9533
      %v9535 = vpop.f32.mrf.mxu0
      %v9536 = vpop.f32.mrf.mxu0
      %v9537 = vadd.f32 %v9376, %v9536
      %v9538 = vpop.f32.mrf.mxu0
      %9539 = vmatprep.mubr.bf16.mxu0 %v8261
      %9540 = vmatmul.mubr.bf16.gmra.mxu0 %v8197
      %v9541 = vpop.f32.mrf.mxu0
      %v9542 = vadd.f32 %v9381, %v9541
      %v9543 = vpop.f32.mrf.mxu0
      %v9544 = vpop.f32.mrf.mxu0
      %v9545 = vadd.f32 %v9384, %v9544
      %v9546 = vpop.f32.mrf.mxu0
      %9547 = vmatprep.mubr.bf16.mxu0 %v8262
      %9548 = vmatmul.mubr.bf16.gmra.mxu0 %v8198
      %v9549 = vpop.f32.mrf.mxu0
      %v9550 = vadd.f32 %v9389, %v9549
      %v9551 = vpop.f32.mrf.mxu0
      %v9552 = vpop.f32.mrf.mxu0
      %v9553 = vadd.f32 %v9392, %v9552
      %v9554 = vpop.f32.mrf.mxu0
      %9555 = vmatprep.mubr.bf16.mxu0 %v8263
      %9556 = vmatmul.mubr.bf16.gmra.mxu0 %v8199
      %v9557 = vpop.f32.mrf.mxu0
      %v9558 = vadd.f32 %v9397, %v9557
      %v9559 = vpop.f32.mrf.mxu0
      %v9560 = vpop.f32.mrf.mxu0
      %v9561 = vadd.f32 %v9400, %v9560
      %v9562 = vpop.f32.mrf.mxu0
      %9563 = vmatprep.mubr.bf16.mxu0 %v8264
      %9564 = vmatmul.mubr.bf16.gmra.mxu0 %v8200
      %v9565 = vpop.f32.mrf.mxu0
      %v9566 = vadd.f32 %v9405, %v9565
      %v9567 = vpop.f32.mrf.mxu0
      %v9568 = vpop.f32.mrf.mxu0
      %v9569 = vadd.f32 %v9408, %v9568
      %v9570 = vpop.f32.mrf.mxu0
      %9571 = vdwg.mxu0
      %9572 = vmatprep.subr.bf16.mxu0 0
      %9573 = vmatpush1.bf16.msra.mxu0 %v8855
      %9574 = vmatprep.subr.bf16.mxu0 0
      %9575 = vmatpush1.bf16.msra.mxu0 %v8854
      %9576 = vmatprep.subr.bf16.mxu0 0
      %9577 = vmatpush1.bf16.msra.mxu0 %v8853
      %9578 = vmatprep.subr.bf16.mxu0 0
      %9579 = vmatpush1.bf16.msra.mxu0 %v8852
      %9580 = vmatprep.subr.bf16.mxu0 0
      %9581 = vmatpush1.bf16.msra.mxu0 %v8851
      %9582 = vmatprep.subr.bf16.mxu0 0
      %9583 = vmatpush1.bf16.msra.mxu0 %v8850
      %9584 = vmatprep.subr.bf16.mxu0 0
      %9585 = vmatpush1.bf16.msra.mxu0 %v8849
      %9586 = vmatprep.subr.bf16.mxu0 0
      %9587 = vmatpush1.bf16.msra.mxu0 %v8848
      %9588 = vmatprep.subr.bf16.mxu0 0
      %9589 = vmatpush2.bf16.msra.mxu0 0
      %9590 = vmatprep.subr.bf16.mxu0 0
      %9591 = vmatpush2.bf16.msra.mxu0 0
      %9592 = vmatprep.subr.bf16.mxu0 0
      %9593 = vmatpush2.bf16.msra.mxu0 0
      %9594 = vmatprep.subr.bf16.mxu0 0
      %9595 = vmatpush2.bf16.msra.mxu0 0
      %9596 = vmatprep.subr.bf16.mxu0 0
      %9597 = vmatpush2.bf16.msra.mxu0 0
      %9598 = vmatprep.subr.bf16.mxu0 0
      %9599 = vmatpush2.bf16.msra.mxu0 0
      %9600 = vmatprep.subr.bf16.mxu0 0
      %9601 = vmatpush2.bf16.msra.mxu0 0
      %9602 = vmatprep.subr.bf16.mxu0 0
      %9603 = vmatpush2.bf16.msra.mxu0 0
      %9604 = vmatprep.mubr.bf16.mxu0 0
      %9605 = vmatmul.mubr.bf16.gmra.mxu0 %v8313
      %v9606 = vpop.f32.mrf.mxu0
      %v9607 = vadd.f32 %v9446, %v9606
      %v9608 = vpop.f32.mrf.mxu0
      %v9609 = vpop.f32.mrf.mxu0
      %v9610 = vadd.f32 %v9449, %v9609
      %v9611 = vpop.f32.mrf.mxu0
      %9612 = vmatprep.mubr.bf16.mxu0 0
      %9613 = vmatmul.mubr.bf16.gmra.mxu0 %v8314
      %v9614 = vpop.f32.mrf.mxu0
      %v9615 = vadd.f32 %v9454, %v9614
      %v9616 = vpop.f32.mrf.mxu0
      %v9617 = vpop.f32.mrf.mxu0
      %v9618 = vadd.f32 %v9457, %v9617
      %v9619 = vpop.f32.mrf.mxu0
      %9620 = vmatprep.mubr.bf16.mxu0 0
      %9621 = vmatmul.mubr.bf16.gmra.mxu0 %v8315
      %v9622 = vpop.f32.mrf.mxu0
      %v9623 = vadd.f32 %v9462, %v9622
      %v9624 = vpop.f32.mrf.mxu0
      %v9625 = vpop.f32.mrf.mxu0
      %v9626 = vadd.f32 %v9465, %v9625
      %v9627 = vpop.f32.mrf.mxu0
      %9628 = vmatprep.mubr.bf16.mxu0 0
      %9629 = vmatmul.mubr.bf16.gmra.mxu0 %v8316
      %v9630 = vpop.f32.mrf.mxu0
      %v9631 = vadd.f32 %v9470, %v9630
      %v9632 = vpop.f32.mrf.mxu0
      %v9633 = vpop.f32.mrf.mxu0
      %v9634 = vadd.f32 %v9473, %v9633
      %v9635 = vpop.f32.mrf.mxu0
      %9636 = vmatprep.mubr.bf16.mxu0 0
      %9637 = vmatmul.mubr.bf16.gmra.mxu0 %v8317
      %v9638 = vpop.f32.mrf.mxu0
      %v9639 = vadd.f32 %v9478, %v9638
      %v9640 = vpop.f32.mrf.mxu0
      %v9641 = vpop.f32.mrf.mxu0
      %v9642 = vadd.f32 %v9481, %v9641
      %v9643 = vpop.f32.mrf.mxu0
      %9644 = vmatprep.mubr.bf16.mxu0 0
      %9645 = vmatmul.mubr.bf16.gmra.mxu0 %v8318
      %v9646 = vpop.f32.mrf.mxu0
      %v9647 = vadd.f32 %v9486, %v9646
      %v9648 = vpop.f32.mrf.mxu0
      %v9649 = vpop.f32.mrf.mxu0
      %v9650 = vadd.f32 %v9489, %v9649
      %v9651 = vpop.f32.mrf.mxu0
      %9652 = vmatprep.mubr.bf16.mxu0 0
      %9653 = vmatmul.mubr.bf16.gmra.mxu0 %v8319
      %v9654 = vpop.f32.mrf.mxu0
      %v9655 = vadd.f32 %v9494, %v9654
      %v9656 = vpop.f32.mrf.mxu0
      %v9657 = vpop.f32.mrf.mxu0
      %v9658 = vadd.f32 %v9497, %v9657
      %v9659 = vpop.f32.mrf.mxu0
      %9660 = vmatprep.mubr.bf16.mxu0 0
      %9661 = vmatmul.mubr.bf16.gmra.mxu0 %v8320
      %v9662 = vpop.f32.mrf.mxu0
      %v9663 = vadd.f32 %v9502, %v9662
      %v9664 = vpop.f32.mrf.mxu0
      %v9665 = vpop.f32.mrf.mxu0
      %v9666 = vadd.f32 %v9505, %v9665
      %v9667 = vpop.f32.mrf.mxu0
      %9668 = vmatprep.mubr.bf16.mxu0 0
      %9669 = vmatmul.mubr.bf16.gmra.mxu0 %v8321
      %v9670 = vpop.f32.mrf.mxu0
      %v9671 = vadd.f32 %v9510, %v9670
      %v9672 = vpop.f32.mrf.mxu0
      %v9673 = vpop.f32.mrf.mxu0
      %v9674 = vadd.f32 %v9513, %v9673
      %v9675 = vpop.f32.mrf.mxu0
      %9676 = vmatprep.mubr.bf16.mxu0 0
      %9677 = vmatmul.mubr.bf16.gmra.mxu0 %v8322
      %v9678 = vpop.f32.mrf.mxu0
      %v9679 = vadd.f32 %v9518, %v9678
      %v9680 = vpop.f32.mrf.mxu0
      %v9681 = vpop.f32.mrf.mxu0
      %v9682 = vadd.f32 %v9521, %v9681
      %v9683 = vpop.f32.mrf.mxu0
      %9684 = vmatprep.mubr.bf16.mxu0 0
      %9685 = vmatmul.mubr.bf16.gmra.mxu0 %v8323
      %v9686 = vpop.f32.mrf.mxu0
      %v9687 = vadd.f32 %v9526, %v9686
      %v9688 = vpop.f32.mrf.mxu0
      %v9689 = vpop.f32.mrf.mxu0
      %v9690 = vadd.f32 %v9529, %v9689
      %v9691 = vpop.f32.mrf.mxu0
      %9692 = vmatprep.mubr.bf16.mxu0 0
      %9693 = vmatmul.mubr.bf16.gmra.mxu0 %v8324
      %v9694 = vpop.f32.mrf.mxu0
      %v9695 = vadd.f32 %v9534, %v9694
      %v9696 = vpop.f32.mrf.mxu0
      %v9697 = vpop.f32.mrf.mxu0
      %v9698 = vadd.f32 %v9537, %v9697
      %v9699 = vpop.f32.mrf.mxu0
      %9700 = vmatprep.mubr.bf16.mxu0 0
      %9701 = vmatmul.mubr.bf16.gmra.mxu0 %v8325
      %v9702 = vpop.f32.mrf.mxu0
      %v9703 = vadd.f32 %v9542, %v9702
      %v9704 = vpop.f32.mrf.mxu0
      %v9705 = vpop.f32.mrf.mxu0
      %v9706 = vadd.f32 %v9545, %v9705
      %v9707 = vpop.f32.mrf.mxu0
      %9708 = vmatprep.mubr.bf16.mxu0 0
      %9709 = vmatmul.mubr.bf16.gmra.mxu0 %v8326
      %v9710 = vpop.f32.mrf.mxu0
      %v9711 = vadd.f32 %v9550, %v9710
      %v9712 = vpop.f32.mrf.mxu0
      %v9713 = vpop.f32.mrf.mxu0
      %v9714 = vadd.f32 %v9553, %v9713
      %v9715 = vpop.f32.mrf.mxu0
      %9716 = vmatprep.mubr.bf16.mxu0 0
      %9717 = vmatmul.mubr.bf16.gmra.mxu0 %v8327
      %v9718 = vpop.f32.mrf.mxu0
      %v9719 = vadd.f32 %v9558, %v9718
      %v9720 = vpop.f32.mrf.mxu0
      %v9721 = vpop.f32.mrf.mxu0
      %v9722 = vadd.f32 %v9561, %v9721
      %v9723 = vpop.f32.mrf.mxu0
      %9724 = vmatprep.mubr.bf16.mxu0 0
      %9725 = vmatmul.mubr.bf16.gmra.mxu0 %v8328
      %v9726 = vpop.f32.mrf.mxu0
      %v9727 = vadd.f32 %v9566, %v9726
      %v9728 = vpop.f32.mrf.mxu0
      %v9729 = vpop.f32.mrf.mxu0
      %v9730 = vadd.f32 %v9569, %v9729
      %v9731 = vpop.f32.mrf.mxu0
      %9732 = vdwg.mxu0
      %v9733 = vmax.f32 %v9607, 0.0
      %v9734 = vmax.f32 %v9610, 0.0
      %v9735 = vmax.f32 %v9615, 0.0
      %v9736 = vmax.f32 %v9618, 0.0
      %v9737 = vmax.f32 %v9623, 0.0
      %v9738 = vmax.f32 %v9626, 0.0
      %v9739 = vmax.f32 %v9631, 0.0
      %v9740 = vmax.f32 %v9634, 0.0
      %v9741 = vmax.f32 %v9639, 0.0
      %v9742 = vmax.f32 %v9642, 0.0
      %v9743 = vmax.f32 %v9647, 0.0
      %v9744 = vmax.f32 %v9650, 0.0
      %v9745 = vmax.f32 %v9655, 0.0
      %v9746 = vmax.f32 %v9658, 0.0
      %v9747 = vmax.f32 %v9663, 0.0
      %v9748 = vmax.f32 %v9666, 0.0
      %v9749 = vmax.f32 %v9671, 0.0
      %v9750 = vmax.f32 %v9674, 0.0
      %v9751 = vmax.f32 %v9679, 0.0
      %v9752 = vmax.f32 %v9682, 0.0
      %v9753 = vmax.f32 %v9687, 0.0
      %v9754 = vmax.f32 %v9690, 0.0
      %v9755 = vmax.f32 %v9695, 0.0
      %v9756 = vmax.f32 %v9698, 0.0
      %v9757 = vmax.f32 %v9703, 0.0
      %v9758 = vmax.f32 %v9706, 0.0
      %v9759 = vmax.f32 %v9711, 0.0
      %v9760 = vmax.f32 %v9714, 0.0
      %v9761 = vmax.f32 %v9719, 0.0
      %v9762 = vmax.f32 %v9722, 0.0
      %v9763 = vmax.f32 %v9727, 0.0
      %v9764 = vmax.f32 %v9730, 0.0
      %9765 = vxpose.xlu0.b32.start [1/16] %v9733, 128
      %9766 = vxpose.xlu0.b32.cont [2/16] %v9734, 128
      %9767 = vxpose.xlu0.b32.cont [3/16] %v9735, 128
      %9768 = vxpose.xlu0.b32.cont [4/16] %v9736, 128
      %9769 = vxpose.xlu0.b32.cont [5/16] %v9737, 128
      %9770 = vxpose.xlu0.b32.cont [6/16] %v9738, 128
      %9771 = vxpose.xlu0.b32.cont [7/16] %v9739, 128
      %9772 = vxpose.xlu0.b32.cont [8/16] %v9740, 128
      %9773 = vxpose.xlu0.b32.cont [9/16] %v9741, 128
      %9774 = vxpose.xlu0.b32.cont [10/16] %v9742, 128
      %9775 = vxpose.xlu0.b32.cont [11/16] %v9743, 128
      %9776 = vxpose.xlu0.b32.cont [12/16] %v9744, 128
      %9777 = vxpose.xlu0.b32.cont [13/16] %v9745, 128
      %9778 = vxpose.xlu0.b32.cont [14/16] %v9746, 128
      %9779 = vxpose.xlu0.b32.cont [15/16] %v9747, 128
      %9780 = vxpose.xlu0.b32.end [16/16] %v9748, 128
      %v9781 = vpop.trf.xlu0
      %v9782 = vpop.trf.xlu0
      %v9783 = vpop.trf.xlu0
      %v9784 = vpop.trf.xlu0
      %v9785 = vpop.trf.xlu0
      %v9786 = vpop.trf.xlu0
      %v9787 = vpop.trf.xlu0
      %v9788 = vpop.trf.xlu0
      %v9789 = vpop.trf.xlu0
      %v9790 = vpop.trf.xlu0
      %v9791 = vpop.trf.xlu0
      %v9792 = vpop.trf.xlu0
      %v9793 = vpop.trf.xlu0
      %v9794 = vpop.trf.xlu0
      %v9795 = vpop.trf.xlu0
      %v9796 = vpop.trf.xlu0
      %9797 = vxpose.xlu0.b32.start [1/16] %v9749, 128
      %9798 = vxpose.xlu0.b32.cont [2/16] %v9750, 128
      %9799 = vxpose.xlu0.b32.cont [3/16] %v9751, 128
      %9800 = vxpose.xlu0.b32.cont [4/16] %v9752, 128
      %9801 = vxpose.xlu0.b32.cont [5/16] %v9753, 128
      %9802 = vxpose.xlu0.b32.cont [6/16] %v9754, 128
      %9803 = vxpose.xlu0.b32.cont [7/16] %v9755, 128
      %9804 = vxpose.xlu0.b32.cont [8/16] %v9756, 128
      %9805 = vxpose.xlu0.b32.cont [9/16] %v9757, 128
      %9806 = vxpose.xlu0.b32.cont [10/16] %v9758, 128
      %9807 = vxpose.xlu0.b32.cont [11/16] %v9759, 128
      %9808 = vxpose.xlu0.b32.cont [12/16] %v9760, 128
      %9809 = vxpose.xlu0.b32.cont [13/16] %v9761, 128
      %9810 = vxpose.xlu0.b32.cont [14/16] %v9762, 128
      %9811 = vxpose.xlu0.b32.cont [15/16] %v9763, 128
      %9812 = vxpose.xlu0.b32.end [16/16] %v9764, 128
      %v9813 = vpop.trf.xlu0
      %v9814 = vpop.trf.xlu0
      %v9815 = vpop.trf.xlu0
      %v9816 = vpop.trf.xlu0
      %v9817 = vpop.trf.xlu0
      %v9818 = vpop.trf.xlu0
      %v9819 = vpop.trf.xlu0
      %v9820 = vpop.trf.xlu0
      %v9821 = vpop.trf.xlu0
      %v9822 = vpop.trf.xlu0
      %v9823 = vpop.trf.xlu0
      %v9824 = vpop.trf.xlu0
      %v9825 = vpop.trf.xlu0
      %v9826 = vpop.trf.xlu0
      %v9827 = vpop.trf.xlu0
      %v9828 = vpop.trf.xlu0
      %9829 = vst [vmem:[%s278 + $0x180] sm:$0xff] %v9781
      %9830 = vst [vmem:[%s278 + $0x188] sm:$0xff] %v9813
      %9831 = vst [vmem:[%s278 + $0x190] sm:$0xff] %v9782
      %9832 = vst [vmem:[%s278 + $0x198] sm:$0xff] %v9814
      %9833 = vst [vmem:[%s278 + $0x1a0] sm:$0xff] %v9783
      %9834 = vst [vmem:[%s278 + $0x1a8] sm:$0xff] %v9815
      %9835 = vst [vmem:[%s278 + $0x1b0] sm:$0xff] %v9784
      %9836 = vst [vmem:[%s278 + $0x1b8] sm:$0xff] %v9816
      %9837 = vst [vmem:[%s278 + $0x1c0] sm:$0xff] %v9785
      %9838 = vst [vmem:[%s278 + $0x1c8] sm:$0xff] %v9817
      %9839 = vst [vmem:[%s278 + $0x1d0] sm:$0xff] %v9786
      %9840 = vst [vmem:[%s278 + $0x1d8] sm:$0xff] %v9818
      %9841 = vst [vmem:[%s278 + $0x1e0] sm:$0xff] %v9787
      %9842 = vst [vmem:[%s278 + $0x1e8] sm:$0xff] %v9819
      %9843 = vst [vmem:[%s278 + $0x1f0] sm:$0xff] %v9788
      %9844 = vst [vmem:[%s278 + $0x1f8] sm:$0xff] %v9820
      %9845 = vst [vmem:[%s278 + $0x200] sm:$0xff] %v9789
      %9846 = vst [vmem:[%s278 + $0x208] sm:$0xff] %v9821
      %9847 = vst [vmem:[%s278 + $0x210] sm:$0xff] %v9790
      %9848 = vst [vmem:[%s278 + $0x218] sm:$0xff] %v9822
      %9849 = vst [vmem:[%s278 + $0x220] sm:$0xff] %v9791
      %9850 = vst [vmem:[%s278 + $0x228] sm:$0xff] %v9823
      %9851 = vst [vmem:[%s278 + $0x230] sm:$0xff] %v9792
      %9852 = vst [vmem:[%s278 + $0x238] sm:$0xff] %v9824
      %p9853 = scmp.lt.s32.totalorder %s18, 1
      %s9854 = scalar_select %p9853, %s18, 1
      %s9855 = smul.addr %s9854, 72
      %s9856 = smul.addr %s9855, 8
      %s9857 = scalar_lea.vmem %s7, %s9856
      // Predicated region
      $region49: #{dense_block_0_forward.1} parent=47 // pred_check
        %p9858 = pneg %p188
      $region50: #{dense_block_0_forward.1} parent=47 // pred_check_branch
        %9860 = sbr.rel (%p9858) target = $region52
      $region51: #{dense_block_0_forward.1} parent=47 // pred_region
        _
      $region52: #{dense_block_0_forward.1} parent=47 // pred_fallthru
        _
    $region48: #{dense_block_0_forward.1} parent=5 // pred_fallthru
      _
    %p9861 = scmp.le.s32.totalorder 2, %s13
    // Predicated region
    $region53: #{dense_block_0_forward.1} parent=5 // pred_check
      %p9862 = pneg %p9861
    $region54: #{dense_block_0_forward.1} parent=5 // pred_check_branch
      %9864 = sbr.rel (%p9862) target = $region56
    $region55: #{dense_block_0_forward.1} parent=5 // pred_region
      %s9865 = ssub.s32 %s13, 2
      // Predicated region
      $region57: #{dense_block_0_forward.1} parent=55 // pred_check
        %p9866 = pneg %p194
      $region58: #{dense_block_0_forward.1} parent=55 // pred_check_branch
        %9868 = sbr.rel (%p9866) target = $region60
      $region59: #{dense_block_0_forward.1} parent=55 // pred_region
        %p9869 = scmp.lt.s32.totalorder %s19, 1
        %s9870 = scalar_select %p9869, %s19, 1
        %s9871 = smul.addr %s9870, 72
        %s9872 = smul.addr %s9871, 8
        %s9873 = scalar_lea.vmem %s7, %s9872
      $region60: #{dense_block_0_forward.1} parent=55 // pred_fallthru
        _
    $region56: #{dense_block_0_forward.1} parent=5 // pred_fallthru
      _
  $region6: #{dense_block_0_forward.1} parent=0 // loop_footer
    %s17 = sadd.s32 1, %s13
  $region7: #{dense_block_0_forward.1} parent=0 // loop_footer_branch
    %12 = sbr.rel target = $region3
  $region8: #{dense_block_0_forward.1} parent=0 // loop_exit
    _

</llo_original>
